<compile_context>
chip_gen: v6e
topology: v6e:2x2x1
jax: 0.10.0
libtpu: 0.0.40
codegen_flags: <defaults>
</compile_context>

<pallas_src>
import functools

import jax
import jax.numpy as jnp
from jax.experimental import pallas as pl
from jax.experimental.pallas import tpu as pltpu

VMEM = pltpu.MemorySpace.VMEM

# ---- small synthetic sizes consistent with the module -----------------------
VOCAB = 64          # albert vocab stand-in
EMBED = 256         # LSTM embedder: embed_dim
EHID = 128          # LSTM embedder: hidden_dim (bidirectional, 2 layers)
SEQ_LEN = 8         # tokens per sentence (instead of 128)
N_SENT = 8          # sentences in the (single) document == graph nodes
TDM_DIM = 16        # term-document-matrix width
IN_DIM = EHID       # GAT in_dim  (= embedder output dim)
GHID = 32           # GAT hidden_dim (per head)
HEADS = 4           # GAT num_heads
OUT_DIM = 64        # GAT out_dim
CHID = 32           # classifier LSTM hidden
NUM_CLASSES = 2
DROP_P = 0.6
NEG_SLOPE = 0.2     # GATConv LeakyReLU default
PPR_ALPHA = 0.05
GDC_TOPK = 5


# =============================== Pallas kernel ================================

def _summarizer_kernel(x_ref, w0i_ref, w0h_ref, b0_ref, w1i_ref, w1h_ref, b1_ref,
                       elw_ref, elb_ref, m1_ref, g1w_ref, g1as_ref, g1ad_ref,
                       g1b_ref, hsel_ref, adj_ref, m2_ref, g2w_ref, g2as_ref,
                       g2ad_ref, g2b_ref, cwi_ref, cwh_ref, cb_ref, fcw_ref,
                       fcb_ref, o_ref, *, seq_len, n_sent, ehid, heads, ghid,
                       chid, neg_slope):
    T, B, H = seq_len, n_sent, ehid
    N = n_sent

    def lstm_cell(gates, c_prev, hdim):
        # PyTorch gate order i, f, g, o; (b_ih + b_hh) already folded into gates.
        i_g = jax.nn.sigmoid(gates[:, 0 * hdim:1 * hdim])
        f_g = jax.nn.sigmoid(gates[:, 1 * hdim:2 * hdim])
        g_g = jnp.tanh(gates[:, 2 * hdim:3 * hdim])
        o_g = jax.nn.sigmoid(gates[:, 3 * hdim:4 * hdim])
        c_new = f_g * c_prev + i_g * g_g
        h_new = o_g * jnp.tanh(c_new)
        return h_new, c_new

    def bilstm(x_flat, wih_ref, whh_ref, b_ref):
        """x_flat: (T*B, D) time-major rows t*B+b.  Returns (T*B, 2H).

        fw/bw fused per step; whole-sequence input projection for BOTH
        directions hoisted into one (T*B, D) @ (D, 8H) matmul."""
        gall = (jnp.dot(x_flat.astype(wih_ref.dtype), wih_ref[...],
                        preferred_element_type=jnp.float32) + b_ref[...])      # (T*B, 8H)
        whh_fw = whh_ref[0]                                                    # (H, 4H)
        whh_bw = whh_ref[1]
        h_fw = jnp.zeros((B, H), jnp.float32)
        c_fw = jnp.zeros((B, H), jnp.float32)
        h_bw = jnp.zeros((B, H), jnp.float32)
        c_bw = jnp.zeros((B, H), jnp.float32)
        fw = [None] * T
        bw = [None] * T
        for s in range(T):                       # statically unrolled (T = 8)
            tf, tb = s, T - 1 - s
            g_f = (gall[tf * B:(tf + 1) * B, 0:4 * H]
                   + jnp.dot(h_fw.astype(whh_fw.dtype), whh_fw,
                             preferred_element_type=jnp.float32))
            g_b = (gall[tb * B:(tb + 1) * B, 4 * H:8 * H]
                   + jnp.dot(h_bw.astype(whh_bw.dtype), whh_bw,
                             preferred_element_type=jnp.float32))
            h_fw, c_fw = lstm_cell(g_f, c_fw, H)
            h_bw, c_bw = lstm_cell(g_b, c_bw, H)
            fw[tf] = h_fw
            bw[tb] = h_bw
        rows = [jnp.concatenate([fw[t], bw[t]], axis=-1) for t in range(T)]
        return jnp.concatenate(rows, axis=0)                                   # (T*B, 2H)

    # ---------------- word embedder: 2-layer biLSTM -> mean -> Linear ----------------
    h1 = bilstm(x_ref[...], w0i_ref, w0h_ref, b0_ref)          # (T*B, 2H)
    h2 = bilstm(h1, w1i_ref, w1h_ref, b1_ref)                  # (T*B, 2H)
    # mean over time per sentence: sum T static (B, 2H) sublane slices (no reshape).
    acc = h2[0:B, :]
    for t in range(1, T):
        acc = acc + h2[t * B:(t + 1) * B, :]
    feats = (jnp.dot((acc * jnp.float32(1.0 / T)).astype(elw_ref.dtype), elw_ref[...],
                     preferred_element_type=jnp.float32) + elb_ref[...])       # (N, IN_DIM)

    # ---------------- GAT layer 1 (4 heads fused, concat) ----------------
    xd = feats * m1_ref[...]                                    # F.dropout (mask prescaled)
    h_all = jnp.dot(xd.astype(g1w_ref.dtype), g1w_ref[...],
                    preferred_element_type=jnp.float32)         # (N, heads*ghid)
    mask = adj_ref[...] > 0.0                                   # [target, source]
    maskf = mask.astype(jnp.float32)
    neg_inf = jnp.float32(-1e30)
    sel = hsel_ref[...]                                         # (heads*ghid, heads) 0/1
    # per-head attention logits: one full-width VPU multiply + one (N,128)@(128,4) matmul
    ed = jnp.dot(h_all * g1ad_ref[...], sel, preferred_element_type=jnp.float32)  # (N, heads)
    es = jnp.dot(h_all * g1as_ref[...], sel, preferred_element_type=jnp.float32)  # (N, heads)
    es_t = jnp.transpose(es)                                    # (heads, N)
    outs = []
    for hh in range(heads):
        e = ed[:, hh:hh + 1] + es_t[hh:hh + 1, :]               # (N, N)
        e = jnp.where(e > 0, e, neg_slope * e)                  # LeakyReLU
        e = jnp.where(mask, e, neg_inf)
        e = e - jnp.max(e, axis=1, keepdims=True)
        p = jnp.exp(e) * maskf
        alpha = p / jnp.sum(p, axis=1, keepdims=True)           # softmax over sources
        outs.append(jnp.dot(alpha, h_all[:, hh * ghid:(hh + 1) * ghid],
                            preferred_element_type=jnp.float32))
    y = jnp.concatenate(outs, axis=-1) + g1b_ref[...]           # concat heads + bias
    y = jnp.where(y > 0, y, jnp.exp(y) - 1.0)                   # F.elu
    y = y * m2_ref[...]                                         # second F.dropout

    # ---------------- GAT layer 2 (1 head, concat=False) ----------------
    h = jnp.dot(y.astype(g2w_ref.dtype), g2w_ref[...],
                preferred_element_type=jnp.float32)             # (N, OUT_DIM)
    e_d = jnp.sum(h * g2ad_ref[...], axis=-1, keepdims=True)    # (N, 1)
    e_s = jnp.sum(h * g2as_ref[...], axis=-1, keepdims=True)    # (N, 1)
    e = e_d + jnp.transpose(e_s)
    e = jnp.where(e > 0, e, neg_slope * e)
    e = jnp.where(mask, e, neg_inf)
    e = e - jnp.max(e, axis=1, keepdims=True)
    p = jnp.exp(e) * maskf
    alpha = p / jnp.sum(p, axis=1, keepdims=True)
    x2 = jnp.dot(alpha, h, preferred_element_type=jnp.float32) + g2b_ref[...]  # (N, OUT_DIM)

    # ---------------- classifier LSTM (batch=1, seq=N) + fc ----------------
    gin = (jnp.dot(x2.astype(cwi_ref.dtype), cwi_ref[...],
                   preferred_element_type=jnp.float32) + cb_ref[...])          # (N, 4*chid)
    whh = cwh_ref[...]
    hc = jnp.zeros((1, chid), jnp.float32)
    cc = jnp.zeros((1, chid), jnp.float32)
    hs = []
    for t in range(N):                          # statically unrolled (N = 8)
        g = gin[t:t + 1, :] + jnp.dot(hc.astype(whh.dtype), whh,
                                      preferred_element_type=jnp.float32)
        hc, cc = lstm_cell(g, cc, chid)
        hs.append(hc)
    h_seq = jnp.concatenate(hs, axis=0)                                        # (N, chid)
    o_ref[...] = (jnp.dot(h_seq, fcw_ref[...],
                          preferred_element_type=jnp.float32) + fcb_ref[...])  # (N, C)


def summarizer_forward_pallas(p, x_emb_flat, m1, m2, adj, head_sel):
    """Single fused pallas_call for the whole network forward (everything fits VMEM)."""
    kernel = functools.partial(
        _summarizer_kernel, seq_len=SEQ_LEN, n_sent=N_SENT, ehid=EHID,
        heads=HEADS, ghid=GHID, chid=CHID, neg_slope=NEG_SLOPE)
    args = (x_emb_flat,
            p["l0_wih"], p["l0_whh"], p["l0_b"],
            p["l1_wih"], p["l1_whh"], p["l1_b"],
            p["emb_lin_w"], p["emb_lin_b"],
            m1, p["g1_w"], p["g1_asrc"], p["g1_adst"], p["g1_b"], head_sel, adj, m2,
            p["g2_w"], p["g2_asrc"], p["g2_adst"], p["g2_b"],
            p["c_wih"], p["c_whh"], p["c_b"], p["fc_w"], p["fc_b"])
    out = pl.pallas_call(
        kernel,
        out_shape=jax.ShapeDtypeStruct((N_SENT, NUM_CLASSES), jnp.float32),
        in_specs=[pl.BlockSpec(memory_space=VMEM)] * len(args),
        out_specs=pl.BlockSpec(memory_space=VMEM),
    )(*args)
    return out.reshape(1, N_SENT, NUM_CLASSES)


# ========================= plain-JAX glue (preprocessing) ====================

def build_gdc_adj_mask(tdm, alpha=PPR_ALPHA, k=GDC_TOPK, self_loop_weight=1.0):
    """build_graph (cosine similarity) + GDC(exact PPR, topk) -> dense GAT mask.

    Only topology matters for GATConv (it ignores edge_attr), so we return a 0/1
    adjacency mask oriented [target, source] with self-loops added.
    """
    # TODO(synk): GDC's exact-PPR matrix inverse / top-k sparsification has no clean
    # Pallas equivalent; it is graph preprocessing, done here in plain JAX.
    norm = jnp.linalg.norm(tdm, axis=1, keepdims=True)
    xn = tdm / jnp.maximum(norm, 1e-12)
    A = xn @ xn.T                                            # 1 - cosine distance
    N = A.shape[0]
    I = jnp.eye(N, dtype=jnp.float32)
    A = A + self_loop_weight * I                             # GDC self-loop weight
    d = jnp.sum(A, axis=1)
    dinv = 1.0 / jnp.sqrt(d)
    T_sym = dinv[:, None] * A * dinv[None, :]                # normalization_in='sym'
    S = alpha * jnp.linalg.inv(I - (1.0 - alpha) * T_sym)    # exact PPR diffusion
    kk = min(k, N)
    topv, _ = jax.lax.top_k(S.T, kk)                         # topk per column (dim=0)
    thr = topv[:, kk - 1]
    keep = (S >= thr[None, :]).astype(jnp.float32)           # sparsified support
    adj = keep.T                                             # [target, source]
    adj = jnp.maximum(adj, I)                                # GATConv add_self_loops
    return adj


def init_params(key):
    ks = iter(jax.random.split(key, 64))

    def nrm(shape, dtype=jnp.float32, scale=0.1):
        return (scale * jax.random.normal(next(ks), shape, dtype=jnp.float32)).astype(dtype)

    p = {}
    # --- word embedder: nn.Embedding + 2-layer bidirectional LSTM + Linear ---
    p["emb"] = nrm((VOCAB, EMBED))
    for layer, d_in in ((0, EMBED), (1, 2 * EHID)):
        # fw/bw input projections concatenated along the output dim -> one matmul
        p[f"l{layer}_wih"] = nrm((d_in, 8 * EHID), jnp.bfloat16)
        p[f"l{layer}_whh"] = nrm((2, EHID, 4 * EHID), jnp.bfloat16)
        p[f"l{layer}_b"] = nrm((1, 8 * EHID))                # b_ih + b_hh summed, fw|bw
    p["emb_lin_w"] = nrm((2 * EHID, EHID), jnp.bfloat16)
    p["emb_lin_b"] = nrm((1, EHID))
    # --- GATClassifier (heads fused along the lane dim) ---
    p["g1_w"] = nrm((IN_DIM, HEADS * GHID), jnp.bfloat16)
    p["g1_asrc"] = nrm((1, HEADS * GHID))
    p["g1_adst"] = nrm((1, HEADS * GHID))
    p["g1_b"] = nrm((1, HEADS * GHID))
    p["g2_w"] = nrm((HEADS * GHID, OUT_DIM), jnp.bfloat16)
    p["g2_asrc"] = nrm((1, OUT_DIM))
    p["g2_adst"] = nrm((1, OUT_DIM))
    p["g2_b"] = nrm((1, OUT_DIM))
    p["c_wih"] = nrm((OUT_DIM, 4 * CHID), jnp.bfloat16)
    p["c_whh"] = nrm((CHID, 4 * CHID), jnp.bfloat16)
    p["c_b"] = nrm((1, 4 * CHID))
    p["fc_w"] = nrm((CHID, NUM_CLASSES))
    p["fc_b"] = nrm((1, NUM_CLASSES))
    return p


def basic_summarizer_forward(params, tokens, tdm, drop_key):
    """BasicSummarizerWithGDC.forward for one document (eval-mode GAT attention)."""
    # TODO(synk): AlbertTokenizer / nn.Embedding gather have no Pallas equivalent;
    # the gather stays in plain JAX (jnp.take).
    x = jnp.take(params["emb"], tokens, axis=0)               # (S, T, EMBED)
    x_tm = jnp.transpose(x, (1, 0, 2)).astype(jnp.float32)    # time-major (T, S, D)
    x_flat = x_tm.reshape(SEQ_LEN * N_SENT, EMBED)

    adj = build_gdc_adj_mask(tdm)                             # GDC-sparsified graph

    # TODO(synk): GATConv's internal attention dropout is tied to module.train();
    # we model eval-mode attention and implement only the explicit F.dropout calls,
    # with keep-masks drawn host-side (hardware PRNG not used) and applied in-kernel.
    k1, k2 = jax.random.split(drop_key)
    keep = 1.0 - DROP_P
    m1 = jax.random.bernoulli(k1, keep, (N_SENT, IN_DIM)).astype(jnp.float32) / keep
    m2 = (jax.random.bernoulli(k2, keep, (N_SENT, HEADS * GHID))
          .astype(jnp.float32) / keep)

    head_sel = (jnp.arange(HEADS * GHID)[:, None] // GHID
                == jnp.arange(HEADS)[None, :]).astype(jnp.float32)   # (128, 4)

    return summarizer_forward_pallas(params, x_flat, m1, m2, adj, head_sel)


if __name__ == "__main__":
    key = jax.random.PRNGKey(0)
    kp, kt, kd, kdrop = jax.random.split(key, 4)
    params = init_params(kp)
    # TODO(synk): AlbertTokenizer has no Pallas/JAX equivalent; synthetic token ids
    # stand in for get_tokenize().
    tokens = jax.random.randint(kt, (N_SENT, SEQ_LEN), 0, VOCAB)
    tdm = jnp.abs(jax.random.normal(kd, (N_SENT, TDM_DIM), dtype=jnp.float32)) + 0.1
    out = basic_summarizer_forward(params, tokens, tdm, kdrop)
    out = jax.block_until_ready(out)
    assert out.shape == (1, N_SENT, NUM_CLASSES), out.shape
    assert bool(jnp.all(jnp.isfinite(out)))
    print("KERNEL_OK")
</pallas_src>

<mosaic_0001>
module attributes {stable_mosaic.version = 11 : i64} {
  func.func @_summarizer_kernel(%arg0: memref<64x256xf32, #tpu.memory_space<vmem>>, %arg1: memref<256x1024xbf16, #tpu.memory_space<vmem>>, %arg2: memref<2x128x512xbf16, #tpu.memory_space<vmem>>, %arg3: memref<1x1024xf32, #tpu.memory_space<vmem>>, %arg4: memref<256x1024xbf16, #tpu.memory_space<vmem>>, %arg5: memref<2x128x512xbf16, #tpu.memory_space<vmem>>, %arg6: memref<1x1024xf32, #tpu.memory_space<vmem>>, %arg7: memref<256x128xbf16, #tpu.memory_space<vmem>>, %arg8: memref<1x128xf32, #tpu.memory_space<vmem>>, %arg9: memref<8x128xf32, #tpu.memory_space<vmem>>, %arg10: memref<128x128xbf16, #tpu.memory_space<vmem>>, %arg11: memref<1x128xf32, #tpu.memory_space<vmem>>, %arg12: memref<1x128xf32, #tpu.memory_space<vmem>>, %arg13: memref<1x128xf32, #tpu.memory_space<vmem>>, %arg14: memref<128x4xf32, #tpu.memory_space<vmem>>, %arg15: memref<8x8xf32, #tpu.memory_space<vmem>>, %arg16: memref<8x128xf32, #tpu.memory_space<vmem>>, %arg17: memref<128x64xbf16, #tpu.memory_space<vmem>>, %arg18: memref<1x64xf32, #tpu.memory_space<vmem>>, %arg19: memref<1x64xf32, #tpu.memory_space<vmem>>, %arg20: memref<1x64xf32, #tpu.memory_space<vmem>>, %arg21: memref<64x128xbf16, #tpu.memory_space<vmem>>, %arg22: memref<32x128xbf16, #tpu.memory_space<vmem>>, %arg23: memref<1x128xf32, #tpu.memory_space<vmem>>, %arg24: memref<32x2xf32, #tpu.memory_space<vmem>>, %arg25: memref<1x2xf32, #tpu.memory_space<vmem>>, %arg26: memref<8x2xf32, #tpu.memory_space<vmem>>) attributes {dimension_semantics = [], scalar_prefetch = 0 : i64, scratch_operands = 0 : i64, tpu.core_type = #tpu.core_type<tc>} {
    %c0 = arith.constant 0 : index
    %c0_0 = arith.constant 0 : index
    %0 = vector.load %arg0[%c0, %c0_0] : memref<64x256xf32, #tpu.memory_space<vmem>>, vector<64x256xf32>
    %1 = arith.truncf %0 : vector<64x256xf32> to vector<64x256xbf16>
    %c0_1 = arith.constant 0 : index
    %c0_2 = arith.constant 0 : index
    %2 = vector.load %arg1[%c0_1, %c0_2] : memref<256x1024xbf16, #tpu.memory_space<vmem>>, vector<256x1024xbf16>
    %cst = arith.constant dense<0.000000e+00> : vector<64x1024xf32>
    %3 = tpu.matmul %1, %2, %cst {dimension_numbers = #tpu.dot_dimension_numbers<[1], [0], [0], [1], [0, 0, 1, 1], [], []>} : vector<64x256xbf16>, vector<256x1024xbf16>, vector<64x1024xf32> -> vector<64x1024xf32>
    %c0_3 = arith.constant 0 : index
    %c0_4 = arith.constant 0 : index
    %4 = vector.load %arg3[%c0_3, %c0_4] : memref<1x1024xf32, #tpu.memory_space<vmem>>, vector<1x1024xf32>
    %5 = vector.broadcast %4 : vector<1x1024xf32> to vector<64x1024xf32>
    %6 = arith.addf %3, %5 : vector<64x1024xf32>
    %c0_5 = arith.constant 0 : index
    %c0_6 = arith.constant 0 : index
    %c0_7 = arith.constant 0 : index
    %7 = vector.load %arg2[%c0_5, %c0_6, %c0_7] : memref<2x128x512xbf16, #tpu.memory_space<vmem>>, vector<1x128x512xbf16>
    %8 = vector.shape_cast %7 : vector<1x128x512xbf16> to vector<128x512xbf16>
    %c1 = arith.constant 1 : index
    %c0_8 = arith.constant 0 : index
    %c0_9 = arith.constant 0 : index
    %9 = vector.load %arg2[%c1, %c0_8, %c0_9] : memref<2x128x512xbf16, #tpu.memory_space<vmem>>, vector<1x128x512xbf16>
    %10 = vector.shape_cast %9 : vector<1x128x512xbf16> to vector<128x512xbf16>
    %cst_10 = arith.constant 0.000000e+00 : f32
    %11 = vector.broadcast %cst_10 : f32 to vector<8x128xf32>
    %cst_11 = arith.constant 0.000000e+00 : f32
    %12 = vector.broadcast %cst_11 : f32 to vector<8x128xf32>
    %cst_12 = arith.constant 0.000000e+00 : f32
    %13 = vector.broadcast %cst_12 : f32 to vector<8x128xf32>
    %cst_13 = arith.constant 0.000000e+00 : f32
    %14 = vector.broadcast %cst_13 : f32 to vector<8x128xf32>
    %15 = vector.extract_strided_slice %6 {offsets = [0, 0], sizes = [8, 512], strides = [1, 1]} : vector<64x1024xf32> to vector<8x512xf32>
    %16 = arith.truncf %11 : vector<8x128xf32> to vector<8x128xbf16>
    %cst_14 = arith.constant dense<0.000000e+00> : vector<8x512xf32>
    %17 = tpu.matmul %16, %8, %cst_14 {dimension_numbers = #tpu.dot_dimension_numbers<[1], [0], [0], [1], [0, 0, 1, 1], [], []>} : vector<8x128xbf16>, vector<128x512xbf16>, vector<8x512xf32> -> vector<8x512xf32>
    %18 = arith.addf %15, %17 : vector<8x512xf32>
    %19 = vector.extract_strided_slice %6 {offsets = [56, 512], sizes = [8, 512], strides = [1, 1]} : vector<64x1024xf32> to vector<8x512xf32>
    %20 = arith.truncf %13 : vector<8x128xf32> to vector<8x128xbf16>
    %cst_15 = arith.constant dense<0.000000e+00> : vector<8x512xf32>
    %21 = tpu.matmul %20, %10, %cst_15 {dimension_numbers = #tpu.dot_dimension_numbers<[1], [0], [0], [1], [0, 0, 1, 1], [], []>} : vector<8x128xbf16>, vector<128x512xbf16>, vector<8x512xf32> -> vector<8x512xf32>
    %22 = arith.addf %19, %21 : vector<8x512xf32>
    %23 = vector.extract_strided_slice %18 {offsets = [0, 0], sizes = [8, 128], strides = [1, 1]} : vector<8x512xf32> to vector<8x128xf32>
    %24 = arith.negf %23 : vector<8x128xf32>
    %25 = math.exp %24 : vector<8x128xf32>
    %cst_16 = arith.constant 1.000000e+00 : f32
    %26 = vector.broadcast %cst_16 : f32 to vector<8x128xf32>
    %27 = arith.addf %26, %25 : vector<8x128xf32>
    %28 = arith.divf %26, %27 : vector<8x128xf32>
    %29 = vector.extract_strided_slice %18 {offsets = [0, 128], sizes = [8, 128], strides = [1, 1]} : vector<8x512xf32> to vector<8x128xf32>
    %30 = arith.negf %29 : vector<8x128xf32>
    %31 = math.exp %30 : vector<8x128xf32>
    %cst_17 = arith.constant 1.000000e+00 : f32
    %32 = vector.broadcast %cst_17 : f32 to vector<8x128xf32>
    %33 = arith.addf %32, %31 : vector<8x128xf32>
    %34 = arith.divf %32, %33 : vector<8x128xf32>
    %35 = vector.extract_strided_slice %18 {offsets = [0, 256], sizes = [8, 128], strides = [1, 1]} : vector<8x512xf32> to vector<8x128xf32>
    %36 = math.tanh %35 : vector<8x128xf32>
    %37 = vector.extract_strided_slice %18 {offsets = [0, 384], sizes = [8, 128], strides = [1, 1]} : vector<8x512xf32> to vector<8x128xf32>
    %38 = arith.negf %37 : vector<8x128xf32>
    %39 = math.exp %38 : vector<8x128xf32>
    %cst_18 = arith.constant 1.000000e+00 : f32
    %40 = vector.broadcast %cst_18 : f32 to vector<8x128xf32>
    %41 = arith.addf %40, %39 : vector<8x128xf32>
    %42 = arith.divf %40, %41 : vector<8x128xf32>
    %43 = arith.mulf %34, %12 : vector<8x128xf32>
    %44 = arith.mulf %28, %36 : vector<8x128xf32>
    %45 = arith.addf %43, %44 : vector<8x128xf32>
    %46 = math.tanh %45 : vector<8x128xf32>
    %47 = arith.mulf %42, %46 : vector<8x128xf32>
    %48 = vector.extract_strided_slice %22 {offsets = [0, 0], sizes = [8, 128], strides = [1, 1]} : vector<8x512xf32> to vector<8x128xf32>
    %49 = arith.negf %48 : vector<8x128xf32>
    %50 = math.exp %49 : vector<8x128xf32>
    %cst_19 = arith.constant 1.000000e+00 : f32
    %51 = vector.broadcast %cst_19 : f32 to vector<8x128xf32>
    %52 = arith.addf %51, %50 : vector<8x128xf32>
    %53 = arith.divf %51, %52 : vector<8x128xf32>
    %54 = vector.extract_strided_slice %22 {offsets = [0, 128], sizes = [8, 128], strides = [1, 1]} : vector<8x512xf32> to vector<8x128xf32>
    %55 = arith.negf %54 : vector<8x128xf32>
    %56 = math.exp %55 : vector<8x128xf32>
    %cst_20 = arith.constant 1.000000e+00 : f32
    %57 = vector.broadcast %cst_20 : f32 to vector<8x128xf32>
    %58 = arith.addf %57, %56 : vector<8x128xf32>
    %59 = arith.divf %57, %58 : vector<8x128xf32>
    %60 = vector.extract_strided_slice %22 {offsets = [0, 256], sizes = [8, 128], strides = [1, 1]} : vector<8x512xf32> to vector<8x128xf32>
    %61 = math.tanh %60 : vector<8x128xf32>
    %62 = vector.extract_strided_slice %22 {offsets = [0, 384], sizes = [8, 128], strides = [1, 1]} : vector<8x512xf32> to vector<8x128xf32>
    %63 = arith.negf %62 : vector<8x128xf32>
    %64 = math.exp %63 : vector<8x128xf32>
    %cst_21 = arith.constant 1.000000e+00 : f32
    %65 = vector.broadcast %cst_21 : f32 to vector<8x128xf32>
    %66 = arith.addf %65, %64 : vector<8x128xf32>
    %67 = arith.divf %65, %66 : vector<8x128xf32>
    %68 = arith.mulf %59, %14 : vector<8x128xf32>
    %69 = arith.mulf %53, %61 : vector<8x128xf32>
    %70 = arith.addf %68, %69 : vector<8x128xf32>
    %71 = math.tanh %70 : vector<8x128xf32>
    %72 = arith.mulf %67, %71 : vector<8x128xf32>
    %73 = vector.extract_strided_slice %6 {offsets = [8, 0], sizes = [8, 512], strides = [1, 1]} : vector<64x1024xf32> to vector<8x512xf32>
    %74 = arith.truncf %47 : vector<8x128xf32> to vector<8x128xbf16>
    %cst_22 = arith.constant dense<0.000000e+00> : vector<8x512xf32>
    %75 = tpu.matmul %74, %8, %cst_22 {dimension_numbers = #tpu.dot_dimension_numbers<[1], [0], [0], [1], [0, 0, 1, 1], [], []>} : vector<8x128xbf16>, vector<128x512xbf16>, vector<8x512xf32> -> vector<8x512xf32>
    %76 = arith.addf %73, %75 : vector<8x512xf32>
    %77 = vector.extract_strided_slice %6 {offsets = [48, 512], sizes = [8, 512], strides = [1, 1]} : vector<64x1024xf32> to vector<8x512xf32>
    %78 = arith.truncf %72 : vector<8x128xf32> to vector<8x128xbf16>
    %cst_23 = arith.constant dense<0.000000e+00> : vector<8x512xf32>
    %79 = tpu.matmul %78, %10, %cst_23 {dimension_numbers = #tpu.dot_dimension_numbers<[1], [0], [0], [1], [0, 0, 1, 1], [], []>} : vector<8x128xbf16>, vector<128x512xbf16>, vector<8x512xf32> -> vector<8x512xf32>
    %80 = arith.addf %77, %79 : vector<8x512xf32>
    %81 = vector.extract_strided_slice %76 {offsets = [0, 0], sizes = [8, 128], strides = [1, 1]} : vector<8x512xf32> to vector<8x128xf32>
    %82 = arith.negf %81 : vector<8x128xf32>
    %83 = math.exp %82 : vector<8x128xf32>
    %cst_24 = arith.constant 1.000000e+00 : f32
    %84 = vector.broadcast %cst_24 : f32 to vector<8x128xf32>
    %85 = arith.addf %84, %83 : vector<8x128xf32>
    %86 = arith.divf %84, %85 : vector<8x128xf32>
    %87 = vector.extract_strided_slice %76 {offsets = [0, 128], sizes = [8, 128], strides = [1, 1]} : vector<8x512xf32> to vector<8x128xf32>
    %88 = arith.negf %87 : vector<8x128xf32>
    %89 = math.exp %88 : vector<8x128xf32>
    %cst_25 = arith.constant 1.000000e+00 : f32
    %90 = vector.broadcast %cst_25 : f32 to vector<8x128xf32>
    %91 = arith.addf %90, %89 : vector<8x128xf32>
    %92 = arith.divf %90, %91 : vector<8x128xf32>
    %93 = vector.extract_strided_slice %76 {offsets = [0, 256], sizes = [8, 128], strides = [1, 1]} : vector<8x512xf32> to vector<8x128xf32>
    %94 = math.tanh %93 : vector<8x128xf32>
    %95 = vector.extract_strided_slice %76 {offsets = [0, 384], sizes = [8, 128], strides = [1, 1]} : vector<8x512xf32> to vector<8x128xf32>
    %96 = arith.negf %95 : vector<8x128xf32>
    %97 = math.exp %96 : vector<8x128xf32>
    %cst_26 = arith.constant 1.000000e+00 : f32
    %98 = vector.broadcast %cst_26 : f32 to vector<8x128xf32>
    %99 = arith.addf %98, %97 : vector<8x128xf32>
    %100 = arith.divf %98, %99 : vector<8x128xf32>
    %101 = arith.mulf %92, %45 : vector<8x128xf32>
    %102 = arith.mulf %86, %94 : vector<8x128xf32>
    %103 = arith.addf %101, %102 : vector<8x128xf32>
    %104 = math.tanh %103 : vector<8x128xf32>
    %105 = arith.mulf %100, %104 : vector<8x128xf32>
    %106 = vector.extract_strided_slice %80 {offsets = [0, 0], sizes = [8, 128], strides = [1, 1]} : vector<8x512xf32> to vector<8x128xf32>
    %107 = arith.negf %106 : vector<8x128xf32>
    %108 = math.exp %107 : vector<8x128xf32>
    %cst_27 = arith.constant 1.000000e+00 : f32
    %109 = vector.broadcast %cst_27 : f32 to vector<8x128xf32>
    %110 = arith.addf %109, %108 : vector<8x128xf32>
    %111 = arith.divf %109, %110 : vector<8x128xf32>
    %112 = vector.extract_strided_slice %80 {offsets = [0, 128], sizes = [8, 128], strides = [1, 1]} : vector<8x512xf32> to vector<8x128xf32>
    %113 = arith.negf %112 : vector<8x128xf32>
    %114 = math.exp %113 : vector<8x128xf32>
    %cst_28 = arith.constant 1.000000e+00 : f32
    %115 = vector.broadcast %cst_28 : f32 to vector<8x128xf32>
    %116 = arith.addf %115, %114 : vector<8x128xf32>
    %117 = arith.divf %115, %116 : vector<8x128xf32>
    %118 = vector.extract_strided_slice %80 {offsets = [0, 256], sizes = [8, 128], strides = [1, 1]} : vector<8x512xf32> to vector<8x128xf32>
    %119 = math.tanh %118 : vector<8x128xf32>
    %120 = vector.extract_strided_slice %80 {offsets = [0, 384], sizes = [8, 128], strides = [1, 1]} : vector<8x512xf32> to vector<8x128xf32>
    %121 = arith.negf %120 : vector<8x128xf32>
    %122 = math.exp %121 : vector<8x128xf32>
    %cst_29 = arith.constant 1.000000e+00 : f32
    %123 = vector.broadcast %cst_29 : f32 to vector<8x128xf32>
    %124 = arith.addf %123, %122 : vector<8x128xf32>
    %125 = arith.divf %123, %124 : vector<8x128xf32>
    %126 = arith.mulf %117, %70 : vector<8x128xf32>
    %127 = arith.mulf %111, %119 : vector<8x128xf32>
    %128 = arith.addf %126, %127 : vector<8x128xf32>
    %129 = math.tanh %128 : vector<8x128xf32>
    %130 = arith.mulf %125, %129 : vector<8x128xf32>
    %131 = vector.extract_strided_slice %6 {offsets = [16, 0], sizes = [8, 512], strides = [1, 1]} : vector<64x1024xf32> to vector<8x512xf32>
    %132 = arith.truncf %105 : vector<8x128xf32> to vector<8x128xbf16>
    %cst_30 = arith.constant dense<0.000000e+00> : vector<8x512xf32>
    %133 = tpu.matmul %132, %8, %cst_30 {dimension_numbers = #tpu.dot_dimension_numbers<[1], [0], [0], [1], [0, 0, 1, 1], [], []>} : vector<8x128xbf16>, vector<128x512xbf16>, vector<8x512xf32> -> vector<8x512xf32>
    %134 = arith.addf %131, %133 : vector<8x512xf32>
    %135 = vector.extract_strided_slice %6 {offsets = [40, 512], sizes = [8, 512], strides = [1, 1]} : vector<64x1024xf32> to vector<8x512xf32>
    %136 = arith.truncf %130 : vector<8x128xf32> to vector<8x128xbf16>
    %cst_31 = arith.constant dense<0.000000e+00> : vector<8x512xf32>
    %137 = tpu.matmul %136, %10, %cst_31 {dimension_numbers = #tpu.dot_dimension_numbers<[1], [0], [0], [1], [0, 0, 1, 1], [], []>} : vector<8x128xbf16>, vector<128x512xbf16>, vector<8x512xf32> -> vector<8x512xf32>
    %138 = arith.addf %135, %137 : vector<8x512xf32>
    %139 = vector.extract_strided_slice %134 {offsets = [0, 0], sizes = [8, 128], strides = [1, 1]} : vector<8x512xf32> to vector<8x128xf32>
    %140 = arith.negf %139 : vector<8x128xf32>
    %141 = math.exp %140 : vector<8x128xf32>
    %cst_32 = arith.constant 1.000000e+00 : f32
    %142 = vector.broadcast %cst_32 : f32 to vector<8x128xf32>
    %143 = arith.addf %142, %141 : vector<8x128xf32>
    %144 = arith.divf %142, %143 : vector<8x128xf32>
    %145 = vector.extract_strided_slice %134 {offsets = [0, 128], sizes = [8, 128], strides = [1, 1]} : vector<8x512xf32> to vector<8x128xf32>
    %146 = arith.negf %145 : vector<8x128xf32>
    %147 = math.exp %146 : vector<8x128xf32>
    %cst_33 = arith.constant 1.000000e+00 : f32
    %148 = vector.broadcast %cst_33 : f32 to vector<8x128xf32>
    %149 = arith.addf %148, %147 : vector<8x128xf32>
    %150 = arith.divf %148, %149 : vector<8x128xf32>
    %151 = vector.extract_strided_slice %134 {offsets = [0, 256], sizes = [8, 128], strides = [1, 1]} : vector<8x512xf32> to vector<8x128xf32>
    %152 = math.tanh %151 : vector<8x128xf32>
    %153 = vector.extract_strided_slice %134 {offsets = [0, 384], sizes = [8, 128], strides = [1, 1]} : vector<8x512xf32> to vector<8x128xf32>
    %154 = arith.negf %153 : vector<8x128xf32>
    %155 = math.exp %154 : vector<8x128xf32>
    %cst_34 = arith.constant 1.000000e+00 : f32
    %156 = vector.broadcast %cst_34 : f32 to vector<8x128xf32>
    %157 = arith.addf %156, %155 : vector<8x128xf32>
    %158 = arith.divf %156, %157 : vector<8x128xf32>
    %159 = arith.mulf %150, %103 : vector<8x128xf32>
    %160 = arith.mulf %144, %152 : vector<8x128xf32>
    %161 = arith.addf %159, %160 : vector<8x128xf32>
    %162 = math.tanh %161 : vector<8x128xf32>
    %163 = arith.mulf %158, %162 : vector<8x128xf32>
    %164 = vector.extract_strided_slice %138 {offsets = [0, 0], sizes = [8, 128], strides = [1, 1]} : vector<8x512xf32> to vector<8x128xf32>
    %165 = arith.negf %164 : vector<8x128xf32>
    %166 = math.exp %165 : vector<8x128xf32>
    %cst_35 = arith.constant 1.000000e+00 : f32
    %167 = vector.broadcast %cst_35 : f32 to vector<8x128xf32>
    %168 = arith.addf %167, %166 : vector<8x128xf32>
    %169 = arith.divf %167, %168 : vector<8x128xf32>
    %170 = vector.extract_strided_slice %138 {offsets = [0, 128], sizes = [8, 128], strides = [1, 1]} : vector<8x512xf32> to vector<8x128xf32>
    %171 = arith.negf %170 : vector<8x128xf32>
    %172 = math.exp %171 : vector<8x128xf32>
    %cst_36 = arith.constant 1.000000e+00 : f32
    %173 = vector.broadcast %cst_36 : f32 to vector<8x128xf32>
    %174 = arith.addf %173, %172 : vector<8x128xf32>
    %175 = arith.divf %173, %174 : vector<8x128xf32>
    %176 = vector.extract_strided_slice %138 {offsets = [0, 256], sizes = [8, 128], strides = [1, 1]} : vector<8x512xf32> to vector<8x128xf32>
    %177 = math.tanh %176 : vector<8x128xf32>
    %178 = vector.extract_strided_slice %138 {offsets = [0, 384], sizes = [8, 128], strides = [1, 1]} : vector<8x512xf32> to vector<8x128xf32>
    %179 = arith.negf %178 : vector<8x128xf32>
    %180 = math.exp %179 : vector<8x128xf32>
    %cst_37 = arith.constant 1.000000e+00 : f32
    %181 = vector.broadcast %cst_37 : f32 to vector<8x128xf32>
    %182 = arith.addf %181, %180 : vector<8x128xf32>
    %183 = arith.divf %181, %182 : vector<8x128xf32>
    %184 = arith.mulf %175, %128 : vector<8x128xf32>
    %185 = arith.mulf %169, %177 : vector<8x128xf32>
    %186 = arith.addf %184, %185 : vector<8x128xf32>
    %187 = math.tanh %186 : vector<8x128xf32>
    %188 = arith.mulf %183, %187 : vector<8x128xf32>
    %189 = vector.extract_strided_slice %6 {offsets = [24, 0], sizes = [8, 512], strides = [1, 1]} : vector<64x1024xf32> to vector<8x512xf32>
    %190 = arith.truncf %163 : vector<8x128xf32> to vector<8x128xbf16>
    %cst_38 = arith.constant dense<0.000000e+00> : vector<8x512xf32>
    %191 = tpu.matmul %190, %8, %cst_38 {dimension_numbers = #tpu.dot_dimension_numbers<[1], [0], [0], [1], [0, 0, 1, 1], [], []>} : vector<8x128xbf16>, vector<128x512xbf16>, vector<8x512xf32> -> vector<8x512xf32>
    %192 = arith.addf %189, %191 : vector<8x512xf32>
    %193 = vector.extract_strided_slice %6 {offsets = [32, 512], sizes = [8, 512], strides = [1, 1]} : vector<64x1024xf32> to vector<8x512xf32>
    %194 = arith.truncf %188 : vector<8x128xf32> to vector<8x128xbf16>
    %cst_39 = arith.constant dense<0.000000e+00> : vector<8x512xf32>
    %195 = tpu.matmul %194, %10, %cst_39 {dimension_numbers = #tpu.dot_dimension_numbers<[1], [0], [0], [1], [0, 0, 1, 1], [], []>} : vector<8x128xbf16>, vector<128x512xbf16>, vector<8x512xf32> -> vector<8x512xf32>
    %196 = arith.addf %193, %195 : vector<8x512xf32>
    %197 = vector.extract_strided_slice %192 {offsets = [0, 0], sizes = [8, 128], strides = [1, 1]} : vector<8x512xf32> to vector<8x128xf32>
    %198 = arith.negf %197 : vector<8x128xf32>
    %199 = math.exp %198 : vector<8x128xf32>
    %cst_40 = arith.constant 1.000000e+00 : f32
    %200 = vector.broadcast %cst_40 : f32 to vector<8x128xf32>
    %201 = arith.addf %200, %199 : vector<8x128xf32>
    %202 = arith.divf %200, %201 : vector<8x128xf32>
    %203 = vector.extract_strided_slice %192 {offsets = [0, 128], sizes = [8, 128], strides = [1, 1]} : vector<8x512xf32> to vector<8x128xf32>
    %204 = arith.negf %203 : vector<8x128xf32>
    %205 = math.exp %204 : vector<8x128xf32>
    %cst_41 = arith.constant 1.000000e+00 : f32
    %206 = vector.broadcast %cst_41 : f32 to vector<8x128xf32>
    %207 = arith.addf %206, %205 : vector<8x128xf32>
    %208 = arith.divf %206, %207 : vector<8x128xf32>
    %209 = vector.extract_strided_slice %192 {offsets = [0, 256], sizes = [8, 128], strides = [1, 1]} : vector<8x512xf32> to vector<8x128xf32>
    %210 = math.tanh %209 : vector<8x128xf32>
    %211 = vector.extract_strided_slice %192 {offsets = [0, 384], sizes = [8, 128], strides = [1, 1]} : vector<8x512xf32> to vector<8x128xf32>
    %212 = arith.negf %211 : vector<8x128xf32>
    %213 = math.exp %212 : vector<8x128xf32>
    %cst_42 = arith.constant 1.000000e+00 : f32
    %214 = vector.broadcast %cst_42 : f32 to vector<8x128xf32>
    %215 = arith.addf %214, %213 : vector<8x128xf32>
    %216 = arith.divf %214, %215 : vector<8x128xf32>
    %217 = arith.mulf %208, %161 : vector<8x128xf32>
    %218 = arith.mulf %202, %210 : vector<8x128xf32>
    %219 = arith.addf %217, %218 : vector<8x128xf32>
    %220 = math.tanh %219 : vector<8x128xf32>
    %221 = arith.mulf %216, %220 : vector<8x128xf32>
    %222 = vector.extract_strided_slice %196 {offsets = [0, 0], sizes = [8, 128], strides = [1, 1]} : vector<8x512xf32> to vector<8x128xf32>
    %223 = arith.negf %222 : vector<8x128xf32>
    %224 = math.exp %223 : vector<8x128xf32>
    %cst_43 = arith.constant 1.000000e+00 : f32
    %225 = vector.broadcast %cst_43 : f32 to vector<8x128xf32>
    %226 = arith.addf %225, %224 : vector<8x128xf32>
    %227 = arith.divf %225, %226 : vector<8x128xf32>
    %228 = vector.extract_strided_slice %196 {offsets = [0, 128], sizes = [8, 128], strides = [1, 1]} : vector<8x512xf32> to vector<8x128xf32>
    %229 = arith.negf %228 : vector<8x128xf32>
    %230 = math.exp %229 : vector<8x128xf32>
    %cst_44 = arith.constant 1.000000e+00 : f32
    %231 = vector.broadcast %cst_44 : f32 to vector<8x128xf32>
    %232 = arith.addf %231, %230 : vector<8x128xf32>
    %233 = arith.divf %231, %232 : vector<8x128xf32>
    %234 = vector.extract_strided_slice %196 {offsets = [0, 256], sizes = [8, 128], strides = [1, 1]} : vector<8x512xf32> to vector<8x128xf32>
    %235 = math.tanh %234 : vector<8x128xf32>
    %236 = vector.extract_strided_slice %196 {offsets = [0, 384], sizes = [8, 128], strides = [1, 1]} : vector<8x512xf32> to vector<8x128xf32>
    %237 = arith.negf %236 : vector<8x128xf32>
    %238 = math.exp %237 : vector<8x128xf32>
    %cst_45 = arith.constant 1.000000e+00 : f32
    %239 = vector.broadcast %cst_45 : f32 to vector<8x128xf32>
    %240 = arith.addf %239, %238 : vector<8x128xf32>
    %241 = arith.divf %239, %240 : vector<8x128xf32>
    %242 = arith.mulf %233, %186 : vector<8x128xf32>
    %243 = arith.mulf %227, %235 : vector<8x128xf32>
    %244 = arith.addf %242, %243 : vector<8x128xf32>
    %245 = math.tanh %244 : vector<8x128xf32>
    %246 = arith.mulf %241, %245 : vector<8x128xf32>
    %247 = vector.extract_strided_slice %6 {offsets = [32, 0], sizes = [8, 512], strides = [1, 1]} : vector<64x1024xf32> to vector<8x512xf32>
    %248 = arith.truncf %221 : vector<8x128xf32> to vector<8x128xbf16>
    %cst_46 = arith.constant dense<0.000000e+00> : vector<8x512xf32>
    %249 = tpu.matmul %248, %8, %cst_46 {dimension_numbers = #tpu.dot_dimension_numbers<[1], [0], [0], [1], [0, 0, 1, 1], [], []>} : vector<8x128xbf16>, vector<128x512xbf16>, vector<8x512xf32> -> vector<8x512xf32>
    %250 = arith.addf %247, %249 : vector<8x512xf32>
    %251 = vector.extract_strided_slice %6 {offsets = [24, 512], sizes = [8, 512], strides = [1, 1]} : vector<64x1024xf32> to vector<8x512xf32>
    %252 = arith.truncf %246 : vector<8x128xf32> to vector<8x128xbf16>
    %cst_47 = arith.constant dense<0.000000e+00> : vector<8x512xf32>
    %253 = tpu.matmul %252, %10, %cst_47 {dimension_numbers = #tpu.dot_dimension_numbers<[1], [0], [0], [1], [0, 0, 1, 1], [], []>} : vector<8x128xbf16>, vector<128x512xbf16>, vector<8x512xf32> -> vector<8x512xf32>
    %254 = arith.addf %251, %253 : vector<8x512xf32>
    %255 = vector.extract_strided_slice %250 {offsets = [0, 0], sizes = [8, 128], strides = [1, 1]} : vector<8x512xf32> to vector<8x128xf32>
    %256 = arith.negf %255 : vector<8x128xf32>
    %257 = math.exp %256 : vector<8x128xf32>
    %cst_48 = arith.constant 1.000000e+00 : f32
    %258 = vector.broadcast %cst_48 : f32 to vector<8x128xf32>
    %259 = arith.addf %258, %257 : vector<8x128xf32>
    %260 = arith.divf %258, %259 : vector<8x128xf32>
    %261 = vector.extract_strided_slice %250 {offsets = [0, 128], sizes = [8, 128], strides = [1, 1]} : vector<8x512xf32> to vector<8x128xf32>
    %262 = arith.negf %261 : vector<8x128xf32>
    %263 = math.exp %262 : vector<8x128xf32>
    %cst_49 = arith.constant 1.000000e+00 : f32
    %264 = vector.broadcast %cst_49 : f32 to vector<8x128xf32>
    %265 = arith.addf %264, %263 : vector<8x128xf32>
    %266 = arith.divf %264, %265 : vector<8x128xf32>
    %267 = vector.extract_strided_slice %250 {offsets = [0, 256], sizes = [8, 128], strides = [1, 1]} : vector<8x512xf32> to vector<8x128xf32>
    %268 = math.tanh %267 : vector<8x128xf32>
    %269 = vector.extract_strided_slice %250 {offsets = [0, 384], sizes = [8, 128], strides = [1, 1]} : vector<8x512xf32> to vector<8x128xf32>
    %270 = arith.negf %269 : vector<8x128xf32>
    %271 = math.exp %270 : vector<8x128xf32>
    %cst_50 = arith.constant 1.000000e+00 : f32
    %272 = vector.broadcast %cst_50 : f32 to vector<8x128xf32>
    %273 = arith.addf %272, %271 : vector<8x128xf32>
    %274 = arith.divf %272, %273 : vector<8x128xf32>
    %275 = arith.mulf %266, %219 : vector<8x128xf32>
    %276 = arith.mulf %260, %268 : vector<8x128xf32>
    %277 = arith.addf %275, %276 : vector<8x128xf32>
    %278 = math.tanh %277 : vector<8x128xf32>
    %279 = arith.mulf %274, %278 : vector<8x128xf32>
    %280 = vector.extract_strided_slice %254 {offsets = [0, 0], sizes = [8, 128], strides = [1, 1]} : vector<8x512xf32> to vector<8x128xf32>
    %281 = arith.negf %280 : vector<8x128xf32>
    %282 = math.exp %281 : vector<8x128xf32>
    %cst_51 = arith.constant 1.000000e+00 : f32
    %283 = vector.broadcast %cst_51 : f32 to vector<8x128xf32>
    %284 = arith.addf %283, %282 : vector<8x128xf32>
    %285 = arith.divf %283, %284 : vector<8x128xf32>
    %286 = vector.extract_strided_slice %254 {offsets = [0, 128], sizes = [8, 128], strides = [1, 1]} : vector<8x512xf32> to vector<8x128xf32>
    %287 = arith.negf %286 : vector<8x128xf32>
    %288 = math.exp %287 : vector<8x128xf32>
    %cst_52 = arith.constant 1.000000e+00 : f32
    %289 = vector.broadcast %cst_52 : f32 to vector<8x128xf32>
    %290 = arith.addf %289, %288 : vector<8x128xf32>
    %291 = arith.divf %289, %290 : vector<8x128xf32>
    %292 = vector.extract_strided_slice %254 {offsets = [0, 256], sizes = [8, 128], strides = [1, 1]} : vector<8x512xf32> to vector<8x128xf32>
    %293 = math.tanh %292 : vector<8x128xf32>
    %294 = vector.extract_strided_slice %254 {offsets = [0, 384], sizes = [8, 128], strides = [1, 1]} : vector<8x512xf32> to vector<8x128xf32>
    %295 = arith.negf %294 : vector<8x128xf32>
    %296 = math.exp %295 : vector<8x128xf32>
    %cst_53 = arith.constant 1.000000e+00 : f32
    %297 = vector.broadcast %cst_53 : f32 to vector<8x128xf32>
    %298 = arith.addf %297, %296 : vector<8x128xf32>
    %299 = arith.divf %297, %298 : vector<8x128xf32>
    %300 = arith.mulf %291, %244 : vector<8x128xf32>
    %301 = arith.mulf %285, %293 : vector<8x128xf32>
    %302 = arith.addf %300, %301 : vector<8x128xf32>
    %303 = math.tanh %302 : vector<8x128xf32>
    %304 = arith.mulf %299, %303 : vector<8x128xf32>
    %305 = vector.extract_strided_slice %6 {offsets = [40, 0], sizes = [8, 512], strides = [1, 1]} : vector<64x1024xf32> to vector<8x512xf32>
    %306 = arith.truncf %279 : vector<8x128xf32> to vector<8x128xbf16>
    %cst_54 = arith.constant dense<0.000000e+00> : vector<8x512xf32>
    %307 = tpu.matmul %306, %8, %cst_54 {dimension_numbers = #tpu.dot_dimension_numbers<[1], [0], [0], [1], [0, 0, 1, 1], [], []>} : vector<8x128xbf16>, vector<128x512xbf16>, vector<8x512xf32> -> vector<8x512xf32>
    %308 = arith.addf %305, %307 : vector<8x512xf32>
    %309 = vector.extract_strided_slice %6 {offsets = [16, 512], sizes = [8, 512], strides = [1, 1]} : vector<64x1024xf32> to vector<8x512xf32>
    %310 = arith.truncf %304 : vector<8x128xf32> to vector<8x128xbf16>
    %cst_55 = arith.constant dense<0.000000e+00> : vector<8x512xf32>
    %311 = tpu.matmul %310, %10, %cst_55 {dimension_numbers = #tpu.dot_dimension_numbers<[1], [0], [0], [1], [0, 0, 1, 1], [], []>} : vector<8x128xbf16>, vector<128x512xbf16>, vector<8x512xf32> -> vector<8x512xf32>
    %312 = arith.addf %309, %311 : vector<8x512xf32>
    %313 = vector.extract_strided_slice %308 {offsets = [0, 0], sizes = [8, 128], strides = [1, 1]} : vector<8x512xf32> to vector<8x128xf32>
    %314 = arith.negf %313 : vector<8x128xf32>
    %315 = math.exp %314 : vector<8x128xf32>
    %cst_56 = arith.constant 1.000000e+00 : f32
    %316 = vector.broadcast %cst_56 : f32 to vector<8x128xf32>
    %317 = arith.addf %316, %315 : vector<8x128xf32>
    %318 = arith.divf %316, %317 : vector<8x128xf32>
    %319 = vector.extract_strided_slice %308 {offsets = [0, 128], sizes = [8, 128], strides = [1, 1]} : vector<8x512xf32> to vector<8x128xf32>
    %320 = arith.negf %319 : vector<8x128xf32>
    %321 = math.exp %320 : vector<8x128xf32>
    %cst_57 = arith.constant 1.000000e+00 : f32
    %322 = vector.broadcast %cst_57 : f32 to vector<8x128xf32>
    %323 = arith.addf %322, %321 : vector<8x128xf32>
    %324 = arith.divf %322, %323 : vector<8x128xf32>
    %325 = vector.extract_strided_slice %308 {offsets = [0, 256], sizes = [8, 128], strides = [1, 1]} : vector<8x512xf32> to vector<8x128xf32>
    %326 = math.tanh %325 : vector<8x128xf32>
    %327 = vector.extract_strided_slice %308 {offsets = [0, 384], sizes = [8, 128], strides = [1, 1]} : vector<8x512xf32> to vector<8x128xf32>
    %328 = arith.negf %327 : vector<8x128xf32>
    %329 = math.exp %328 : vector<8x128xf32>
    %cst_58 = arith.constant 1.000000e+00 : f32
    %330 = vector.broadcast %cst_58 : f32 to vector<8x128xf32>
    %331 = arith.addf %330, %329 : vector<8x128xf32>
    %332 = arith.divf %330, %331 : vector<8x128xf32>
    %333 = arith.mulf %324, %277 : vector<8x128xf32>
    %334 = arith.mulf %318, %326 : vector<8x128xf32>
    %335 = arith.addf %333, %334 : vector<8x128xf32>
    %336 = math.tanh %335 : vector<8x128xf32>
    %337 = arith.mulf %332, %336 : vector<8x128xf32>
    %338 = vector.extract_strided_slice %312 {offsets = [0, 0], sizes = [8, 128], strides = [1, 1]} : vector<8x512xf32> to vector<8x128xf32>
    %339 = arith.negf %338 : vector<8x128xf32>
    %340 = math.exp %339 : vector<8x128xf32>
    %cst_59 = arith.constant 1.000000e+00 : f32
    %341 = vector.broadcast %cst_59 : f32 to vector<8x128xf32>
    %342 = arith.addf %341, %340 : vector<8x128xf32>
    %343 = arith.divf %341, %342 : vector<8x128xf32>
    %344 = vector.extract_strided_slice %312 {offsets = [0, 128], sizes = [8, 128], strides = [1, 1]} : vector<8x512xf32> to vector<8x128xf32>
    %345 = arith.negf %344 : vector<8x128xf32>
    %346 = math.exp %345 : vector<8x128xf32>
    %cst_60 = arith.constant 1.000000e+00 : f32
    %347 = vector.broadcast %cst_60 : f32 to vector<8x128xf32>
    %348 = arith.addf %347, %346 : vector<8x128xf32>
    %349 = arith.divf %347, %348 : vector<8x128xf32>
    %350 = vector.extract_strided_slice %312 {offsets = [0, 256], sizes = [8, 128], strides = [1, 1]} : vector<8x512xf32> to vector<8x128xf32>
    %351 = math.tanh %350 : vector<8x128xf32>
    %352 = vector.extract_strided_slice %312 {offsets = [0, 384], sizes = [8, 128], strides = [1, 1]} : vector<8x512xf32> to vector<8x128xf32>
    %353 = arith.negf %352 : vector<8x128xf32>
    %354 = math.exp %353 : vector<8x128xf32>
    %cst_61 = arith.constant 1.000000e+00 : f32
    %355 = vector.broadcast %cst_61 : f32 to vector<8x128xf32>
    %356 = arith.addf %355, %354 : vector<8x128xf32>
    %357 = arith.divf %355, %356 : vector<8x128xf32>
    %358 = arith.mulf %349, %302 : vector<8x128xf32>
    %359 = arith.mulf %343, %351 : vector<8x128xf32>
    %360 = arith.addf %358, %359 : vector<8x128xf32>
    %361 = math.tanh %360 : vector<8x128xf32>
    %362 = arith.mulf %357, %361 : vector<8x128xf32>
    %363 = vector.extract_strided_slice %6 {offsets = [48, 0], sizes = [8, 512], strides = [1, 1]} : vector<64x1024xf32> to vector<8x512xf32>
    %364 = arith.truncf %337 : vector<8x128xf32> to vector<8x128xbf16>
    %cst_62 = arith.constant dense<0.000000e+00> : vector<8x512xf32>
    %365 = tpu.matmul %364, %8, %cst_62 {dimension_numbers = #tpu.dot_dimension_numbers<[1], [0], [0], [1], [0, 0, 1, 1], [], []>} : vector<8x128xbf16>, vector<128x512xbf16>, vector<8x512xf32> -> vector<8x512xf32>
    %366 = arith.addf %363, %365 : vector<8x512xf32>
    %367 = vector.extract_strided_slice %6 {offsets = [8, 512], sizes = [8, 512], strides = [1, 1]} : vector<64x1024xf32> to vector<8x512xf32>
    %368 = arith.truncf %362 : vector<8x128xf32> to vector<8x128xbf16>
    %cst_63 = arith.constant dense<0.000000e+00> : vector<8x512xf32>
    %369 = tpu.matmul %368, %10, %cst_63 {dimension_numbers = #tpu.dot_dimension_numbers<[1], [0], [0], [1], [0, 0, 1, 1], [], []>} : vector<8x128xbf16>, vector<128x512xbf16>, vector<8x512xf32> -> vector<8x512xf32>
    %370 = arith.addf %367, %369 : vector<8x512xf32>
    %371 = vector.extract_strided_slice %366 {offsets = [0, 0], sizes = [8, 128], strides = [1, 1]} : vector<8x512xf32> to vector<8x128xf32>
    %372 = arith.negf %371 : vector<8x128xf32>
    %373 = math.exp %372 : vector<8x128xf32>
    %cst_64 = arith.constant 1.000000e+00 : f32
    %374 = vector.broadcast %cst_64 : f32 to vector<8x128xf32>
    %375 = arith.addf %374, %373 : vector<8x128xf32>
    %376 = arith.divf %374, %375 : vector<8x128xf32>
    %377 = vector.extract_strided_slice %366 {offsets = [0, 128], sizes = [8, 128], strides = [1, 1]} : vector<8x512xf32> to vector<8x128xf32>
    %378 = arith.negf %377 : vector<8x128xf32>
    %379 = math.exp %378 : vector<8x128xf32>
    %cst_65 = arith.constant 1.000000e+00 : f32
    %380 = vector.broadcast %cst_65 : f32 to vector<8x128xf32>
    %381 = arith.addf %380, %379 : vector<8x128xf32>
    %382 = arith.divf %380, %381 : vector<8x128xf32>
    %383 = vector.extract_strided_slice %366 {offsets = [0, 256], sizes = [8, 128], strides = [1, 1]} : vector<8x512xf32> to vector<8x128xf32>
    %384 = math.tanh %383 : vector<8x128xf32>
    %385 = vector.extract_strided_slice %366 {offsets = [0, 384], sizes = [8, 128], strides = [1, 1]} : vector<8x512xf32> to vector<8x128xf32>
    %386 = arith.negf %385 : vector<8x128xf32>
    %387 = math.exp %386 : vector<8x128xf32>
    %cst_66 = arith.constant 1.000000e+00 : f32
    %388 = vector.broadcast %cst_66 : f32 to vector<8x128xf32>
    %389 = arith.addf %388, %387 : vector<8x128xf32>
    %390 = arith.divf %388, %389 : vector<8x128xf32>
    %391 = arith.mulf %382, %335 : vector<8x128xf32>
    %392 = arith.mulf %376, %384 : vector<8x128xf32>
    %393 = arith.addf %391, %392 : vector<8x128xf32>
    %394 = math.tanh %393 : vector<8x128xf32>
    %395 = arith.mulf %390, %394 : vector<8x128xf32>
    %396 = vector.extract_strided_slice %370 {offsets = [0, 0], sizes = [8, 128], strides = [1, 1]} : vector<8x512xf32> to vector<8x128xf32>
    %397 = arith.negf %396 : vector<8x128xf32>
    %398 = math.exp %397 : vector<8x128xf32>
    %cst_67 = arith.constant 1.000000e+00 : f32
    %399 = vector.broadcast %cst_67 : f32 to vector<8x128xf32>
    %400 = arith.addf %399, %398 : vector<8x128xf32>
    %401 = arith.divf %399, %400 : vector<8x128xf32>
    %402 = vector.extract_strided_slice %370 {offsets = [0, 128], sizes = [8, 128], strides = [1, 1]} : vector<8x512xf32> to vector<8x128xf32>
    %403 = arith.negf %402 : vector<8x128xf32>
    %404 = math.exp %403 : vector<8x128xf32>
    %cst_68 = arith.constant 1.000000e+00 : f32
    %405 = vector.broadcast %cst_68 : f32 to vector<8x128xf32>
    %406 = arith.addf %405, %404 : vector<8x128xf32>
    %407 = arith.divf %405, %406 : vector<8x128xf32>
    %408 = vector.extract_strided_slice %370 {offsets = [0, 256], sizes = [8, 128], strides = [1, 1]} : vector<8x512xf32> to vector<8x128xf32>
    %409 = math.tanh %408 : vector<8x128xf32>
    %410 = vector.extract_strided_slice %370 {offsets = [0, 384], sizes = [8, 128], strides = [1, 1]} : vector<8x512xf32> to vector<8x128xf32>
    %411 = arith.negf %410 : vector<8x128xf32>
    %412 = math.exp %411 : vector<8x128xf32>
    %cst_69 = arith.constant 1.000000e+00 : f32
    %413 = vector.broadcast %cst_69 : f32 to vector<8x128xf32>
    %414 = arith.addf %413, %412 : vector<8x128xf32>
    %415 = arith.divf %413, %414 : vector<8x128xf32>
    %416 = arith.mulf %407, %360 : vector<8x128xf32>
    %417 = arith.mulf %401, %409 : vector<8x128xf32>
    %418 = arith.addf %416, %417 : vector<8x128xf32>
    %419 = math.tanh %418 : vector<8x128xf32>
    %420 = arith.mulf %415, %419 : vector<8x128xf32>
    %421 = vector.extract_strided_slice %6 {offsets = [56, 0], sizes = [8, 512], strides = [1, 1]} : vector<64x1024xf32> to vector<8x512xf32>
    %422 = arith.truncf %395 : vector<8x128xf32> to vector<8x128xbf16>
    %cst_70 = arith.constant dense<0.000000e+00> : vector<8x512xf32>
    %423 = tpu.matmul %422, %8, %cst_70 {dimension_numbers = #tpu.dot_dimension_numbers<[1], [0], [0], [1], [0, 0, 1, 1], [], []>} : vector<8x128xbf16>, vector<128x512xbf16>, vector<8x512xf32> -> vector<8x512xf32>
    %424 = arith.addf %421, %423 : vector<8x512xf32>
    %425 = vector.extract_strided_slice %6 {offsets = [0, 512], sizes = [8, 512], strides = [1, 1]} : vector<64x1024xf32> to vector<8x512xf32>
    %426 = arith.truncf %420 : vector<8x128xf32> to vector<8x128xbf16>
    %cst_71 = arith.constant dense<0.000000e+00> : vector<8x512xf32>
    %427 = tpu.matmul %426, %10, %cst_71 {dimension_numbers = #tpu.dot_dimension_numbers<[1], [0], [0], [1], [0, 0, 1, 1], [], []>} : vector<8x128xbf16>, vector<128x512xbf16>, vector<8x512xf32> -> vector<8x512xf32>
    %428 = arith.addf %425, %427 : vector<8x512xf32>
    %429 = vector.extract_strided_slice %424 {offsets = [0, 0], sizes = [8, 128], strides = [1, 1]} : vector<8x512xf32> to vector<8x128xf32>
    %430 = arith.negf %429 : vector<8x128xf32>
    %431 = math.exp %430 : vector<8x128xf32>
    %cst_72 = arith.constant 1.000000e+00 : f32
    %432 = vector.broadcast %cst_72 : f32 to vector<8x128xf32>
    %433 = arith.addf %432, %431 : vector<8x128xf32>
    %434 = arith.divf %432, %433 : vector<8x128xf32>
    %435 = vector.extract_strided_slice %424 {offsets = [0, 128], sizes = [8, 128], strides = [1, 1]} : vector<8x512xf32> to vector<8x128xf32>
    %436 = arith.negf %435 : vector<8x128xf32>
    %437 = math.exp %436 : vector<8x128xf32>
    %cst_73 = arith.constant 1.000000e+00 : f32
    %438 = vector.broadcast %cst_73 : f32 to vector<8x128xf32>
    %439 = arith.addf %438, %437 : vector<8x128xf32>
    %440 = arith.divf %438, %439 : vector<8x128xf32>
    %441 = vector.extract_strided_slice %424 {offsets = [0, 256], sizes = [8, 128], strides = [1, 1]} : vector<8x512xf32> to vector<8x128xf32>
    %442 = math.tanh %441 : vector<8x128xf32>
    %443 = vector.extract_strided_slice %424 {offsets = [0, 384], sizes = [8, 128], strides = [1, 1]} : vector<8x512xf32> to vector<8x128xf32>
    %444 = arith.negf %443 : vector<8x128xf32>
    %445 = math.exp %444 : vector<8x128xf32>
    %cst_74 = arith.constant 1.000000e+00 : f32
    %446 = vector.broadcast %cst_74 : f32 to vector<8x128xf32>
    %447 = arith.addf %446, %445 : vector<8x128xf32>
    %448 = arith.divf %446, %447 : vector<8x128xf32>
    %449 = arith.mulf %440, %393 : vector<8x128xf32>
    %450 = arith.mulf %434, %442 : vector<8x128xf32>
    %451 = arith.addf %449, %450 : vector<8x128xf32>
    %452 = math.tanh %451 : vector<8x128xf32>
    %453 = arith.mulf %448, %452 : vector<8x128xf32>
    %454 = vector.extract_strided_slice %428 {offsets = [0, 0], sizes = [8, 128], strides = [1, 1]} : vector<8x512xf32> to vector<8x128xf32>
    %455 = arith.negf %454 : vector<8x128xf32>
    %456 = math.exp %455 : vector<8x128xf32>
    %cst_75 = arith.constant 1.000000e+00 : f32
    %457 = vector.broadcast %cst_75 : f32 to vector<8x128xf32>
    %458 = arith.addf %457, %456 : vector<8x128xf32>
    %459 = arith.divf %457, %458 : vector<8x128xf32>
    %460 = vector.extract_strided_slice %428 {offsets = [0, 128], sizes = [8, 128], strides = [1, 1]} : vector<8x512xf32> to vector<8x128xf32>
    %461 = arith.negf %460 : vector<8x128xf32>
    %462 = math.exp %461 : vector<8x128xf32>
    %cst_76 = arith.constant 1.000000e+00 : f32
    %463 = vector.broadcast %cst_76 : f32 to vector<8x128xf32>
    %464 = arith.addf %463, %462 : vector<8x128xf32>
    %465 = arith.divf %463, %464 : vector<8x128xf32>
    %466 = vector.extract_strided_slice %428 {offsets = [0, 256], sizes = [8, 128], strides = [1, 1]} : vector<8x512xf32> to vector<8x128xf32>
    %467 = math.tanh %466 : vector<8x128xf32>
    %468 = vector.extract_strided_slice %428 {offsets = [0, 384], sizes = [8, 128], strides = [1, 1]} : vector<8x512xf32> to vector<8x128xf32>
    %469 = arith.negf %468 : vector<8x128xf32>
    %470 = math.exp %469 : vector<8x128xf32>
    %cst_77 = arith.constant 1.000000e+00 : f32
    %471 = vector.broadcast %cst_77 : f32 to vector<8x128xf32>
    %472 = arith.addf %471, %470 : vector<8x128xf32>
    %473 = arith.divf %471, %472 : vector<8x128xf32>
    %474 = arith.mulf %465, %418 : vector<8x128xf32>
    %475 = arith.mulf %459, %467 : vector<8x128xf32>
    %476 = arith.addf %474, %475 : vector<8x128xf32>
    %477 = math.tanh %476 : vector<8x128xf32>
    %478 = arith.mulf %473, %477 : vector<8x128xf32>
    %479 = tpu.concatenate %47, %478 in 1 : vector<8x128xf32>, vector<8x128xf32> -> vector<8x256xf32>
    %480 = tpu.concatenate %105, %420 in 1 : vector<8x128xf32>, vector<8x128xf32> -> vector<8x256xf32>
    %481 = tpu.concatenate %163, %362 in 1 : vector<8x128xf32>, vector<8x128xf32> -> vector<8x256xf32>
    %482 = tpu.concatenate %221, %304 in 1 : vector<8x128xf32>, vector<8x128xf32> -> vector<8x256xf32>
    %483 = tpu.concatenate %279, %246 in 1 : vector<8x128xf32>, vector<8x128xf32> -> vector<8x256xf32>
    %484 = tpu.concatenate %337, %188 in 1 : vector<8x128xf32>, vector<8x128xf32> -> vector<8x256xf32>
    %485 = tpu.concatenate %395, %130 in 1 : vector<8x128xf32>, vector<8x128xf32> -> vector<8x256xf32>
    %486 = tpu.concatenate %453, %72 in 1 : vector<8x128xf32>, vector<8x128xf32> -> vector<8x256xf32>
    %487 = tpu.concatenate %479, %480, %481, %482, %483, %484, %485, %486 in 0 : vector<8x256xf32>, vector<8x256xf32>, vector<8x256xf32>, vector<8x256xf32>, vector<8x256xf32>, vector<8x256xf32>, vector<8x256xf32>, vector<8x256xf32> -> vector<64x256xf32>
    %488 = arith.truncf %487 : vector<64x256xf32> to vector<64x256xbf16>
    %c0_78 = arith.constant 0 : index
    %c0_79 = arith.constant 0 : index
    %489 = vector.load %arg4[%c0_78, %c0_79] : memref<256x1024xbf16, #tpu.memory_space<vmem>>, vector<256x1024xbf16>
    %cst_80 = arith.constant dense<0.000000e+00> : vector<64x1024xf32>
    %490 = tpu.matmul %488, %489, %cst_80 {dimension_numbers = #tpu.dot_dimension_numbers<[1], [0], [0], [1], [0, 0, 1, 1], [], []>} : vector<64x256xbf16>, vector<256x1024xbf16>, vector<64x1024xf32> -> vector<64x1024xf32>
    %c0_81 = arith.constant 0 : index
    %c0_82 = arith.constant 0 : index
    %491 = vector.load %arg6[%c0_81, %c0_82] : memref<1x1024xf32, #tpu.memory_space<vmem>>, vector<1x1024xf32>
    %492 = vector.broadcast %491 : vector<1x1024xf32> to vector<64x1024xf32>
    %493 = arith.addf %490, %492 : vector<64x1024xf32>
    %c0_83 = arith.constant 0 : index
    %c0_84 = arith.constant 0 : index
    %c0_85 = arith.constant 0 : index
    %494 = vector.load %arg5[%c0_83, %c0_84, %c0_85] : memref<2x128x512xbf16, #tpu.memory_space<vmem>>, vector<1x128x512xbf16>
    %495 = vector.shape_cast %494 : vector<1x128x512xbf16> to vector<128x512xbf16>
    %c1_86 = arith.constant 1 : index
    %c0_87 = arith.constant 0 : index
    %c0_88 = arith.constant 0 : index
    %496 = vector.load %arg5[%c1_86, %c0_87, %c0_88] : memref<2x128x512xbf16, #tpu.memory_space<vmem>>, vector<1x128x512xbf16>
    %497 = vector.shape_cast %496 : vector<1x128x512xbf16> to vector<128x512xbf16>
    %cst_89 = arith.constant 0.000000e+00 : f32
    %498 = vector.broadcast %cst_89 : f32 to vector<8x128xf32>
    %cst_90 = arith.constant 0.000000e+00 : f32
    %499 = vector.broadcast %cst_90 : f32 to vector<8x128xf32>
    %cst_91 = arith.constant 0.000000e+00 : f32
    %500 = vector.broadcast %cst_91 : f32 to vector<8x128xf32>
    %cst_92 = arith.constant 0.000000e+00 : f32
    %501 = vector.broadcast %cst_92 : f32 to vector<8x128xf32>
    %502 = vector.extract_strided_slice %493 {offsets = [0, 0], sizes = [8, 512], strides = [1, 1]} : vector<64x1024xf32> to vector<8x512xf32>
    %503 = arith.truncf %498 : vector<8x128xf32> to vector<8x128xbf16>
    %cst_93 = arith.constant dense<0.000000e+00> : vector<8x512xf32>
    %504 = tpu.matmul %503, %495, %cst_93 {dimension_numbers = #tpu.dot_dimension_numbers<[1], [0], [0], [1], [0, 0, 1, 1], [], []>} : vector<8x128xbf16>, vector<128x512xbf16>, vector<8x512xf32> -> vector<8x512xf32>
    %505 = arith.addf %502, %504 : vector<8x512xf32>
    %506 = vector.extract_strided_slice %493 {offsets = [56, 512], sizes = [8, 512], strides = [1, 1]} : vector<64x1024xf32> to vector<8x512xf32>
    %507 = arith.truncf %500 : vector<8x128xf32> to vector<8x128xbf16>
    %cst_94 = arith.constant dense<0.000000e+00> : vector<8x512xf32>
    %508 = tpu.matmul %507, %497, %cst_94 {dimension_numbers = #tpu.dot_dimension_numbers<[1], [0], [0], [1], [0, 0, 1, 1], [], []>} : vector<8x128xbf16>, vector<128x512xbf16>, vector<8x512xf32> -> vector<8x512xf32>
    %509 = arith.addf %506, %508 : vector<8x512xf32>
    %510 = vector.extract_strided_slice %505 {offsets = [0, 0], sizes = [8, 128], strides = [1, 1]} : vector<8x512xf32> to vector<8x128xf32>
    %511 = arith.negf %510 : vector<8x128xf32>
    %512 = math.exp %511 : vector<8x128xf32>
    %cst_95 = arith.constant 1.000000e+00 : f32
    %513 = vector.broadcast %cst_95 : f32 to vector<8x128xf32>
    %514 = arith.addf %513, %512 : vector<8x128xf32>
    %515 = arith.divf %513, %514 : vector<8x128xf32>
    %516 = vector.extract_strided_slice %505 {offsets = [0, 128], sizes = [8, 128], strides = [1, 1]} : vector<8x512xf32> to vector<8x128xf32>
    %517 = arith.negf %516 : vector<8x128xf32>
    %518 = math.exp %517 : vector<8x128xf32>
    %cst_96 = arith.constant 1.000000e+00 : f32
    %519 = vector.broadcast %cst_96 : f32 to vector<8x128xf32>
    %520 = arith.addf %519, %518 : vector<8x128xf32>
    %521 = arith.divf %519, %520 : vector<8x128xf32>
    %522 = vector.extract_strided_slice %505 {offsets = [0, 256], sizes = [8, 128], strides = [1, 1]} : vector<8x512xf32> to vector<8x128xf32>
    %523 = math.tanh %522 : vector<8x128xf32>
    %524 = vector.extract_strided_slice %505 {offsets = [0, 384], sizes = [8, 128], strides = [1, 1]} : vector<8x512xf32> to vector<8x128xf32>
    %525 = arith.negf %524 : vector<8x128xf32>
    %526 = math.exp %525 : vector<8x128xf32>
    %cst_97 = arith.constant 1.000000e+00 : f32
    %527 = vector.broadcast %cst_97 : f32 to vector<8x128xf32>
    %528 = arith.addf %527, %526 : vector<8x128xf32>
    %529 = arith.divf %527, %528 : vector<8x128xf32>
    %530 = arith.mulf %521, %499 : vector<8x128xf32>
    %531 = arith.mulf %515, %523 : vector<8x128xf32>
    %532 = arith.addf %530, %531 : vector<8x128xf32>
    %533 = math.tanh %532 : vector<8x128xf32>
    %534 = arith.mulf %529, %533 : vector<8x128xf32>
    %535 = vector.extract_strided_slice %509 {offsets = [0, 0], sizes = [8, 128], strides = [1, 1]} : vector<8x512xf32> to vector<8x128xf32>
    %536 = arith.negf %535 : vector<8x128xf32>
    %537 = math.exp %536 : vector<8x128xf32>
    %cst_98 = arith.constant 1.000000e+00 : f32
    %538 = vector.broadcast %cst_98 : f32 to vector<8x128xf32>
    %539 = arith.addf %538, %537 : vector<8x128xf32>
    %540 = arith.divf %538, %539 : vector<8x128xf32>
    %541 = vector.extract_strided_slice %509 {offsets = [0, 128], sizes = [8, 128], strides = [1, 1]} : vector<8x512xf32> to vector<8x128xf32>
    %542 = arith.negf %541 : vector<8x128xf32>
    %543 = math.exp %542 : vector<8x128xf32>
    %cst_99 = arith.constant 1.000000e+00 : f32
    %544 = vector.broadcast %cst_99 : f32 to vector<8x128xf32>
    %545 = arith.addf %544, %543 : vector<8x128xf32>
    %546 = arith.divf %544, %545 : vector<8x128xf32>
    %547 = vector.extract_strided_slice %509 {offsets = [0, 256], sizes = [8, 128], strides = [1, 1]} : vector<8x512xf32> to vector<8x128xf32>
    %548 = math.tanh %547 : vector<8x128xf32>
    %549 = vector.extract_strided_slice %509 {offsets = [0, 384], sizes = [8, 128], strides = [1, 1]} : vector<8x512xf32> to vector<8x128xf32>
    %550 = arith.negf %549 : vector<8x128xf32>
    %551 = math.exp %550 : vector<8x128xf32>
    %cst_100 = arith.constant 1.000000e+00 : f32
    %552 = vector.broadcast %cst_100 : f32 to vector<8x128xf32>
    %553 = arith.addf %552, %551 : vector<8x128xf32>
    %554 = arith.divf %552, %553 : vector<8x128xf32>
    %555 = arith.mulf %546, %501 : vector<8x128xf32>
    %556 = arith.mulf %540, %548 : vector<8x128xf32>
    %557 = arith.addf %555, %556 : vector<8x128xf32>
    %558 = math.tanh %557 : vector<8x128xf32>
    %559 = arith.mulf %554, %558 : vector<8x128xf32>
    %560 = vector.extract_strided_slice %493 {offsets = [8, 0], sizes = [8, 512], strides = [1, 1]} : vector<64x1024xf32> to vector<8x512xf32>
    %561 = arith.truncf %534 : vector<8x128xf32> to vector<8x128xbf16>
    %cst_101 = arith.constant dense<0.000000e+00> : vector<8x512xf32>
    %562 = tpu.matmul %561, %495, %cst_101 {dimension_numbers = #tpu.dot_dimension_numbers<[1], [0], [0], [1], [0, 0, 1, 1], [], []>} : vector<8x128xbf16>, vector<128x512xbf16>, vector<8x512xf32> -> vector<8x512xf32>
    %563 = arith.addf %560, %562 : vector<8x512xf32>
    %564 = vector.extract_strided_slice %493 {offsets = [48, 512], sizes = [8, 512], strides = [1, 1]} : vector<64x1024xf32> to vector<8x512xf32>
    %565 = arith.truncf %559 : vector<8x128xf32> to vector<8x128xbf16>
    %cst_102 = arith.constant dense<0.000000e+00> : vector<8x512xf32>
    %566 = tpu.matmul %565, %497, %cst_102 {dimension_numbers = #tpu.dot_dimension_numbers<[1], [0], [0], [1], [0, 0, 1, 1], [], []>} : vector<8x128xbf16>, vector<128x512xbf16>, vector<8x512xf32> -> vector<8x512xf32>
    %567 = arith.addf %564, %566 : vector<8x512xf32>
    %568 = vector.extract_strided_slice %563 {offsets = [0, 0], sizes = [8, 128], strides = [1, 1]} : vector<8x512xf32> to vector<8x128xf32>
    %569 = arith.negf %568 : vector<8x128xf32>
    %570 = math.exp %569 : vector<8x128xf32>
    %cst_103 = arith.constant 1.000000e+00 : f32
    %571 = vector.broadcast %cst_103 : f32 to vector<8x128xf32>
    %572 = arith.addf %571, %570 : vector<8x128xf32>
    %573 = arith.divf %571, %572 : vector<8x128xf32>
    %574 = vector.extract_strided_slice %563 {offsets = [0, 128], sizes = [8, 128], strides = [1, 1]} : vector<8x512xf32> to vector<8x128xf32>
    %575 = arith.negf %574 : vector<8x128xf32>
    %576 = math.exp %575 : vector<8x128xf32>
    %cst_104 = arith.constant 1.000000e+00 : f32
    %577 = vector.broadcast %cst_104 : f32 to vector<8x128xf32>
    %578 = arith.addf %577, %576 : vector<8x128xf32>
    %579 = arith.divf %577, %578 : vector<8x128xf32>
    %580 = vector.extract_strided_slice %563 {offsets = [0, 256], sizes = [8, 128], strides = [1, 1]} : vector<8x512xf32> to vector<8x128xf32>
    %581 = math.tanh %580 : vector<8x128xf32>
    %582 = vector.extract_strided_slice %563 {offsets = [0, 384], sizes = [8, 128], strides = [1, 1]} : vector<8x512xf32> to vector<8x128xf32>
    %583 = arith.negf %582 : vector<8x128xf32>
    %584 = math.exp %583 : vector<8x128xf32>
    %cst_105 = arith.constant 1.000000e+00 : f32
    %585 = vector.broadcast %cst_105 : f32 to vector<8x128xf32>
    %586 = arith.addf %585, %584 : vector<8x128xf32>
    %587 = arith.divf %585, %586 : vector<8x128xf32>
    %588 = arith.mulf %579, %532 : vector<8x128xf32>
    %589 = arith.mulf %573, %581 : vector<8x128xf32>
    %590 = arith.addf %588, %589 : vector<8x128xf32>
    %591 = math.tanh %590 : vector<8x128xf32>
    %592 = arith.mulf %587, %591 : vector<8x128xf32>
    %593 = vector.extract_strided_slice %567 {offsets = [0, 0], sizes = [8, 128], strides = [1, 1]} : vector<8x512xf32> to vector<8x128xf32>
    %594 = arith.negf %593 : vector<8x128xf32>
    %595 = math.exp %594 : vector<8x128xf32>
    %cst_106 = arith.constant 1.000000e+00 : f32
    %596 = vector.broadcast %cst_106 : f32 to vector<8x128xf32>
    %597 = arith.addf %596, %595 : vector<8x128xf32>
    %598 = arith.divf %596, %597 : vector<8x128xf32>
    %599 = vector.extract_strided_slice %567 {offsets = [0, 128], sizes = [8, 128], strides = [1, 1]} : vector<8x512xf32> to vector<8x128xf32>
    %600 = arith.negf %599 : vector<8x128xf32>
    %601 = math.exp %600 : vector<8x128xf32>
    %cst_107 = arith.constant 1.000000e+00 : f32
    %602 = vector.broadcast %cst_107 : f32 to vector<8x128xf32>
    %603 = arith.addf %602, %601 : vector<8x128xf32>
    %604 = arith.divf %602, %603 : vector<8x128xf32>
    %605 = vector.extract_strided_slice %567 {offsets = [0, 256], sizes = [8, 128], strides = [1, 1]} : vector<8x512xf32> to vector<8x128xf32>
    %606 = math.tanh %605 : vector<8x128xf32>
    %607 = vector.extract_strided_slice %567 {offsets = [0, 384], sizes = [8, 128], strides = [1, 1]} : vector<8x512xf32> to vector<8x128xf32>
    %608 = arith.negf %607 : vector<8x128xf32>
    %609 = math.exp %608 : vector<8x128xf32>
    %cst_108 = arith.constant 1.000000e+00 : f32
    %610 = vector.broadcast %cst_108 : f32 to vector<8x128xf32>
    %611 = arith.addf %610, %609 : vector<8x128xf32>
    %612 = arith.divf %610, %611 : vector<8x128xf32>
    %613 = arith.mulf %604, %557 : vector<8x128xf32>
    %614 = arith.mulf %598, %606 : vector<8x128xf32>
    %615 = arith.addf %613, %614 : vector<8x128xf32>
    %616 = math.tanh %615 : vector<8x128xf32>
    %617 = arith.mulf %612, %616 : vector<8x128xf32>
    %618 = vector.extract_strided_slice %493 {offsets = [16, 0], sizes = [8, 512], strides = [1, 1]} : vector<64x1024xf32> to vector<8x512xf32>
    %619 = arith.truncf %592 : vector<8x128xf32> to vector<8x128xbf16>
    %cst_109 = arith.constant dense<0.000000e+00> : vector<8x512xf32>
    %620 = tpu.matmul %619, %495, %cst_109 {dimension_numbers = #tpu.dot_dimension_numbers<[1], [0], [0], [1], [0, 0, 1, 1], [], []>} : vector<8x128xbf16>, vector<128x512xbf16>, vector<8x512xf32> -> vector<8x512xf32>
    %621 = arith.addf %618, %620 : vector<8x512xf32>
    %622 = vector.extract_strided_slice %493 {offsets = [40, 512], sizes = [8, 512], strides = [1, 1]} : vector<64x1024xf32> to vector<8x512xf32>
    %623 = arith.truncf %617 : vector<8x128xf32> to vector<8x128xbf16>
    %cst_110 = arith.constant dense<0.000000e+00> : vector<8x512xf32>
    %624 = tpu.matmul %623, %497, %cst_110 {dimension_numbers = #tpu.dot_dimension_numbers<[1], [0], [0], [1], [0, 0, 1, 1], [], []>} : vector<8x128xbf16>, vector<128x512xbf16>, vector<8x512xf32> -> vector<8x512xf32>
    %625 = arith.addf %622, %624 : vector<8x512xf32>
    %626 = vector.extract_strided_slice %621 {offsets = [0, 0], sizes = [8, 128], strides = [1, 1]} : vector<8x512xf32> to vector<8x128xf32>
    %627 = arith.negf %626 : vector<8x128xf32>
    %628 = math.exp %627 : vector<8x128xf32>
    %cst_111 = arith.constant 1.000000e+00 : f32
    %629 = vector.broadcast %cst_111 : f32 to vector<8x128xf32>
    %630 = arith.addf %629, %628 : vector<8x128xf32>
    %631 = arith.divf %629, %630 : vector<8x128xf32>
    %632 = vector.extract_strided_slice %621 {offsets = [0, 128], sizes = [8, 128], strides = [1, 1]} : vector<8x512xf32> to vector<8x128xf32>
    %633 = arith.negf %632 : vector<8x128xf32>
    %634 = math.exp %633 : vector<8x128xf32>
    %cst_112 = arith.constant 1.000000e+00 : f32
    %635 = vector.broadcast %cst_112 : f32 to vector<8x128xf32>
    %636 = arith.addf %635, %634 : vector<8x128xf32>
    %637 = arith.divf %635, %636 : vector<8x128xf32>
    %638 = vector.extract_strided_slice %621 {offsets = [0, 256], sizes = [8, 128], strides = [1, 1]} : vector<8x512xf32> to vector<8x128xf32>
    %639 = math.tanh %638 : vector<8x128xf32>
    %640 = vector.extract_strided_slice %621 {offsets = [0, 384], sizes = [8, 128], strides = [1, 1]} : vector<8x512xf32> to vector<8x128xf32>
    %641 = arith.negf %640 : vector<8x128xf32>
    %642 = math.exp %641 : vector<8x128xf32>
    %cst_113 = arith.constant 1.000000e+00 : f32
    %643 = vector.broadcast %cst_113 : f32 to vector<8x128xf32>
    %644 = arith.addf %643, %642 : vector<8x128xf32>
    %645 = arith.divf %643, %644 : vector<8x128xf32>
    %646 = arith.mulf %637, %590 : vector<8x128xf32>
    %647 = arith.mulf %631, %639 : vector<8x128xf32>
    %648 = arith.addf %646, %647 : vector<8x128xf32>
    %649 = math.tanh %648 : vector<8x128xf32>
    %650 = arith.mulf %645, %649 : vector<8x128xf32>
    %651 = vector.extract_strided_slice %625 {offsets = [0, 0], sizes = [8, 128], strides = [1, 1]} : vector<8x512xf32> to vector<8x128xf32>
    %652 = arith.negf %651 : vector<8x128xf32>
    %653 = math.exp %652 : vector<8x128xf32>
    %cst_114 = arith.constant 1.000000e+00 : f32
    %654 = vector.broadcast %cst_114 : f32 to vector<8x128xf32>
    %655 = arith.addf %654, %653 : vector<8x128xf32>
    %656 = arith.divf %654, %655 : vector<8x128xf32>
    %657 = vector.extract_strided_slice %625 {offsets = [0, 128], sizes = [8, 128], strides = [1, 1]} : vector<8x512xf32> to vector<8x128xf32>
    %658 = arith.negf %657 : vector<8x128xf32>
    %659 = math.exp %658 : vector<8x128xf32>
    %cst_115 = arith.constant 1.000000e+00 : f32
    %660 = vector.broadcast %cst_115 : f32 to vector<8x128xf32>
    %661 = arith.addf %660, %659 : vector<8x128xf32>
    %662 = arith.divf %660, %661 : vector<8x128xf32>
    %663 = vector.extract_strided_slice %625 {offsets = [0, 256], sizes = [8, 128], strides = [1, 1]} : vector<8x512xf32> to vector<8x128xf32>
    %664 = math.tanh %663 : vector<8x128xf32>
    %665 = vector.extract_strided_slice %625 {offsets = [0, 384], sizes = [8, 128], strides = [1, 1]} : vector<8x512xf32> to vector<8x128xf32>
    %666 = arith.negf %665 : vector<8x128xf32>
    %667 = math.exp %666 : vector<8x128xf32>
    %cst_116 = arith.constant 1.000000e+00 : f32
    %668 = vector.broadcast %cst_116 : f32 to vector<8x128xf32>
    %669 = arith.addf %668, %667 : vector<8x128xf32>
    %670 = arith.divf %668, %669 : vector<8x128xf32>
    %671 = arith.mulf %662, %615 : vector<8x128xf32>
    %672 = arith.mulf %656, %664 : vector<8x128xf32>
    %673 = arith.addf %671, %672 : vector<8x128xf32>
    %674 = math.tanh %673 : vector<8x128xf32>
    %675 = arith.mulf %670, %674 : vector<8x128xf32>
    %676 = vector.extract_strided_slice %493 {offsets = [24, 0], sizes = [8, 512], strides = [1, 1]} : vector<64x1024xf32> to vector<8x512xf32>
    %677 = arith.truncf %650 : vector<8x128xf32> to vector<8x128xbf16>
    %cst_117 = arith.constant dense<0.000000e+00> : vector<8x512xf32>
    %678 = tpu.matmul %677, %495, %cst_117 {dimension_numbers = #tpu.dot_dimension_numbers<[1], [0], [0], [1], [0, 0, 1, 1], [], []>} : vector<8x128xbf16>, vector<128x512xbf16>, vector<8x512xf32> -> vector<8x512xf32>
    %679 = arith.addf %676, %678 : vector<8x512xf32>
    %680 = vector.extract_strided_slice %493 {offsets = [32, 512], sizes = [8, 512], strides = [1, 1]} : vector<64x1024xf32> to vector<8x512xf32>
    %681 = arith.truncf %675 : vector<8x128xf32> to vector<8x128xbf16>
    %cst_118 = arith.constant dense<0.000000e+00> : vector<8x512xf32>
    %682 = tpu.matmul %681, %497, %cst_118 {dimension_numbers = #tpu.dot_dimension_numbers<[1], [0], [0], [1], [0, 0, 1, 1], [], []>} : vector<8x128xbf16>, vector<128x512xbf16>, vector<8x512xf32> -> vector<8x512xf32>
    %683 = arith.addf %680, %682 : vector<8x512xf32>
    %684 = vector.extract_strided_slice %679 {offsets = [0, 0], sizes = [8, 128], strides = [1, 1]} : vector<8x512xf32> to vector<8x128xf32>
    %685 = arith.negf %684 : vector<8x128xf32>
    %686 = math.exp %685 : vector<8x128xf32>
    %cst_119 = arith.constant 1.000000e+00 : f32
    %687 = vector.broadcast %cst_119 : f32 to vector<8x128xf32>
    %688 = arith.addf %687, %686 : vector<8x128xf32>
    %689 = arith.divf %687, %688 : vector<8x128xf32>
    %690 = vector.extract_strided_slice %679 {offsets = [0, 128], sizes = [8, 128], strides = [1, 1]} : vector<8x512xf32> to vector<8x128xf32>
    %691 = arith.negf %690 : vector<8x128xf32>
    %692 = math.exp %691 : vector<8x128xf32>
    %cst_120 = arith.constant 1.000000e+00 : f32
    %693 = vector.broadcast %cst_120 : f32 to vector<8x128xf32>
    %694 = arith.addf %693, %692 : vector<8x128xf32>
    %695 = arith.divf %693, %694 : vector<8x128xf32>
    %696 = vector.extract_strided_slice %679 {offsets = [0, 256], sizes = [8, 128], strides = [1, 1]} : vector<8x512xf32> to vector<8x128xf32>
    %697 = math.tanh %696 : vector<8x128xf32>
    %698 = vector.extract_strided_slice %679 {offsets = [0, 384], sizes = [8, 128], strides = [1, 1]} : vector<8x512xf32> to vector<8x128xf32>
    %699 = arith.negf %698 : vector<8x128xf32>
    %700 = math.exp %699 : vector<8x128xf32>
    %cst_121 = arith.constant 1.000000e+00 : f32
    %701 = vector.broadcast %cst_121 : f32 to vector<8x128xf32>
    %702 = arith.addf %701, %700 : vector<8x128xf32>
    %703 = arith.divf %701, %702 : vector<8x128xf32>
    %704 = arith.mulf %695, %648 : vector<8x128xf32>
    %705 = arith.mulf %689, %697 : vector<8x128xf32>
    %706 = arith.addf %704, %705 : vector<8x128xf32>
    %707 = math.tanh %706 : vector<8x128xf32>
    %708 = arith.mulf %703, %707 : vector<8x128xf32>
    %709 = vector.extract_strided_slice %683 {offsets = [0, 0], sizes = [8, 128], strides = [1, 1]} : vector<8x512xf32> to vector<8x128xf32>
    %710 = arith.negf %709 : vector<8x128xf32>
    %711 = math.exp %710 : vector<8x128xf32>
    %cst_122 = arith.constant 1.000000e+00 : f32
    %712 = vector.broadcast %cst_122 : f32 to vector<8x128xf32>
    %713 = arith.addf %712, %711 : vector<8x128xf32>
    %714 = arith.divf %712, %713 : vector<8x128xf32>
    %715 = vector.extract_strided_slice %683 {offsets = [0, 128], sizes = [8, 128], strides = [1, 1]} : vector<8x512xf32> to vector<8x128xf32>
    %716 = arith.negf %715 : vector<8x128xf32>
    %717 = math.exp %716 : vector<8x128xf32>
    %cst_123 = arith.constant 1.000000e+00 : f32
    %718 = vector.broadcast %cst_123 : f32 to vector<8x128xf32>
    %719 = arith.addf %718, %717 : vector<8x128xf32>
    %720 = arith.divf %718, %719 : vector<8x128xf32>
    %721 = vector.extract_strided_slice %683 {offsets = [0, 256], sizes = [8, 128], strides = [1, 1]} : vector<8x512xf32> to vector<8x128xf32>
    %722 = math.tanh %721 : vector<8x128xf32>
    %723 = vector.extract_strided_slice %683 {offsets = [0, 384], sizes = [8, 128], strides = [1, 1]} : vector<8x512xf32> to vector<8x128xf32>
    %724 = arith.negf %723 : vector<8x128xf32>
    %725 = math.exp %724 : vector<8x128xf32>
    %cst_124 = arith.constant 1.000000e+00 : f32
    %726 = vector.broadcast %cst_124 : f32 to vector<8x128xf32>
    %727 = arith.addf %726, %725 : vector<8x128xf32>
    %728 = arith.divf %726, %727 : vector<8x128xf32>
    %729 = arith.mulf %720, %673 : vector<8x128xf32>
    %730 = arith.mulf %714, %722 : vector<8x128xf32>
    %731 = arith.addf %729, %730 : vector<8x128xf32>
    %732 = math.tanh %731 : vector<8x128xf32>
    %733 = arith.mulf %728, %732 : vector<8x128xf32>
    %734 = vector.extract_strided_slice %493 {offsets = [32, 0], sizes = [8, 512], strides = [1, 1]} : vector<64x1024xf32> to vector<8x512xf32>
    %735 = arith.truncf %708 : vector<8x128xf32> to vector<8x128xbf16>
    %cst_125 = arith.constant dense<0.000000e+00> : vector<8x512xf32>
    %736 = tpu.matmul %735, %495, %cst_125 {dimension_numbers = #tpu.dot_dimension_numbers<[1], [0], [0], [1], [0, 0, 1, 1], [], []>} : vector<8x128xbf16>, vector<128x512xbf16>, vector<8x512xf32> -> vector<8x512xf32>
    %737 = arith.addf %734, %736 : vector<8x512xf32>
    %738 = vector.extract_strided_slice %493 {offsets = [24, 512], sizes = [8, 512], strides = [1, 1]} : vector<64x1024xf32> to vector<8x512xf32>
    %739 = arith.truncf %733 : vector<8x128xf32> to vector<8x128xbf16>
    %cst_126 = arith.constant dense<0.000000e+00> : vector<8x512xf32>
    %740 = tpu.matmul %739, %497, %cst_126 {dimension_numbers = #tpu.dot_dimension_numbers<[1], [0], [0], [1], [0, 0, 1, 1], [], []>} : vector<8x128xbf16>, vector<128x512xbf16>, vector<8x512xf32> -> vector<8x512xf32>
    %741 = arith.addf %738, %740 : vector<8x512xf32>
    %742 = vector.extract_strided_slice %737 {offsets = [0, 0], sizes = [8, 128], strides = [1, 1]} : vector<8x512xf32> to vector<8x128xf32>
    %743 = arith.negf %742 : vector<8x128xf32>
    %744 = math.exp %743 : vector<8x128xf32>
    %cst_127 = arith.constant 1.000000e+00 : f32
    %745 = vector.broadcast %cst_127 : f32 to vector<8x128xf32>
    %746 = arith.addf %745, %744 : vector<8x128xf32>
    %747 = arith.divf %745, %746 : vector<8x128xf32>
    %748 = vector.extract_strided_slice %737 {offsets = [0, 128], sizes = [8, 128], strides = [1, 1]} : vector<8x512xf32> to vector<8x128xf32>
    %749 = arith.negf %748 : vector<8x128xf32>
    %750 = math.exp %749 : vector<8x128xf32>
    %cst_128 = arith.constant 1.000000e+00 : f32
    %751 = vector.broadcast %cst_128 : f32 to vector<8x128xf32>
    %752 = arith.addf %751, %750 : vector<8x128xf32>
    %753 = arith.divf %751, %752 : vector<8x128xf32>
    %754 = vector.extract_strided_slice %737 {offsets = [0, 256], sizes = [8, 128], strides = [1, 1]} : vector<8x512xf32> to vector<8x128xf32>
    %755 = math.tanh %754 : vector<8x128xf32>
    %756 = vector.extract_strided_slice %737 {offsets = [0, 384], sizes = [8, 128], strides = [1, 1]} : vector<8x512xf32> to vector<8x128xf32>
    %757 = arith.negf %756 : vector<8x128xf32>
    %758 = math.exp %757 : vector<8x128xf32>
    %cst_129 = arith.constant 1.000000e+00 : f32
    %759 = vector.broadcast %cst_129 : f32 to vector<8x128xf32>
    %760 = arith.addf %759, %758 : vector<8x128xf32>
    %761 = arith.divf %759, %760 : vector<8x128xf32>
    %762 = arith.mulf %753, %706 : vector<8x128xf32>
    %763 = arith.mulf %747, %755 : vector<8x128xf32>
    %764 = arith.addf %762, %763 : vector<8x128xf32>
    %765 = math.tanh %764 : vector<8x128xf32>
    %766 = arith.mulf %761, %765 : vector<8x128xf32>
    %767 = vector.extract_strided_slice %741 {offsets = [0, 0], sizes = [8, 128], strides = [1, 1]} : vector<8x512xf32> to vector<8x128xf32>
    %768 = arith.negf %767 : vector<8x128xf32>
    %769 = math.exp %768 : vector<8x128xf32>
    %cst_130 = arith.constant 1.000000e+00 : f32
    %770 = vector.broadcast %cst_130 : f32 to vector<8x128xf32>
    %771 = arith.addf %770, %769 : vector<8x128xf32>
    %772 = arith.divf %770, %771 : vector<8x128xf32>
    %773 = vector.extract_strided_slice %741 {offsets = [0, 128], sizes = [8, 128], strides = [1, 1]} : vector<8x512xf32> to vector<8x128xf32>
    %774 = arith.negf %773 : vector<8x128xf32>
    %775 = math.exp %774 : vector<8x128xf32>
    %cst_131 = arith.constant 1.000000e+00 : f32
    %776 = vector.broadcast %cst_131 : f32 to vector<8x128xf32>
    %777 = arith.addf %776, %775 : vector<8x128xf32>
    %778 = arith.divf %776, %777 : vector<8x128xf32>
    %779 = vector.extract_strided_slice %741 {offsets = [0, 256], sizes = [8, 128], strides = [1, 1]} : vector<8x512xf32> to vector<8x128xf32>
    %780 = math.tanh %779 : vector<8x128xf32>
    %781 = vector.extract_strided_slice %741 {offsets = [0, 384], sizes = [8, 128], strides = [1, 1]} : vector<8x512xf32> to vector<8x128xf32>
    %782 = arith.negf %781 : vector<8x128xf32>
    %783 = math.exp %782 : vector<8x128xf32>
    %cst_132 = arith.constant 1.000000e+00 : f32
    %784 = vector.broadcast %cst_132 : f32 to vector<8x128xf32>
    %785 = arith.addf %784, %783 : vector<8x128xf32>
    %786 = arith.divf %784, %785 : vector<8x128xf32>
    %787 = arith.mulf %778, %731 : vector<8x128xf32>
    %788 = arith.mulf %772, %780 : vector<8x128xf32>
    %789 = arith.addf %787, %788 : vector<8x128xf32>
    %790 = math.tanh %789 : vector<8x128xf32>
    %791 = arith.mulf %786, %790 : vector<8x128xf32>
    %792 = vector.extract_strided_slice %493 {offsets = [40, 0], sizes = [8, 512], strides = [1, 1]} : vector<64x1024xf32> to vector<8x512xf32>
    %793 = arith.truncf %766 : vector<8x128xf32> to vector<8x128xbf16>
    %cst_133 = arith.constant dense<0.000000e+00> : vector<8x512xf32>
    %794 = tpu.matmul %793, %495, %cst_133 {dimension_numbers = #tpu.dot_dimension_numbers<[1], [0], [0], [1], [0, 0, 1, 1], [], []>} : vector<8x128xbf16>, vector<128x512xbf16>, vector<8x512xf32> -> vector<8x512xf32>
    %795 = arith.addf %792, %794 : vector<8x512xf32>
    %796 = vector.extract_strided_slice %493 {offsets = [16, 512], sizes = [8, 512], strides = [1, 1]} : vector<64x1024xf32> to vector<8x512xf32>
    %797 = arith.truncf %791 : vector<8x128xf32> to vector<8x128xbf16>
    %cst_134 = arith.constant dense<0.000000e+00> : vector<8x512xf32>
    %798 = tpu.matmul %797, %497, %cst_134 {dimension_numbers = #tpu.dot_dimension_numbers<[1], [0], [0], [1], [0, 0, 1, 1], [], []>} : vector<8x128xbf16>, vector<128x512xbf16>, vector<8x512xf32> -> vector<8x512xf32>
    %799 = arith.addf %796, %798 : vector<8x512xf32>
    %800 = vector.extract_strided_slice %795 {offsets = [0, 0], sizes = [8, 128], strides = [1, 1]} : vector<8x512xf32> to vector<8x128xf32>
    %801 = arith.negf %800 : vector<8x128xf32>
    %802 = math.exp %801 : vector<8x128xf32>
    %cst_135 = arith.constant 1.000000e+00 : f32
    %803 = vector.broadcast %cst_135 : f32 to vector<8x128xf32>
    %804 = arith.addf %803, %802 : vector<8x128xf32>
    %805 = arith.divf %803, %804 : vector<8x128xf32>
    %806 = vector.extract_strided_slice %795 {offsets = [0, 128], sizes = [8, 128], strides = [1, 1]} : vector<8x512xf32> to vector<8x128xf32>
    %807 = arith.negf %806 : vector<8x128xf32>
    %808 = math.exp %807 : vector<8x128xf32>
    %cst_136 = arith.constant 1.000000e+00 : f32
    %809 = vector.broadcast %cst_136 : f32 to vector<8x128xf32>
    %810 = arith.addf %809, %808 : vector<8x128xf32>
    %811 = arith.divf %809, %810 : vector<8x128xf32>
    %812 = vector.extract_strided_slice %795 {offsets = [0, 256], sizes = [8, 128], strides = [1, 1]} : vector<8x512xf32> to vector<8x128xf32>
    %813 = math.tanh %812 : vector<8x128xf32>
    %814 = vector.extract_strided_slice %795 {offsets = [0, 384], sizes = [8, 128], strides = [1, 1]} : vector<8x512xf32> to vector<8x128xf32>
    %815 = arith.negf %814 : vector<8x128xf32>
    %816 = math.exp %815 : vector<8x128xf32>
    %cst_137 = arith.constant 1.000000e+00 : f32
    %817 = vector.broadcast %cst_137 : f32 to vector<8x128xf32>
    %818 = arith.addf %817, %816 : vector<8x128xf32>
    %819 = arith.divf %817, %818 : vector<8x128xf32>
    %820 = arith.mulf %811, %764 : vector<8x128xf32>
    %821 = arith.mulf %805, %813 : vector<8x128xf32>
    %822 = arith.addf %820, %821 : vector<8x128xf32>
    %823 = math.tanh %822 : vector<8x128xf32>
    %824 = arith.mulf %819, %823 : vector<8x128xf32>
    %825 = vector.extract_strided_slice %799 {offsets = [0, 0], sizes = [8, 128], strides = [1, 1]} : vector<8x512xf32> to vector<8x128xf32>
    %826 = arith.negf %825 : vector<8x128xf32>
    %827 = math.exp %826 : vector<8x128xf32>
    %cst_138 = arith.constant 1.000000e+00 : f32
    %828 = vector.broadcast %cst_138 : f32 to vector<8x128xf32>
    %829 = arith.addf %828, %827 : vector<8x128xf32>
    %830 = arith.divf %828, %829 : vector<8x128xf32>
    %831 = vector.extract_strided_slice %799 {offsets = [0, 128], sizes = [8, 128], strides = [1, 1]} : vector<8x512xf32> to vector<8x128xf32>
    %832 = arith.negf %831 : vector<8x128xf32>
    %833 = math.exp %832 : vector<8x128xf32>
    %cst_139 = arith.constant 1.000000e+00 : f32
    %834 = vector.broadcast %cst_139 : f32 to vector<8x128xf32>
    %835 = arith.addf %834, %833 : vector<8x128xf32>
    %836 = arith.divf %834, %835 : vector<8x128xf32>
    %837 = vector.extract_strided_slice %799 {offsets = [0, 256], sizes = [8, 128], strides = [1, 1]} : vector<8x512xf32> to vector<8x128xf32>
    %838 = math.tanh %837 : vector<8x128xf32>
    %839 = vector.extract_strided_slice %799 {offsets = [0, 384], sizes = [8, 128], strides = [1, 1]} : vector<8x512xf32> to vector<8x128xf32>
    %840 = arith.negf %839 : vector<8x128xf32>
    %841 = math.exp %840 : vector<8x128xf32>
    %cst_140 = arith.constant 1.000000e+00 : f32
    %842 = vector.broadcast %cst_140 : f32 to vector<8x128xf32>
    %843 = arith.addf %842, %841 : vector<8x128xf32>
    %844 = arith.divf %842, %843 : vector<8x128xf32>
    %845 = arith.mulf %836, %789 : vector<8x128xf32>
    %846 = arith.mulf %830, %838 : vector<8x128xf32>
    %847 = arith.addf %845, %846 : vector<8x128xf32>
    %848 = math.tanh %847 : vector<8x128xf32>
    %849 = arith.mulf %844, %848 : vector<8x128xf32>
    %850 = vector.extract_strided_slice %493 {offsets = [48, 0], sizes = [8, 512], strides = [1, 1]} : vector<64x1024xf32> to vector<8x512xf32>
    %851 = arith.truncf %824 : vector<8x128xf32> to vector<8x128xbf16>
    %cst_141 = arith.constant dense<0.000000e+00> : vector<8x512xf32>
    %852 = tpu.matmul %851, %495, %cst_141 {dimension_numbers = #tpu.dot_dimension_numbers<[1], [0], [0], [1], [0, 0, 1, 1], [], []>} : vector<8x128xbf16>, vector<128x512xbf16>, vector<8x512xf32> -> vector<8x512xf32>
    %853 = arith.addf %850, %852 : vector<8x512xf32>
    %854 = vector.extract_strided_slice %493 {offsets = [8, 512], sizes = [8, 512], strides = [1, 1]} : vector<64x1024xf32> to vector<8x512xf32>
    %855 = arith.truncf %849 : vector<8x128xf32> to vector<8x128xbf16>
    %cst_142 = arith.constant dense<0.000000e+00> : vector<8x512xf32>
    %856 = tpu.matmul %855, %497, %cst_142 {dimension_numbers = #tpu.dot_dimension_numbers<[1], [0], [0], [1], [0, 0, 1, 1], [], []>} : vector<8x128xbf16>, vector<128x512xbf16>, vector<8x512xf32> -> vector<8x512xf32>
    %857 = arith.addf %854, %856 : vector<8x512xf32>
    %858 = vector.extract_strided_slice %853 {offsets = [0, 0], sizes = [8, 128], strides = [1, 1]} : vector<8x512xf32> to vector<8x128xf32>
    %859 = arith.negf %858 : vector<8x128xf32>
    %860 = math.exp %859 : vector<8x128xf32>
    %cst_143 = arith.constant 1.000000e+00 : f32
    %861 = vector.broadcast %cst_143 : f32 to vector<8x128xf32>
    %862 = arith.addf %861, %860 : vector<8x128xf32>
    %863 = arith.divf %861, %862 : vector<8x128xf32>
    %864 = vector.extract_strided_slice %853 {offsets = [0, 128], sizes = [8, 128], strides = [1, 1]} : vector<8x512xf32> to vector<8x128xf32>
    %865 = arith.negf %864 : vector<8x128xf32>
    %866 = math.exp %865 : vector<8x128xf32>
    %cst_144 = arith.constant 1.000000e+00 : f32
    %867 = vector.broadcast %cst_144 : f32 to vector<8x128xf32>
    %868 = arith.addf %867, %866 : vector<8x128xf32>
    %869 = arith.divf %867, %868 : vector<8x128xf32>
    %870 = vector.extract_strided_slice %853 {offsets = [0, 256], sizes = [8, 128], strides = [1, 1]} : vector<8x512xf32> to vector<8x128xf32>
    %871 = math.tanh %870 : vector<8x128xf32>
    %872 = vector.extract_strided_slice %853 {offsets = [0, 384], sizes = [8, 128], strides = [1, 1]} : vector<8x512xf32> to vector<8x128xf32>
    %873 = arith.negf %872 : vector<8x128xf32>
    %874 = math.exp %873 : vector<8x128xf32>
    %cst_145 = arith.constant 1.000000e+00 : f32
    %875 = vector.broadcast %cst_145 : f32 to vector<8x128xf32>
    %876 = arith.addf %875, %874 : vector<8x128xf32>
    %877 = arith.divf %875, %876 : vector<8x128xf32>
    %878 = arith.mulf %869, %822 : vector<8x128xf32>
    %879 = arith.mulf %863, %871 : vector<8x128xf32>
    %880 = arith.addf %878, %879 : vector<8x128xf32>
    %881 = math.tanh %880 : vector<8x128xf32>
    %882 = arith.mulf %877, %881 : vector<8x128xf32>
    %883 = vector.extract_strided_slice %857 {offsets = [0, 0], sizes = [8, 128], strides = [1, 1]} : vector<8x512xf32> to vector<8x128xf32>
    %884 = arith.negf %883 : vector<8x128xf32>
    %885 = math.exp %884 : vector<8x128xf32>
    %cst_146 = arith.constant 1.000000e+00 : f32
    %886 = vector.broadcast %cst_146 : f32 to vector<8x128xf32>
    %887 = arith.addf %886, %885 : vector<8x128xf32>
    %888 = arith.divf %886, %887 : vector<8x128xf32>
    %889 = vector.extract_strided_slice %857 {offsets = [0, 128], sizes = [8, 128], strides = [1, 1]} : vector<8x512xf32> to vector<8x128xf32>
    %890 = arith.negf %889 : vector<8x128xf32>
    %891 = math.exp %890 : vector<8x128xf32>
    %cst_147 = arith.constant 1.000000e+00 : f32
    %892 = vector.broadcast %cst_147 : f32 to vector<8x128xf32>
    %893 = arith.addf %892, %891 : vector<8x128xf32>
    %894 = arith.divf %892, %893 : vector<8x128xf32>
    %895 = vector.extract_strided_slice %857 {offsets = [0, 256], sizes = [8, 128], strides = [1, 1]} : vector<8x512xf32> to vector<8x128xf32>
    %896 = math.tanh %895 : vector<8x128xf32>
    %897 = vector.extract_strided_slice %857 {offsets = [0, 384], sizes = [8, 128], strides = [1, 1]} : vector<8x512xf32> to vector<8x128xf32>
    %898 = arith.negf %897 : vector<8x128xf32>
    %899 = math.exp %898 : vector<8x128xf32>
    %cst_148 = arith.constant 1.000000e+00 : f32
    %900 = vector.broadcast %cst_148 : f32 to vector<8x128xf32>
    %901 = arith.addf %900, %899 : vector<8x128xf32>
    %902 = arith.divf %900, %901 : vector<8x128xf32>
    %903 = arith.mulf %894, %847 : vector<8x128xf32>
    %904 = arith.mulf %888, %896 : vector<8x128xf32>
    %905 = arith.addf %903, %904 : vector<8x128xf32>
    %906 = math.tanh %905 : vector<8x128xf32>
    %907 = arith.mulf %902, %906 : vector<8x128xf32>
    %908 = vector.extract_strided_slice %493 {offsets = [56, 0], sizes = [8, 512], strides = [1, 1]} : vector<64x1024xf32> to vector<8x512xf32>
    %909 = arith.truncf %882 : vector<8x128xf32> to vector<8x128xbf16>
    %cst_149 = arith.constant dense<0.000000e+00> : vector<8x512xf32>
    %910 = tpu.matmul %909, %495, %cst_149 {dimension_numbers = #tpu.dot_dimension_numbers<[1], [0], [0], [1], [0, 0, 1, 1], [], []>} : vector<8x128xbf16>, vector<128x512xbf16>, vector<8x512xf32> -> vector<8x512xf32>
    %911 = arith.addf %908, %910 : vector<8x512xf32>
    %912 = vector.extract_strided_slice %493 {offsets = [0, 512], sizes = [8, 512], strides = [1, 1]} : vector<64x1024xf32> to vector<8x512xf32>
    %913 = arith.truncf %907 : vector<8x128xf32> to vector<8x128xbf16>
    %cst_150 = arith.constant dense<0.000000e+00> : vector<8x512xf32>
    %914 = tpu.matmul %913, %497, %cst_150 {dimension_numbers = #tpu.dot_dimension_numbers<[1], [0], [0], [1], [0, 0, 1, 1], [], []>} : vector<8x128xbf16>, vector<128x512xbf16>, vector<8x512xf32> -> vector<8x512xf32>
    %915 = arith.addf %912, %914 : vector<8x512xf32>
    %916 = vector.extract_strided_slice %911 {offsets = [0, 0], sizes = [8, 128], strides = [1, 1]} : vector<8x512xf32> to vector<8x128xf32>
    %917 = arith.negf %916 : vector<8x128xf32>
    %918 = math.exp %917 : vector<8x128xf32>
    %cst_151 = arith.constant 1.000000e+00 : f32
    %919 = vector.broadcast %cst_151 : f32 to vector<8x128xf32>
    %920 = arith.addf %919, %918 : vector<8x128xf32>
    %921 = arith.divf %919, %920 : vector<8x128xf32>
    %922 = vector.extract_strided_slice %911 {offsets = [0, 128], sizes = [8, 128], strides = [1, 1]} : vector<8x512xf32> to vector<8x128xf32>
    %923 = arith.negf %922 : vector<8x128xf32>
    %924 = math.exp %923 : vector<8x128xf32>
    %cst_152 = arith.constant 1.000000e+00 : f32
    %925 = vector.broadcast %cst_152 : f32 to vector<8x128xf32>
    %926 = arith.addf %925, %924 : vector<8x128xf32>
    %927 = arith.divf %925, %926 : vector<8x128xf32>
    %928 = vector.extract_strided_slice %911 {offsets = [0, 256], sizes = [8, 128], strides = [1, 1]} : vector<8x512xf32> to vector<8x128xf32>
    %929 = math.tanh %928 : vector<8x128xf32>
    %930 = vector.extract_strided_slice %911 {offsets = [0, 384], sizes = [8, 128], strides = [1, 1]} : vector<8x512xf32> to vector<8x128xf32>
    %931 = arith.negf %930 : vector<8x128xf32>
    %932 = math.exp %931 : vector<8x128xf32>
    %cst_153 = arith.constant 1.000000e+00 : f32
    %933 = vector.broadcast %cst_153 : f32 to vector<8x128xf32>
    %934 = arith.addf %933, %932 : vector<8x128xf32>
    %935 = arith.divf %933, %934 : vector<8x128xf32>
    %936 = arith.mulf %927, %880 : vector<8x128xf32>
    %937 = arith.mulf %921, %929 : vector<8x128xf32>
    %938 = arith.addf %936, %937 : vector<8x128xf32>
    %939 = math.tanh %938 : vector<8x128xf32>
    %940 = arith.mulf %935, %939 : vector<8x128xf32>
    %941 = vector.extract_strided_slice %915 {offsets = [0, 0], sizes = [8, 128], strides = [1, 1]} : vector<8x512xf32> to vector<8x128xf32>
    %942 = arith.negf %941 : vector<8x128xf32>
    %943 = math.exp %942 : vector<8x128xf32>
    %cst_154 = arith.constant 1.000000e+00 : f32
    %944 = vector.broadcast %cst_154 : f32 to vector<8x128xf32>
    %945 = arith.addf %944, %943 : vector<8x128xf32>
    %946 = arith.divf %944, %945 : vector<8x128xf32>
    %947 = vector.extract_strided_slice %915 {offsets = [0, 128], sizes = [8, 128], strides = [1, 1]} : vector<8x512xf32> to vector<8x128xf32>
    %948 = arith.negf %947 : vector<8x128xf32>
    %949 = math.exp %948 : vector<8x128xf32>
    %cst_155 = arith.constant 1.000000e+00 : f32
    %950 = vector.broadcast %cst_155 : f32 to vector<8x128xf32>
    %951 = arith.addf %950, %949 : vector<8x128xf32>
    %952 = arith.divf %950, %951 : vector<8x128xf32>
    %953 = vector.extract_strided_slice %915 {offsets = [0, 256], sizes = [8, 128], strides = [1, 1]} : vector<8x512xf32> to vector<8x128xf32>
    %954 = math.tanh %953 : vector<8x128xf32>
    %955 = vector.extract_strided_slice %915 {offsets = [0, 384], sizes = [8, 128], strides = [1, 1]} : vector<8x512xf32> to vector<8x128xf32>
    %956 = arith.negf %955 : vector<8x128xf32>
    %957 = math.exp %956 : vector<8x128xf32>
    %cst_156 = arith.constant 1.000000e+00 : f32
    %958 = vector.broadcast %cst_156 : f32 to vector<8x128xf32>
    %959 = arith.addf %958, %957 : vector<8x128xf32>
    %960 = arith.divf %958, %959 : vector<8x128xf32>
    %961 = arith.mulf %952, %905 : vector<8x128xf32>
    %962 = arith.mulf %946, %954 : vector<8x128xf32>
    %963 = arith.addf %961, %962 : vector<8x128xf32>
    %964 = math.tanh %963 : vector<8x128xf32>
    %965 = arith.mulf %960, %964 : vector<8x128xf32>
    %966 = tpu.concatenate %534, %965 in 1 : vector<8x128xf32>, vector<8x128xf32> -> vector<8x256xf32>
    %967 = tpu.concatenate %592, %907 in 1 : vector<8x128xf32>, vector<8x128xf32> -> vector<8x256xf32>
    %968 = tpu.concatenate %650, %849 in 1 : vector<8x128xf32>, vector<8x128xf32> -> vector<8x256xf32>
    %969 = tpu.concatenate %708, %791 in 1 : vector<8x128xf32>, vector<8x128xf32> -> vector<8x256xf32>
    %970 = tpu.concatenate %766, %733 in 1 : vector<8x128xf32>, vector<8x128xf32> -> vector<8x256xf32>
    %971 = tpu.concatenate %824, %675 in 1 : vector<8x128xf32>, vector<8x128xf32> -> vector<8x256xf32>
    %972 = tpu.concatenate %882, %617 in 1 : vector<8x128xf32>, vector<8x128xf32> -> vector<8x256xf32>
    %973 = tpu.concatenate %940, %559 in 1 : vector<8x128xf32>, vector<8x128xf32> -> vector<8x256xf32>
    %974 = tpu.concatenate %966, %967, %968, %969, %970, %971, %972, %973 in 0 : vector<8x256xf32>, vector<8x256xf32>, vector<8x256xf32>, vector<8x256xf32>, vector<8x256xf32>, vector<8x256xf32>, vector<8x256xf32>, vector<8x256xf32> -> vector<64x256xf32>
    %975 = vector.extract_strided_slice %974 {offsets = [0, 0], sizes = [8, 256], strides = [1, 1]} : vector<64x256xf32> to vector<8x256xf32>
    %976 = vector.extract_strided_slice %974 {offsets = [8, 0], sizes = [8, 256], strides = [1, 1]} : vector<64x256xf32> to vector<8x256xf32>
    %977 = arith.addf %975, %976 : vector<8x256xf32>
    %978 = vector.extract_strided_slice %974 {offsets = [16, 0], sizes = [8, 256], strides = [1, 1]} : vector<64x256xf32> to vector<8x256xf32>
    %979 = arith.addf %977, %978 : vector<8x256xf32>
    %980 = vector.extract_strided_slice %974 {offsets = [24, 0], sizes = [8, 256], strides = [1, 1]} : vector<64x256xf32> to vector<8x256xf32>
    %981 = arith.addf %979, %980 : vector<8x256xf32>
    %982 = vector.extract_strided_slice %974 {offsets = [32, 0], sizes = [8, 256], strides = [1, 1]} : vector<64x256xf32> to vector<8x256xf32>
    %983 = arith.addf %981, %982 : vector<8x256xf32>
    %984 = vector.extract_strided_slice %974 {offsets = [40, 0], sizes = [8, 256], strides = [1, 1]} : vector<64x256xf32> to vector<8x256xf32>
    %985 = arith.addf %983, %984 : vector<8x256xf32>
    %986 = vector.extract_strided_slice %974 {offsets = [48, 0], sizes = [8, 256], strides = [1, 1]} : vector<64x256xf32> to vector<8x256xf32>
    %987 = arith.addf %985, %986 : vector<8x256xf32>
    %988 = vector.extract_strided_slice %974 {offsets = [56, 0], sizes = [8, 256], strides = [1, 1]} : vector<64x256xf32> to vector<8x256xf32>
    %989 = arith.addf %987, %988 : vector<8x256xf32>
    %cst_157 = arith.constant 1.250000e-01 : f32
    %990 = vector.broadcast %cst_157 : f32 to vector<8x256xf32>
    %991 = arith.mulf %989, %990 : vector<8x256xf32>
    %992 = arith.truncf %991 : vector<8x256xf32> to vector<8x256xbf16>
    %c0_158 = arith.constant 0 : index
    %c0_159 = arith.constant 0 : index
    %993 = vector.load %arg7[%c0_158, %c0_159] : memref<256x128xbf16, #tpu.memory_space<vmem>>, vector<256x128xbf16>
    %cst_160 = arith.constant dense<0.000000e+00> : vector<8x128xf32>
    %994 = tpu.matmul %992, %993, %cst_160 {dimension_numbers = #tpu.dot_dimension_numbers<[1], [0], [0], [1], [0, 0, 1, 1], [], []>} : vector<8x256xbf16>, vector<256x128xbf16>, vector<8x128xf32> -> vector<8x128xf32>
    %c0_161 = arith.constant 0 : index
    %c0_162 = arith.constant 0 : index
    %995 = vector.load %arg8[%c0_161, %c0_162] : memref<1x128xf32, #tpu.memory_space<vmem>>, vector<1x128xf32>
    %996 = vector.broadcast %995 : vector<1x128xf32> to vector<8x128xf32>
    %997 = arith.addf %994, %996 : vector<8x128xf32>
    %c0_163 = arith.constant 0 : index
    %c0_164 = arith.constant 0 : index
    %998 = vector.load %arg9[%c0_163, %c0_164] : memref<8x128xf32, #tpu.memory_space<vmem>>, vector<8x128xf32>
    %999 = arith.mulf %997, %998 : vector<8x128xf32>
    %1000 = arith.truncf %999 : vector<8x128xf32> to vector<8x128xbf16>
    %c0_165 = arith.constant 0 : index
    %c0_166 = arith.constant 0 : index
    %1001 = vector.load %arg10[%c0_165, %c0_166] : memref<128x128xbf16, #tpu.memory_space<vmem>>, vector<128x128xbf16>
    %cst_167 = arith.constant dense<0.000000e+00> : vector<8x128xf32>
    %1002 = tpu.matmul %1000, %1001, %cst_167 {dimension_numbers = #tpu.dot_dimension_numbers<[1], [0], [0], [1], [0, 0, 1, 1], [], []>} : vector<8x128xbf16>, vector<128x128xbf16>, vector<8x128xf32> -> vector<8x128xf32>
    %c0_168 = arith.constant 0 : index
    %c0_169 = arith.constant 0 : index
    %1003 = vector.load %arg15[%c0_168, %c0_169] : memref<8x8xf32, #tpu.memory_space<vmem>>, vector<8x8xf32>
    %cst_170 = arith.constant 0.000000e+00 : f32
    %1004 = vector.broadcast %cst_170 : f32 to vector<8x8xf32>
    %1005 = arith.cmpf ogt, %1003, %1004 : vector<8x8xf32>
    %1006 = arith.extui %1005 : vector<8x8xi1> to vector<8x8xi32>
    %1007 = arith.sitofp %1006 : vector<8x8xi32> to vector<8x8xf32>
    %c0_171 = arith.constant 0 : index
    %c0_172 = arith.constant 0 : index
    %1008 = vector.load %arg14[%c0_171, %c0_172] : memref<128x4xf32, #tpu.memory_space<vmem>>, vector<128x4xf32>
    %c0_173 = arith.constant 0 : index
    %c0_174 = arith.constant 0 : index
    %1009 = vector.load %arg12[%c0_173, %c0_174] : memref<1x128xf32, #tpu.memory_space<vmem>>, vector<1x128xf32>
    %1010 = vector.broadcast %1009 : vector<1x128xf32> to vector<8x128xf32>
    %1011 = arith.mulf %1002, %1010 : vector<8x128xf32>
    %cst_175 = arith.constant dense<0.000000e+00> : vector<8x4xf32>
    %1012 = tpu.matmul %1011, %1008, %cst_175 {dimension_numbers = #tpu.dot_dimension_numbers<[1], [0], [0], [1], [0, 0, 1, 1], [], []>} : vector<8x128xf32>, vector<128x4xf32>, vector<8x4xf32> -> vector<8x4xf32>
    %c0_176 = arith.constant 0 : index
    %c0_177 = arith.constant 0 : index
    %1013 = vector.load %arg11[%c0_176, %c0_177] : memref<1x128xf32, #tpu.memory_space<vmem>>, vector<1x128xf32>
    %1014 = vector.broadcast %1013 : vector<1x128xf32> to vector<8x128xf32>
    %1015 = arith.mulf %1002, %1014 : vector<8x128xf32>
    %cst_178 = arith.constant dense<0.000000e+00> : vector<8x4xf32>
    %1016 = tpu.matmul %1015, %1008, %cst_178 {dimension_numbers = #tpu.dot_dimension_numbers<[1], [0], [0], [1], [0, 0, 1, 1], [], []>} : vector<8x128xf32>, vector<128x4xf32>, vector<8x4xf32> -> vector<8x4xf32>
    %1017 = tpu.transpose %1016, [1, 0] : vector<8x4xf32> -> vector<4x8xf32>
    %1018 = vector.extract_strided_slice %1012 {offsets = [0, 0], sizes = [8, 1], strides = [1, 1]} : vector<8x4xf32> to vector<8x1xf32>
    %1019 = vector.extract_strided_slice %1017 {offsets = [0, 0], sizes = [1, 8], strides = [1, 1]} : vector<4x8xf32> to vector<1x8xf32>
    %1020 = vector.broadcast %1018 : vector<8x1xf32> to vector<8x8xf32>
    %1021 = vector.broadcast %1019 : vector<1x8xf32> to vector<8x8xf32>
    %1022 = arith.addf %1020, %1021 : vector<8x8xf32>
    %cst_179 = arith.constant 0.000000e+00 : f32
    %1023 = vector.broadcast %cst_179 : f32 to vector<8x8xf32>
    %1024 = arith.cmpf ogt, %1022, %1023 : vector<8x8xf32>
    %cst_180 = arith.constant 2.000000e-01 : f32
    %1025 = vector.broadcast %cst_180 : f32 to vector<8x8xf32>
    %1026 = arith.mulf %1025, %1022 : vector<8x8xf32>
    %1027 = arith.select %1024, %1022, %1026 : vector<8x8xi1>, vector<8x8xf32>
    %cst_181 = arith.constant -1.000000e+30 : f32
    %1028 = vector.broadcast %cst_181 : f32 to vector<8x8xf32>
    %1029 = arith.select %1005, %1027, %1028 : vector<8x8xi1>, vector<8x8xf32>
    %cst_182 = arith.constant dense<0xFF800000> : vector<8xf32>
    %1030 = vector.multi_reduction <maximumf>, %1029, %cst_182 [1] : vector<8x8xf32> to vector<8xf32>
    %1031 = vector.shape_cast %1030 : vector<8xf32> to vector<8x1xf32>
    %1032 = vector.broadcast %1031 : vector<8x1xf32> to vector<8x8xf32>
    %1033 = arith.subf %1029, %1032 : vector<8x8xf32>
    %1034 = math.exp %1033 : vector<8x8xf32>
    %1035 = arith.mulf %1034, %1007 : vector<8x8xf32>
    %cst_183 = arith.constant dense<0.000000e+00> : vector<8xf32>
    %1036 = vector.multi_reduction <add>, %1035, %cst_183 [1] : vector<8x8xf32> to vector<8xf32>
    %1037 = vector.shape_cast %1036 : vector<8xf32> to vector<8x1xf32>
    %1038 = vector.broadcast %1037 : vector<8x1xf32> to vector<8x8xf32>
    %1039 = arith.divf %1035, %1038 : vector<8x8xf32>
    %1040 = vector.extract_strided_slice %1002 {offsets = [0, 0], sizes = [8, 32], strides = [1, 1]} : vector<8x128xf32> to vector<8x32xf32>
    %cst_184 = arith.constant dense<0.000000e+00> : vector<8x32xf32>
    %1041 = tpu.matmul %1039, %1040, %cst_184 {dimension_numbers = #tpu.dot_dimension_numbers<[1], [0], [0], [1], [0, 0, 1, 1], [], []>} : vector<8x8xf32>, vector<8x32xf32>, vector<8x32xf32> -> vector<8x32xf32>
    %1042 = vector.extract_strided_slice %1012 {offsets = [0, 1], sizes = [8, 1], strides = [1, 1]} : vector<8x4xf32> to vector<8x1xf32>
    %1043 = vector.extract_strided_slice %1017 {offsets = [1, 0], sizes = [1, 8], strides = [1, 1]} : vector<4x8xf32> to vector<1x8xf32>
    %1044 = vector.broadcast %1042 : vector<8x1xf32> to vector<8x8xf32>
    %1045 = vector.broadcast %1043 : vector<1x8xf32> to vector<8x8xf32>
    %1046 = arith.addf %1044, %1045 : vector<8x8xf32>
    %cst_185 = arith.constant 0.000000e+00 : f32
    %1047 = vector.broadcast %cst_185 : f32 to vector<8x8xf32>
    %1048 = arith.cmpf ogt, %1046, %1047 : vector<8x8xf32>
    %cst_186 = arith.constant 2.000000e-01 : f32
    %1049 = vector.broadcast %cst_186 : f32 to vector<8x8xf32>
    %1050 = arith.mulf %1049, %1046 : vector<8x8xf32>
    %1051 = arith.select %1048, %1046, %1050 : vector<8x8xi1>, vector<8x8xf32>
    %cst_187 = arith.constant -1.000000e+30 : f32
    %1052 = vector.broadcast %cst_187 : f32 to vector<8x8xf32>
    %1053 = arith.select %1005, %1051, %1052 : vector<8x8xi1>, vector<8x8xf32>
    %cst_188 = arith.constant dense<0xFF800000> : vector<8xf32>
    %1054 = vector.multi_reduction <maximumf>, %1053, %cst_188 [1] : vector<8x8xf32> to vector<8xf32>
    %1055 = vector.shape_cast %1054 : vector<8xf32> to vector<8x1xf32>
    %1056 = vector.broadcast %1055 : vector<8x1xf32> to vector<8x8xf32>
    %1057 = arith.subf %1053, %1056 : vector<8x8xf32>
    %1058 = math.exp %1057 : vector<8x8xf32>
    %1059 = arith.mulf %1058, %1007 : vector<8x8xf32>
    %cst_189 = arith.constant dense<0.000000e+00> : vector<8xf32>
    %1060 = vector.multi_reduction <add>, %1059, %cst_189 [1] : vector<8x8xf32> to vector<8xf32>
    %1061 = vector.shape_cast %1060 : vector<8xf32> to vector<8x1xf32>
    %1062 = vector.broadcast %1061 : vector<8x1xf32> to vector<8x8xf32>
    %1063 = arith.divf %1059, %1062 : vector<8x8xf32>
    %1064 = vector.extract_strided_slice %1002 {offsets = [0, 32], sizes = [8, 32], strides = [1, 1]} : vector<8x128xf32> to vector<8x32xf32>
    %cst_190 = arith.constant dense<0.000000e+00> : vector<8x32xf32>
    %1065 = tpu.matmul %1063, %1064, %cst_190 {dimension_numbers = #tpu.dot_dimension_numbers<[1], [0], [0], [1], [0, 0, 1, 1], [], []>} : vector<8x8xf32>, vector<8x32xf32>, vector<8x32xf32> -> vector<8x32xf32>
    %1066 = vector.extract_strided_slice %1012 {offsets = [0, 2], sizes = [8, 1], strides = [1, 1]} : vector<8x4xf32> to vector<8x1xf32>
    %1067 = vector.extract_strided_slice %1017 {offsets = [2, 0], sizes = [1, 8], strides = [1, 1]} : vector<4x8xf32> to vector<1x8xf32>
    %1068 = vector.broadcast %1066 : vector<8x1xf32> to vector<8x8xf32>
    %1069 = vector.broadcast %1067 : vector<1x8xf32> to vector<8x8xf32>
    %1070 = arith.addf %1068, %1069 : vector<8x8xf32>
    %cst_191 = arith.constant 0.000000e+00 : f32
    %1071 = vector.broadcast %cst_191 : f32 to vector<8x8xf32>
    %1072 = arith.cmpf ogt, %1070, %1071 : vector<8x8xf32>
    %cst_192 = arith.constant 2.000000e-01 : f32
    %1073 = vector.broadcast %cst_192 : f32 to vector<8x8xf32>
    %1074 = arith.mulf %1073, %1070 : vector<8x8xf32>
    %1075 = arith.select %1072, %1070, %1074 : vector<8x8xi1>, vector<8x8xf32>
    %cst_193 = arith.constant -1.000000e+30 : f32
    %1076 = vector.broadcast %cst_193 : f32 to vector<8x8xf32>
    %1077 = arith.select %1005, %1075, %1076 : vector<8x8xi1>, vector<8x8xf32>
    %cst_194 = arith.constant dense<0xFF800000> : vector<8xf32>
    %1078 = vector.multi_reduction <maximumf>, %1077, %cst_194 [1] : vector<8x8xf32> to vector<8xf32>
    %1079 = vector.shape_cast %1078 : vector<8xf32> to vector<8x1xf32>
    %1080 = vector.broadcast %1079 : vector<8x1xf32> to vector<8x8xf32>
    %1081 = arith.subf %1077, %1080 : vector<8x8xf32>
    %1082 = math.exp %1081 : vector<8x8xf32>
    %1083 = arith.mulf %1082, %1007 : vector<8x8xf32>
    %cst_195 = arith.constant dense<0.000000e+00> : vector<8xf32>
    %1084 = vector.multi_reduction <add>, %1083, %cst_195 [1] : vector<8x8xf32> to vector<8xf32>
    %1085 = vector.shape_cast %1084 : vector<8xf32> to vector<8x1xf32>
    %1086 = vector.broadcast %1085 : vector<8x1xf32> to vector<8x8xf32>
    %1087 = arith.divf %1083, %1086 : vector<8x8xf32>
    %1088 = vector.extract_strided_slice %1002 {offsets = [0, 64], sizes = [8, 32], strides = [1, 1]} : vector<8x128xf32> to vector<8x32xf32>
    %cst_196 = arith.constant dense<0.000000e+00> : vector<8x32xf32>
    %1089 = tpu.matmul %1087, %1088, %cst_196 {dimension_numbers = #tpu.dot_dimension_numbers<[1], [0], [0], [1], [0, 0, 1, 1], [], []>} : vector<8x8xf32>, vector<8x32xf32>, vector<8x32xf32> -> vector<8x32xf32>
    %1090 = vector.extract_strided_slice %1012 {offsets = [0, 3], sizes = [8, 1], strides = [1, 1]} : vector<8x4xf32> to vector<8x1xf32>
    %1091 = vector.extract_strided_slice %1017 {offsets = [3, 0], sizes = [1, 8], strides = [1, 1]} : vector<4x8xf32> to vector<1x8xf32>
    %1092 = vector.broadcast %1090 : vector<8x1xf32> to vector<8x8xf32>
    %1093 = vector.broadcast %1091 : vector<1x8xf32> to vector<8x8xf32>
    %1094 = arith.addf %1092, %1093 : vector<8x8xf32>
    %cst_197 = arith.constant 0.000000e+00 : f32
    %1095 = vector.broadcast %cst_197 : f32 to vector<8x8xf32>
    %1096 = arith.cmpf ogt, %1094, %1095 : vector<8x8xf32>
    %cst_198 = arith.constant 2.000000e-01 : f32
    %1097 = vector.broadcast %cst_198 : f32 to vector<8x8xf32>
    %1098 = arith.mulf %1097, %1094 : vector<8x8xf32>
    %1099 = arith.select %1096, %1094, %1098 : vector<8x8xi1>, vector<8x8xf32>
    %cst_199 = arith.constant -1.000000e+30 : f32
    %1100 = vector.broadcast %cst_199 : f32 to vector<8x8xf32>
    %1101 = arith.select %1005, %1099, %1100 : vector<8x8xi1>, vector<8x8xf32>
    %cst_200 = arith.constant dense<0xFF800000> : vector<8xf32>
    %1102 = vector.multi_reduction <maximumf>, %1101, %cst_200 [1] : vector<8x8xf32> to vector<8xf32>
    %1103 = vector.shape_cast %1102 : vector<8xf32> to vector<8x1xf32>
    %1104 = vector.broadcast %1103 : vector<8x1xf32> to vector<8x8xf32>
    %1105 = arith.subf %1101, %1104 : vector<8x8xf32>
    %1106 = math.exp %1105 : vector<8x8xf32>
    %1107 = arith.mulf %1106, %1007 : vector<8x8xf32>
    %cst_201 = arith.constant dense<0.000000e+00> : vector<8xf32>
    %1108 = vector.multi_reduction <add>, %1107, %cst_201 [1] : vector<8x8xf32> to vector<8xf32>
    %1109 = vector.shape_cast %1108 : vector<8xf32> to vector<8x1xf32>
    %1110 = vector.broadcast %1109 : vector<8x1xf32> to vector<8x8xf32>
    %1111 = arith.divf %1107, %1110 : vector<8x8xf32>
    %1112 = vector.extract_strided_slice %1002 {offsets = [0, 96], sizes = [8, 32], strides = [1, 1]} : vector<8x128xf32> to vector<8x32xf32>
    %cst_202 = arith.constant dense<0.000000e+00> : vector<8x32xf32>
    %1113 = tpu.matmul %1111, %1112, %cst_202 {dimension_numbers = #tpu.dot_dimension_numbers<[1], [0], [0], [1], [0, 0, 1, 1], [], []>} : vector<8x8xf32>, vector<8x32xf32>, vector<8x32xf32> -> vector<8x32xf32>
    %1114 = tpu.concatenate %1041, %1065, %1089, %1113 in 1 : vector<8x32xf32>, vector<8x32xf32>, vector<8x32xf32>, vector<8x32xf32> -> vector<8x128xf32>
    %c0_203 = arith.constant 0 : index
    %c0_204 = arith.constant 0 : index
    %1115 = vector.load %arg13[%c0_203, %c0_204] : memref<1x128xf32, #tpu.memory_space<vmem>>, vector<1x128xf32>
    %1116 = vector.broadcast %1115 : vector<1x128xf32> to vector<8x128xf32>
    %1117 = arith.addf %1114, %1116 : vector<8x128xf32>
    %cst_205 = arith.constant 0.000000e+00 : f32
    %1118 = vector.broadcast %cst_205 : f32 to vector<8x128xf32>
    %1119 = arith.cmpf ogt, %1117, %1118 : vector<8x128xf32>
    %1120 = math.exp %1117 : vector<8x128xf32>
    %cst_206 = arith.constant 1.000000e+00 : f32
    %1121 = vector.broadcast %cst_206 : f32 to vector<8x128xf32>
    %1122 = arith.subf %1120, %1121 : vector<8x128xf32>
    %1123 = arith.select %1119, %1117, %1122 : vector<8x128xi1>, vector<8x128xf32>
    %c0_207 = arith.constant 0 : index
    %c0_208 = arith.constant 0 : index
    %1124 = vector.load %arg16[%c0_207, %c0_208] : memref<8x128xf32, #tpu.memory_space<vmem>>, vector<8x128xf32>
    %1125 = arith.mulf %1123, %1124 : vector<8x128xf32>
    %1126 = arith.truncf %1125 : vector<8x128xf32> to vector<8x128xbf16>
    %c0_209 = arith.constant 0 : index
    %c0_210 = arith.constant 0 : index
    %1127 = vector.load %arg17[%c0_209, %c0_210] : memref<128x64xbf16, #tpu.memory_space<vmem>>, vector<128x64xbf16>
    %cst_211 = arith.constant dense<0.000000e+00> : vector<8x64xf32>
    %1128 = tpu.matmul %1126, %1127, %cst_211 {dimension_numbers = #tpu.dot_dimension_numbers<[1], [0], [0], [1], [0, 0, 1, 1], [], []>} : vector<8x128xbf16>, vector<128x64xbf16>, vector<8x64xf32> -> vector<8x64xf32>
    %c0_212 = arith.constant 0 : index
    %c0_213 = arith.constant 0 : index
    %1129 = vector.load %arg19[%c0_212, %c0_213] : memref<1x64xf32, #tpu.memory_space<vmem>>, vector<1x64xf32>
    %1130 = vector.broadcast %1129 : vector<1x64xf32> to vector<8x64xf32>
    %1131 = arith.mulf %1128, %1130 : vector<8x64xf32>
    %cst_214 = arith.constant dense<0.000000e+00> : vector<8xf32>
    %1132 = vector.multi_reduction <add>, %1131, %cst_214 [1] : vector<8x64xf32> to vector<8xf32>
    %1133 = vector.shape_cast %1132 : vector<8xf32> to vector<8x1xf32>
    %c0_215 = arith.constant 0 : index
    %c0_216 = arith.constant 0 : index
    %1134 = vector.load %arg18[%c0_215, %c0_216] : memref<1x64xf32, #tpu.memory_space<vmem>>, vector<1x64xf32>
    %1135 = vector.broadcast %1134 : vector<1x64xf32> to vector<8x64xf32>
    %1136 = arith.mulf %1128, %1135 : vector<8x64xf32>
    %cst_217 = arith.constant dense<0.000000e+00> : vector<8xf32>
    %1137 = vector.multi_reduction <add>, %1136, %cst_217 [1] : vector<8x64xf32> to vector<8xf32>
    %1138 = vector.shape_cast %1137 : vector<8xf32> to vector<8x1xf32>
    %1139 = tpu.transpose %1138, [1, 0] : vector<8x1xf32> -> vector<1x8xf32>
    %1140 = vector.broadcast %1133 : vector<8x1xf32> to vector<8x8xf32>
    %1141 = vector.broadcast %1139 : vector<1x8xf32> to vector<8x8xf32>
    %1142 = arith.addf %1140, %1141 : vector<8x8xf32>
    %cst_218 = arith.constant 0.000000e+00 : f32
    %1143 = vector.broadcast %cst_218 : f32 to vector<8x8xf32>
    %1144 = arith.cmpf ogt, %1142, %1143 : vector<8x8xf32>
    %cst_219 = arith.constant 2.000000e-01 : f32
    %1145 = vector.broadcast %cst_219 : f32 to vector<8x8xf32>
    %1146 = arith.mulf %1145, %1142 : vector<8x8xf32>
    %1147 = arith.select %1144, %1142, %1146 : vector<8x8xi1>, vector<8x8xf32>
    %cst_220 = arith.constant -1.000000e+30 : f32
    %1148 = vector.broadcast %cst_220 : f32 to vector<8x8xf32>
    %1149 = arith.select %1005, %1147, %1148 : vector<8x8xi1>, vector<8x8xf32>
    %cst_221 = arith.constant dense<0xFF800000> : vector<8xf32>
    %1150 = vector.multi_reduction <maximumf>, %1149, %cst_221 [1] : vector<8x8xf32> to vector<8xf32>
    %1151 = vector.shape_cast %1150 : vector<8xf32> to vector<8x1xf32>
    %1152 = vector.broadcast %1151 : vector<8x1xf32> to vector<8x8xf32>
    %1153 = arith.subf %1149, %1152 : vector<8x8xf32>
    %1154 = math.exp %1153 : vector<8x8xf32>
    %1155 = arith.mulf %1154, %1007 : vector<8x8xf32>
    %cst_222 = arith.constant dense<0.000000e+00> : vector<8xf32>
    %1156 = vector.multi_reduction <add>, %1155, %cst_222 [1] : vector<8x8xf32> to vector<8xf32>
    %1157 = vector.shape_cast %1156 : vector<8xf32> to vector<8x1xf32>
    %1158 = vector.broadcast %1157 : vector<8x1xf32> to vector<8x8xf32>
    %1159 = arith.divf %1155, %1158 : vector<8x8xf32>
    %cst_223 = arith.constant dense<0.000000e+00> : vector<8x64xf32>
    %1160 = tpu.matmul %1159, %1128, %cst_223 {dimension_numbers = #tpu.dot_dimension_numbers<[1], [0], [0], [1], [0, 0, 1, 1], [], []>} : vector<8x8xf32>, vector<8x64xf32>, vector<8x64xf32> -> vector<8x64xf32>
    %c0_224 = arith.constant 0 : index
    %c0_225 = arith.constant 0 : index
    %1161 = vector.load %arg20[%c0_224, %c0_225] : memref<1x64xf32, #tpu.memory_space<vmem>>, vector<1x64xf32>
    %1162 = vector.broadcast %1161 : vector<1x64xf32> to vector<8x64xf32>
    %1163 = arith.addf %1160, %1162 : vector<8x64xf32>
    %1164 = arith.truncf %1163 : vector<8x64xf32> to vector<8x64xbf16>
    %c0_226 = arith.constant 0 : index
    %c0_227 = arith.constant 0 : index
    %1165 = vector.load %arg21[%c0_226, %c0_227] : memref<64x128xbf16, #tpu.memory_space<vmem>>, vector<64x128xbf16>
    %cst_228 = arith.constant dense<0.000000e+00> : vector<8x128xf32>
    %1166 = tpu.matmul %1164, %1165, %cst_228 {dimension_numbers = #tpu.dot_dimension_numbers<[1], [0], [0], [1], [0, 0, 1, 1], [], []>} : vector<8x64xbf16>, vector<64x128xbf16>, vector<8x128xf32> -> vector<8x128xf32>
    %c0_229 = arith.constant 0 : index
    %c0_230 = arith.constant 0 : index
    %1167 = vector.load %arg23[%c0_229, %c0_230] : memref<1x128xf32, #tpu.memory_space<vmem>>, vector<1x128xf32>
    %1168 = vector.broadcast %1167 : vector<1x128xf32> to vector<8x128xf32>
    %1169 = arith.addf %1166, %1168 : vector<8x128xf32>
    %c0_231 = arith.constant 0 : index
    %c0_232 = arith.constant 0 : index
    %1170 = vector.load %arg22[%c0_231, %c0_232] : memref<32x128xbf16, #tpu.memory_space<vmem>>, vector<32x128xbf16>
    %cst_233 = arith.constant 0.000000e+00 : f32
    %1171 = vector.broadcast %cst_233 : f32 to vector<1x32xf32>
    %cst_234 = arith.constant 0.000000e+00 : f32
    %1172 = vector.broadcast %cst_234 : f32 to vector<1x32xf32>
    %1173 = vector.extract_strided_slice %1169 {offsets = [0, 0], sizes = [1, 128], strides = [1, 1]} : vector<8x128xf32> to vector<1x128xf32>
    %1174 = arith.truncf %1171 : vector<1x32xf32> to vector<1x32xbf16>
    %cst_235 = arith.constant dense<0.000000e+00> : vector<1x128xf32>
    %1175 = tpu.matmul %1174, %1170, %cst_235 {dimension_numbers = #tpu.dot_dimension_numbers<[1], [0], [0], [1], [0, 0, 1, 1], [], []>} : vector<1x32xbf16>, vector<32x128xbf16>, vector<1x128xf32> -> vector<1x128xf32>
    %1176 = arith.addf %1173, %1175 : vector<1x128xf32>
    %1177 = vector.extract_strided_slice %1176 {offsets = [0, 0], sizes = [1, 32], strides = [1, 1]} : vector<1x128xf32> to vector<1x32xf32>
    %1178 = arith.negf %1177 : vector<1x32xf32>
    %1179 = math.exp %1178 : vector<1x32xf32>
    %cst_236 = arith.constant 1.000000e+00 : f32
    %1180 = vector.broadcast %cst_236 : f32 to vector<1x32xf32>
    %1181 = arith.addf %1180, %1179 : vector<1x32xf32>
    %1182 = arith.divf %1180, %1181 : vector<1x32xf32>
    %1183 = vector.extract_strided_slice %1176 {offsets = [0, 32], sizes = [1, 32], strides = [1, 1]} : vector<1x128xf32> to vector<1x32xf32>
    %1184 = arith.negf %1183 : vector<1x32xf32>
    %1185 = math.exp %1184 : vector<1x32xf32>
    %cst_237 = arith.constant 1.000000e+00 : f32
    %1186 = vector.broadcast %cst_237 : f32 to vector<1x32xf32>
    %1187 = arith.addf %1186, %1185 : vector<1x32xf32>
    %1188 = arith.divf %1186, %1187 : vector<1x32xf32>
    %1189 = vector.extract_strided_slice %1176 {offsets = [0, 64], sizes = [1, 32], strides = [1, 1]} : vector<1x128xf32> to vector<1x32xf32>
    %1190 = math.tanh %1189 : vector<1x32xf32>
    %1191 = vector.extract_strided_slice %1176 {offsets = [0, 96], sizes = [1, 32], strides = [1, 1]} : vector<1x128xf32> to vector<1x32xf32>
    %1192 = arith.negf %1191 : vector<1x32xf32>
    %1193 = math.exp %1192 : vector<1x32xf32>
    %cst_238 = arith.constant 1.000000e+00 : f32
    %1194 = vector.broadcast %cst_238 : f32 to vector<1x32xf32>
    %1195 = arith.addf %1194, %1193 : vector<1x32xf32>
    %1196 = arith.divf %1194, %1195 : vector<1x32xf32>
    %1197 = arith.mulf %1188, %1172 : vector<1x32xf32>
    %1198 = arith.mulf %1182, %1190 : vector<1x32xf32>
    %1199 = arith.addf %1197, %1198 : vector<1x32xf32>
    %1200 = math.tanh %1199 : vector<1x32xf32>
    %1201 = arith.mulf %1196, %1200 : vector<1x32xf32>
    %1202 = vector.extract_strided_slice %1169 {offsets = [1, 0], sizes = [1, 128], strides = [1, 1]} : vector<8x128xf32> to vector<1x128xf32>
    %1203 = arith.truncf %1201 : vector<1x32xf32> to vector<1x32xbf16>
    %cst_239 = arith.constant dense<0.000000e+00> : vector<1x128xf32>
    %1204 = tpu.matmul %1203, %1170, %cst_239 {dimension_numbers = #tpu.dot_dimension_numbers<[1], [0], [0], [1], [0, 0, 1, 1], [], []>} : vector<1x32xbf16>, vector<32x128xbf16>, vector<1x128xf32> -> vector<1x128xf32>
    %1205 = arith.addf %1202, %1204 : vector<1x128xf32>
    %1206 = vector.extract_strided_slice %1205 {offsets = [0, 0], sizes = [1, 32], strides = [1, 1]} : vector<1x128xf32> to vector<1x32xf32>
    %1207 = arith.negf %1206 : vector<1x32xf32>
    %1208 = math.exp %1207 : vector<1x32xf32>
    %cst_240 = arith.constant 1.000000e+00 : f32
    %1209 = vector.broadcast %cst_240 : f32 to vector<1x32xf32>
    %1210 = arith.addf %1209, %1208 : vector<1x32xf32>
    %1211 = arith.divf %1209, %1210 : vector<1x32xf32>
    %1212 = vector.extract_strided_slice %1205 {offsets = [0, 32], sizes = [1, 32], strides = [1, 1]} : vector<1x128xf32> to vector<1x32xf32>
    %1213 = arith.negf %1212 : vector<1x32xf32>
    %1214 = math.exp %1213 : vector<1x32xf32>
    %cst_241 = arith.constant 1.000000e+00 : f32
    %1215 = vector.broadcast %cst_241 : f32 to vector<1x32xf32>
    %1216 = arith.addf %1215, %1214 : vector<1x32xf32>
    %1217 = arith.divf %1215, %1216 : vector<1x32xf32>
    %1218 = vector.extract_strided_slice %1205 {offsets = [0, 64], sizes = [1, 32], strides = [1, 1]} : vector<1x128xf32> to vector<1x32xf32>
    %1219 = math.tanh %1218 : vector<1x32xf32>
    %1220 = vector.extract_strided_slice %1205 {offsets = [0, 96], sizes = [1, 32], strides = [1, 1]} : vector<1x128xf32> to vector<1x32xf32>
    %1221 = arith.negf %1220 : vector<1x32xf32>
    %1222 = math.exp %1221 : vector<1x32xf32>
    %cst_242 = arith.constant 1.000000e+00 : f32
    %1223 = vector.broadcast %cst_242 : f32 to vector<1x32xf32>
    %1224 = arith.addf %1223, %1222 : vector<1x32xf32>
    %1225 = arith.divf %1223, %1224 : vector<1x32xf32>
    %1226 = arith.mulf %1217, %1199 : vector<1x32xf32>
    %1227 = arith.mulf %1211, %1219 : vector<1x32xf32>
    %1228 = arith.addf %1226, %1227 : vector<1x32xf32>
    %1229 = math.tanh %1228 : vector<1x32xf32>
    %1230 = arith.mulf %1225, %1229 : vector<1x32xf32>
    %1231 = vector.extract_strided_slice %1169 {offsets = [2, 0], sizes = [1, 128], strides = [1, 1]} : vector<8x128xf32> to vector<1x128xf32>
    %1232 = arith.truncf %1230 : vector<1x32xf32> to vector<1x32xbf16>
    %cst_243 = arith.constant dense<0.000000e+00> : vector<1x128xf32>
    %1233 = tpu.matmul %1232, %1170, %cst_243 {dimension_numbers = #tpu.dot_dimension_numbers<[1], [0], [0], [1], [0, 0, 1, 1], [], []>} : vector<1x32xbf16>, vector<32x128xbf16>, vector<1x128xf32> -> vector<1x128xf32>
    %1234 = arith.addf %1231, %1233 : vector<1x128xf32>
    %1235 = vector.extract_strided_slice %1234 {offsets = [0, 0], sizes = [1, 32], strides = [1, 1]} : vector<1x128xf32> to vector<1x32xf32>
    %1236 = arith.negf %1235 : vector<1x32xf32>
    %1237 = math.exp %1236 : vector<1x32xf32>
    %cst_244 = arith.constant 1.000000e+00 : f32
    %1238 = vector.broadcast %cst_244 : f32 to vector<1x32xf32>
    %1239 = arith.addf %1238, %1237 : vector<1x32xf32>
    %1240 = arith.divf %1238, %1239 : vector<1x32xf32>
    %1241 = vector.extract_strided_slice %1234 {offsets = [0, 32], sizes = [1, 32], strides = [1, 1]} : vector<1x128xf32> to vector<1x32xf32>
    %1242 = arith.negf %1241 : vector<1x32xf32>
    %1243 = math.exp %1242 : vector<1x32xf32>
    %cst_245 = arith.constant 1.000000e+00 : f32
    %1244 = vector.broadcast %cst_245 : f32 to vector<1x32xf32>
    %1245 = arith.addf %1244, %1243 : vector<1x32xf32>
    %1246 = arith.divf %1244, %1245 : vector<1x32xf32>
    %1247 = vector.extract_strided_slice %1234 {offsets = [0, 64], sizes = [1, 32], strides = [1, 1]} : vector<1x128xf32> to vector<1x32xf32>
    %1248 = math.tanh %1247 : vector<1x32xf32>
    %1249 = vector.extract_strided_slice %1234 {offsets = [0, 96], sizes = [1, 32], strides = [1, 1]} : vector<1x128xf32> to vector<1x32xf32>
    %1250 = arith.negf %1249 : vector<1x32xf32>
    %1251 = math.exp %1250 : vector<1x32xf32>
    %cst_246 = arith.constant 1.000000e+00 : f32
    %1252 = vector.broadcast %cst_246 : f32 to vector<1x32xf32>
    %1253 = arith.addf %1252, %1251 : vector<1x32xf32>
    %1254 = arith.divf %1252, %1253 : vector<1x32xf32>
    %1255 = arith.mulf %1246, %1228 : vector<1x32xf32>
    %1256 = arith.mulf %1240, %1248 : vector<1x32xf32>
    %1257 = arith.addf %1255, %1256 : vector<1x32xf32>
    %1258 = math.tanh %1257 : vector<1x32xf32>
    %1259 = arith.mulf %1254, %1258 : vector<1x32xf32>
    %1260 = vector.extract_strided_slice %1169 {offsets = [3, 0], sizes = [1, 128], strides = [1, 1]} : vector<8x128xf32> to vector<1x128xf32>
    %1261 = arith.truncf %1259 : vector<1x32xf32> to vector<1x32xbf16>
    %cst_247 = arith.constant dense<0.000000e+00> : vector<1x128xf32>
    %1262 = tpu.matmul %1261, %1170, %cst_247 {dimension_numbers = #tpu.dot_dimension_numbers<[1], [0], [0], [1], [0, 0, 1, 1], [], []>} : vector<1x32xbf16>, vector<32x128xbf16>, vector<1x128xf32> -> vector<1x128xf32>
    %1263 = arith.addf %1260, %1262 : vector<1x128xf32>
    %1264 = vector.extract_strided_slice %1263 {offsets = [0, 0], sizes = [1, 32], strides = [1, 1]} : vector<1x128xf32> to vector<1x32xf32>
    %1265 = arith.negf %1264 : vector<1x32xf32>
    %1266 = math.exp %1265 : vector<1x32xf32>
    %cst_248 = arith.constant 1.000000e+00 : f32
    %1267 = vector.broadcast %cst_248 : f32 to vector<1x32xf32>
    %1268 = arith.addf %1267, %1266 : vector<1x32xf32>
    %1269 = arith.divf %1267, %1268 : vector<1x32xf32>
    %1270 = vector.extract_strided_slice %1263 {offsets = [0, 32], sizes = [1, 32], strides = [1, 1]} : vector<1x128xf32> to vector<1x32xf32>
    %1271 = arith.negf %1270 : vector<1x32xf32>
    %1272 = math.exp %1271 : vector<1x32xf32>
    %cst_249 = arith.constant 1.000000e+00 : f32
    %1273 = vector.broadcast %cst_249 : f32 to vector<1x32xf32>
    %1274 = arith.addf %1273, %1272 : vector<1x32xf32>
    %1275 = arith.divf %1273, %1274 : vector<1x32xf32>
    %1276 = vector.extract_strided_slice %1263 {offsets = [0, 64], sizes = [1, 32], strides = [1, 1]} : vector<1x128xf32> to vector<1x32xf32>
    %1277 = math.tanh %1276 : vector<1x32xf32>
    %1278 = vector.extract_strided_slice %1263 {offsets = [0, 96], sizes = [1, 32], strides = [1, 1]} : vector<1x128xf32> to vector<1x32xf32>
    %1279 = arith.negf %1278 : vector<1x32xf32>
    %1280 = math.exp %1279 : vector<1x32xf32>
    %cst_250 = arith.constant 1.000000e+00 : f32
    %1281 = vector.broadcast %cst_250 : f32 to vector<1x32xf32>
    %1282 = arith.addf %1281, %1280 : vector<1x32xf32>
    %1283 = arith.divf %1281, %1282 : vector<1x32xf32>
    %1284 = arith.mulf %1275, %1257 : vector<1x32xf32>
    %1285 = arith.mulf %1269, %1277 : vector<1x32xf32>
    %1286 = arith.addf %1284, %1285 : vector<1x32xf32>
    %1287 = math.tanh %1286 : vector<1x32xf32>
    %1288 = arith.mulf %1283, %1287 : vector<1x32xf32>
    %1289 = vector.extract_strided_slice %1169 {offsets = [4, 0], sizes = [1, 128], strides = [1, 1]} : vector<8x128xf32> to vector<1x128xf32>
    %1290 = arith.truncf %1288 : vector<1x32xf32> to vector<1x32xbf16>
    %cst_251 = arith.constant dense<0.000000e+00> : vector<1x128xf32>
    %1291 = tpu.matmul %1290, %1170, %cst_251 {dimension_numbers = #tpu.dot_dimension_numbers<[1], [0], [0], [1], [0, 0, 1, 1], [], []>} : vector<1x32xbf16>, vector<32x128xbf16>, vector<1x128xf32> -> vector<1x128xf32>
    %1292 = arith.addf %1289, %1291 : vector<1x128xf32>
    %1293 = vector.extract_strided_slice %1292 {offsets = [0, 0], sizes = [1, 32], strides = [1, 1]} : vector<1x128xf32> to vector<1x32xf32>
    %1294 = arith.negf %1293 : vector<1x32xf32>
    %1295 = math.exp %1294 : vector<1x32xf32>
    %cst_252 = arith.constant 1.000000e+00 : f32
    %1296 = vector.broadcast %cst_252 : f32 to vector<1x32xf32>
    %1297 = arith.addf %1296, %1295 : vector<1x32xf32>
    %1298 = arith.divf %1296, %1297 : vector<1x32xf32>
    %1299 = vector.extract_strided_slice %1292 {offsets = [0, 32], sizes = [1, 32], strides = [1, 1]} : vector<1x128xf32> to vector<1x32xf32>
    %1300 = arith.negf %1299 : vector<1x32xf32>
    %1301 = math.exp %1300 : vector<1x32xf32>
    %cst_253 = arith.constant 1.000000e+00 : f32
    %1302 = vector.broadcast %cst_253 : f32 to vector<1x32xf32>
    %1303 = arith.addf %1302, %1301 : vector<1x32xf32>
    %1304 = arith.divf %1302, %1303 : vector<1x32xf32>
    %1305 = vector.extract_strided_slice %1292 {offsets = [0, 64], sizes = [1, 32], strides = [1, 1]} : vector<1x128xf32> to vector<1x32xf32>
    %1306 = math.tanh %1305 : vector<1x32xf32>
    %1307 = vector.extract_strided_slice %1292 {offsets = [0, 96], sizes = [1, 32], strides = [1, 1]} : vector<1x128xf32> to vector<1x32xf32>
    %1308 = arith.negf %1307 : vector<1x32xf32>
    %1309 = math.exp %1308 : vector<1x32xf32>
    %cst_254 = arith.constant 1.000000e+00 : f32
    %1310 = vector.broadcast %cst_254 : f32 to vector<1x32xf32>
    %1311 = arith.addf %1310, %1309 : vector<1x32xf32>
    %1312 = arith.divf %1310, %1311 : vector<1x32xf32>
    %1313 = arith.mulf %1304, %1286 : vector<1x32xf32>
    %1314 = arith.mulf %1298, %1306 : vector<1x32xf32>
    %1315 = arith.addf %1313, %1314 : vector<1x32xf32>
    %1316 = math.tanh %1315 : vector<1x32xf32>
    %1317 = arith.mulf %1312, %1316 : vector<1x32xf32>
    %1318 = vector.extract_strided_slice %1169 {offsets = [5, 0], sizes = [1, 128], strides = [1, 1]} : vector<8x128xf32> to vector<1x128xf32>
    %1319 = arith.truncf %1317 : vector<1x32xf32> to vector<1x32xbf16>
    %cst_255 = arith.constant dense<0.000000e+00> : vector<1x128xf32>
    %1320 = tpu.matmul %1319, %1170, %cst_255 {dimension_numbers = #tpu.dot_dimension_numbers<[1], [0], [0], [1], [0, 0, 1, 1], [], []>} : vector<1x32xbf16>, vector<32x128xbf16>, vector<1x128xf32> -> vector<1x128xf32>
    %1321 = arith.addf %1318, %1320 : vector<1x128xf32>
    %1322 = vector.extract_strided_slice %1321 {offsets = [0, 0], sizes = [1, 32], strides = [1, 1]} : vector<1x128xf32> to vector<1x32xf32>
    %1323 = arith.negf %1322 : vector<1x32xf32>
    %1324 = math.exp %1323 : vector<1x32xf32>
    %cst_256 = arith.constant 1.000000e+00 : f32
    %1325 = vector.broadcast %cst_256 : f32 to vector<1x32xf32>
    %1326 = arith.addf %1325, %1324 : vector<1x32xf32>
    %1327 = arith.divf %1325, %1326 : vector<1x32xf32>
    %1328 = vector.extract_strided_slice %1321 {offsets = [0, 32], sizes = [1, 32], strides = [1, 1]} : vector<1x128xf32> to vector<1x32xf32>
    %1329 = arith.negf %1328 : vector<1x32xf32>
    %1330 = math.exp %1329 : vector<1x32xf32>
    %cst_257 = arith.constant 1.000000e+00 : f32
    %1331 = vector.broadcast %cst_257 : f32 to vector<1x32xf32>
    %1332 = arith.addf %1331, %1330 : vector<1x32xf32>
    %1333 = arith.divf %1331, %1332 : vector<1x32xf32>
    %1334 = vector.extract_strided_slice %1321 {offsets = [0, 64], sizes = [1, 32], strides = [1, 1]} : vector<1x128xf32> to vector<1x32xf32>
    %1335 = math.tanh %1334 : vector<1x32xf32>
    %1336 = vector.extract_strided_slice %1321 {offsets = [0, 96], sizes = [1, 32], strides = [1, 1]} : vector<1x128xf32> to vector<1x32xf32>
    %1337 = arith.negf %1336 : vector<1x32xf32>
    %1338 = math.exp %1337 : vector<1x32xf32>
    %cst_258 = arith.constant 1.000000e+00 : f32
    %1339 = vector.broadcast %cst_258 : f32 to vector<1x32xf32>
    %1340 = arith.addf %1339, %1338 : vector<1x32xf32>
    %1341 = arith.divf %1339, %1340 : vector<1x32xf32>
    %1342 = arith.mulf %1333, %1315 : vector<1x32xf32>
    %1343 = arith.mulf %1327, %1335 : vector<1x32xf32>
    %1344 = arith.addf %1342, %1343 : vector<1x32xf32>
    %1345 = math.tanh %1344 : vector<1x32xf32>
    %1346 = arith.mulf %1341, %1345 : vector<1x32xf32>
    %1347 = vector.extract_strided_slice %1169 {offsets = [6, 0], sizes = [1, 128], strides = [1, 1]} : vector<8x128xf32> to vector<1x128xf32>
    %1348 = arith.truncf %1346 : vector<1x32xf32> to vector<1x32xbf16>
    %cst_259 = arith.constant dense<0.000000e+00> : vector<1x128xf32>
    %1349 = tpu.matmul %1348, %1170, %cst_259 {dimension_numbers = #tpu.dot_dimension_numbers<[1], [0], [0], [1], [0, 0, 1, 1], [], []>} : vector<1x32xbf16>, vector<32x128xbf16>, vector<1x128xf32> -> vector<1x128xf32>
    %1350 = arith.addf %1347, %1349 : vector<1x128xf32>
    %1351 = vector.extract_strided_slice %1350 {offsets = [0, 0], sizes = [1, 32], strides = [1, 1]} : vector<1x128xf32> to vector<1x32xf32>
    %1352 = arith.negf %1351 : vector<1x32xf32>
    %1353 = math.exp %1352 : vector<1x32xf32>
    %cst_260 = arith.constant 1.000000e+00 : f32
    %1354 = vector.broadcast %cst_260 : f32 to vector<1x32xf32>
    %1355 = arith.addf %1354, %1353 : vector<1x32xf32>
    %1356 = arith.divf %1354, %1355 : vector<1x32xf32>
    %1357 = vector.extract_strided_slice %1350 {offsets = [0, 32], sizes = [1, 32], strides = [1, 1]} : vector<1x128xf32> to vector<1x32xf32>
    %1358 = arith.negf %1357 : vector<1x32xf32>
    %1359 = math.exp %1358 : vector<1x32xf32>
    %cst_261 = arith.constant 1.000000e+00 : f32
    %1360 = vector.broadcast %cst_261 : f32 to vector<1x32xf32>
    %1361 = arith.addf %1360, %1359 : vector<1x32xf32>
    %1362 = arith.divf %1360, %1361 : vector<1x32xf32>
    %1363 = vector.extract_strided_slice %1350 {offsets = [0, 64], sizes = [1, 32], strides = [1, 1]} : vector<1x128xf32> to vector<1x32xf32>
    %1364 = math.tanh %1363 : vector<1x32xf32>
    %1365 = vector.extract_strided_slice %1350 {offsets = [0, 96], sizes = [1, 32], strides = [1, 1]} : vector<1x128xf32> to vector<1x32xf32>
    %1366 = arith.negf %1365 : vector<1x32xf32>
    %1367 = math.exp %1366 : vector<1x32xf32>
    %cst_262 = arith.constant 1.000000e+00 : f32
    %1368 = vector.broadcast %cst_262 : f32 to vector<1x32xf32>
    %1369 = arith.addf %1368, %1367 : vector<1x32xf32>
    %1370 = arith.divf %1368, %1369 : vector<1x32xf32>
    %1371 = arith.mulf %1362, %1344 : vector<1x32xf32>
    %1372 = arith.mulf %1356, %1364 : vector<1x32xf32>
    %1373 = arith.addf %1371, %1372 : vector<1x32xf32>
    %1374 = math.tanh %1373 : vector<1x32xf32>
    %1375 = arith.mulf %1370, %1374 : vector<1x32xf32>
    %1376 = vector.extract_strided_slice %1169 {offsets = [7, 0], sizes = [1, 128], strides = [1, 1]} : vector<8x128xf32> to vector<1x128xf32>
    %1377 = arith.truncf %1375 : vector<1x32xf32> to vector<1x32xbf16>
    %cst_263 = arith.constant dense<0.000000e+00> : vector<1x128xf32>
    %1378 = tpu.matmul %1377, %1170, %cst_263 {dimension_numbers = #tpu.dot_dimension_numbers<[1], [0], [0], [1], [0, 0, 1, 1], [], []>} : vector<1x32xbf16>, vector<32x128xbf16>, vector<1x128xf32> -> vector<1x128xf32>
    %1379 = arith.addf %1376, %1378 : vector<1x128xf32>
    %1380 = vector.extract_strided_slice %1379 {offsets = [0, 0], sizes = [1, 32], strides = [1, 1]} : vector<1x128xf32> to vector<1x32xf32>
    %1381 = arith.negf %1380 : vector<1x32xf32>
    %1382 = math.exp %1381 : vector<1x32xf32>
    %cst_264 = arith.constant 1.000000e+00 : f32
    %1383 = vector.broadcast %cst_264 : f32 to vector<1x32xf32>
    %1384 = arith.addf %1383, %1382 : vector<1x32xf32>
    %1385 = arith.divf %1383, %1384 : vector<1x32xf32>
    %1386 = vector.extract_strided_slice %1379 {offsets = [0, 32], sizes = [1, 32], strides = [1, 1]} : vector<1x128xf32> to vector<1x32xf32>
    %1387 = arith.negf %1386 : vector<1x32xf32>
    %1388 = math.exp %1387 : vector<1x32xf32>
    %cst_265 = arith.constant 1.000000e+00 : f32
    %1389 = vector.broadcast %cst_265 : f32 to vector<1x32xf32>
    %1390 = arith.addf %1389, %1388 : vector<1x32xf32>
    %1391 = arith.divf %1389, %1390 : vector<1x32xf32>
    %1392 = vector.extract_strided_slice %1379 {offsets = [0, 64], sizes = [1, 32], strides = [1, 1]} : vector<1x128xf32> to vector<1x32xf32>
    %1393 = math.tanh %1392 : vector<1x32xf32>
    %1394 = vector.extract_strided_slice %1379 {offsets = [0, 96], sizes = [1, 32], strides = [1, 1]} : vector<1x128xf32> to vector<1x32xf32>
    %1395 = arith.negf %1394 : vector<1x32xf32>
    %1396 = math.exp %1395 : vector<1x32xf32>
    %cst_266 = arith.constant 1.000000e+00 : f32
    %1397 = vector.broadcast %cst_266 : f32 to vector<1x32xf32>
    %1398 = arith.addf %1397, %1396 : vector<1x32xf32>
    %1399 = arith.divf %1397, %1398 : vector<1x32xf32>
    %1400 = arith.mulf %1391, %1373 : vector<1x32xf32>
    %1401 = arith.mulf %1385, %1393 : vector<1x32xf32>
    %1402 = arith.addf %1400, %1401 : vector<1x32xf32>
    %1403 = math.tanh %1402 : vector<1x32xf32>
    %1404 = arith.mulf %1399, %1403 : vector<1x32xf32>
    %1405 = tpu.concatenate %1201, %1230, %1259, %1288, %1317, %1346, %1375, %1404 in 0 : vector<1x32xf32>, vector<1x32xf32>, vector<1x32xf32>, vector<1x32xf32>, vector<1x32xf32>, vector<1x32xf32>, vector<1x32xf32>, vector<1x32xf32> -> vector<8x32xf32>
    %c0_267 = arith.constant 0 : index
    %c0_268 = arith.constant 0 : index
    %1406 = vector.load %arg24[%c0_267, %c0_268] : memref<32x2xf32, #tpu.memory_space<vmem>>, vector<32x2xf32>
    %cst_269 = arith.constant dense<0.000000e+00> : vector<8x2xf32>
    %1407 = tpu.matmul %1405, %1406, %cst_269 {dimension_numbers = #tpu.dot_dimension_numbers<[1], [0], [0], [1], [0, 0, 1, 1], [], []>} : vector<8x32xf32>, vector<32x2xf32>, vector<8x2xf32> -> vector<8x2xf32>
    %c0_270 = arith.constant 0 : index
    %c0_271 = arith.constant 0 : index
    %1408 = vector.load %arg25[%c0_270, %c0_271] : memref<1x2xf32, #tpu.memory_space<vmem>>, vector<1x2xf32>
    %1409 = vector.broadcast %1408 : vector<1x2xf32> to vector<8x2xf32>
    %1410 = arith.addf %1407, %1409 : vector<8x2xf32>
    %c0_272 = arith.constant 0 : index
    %c0_273 = arith.constant 0 : index
    %1411 = vector.load %arg26[%c0_272, %c0_273] : memref<8x2xf32, #tpu.memory_space<vmem>>, vector<8x2xf32>
    tpu.vector_store %arg26[%c0_272, %c0_273], %1410 {strides = array<i32>} : memref<8x2xf32, #tpu.memory_space<vmem>>, vector<8x2xf32>,
    return
  }
}

</mosaic_0001>

<llo_original>
// kernel: tpu_custom_call.1
$region0: #{tpu_custom_call.1}
  #allocation0 [shape = 'u32[]', space=smem, size = 0x4, offset = 0x4, fixed_abs, tag = 'smem constant byte address 0x4 - core index']
  #allocation1 [shape = 'u32[144,128]{1,0:T(1,128)}', space=vmem, size = 0x12000, scoped, tag = 'internal scratch']
  %s0 = inlined_call_operand.vmem [shape: f32[64,256], index: 0, kind: input, shape index: {}]
  %s1 = inlined_call_operand.hbm [shape: bf16[256,1024], index: 1, kind: input, shape index: {}]
  %s2 = inlined_call_operand.hbm [shape: bf16[2,128,512], index: 2, kind: input, shape index: {}]
  %s3 = inlined_call_operand.hbm [shape: f32[1,1024], index: 3, kind: input, shape index: {}]
  %s4 = inlined_call_operand.hbm [shape: bf16[256,1024], index: 4, kind: input, shape index: {}]
  %s5 = inlined_call_operand.hbm [shape: bf16[2,128,512], index: 5, kind: input, shape index: {}]
  %s6 = inlined_call_operand.hbm [shape: f32[1,1024], index: 6, kind: input, shape index: {}]
  %s7 = inlined_call_operand.vmem [shape: bf16[256,128], index: 7, kind: input, shape index: {}]
  %s8 = inlined_call_operand.vmem [shape: f32[1,128], index: 8, kind: input, shape index: {}]
  %s9 = inlined_call_operand.hbm [shape: f32[8,128], index: 9, kind: input, shape index: {}]
  %s10 = inlined_call_operand.hbm [shape: bf16[128,128], index: 10, kind: input, shape index: {}]
  %s11 = inlined_call_operand.vmem [shape: f32[1,128], index: 11, kind: input, shape index: {}]
  %s12 = inlined_call_operand.vmem [shape: f32[1,128], index: 12, kind: input, shape index: {}]
  %s13 = inlined_call_operand.hbm [shape: f32[1,128], index: 13, kind: input, shape index: {}]
  %s14 = inlined_call_operand.vmem [shape: f32[128,4], index: 14, kind: input, shape index: {}]
  %s15 = inlined_call_operand.hbm [shape: f32[8,8], index: 15, kind: input, shape index: {}]
  %s16 = inlined_call_operand.hbm [shape: f32[8,128], index: 16, kind: input, shape index: {}]
  %s17 = inlined_call_operand.vmem [shape: bf16[128,64], index: 17, kind: input, shape index: {}]
  %s18 = inlined_call_operand.vmem [shape: f32[1,64], index: 18, kind: input, shape index: {}]
  %s19 = inlined_call_operand.hbm [shape: f32[1,64], index: 19, kind: input, shape index: {}]
  %s20 = inlined_call_operand.vmem [shape: f32[1,64], index: 20, kind: input, shape index: {}]
  %s21 = inlined_call_operand.vmem [shape: bf16[64,128], index: 21, kind: input, shape index: {}]
  %s22 = inlined_call_operand.hbm [shape: bf16[32,128], index: 22, kind: input, shape index: {}]
  %s23 = inlined_call_operand.vmem [shape: f32[1,128], index: 23, kind: input, shape index: {}]
  %s24 = inlined_call_operand.vmem [shape: f32[32,2], index: 24, kind: input, shape index: {}]
  %s25 = inlined_call_operand.vmem [shape: f32[1,2], index: 25, kind: input, shape index: {}]
  %s26 = inlined_call_operand.vmem [shape: f32[8,2], index: 26, kind: output, shape index: {}]
  %s27 = sld [smem:[#allocation0]]
  $region166: #{tpu_custom_call.1} parent=0
    _
  %s29 = ssub.s32 1, %s27
  %s30 = scalar_select 0, %s29, %s27
  $region1: #{tpu_custom_call.1} parent=0
    #allocation2 [shape = 'u8[524288]{0}', space=vmem, size = 0x80000, scoped, tag = 'input window, operand 1, single buffered']
    #allocation3 [shape = 's32[1]{0}', space=sflag, size = 0x4, scoped, tag = 'scoped memory for tpu_custom_call.1']
    #allocation4 [shape = 'u8[262144]{0}', space=vmem, size = 0x40000, scoped, tag = 'input window, operand 2, single buffered']
    #allocation5 [shape = 's32[1]{0}', space=sflag, size = 0x4, scoped, tag = 'scoped memory for tpu_custom_call.1']
    #allocation6 [shape = 'u8[4096]{0}', space=vmem, size = 0x1000, scoped, tag = 'input window, operand 3, single buffered']
    #allocation7 [shape = 'u8[524288]{0}', space=vmem, size = 0x80000, scoped, tag = 'input window, operand 4, single buffered']
    #allocation8 [shape = 's32[1]{0}', space=sflag, size = 0x4, scoped, tag = 'scoped memory for tpu_custom_call.1']
    #allocation9 [shape = 'u8[262144]{0}', space=vmem, size = 0x40000, scoped, tag = 'input window, operand 5, single buffered']
    #allocation10 [shape = 'u8[4096]{0}', space=vmem, size = 0x1000, scoped, tag = 'input window, operand 6, single buffered']
    #allocation11 [shape = 's32[1]{0}', space=sflag, size = 0x4, scoped, tag = 'scoped memory for tpu_custom_call.1']
    #allocation12 [shape = 'u8[4096]{0}', space=vmem, size = 0x1000, scoped, tag = 'input window, operand 9, single buffered']
    #allocation13 [shape = 'u8[32768]{0}', space=vmem, size = 0x8000, scoped, tag = 'input window, operand 10, single buffered']
    #allocation14 [shape = 's32[1]{0}', space=sflag, size = 0x4, scoped, tag = 'scoped memory for tpu_custom_call.1']
    #allocation15 [shape = 'u8[512]{0}', space=vmem, size = 0x400, scoped, tag = 'input window, operand 13, single buffered']
    #allocation16 [shape = 'u8[4096]{0}', space=vmem, size = 0x1000, scoped, tag = 'input window, operand 15, single buffered']
    #allocation17 [shape = 's32[1]{0}', space=sflag, size = 0x4, scoped, tag = 'scoped memory for tpu_custom_call.1']
    #allocation18 [shape = 'u8[4096]{0}', space=vmem, size = 0x1000, scoped, tag = 'input window, operand 16, single buffered']
    #allocation19 [shape = 'u8[512]{0}', space=vmem, size = 0x400, scoped, tag = 'input window, operand 19, single buffered']
    #allocation20 [shape = 's32[1]{0}', space=sflag, size = 0x4, scoped, tag = 'scoped memory for tpu_custom_call.1']
    #allocation21 [shape = 'u8[8192]{0}', space=vmem, size = 0x2000, scoped, tag = 'input window, operand 22, single buffered']
    %31 = vsyncpa [#allocation3], 0
    %32 = vsyncpa [#allocation5], 0
    %33 = vsyncpa [#allocation8], 0
    %34 = vsyncpa [#allocation11], 0
    %35 = vsyncpa [#allocation14], 0
    %36 = vsyncpa [#allocation17], 0
    %37 = vsyncpa [#allocation20], 0
    // Predicated region
    $region2: #{tpu_custom_call.1} parent=1 // pred_check
      _
    $region3: #{tpu_custom_call.1} parent=1 // pred_check_branch
      %39 = sbr.rel (0) target = $region5
    $region4: #{tpu_custom_call.1} parent=1 // pred_region
      _
    $region5: #{tpu_custom_call.1} parent=1 // pred_fallthru
      _
    // Predicated region
    $region6: #{tpu_custom_call.1} parent=1 // pred_check
      _
    $region7: #{tpu_custom_call.1} parent=1 // pred_check_branch
      %41 = sbr.rel (0) target = $region9
    $region8: #{tpu_custom_call.1} parent=1 // pred_region
      %s43 = ssub.s32 16384, 16384
      %44 = vsyncadd [#allocation3], %s43
      %s45 = sshll.u32 [#allocation2], 4
      %s46 = int_to_ptr.vmem [resolvable:$true] %s45
      %51 = dma.hbm_to_vmem [thread:$0]  %s1, 16384, %s46, [#allocation3], 512, 512, 32
    $region9: #{tpu_custom_call.1} parent=1 // pred_fallthru
      _
    // Predicated region
    $region10: #{tpu_custom_call.1} parent=1 // pred_check
      _
    $region11: #{tpu_custom_call.1} parent=1 // pred_check_branch
      %53 = sbr.rel (0) target = $region13
    $region12: #{tpu_custom_call.1} parent=1 // pred_region
      %s55 = ssub.s32 8192, 8192
      %56 = vsyncadd [#allocation5], %s55
      %s57 = sshll.u32 [#allocation4], 4
      %s58 = int_to_ptr.vmem [resolvable:$true] %s57
      %63 = dma.hbm_to_vmem [thread:$0]  %s2, 8192, %s58, [#allocation5], 256, 256, 16
    $region13: #{tpu_custom_call.1} parent=1 // pred_fallthru
      _
    // Predicated region
    $region14: #{tpu_custom_call.1} parent=1 // pred_check
      _
    $region15: #{tpu_custom_call.1} parent=1 // pred_check_branch
      %65 = sbr.rel (0) target = $region17
    $region16: #{tpu_custom_call.1} parent=1 // pred_region
      %s67 = ssub.s32 128, 128
      %68 = vsyncadd [#allocation5], %s67
      %s70 = sshll.u32 [#allocation6], 4
      %s71 = int_to_ptr.vmem [resolvable:$true] %s70
      %73 = dma.hbm_to_vmem [thread:$0]  %s3, 128, %s71, [#allocation5]
    $region17: #{tpu_custom_call.1} parent=1 // pred_fallthru
      _
    // Predicated region
    $region18: #{tpu_custom_call.1} parent=1 // pred_check
      _
    $region19: #{tpu_custom_call.1} parent=1 // pred_check_branch
      %75 = sbr.rel (0) target = $region21
    $region20: #{tpu_custom_call.1} parent=1 // pred_region
      %s77 = ssub.s32 16384, 16384
      %78 = vsyncadd [#allocation8], %s77
      %s79 = sshll.u32 [#allocation7], 4
      %s80 = int_to_ptr.vmem [resolvable:$true] %s79
      %85 = dma.hbm_to_vmem [thread:$0]  %s4, 16384, %s80, [#allocation8], 512, 512, 32
    $region21: #{tpu_custom_call.1} parent=1 // pred_fallthru
      _
    // Predicated region
    $region22: #{tpu_custom_call.1} parent=1 // pred_check
      _
    $region23: #{tpu_custom_call.1} parent=1 // pred_check_branch
      %87 = sbr.rel (0) target = $region25
    $region24: #{tpu_custom_call.1} parent=1 // pred_region
      %s89 = ssub.s32 8192, 8192
      %90 = vsyncadd [#allocation8], %s89
      %s91 = sshll.u32 [#allocation9], 4
      %s92 = int_to_ptr.vmem [resolvable:$true] %s91
      %97 = dma.hbm_to_vmem [thread:$0]  %s5, 8192, %s92, [#allocation8], 256, 256, 16
    $region25: #{tpu_custom_call.1} parent=1 // pred_fallthru
      _
    // Predicated region
    $region26: #{tpu_custom_call.1} parent=1 // pred_check
      _
    $region27: #{tpu_custom_call.1} parent=1 // pred_check_branch
      %99 = sbr.rel (0) target = $region29
    $region28: #{tpu_custom_call.1} parent=1 // pred_region
      %s101 = ssub.s32 128, 128
      %102 = vsyncadd [#allocation11], %s101
      %s104 = sshll.u32 [#allocation10], 4
      %s105 = int_to_ptr.vmem [resolvable:$true] %s104
      %107 = dma.hbm_to_vmem [thread:$0]  %s6, 128, %s105, [#allocation11]
    $region29: #{tpu_custom_call.1} parent=1 // pred_fallthru
      _
    // Predicated region
    $region30: #{tpu_custom_call.1} parent=1 // pred_check
      _
    $region31: #{tpu_custom_call.1} parent=1 // pred_check_branch
      %109 = sbr.rel (0) target = $region33
    $region32: #{tpu_custom_call.1} parent=1 // pred_region
      _
    $region33: #{tpu_custom_call.1} parent=1 // pred_fallthru
      _
    // Predicated region
    $region34: #{tpu_custom_call.1} parent=1 // pred_check
      _
    $region35: #{tpu_custom_call.1} parent=1 // pred_check_branch
      %111 = sbr.rel (0) target = $region37
    $region36: #{tpu_custom_call.1} parent=1 // pred_region
      _
    $region37: #{tpu_custom_call.1} parent=1 // pred_fallthru
      _
    // Predicated region
    $region38: #{tpu_custom_call.1} parent=1 // pred_check
      _
    $region39: #{tpu_custom_call.1} parent=1 // pred_check_branch
      %113 = sbr.rel (0) target = $region41
    $region40: #{tpu_custom_call.1} parent=1 // pred_region
      %s115 = ssub.s32 128, 128
      %116 = vsyncadd [#allocation11], %s115
      %s118 = sshll.u32 [#allocation12], 4
      %s119 = int_to_ptr.vmem [resolvable:$true] %s118
      %121 = dma.hbm_to_vmem [thread:$0]  %s9, 128, %s119, [#allocation11]
    $region41: #{tpu_custom_call.1} parent=1 // pred_fallthru
      _
    // Predicated region
    $region42: #{tpu_custom_call.1} parent=1 // pred_check
      _
    $region43: #{tpu_custom_call.1} parent=1 // pred_check_branch
      %123 = sbr.rel (0) target = $region45
    $region44: #{tpu_custom_call.1} parent=1 // pred_region
      %s125 = ssub.s32 1024, 1024
      %126 = vsyncadd [#allocation14], %s125
      %s127 = sshll.u32 [#allocation13], 4
      %s128 = int_to_ptr.vmem [resolvable:$true] %s127
      %133 = dma.hbm_to_vmem [thread:$0]  %s10, 1024, %s128, [#allocation14], 64, 64, 4
    $region45: #{tpu_custom_call.1} parent=1 // pred_fallthru
      _
    // Predicated region
    $region46: #{tpu_custom_call.1} parent=1 // pred_check
      _
    $region47: #{tpu_custom_call.1} parent=1 // pred_check_branch
      %135 = sbr.rel (0) target = $region49
    $region48: #{tpu_custom_call.1} parent=1 // pred_region
      _
    $region49: #{tpu_custom_call.1} parent=1 // pred_fallthru
      _
    // Predicated region
    $region50: #{tpu_custom_call.1} parent=1 // pred_check
      _
    $region51: #{tpu_custom_call.1} parent=1 // pred_check_branch
      %137 = sbr.rel (0) target = $region53
    $region52: #{tpu_custom_call.1} parent=1 // pred_region
      _
    $region53: #{tpu_custom_call.1} parent=1 // pred_fallthru
      _
    // Predicated region
    $region54: #{tpu_custom_call.1} parent=1 // pred_check
      _
    $region55: #{tpu_custom_call.1} parent=1 // pred_check_branch
      %139 = sbr.rel (0) target = $region57
    $region56: #{tpu_custom_call.1} parent=1 // pred_region
      %s141 = ssub.s32 16, 16
      %142 = vsyncadd [#allocation14], %s141
      %s144 = sshll.u32 [#allocation15], 4
      %s145 = int_to_ptr.vmem [resolvable:$true] %s144
      %147 = dma.hbm_to_vmem [thread:$0]  %s13, 16, %s145, [#allocation14]
    $region57: #{tpu_custom_call.1} parent=1 // pred_fallthru
      _
    // Predicated region
    $region58: #{tpu_custom_call.1} parent=1 // pred_check
      _
    $region59: #{tpu_custom_call.1} parent=1 // pred_check_branch
      %149 = sbr.rel (0) target = $region61
    $region60: #{tpu_custom_call.1} parent=1 // pred_region
      _
    $region61: #{tpu_custom_call.1} parent=1 // pred_fallthru
      _
    // Predicated region
    $region62: #{tpu_custom_call.1} parent=1 // pred_check
      _
    $region63: #{tpu_custom_call.1} parent=1 // pred_check_branch
      %151 = sbr.rel (0) target = $region65
    $region64: #{tpu_custom_call.1} parent=1 // pred_region
      %s153 = ssub.s32 128, 128
      %154 = vsyncadd [#allocation17], %s153
      %s156 = sshll.u32 [#allocation16], 4
      %s157 = int_to_ptr.vmem [resolvable:$true] %s156
      %159 = dma.hbm_to_vmem [thread:$0]  %s15, 128, %s157, [#allocation17]
    $region65: #{tpu_custom_call.1} parent=1 // pred_fallthru
      _
    // Predicated region
    $region66: #{tpu_custom_call.1} parent=1 // pred_check
      _
    $region67: #{tpu_custom_call.1} parent=1 // pred_check_branch
      %161 = sbr.rel (0) target = $region69
    $region68: #{tpu_custom_call.1} parent=1 // pred_region
      %s163 = ssub.s32 128, 128
      %164 = vsyncadd [#allocation17], %s163
      %s166 = sshll.u32 [#allocation18], 4
      %s167 = int_to_ptr.vmem [resolvable:$true] %s166
      %169 = dma.hbm_to_vmem [thread:$0]  %s16, 128, %s167, [#allocation17]
    $region69: #{tpu_custom_call.1} parent=1 // pred_fallthru
      _
    // Predicated region
    $region70: #{tpu_custom_call.1} parent=1 // pred_check
      _
    $region71: #{tpu_custom_call.1} parent=1 // pred_check_branch
      %171 = sbr.rel (0) target = $region73
    $region72: #{tpu_custom_call.1} parent=1 // pred_region
      _
    $region73: #{tpu_custom_call.1} parent=1 // pred_fallthru
      _
    // Predicated region
    $region74: #{tpu_custom_call.1} parent=1 // pred_check
      _
    $region75: #{tpu_custom_call.1} parent=1 // pred_check_branch
      %173 = sbr.rel (0) target = $region77
    $region76: #{tpu_custom_call.1} parent=1 // pred_region
      _
    $region77: #{tpu_custom_call.1} parent=1 // pred_fallthru
      _
    // Predicated region
    $region78: #{tpu_custom_call.1} parent=1 // pred_check
      _
    $region79: #{tpu_custom_call.1} parent=1 // pred_check_branch
      %175 = sbr.rel (0) target = $region81
    $region80: #{tpu_custom_call.1} parent=1 // pred_region
      %s177 = ssub.s32 16, 16
      %178 = vsyncadd [#allocation20], %s177
      %s180 = sshll.u32 [#allocation19], 4
      %s181 = int_to_ptr.vmem [resolvable:$true] %s180
      %183 = dma.hbm_to_vmem [thread:$0]  %s19, 16, %s181, [#allocation20]
    $region81: #{tpu_custom_call.1} parent=1 // pred_fallthru
      _
    // Predicated region
    $region82: #{tpu_custom_call.1} parent=1 // pred_check
      _
    $region83: #{tpu_custom_call.1} parent=1 // pred_check_branch
      %185 = sbr.rel (0) target = $region85
    $region84: #{tpu_custom_call.1} parent=1 // pred_region
      _
    $region85: #{tpu_custom_call.1} parent=1 // pred_fallthru
      _
    // Predicated region
    $region86: #{tpu_custom_call.1} parent=1 // pred_check
      _
    $region87: #{tpu_custom_call.1} parent=1 // pred_check_branch
      %187 = sbr.rel (0) target = $region89
    $region88: #{tpu_custom_call.1} parent=1 // pred_region
      _
    $region89: #{tpu_custom_call.1} parent=1 // pred_fallthru
      _
    // Predicated region
    $region90: #{tpu_custom_call.1} parent=1 // pred_check
      _
    $region91: #{tpu_custom_call.1} parent=1 // pred_check_branch
      %189 = sbr.rel (0) target = $region93
    $region92: #{tpu_custom_call.1} parent=1 // pred_region
      %s191 = ssub.s32 256, 256
      %192 = vsyncadd [#allocation20], %s191
      %s193 = sshll.u32 [#allocation21], 4
      %s194 = int_to_ptr.vmem [resolvable:$true] %s193
      %199 = dma.hbm_to_vmem [thread:$0]  %s22, 256, %s194, [#allocation20], 64, 64, 4
    $region93: #{tpu_custom_call.1} parent=1 // pred_fallthru
      _
    // Predicated region
    $region94: #{tpu_custom_call.1} parent=1 // pred_check
      _
    $region95: #{tpu_custom_call.1} parent=1 // pred_check_branch
      %201 = sbr.rel (0) target = $region97
    $region96: #{tpu_custom_call.1} parent=1 // pred_region
      _
    $region97: #{tpu_custom_call.1} parent=1 // pred_fallthru
      _
    // Predicated region
    $region98: #{tpu_custom_call.1} parent=1 // pred_check
      _
    $region99: #{tpu_custom_call.1} parent=1 // pred_check_branch
      %203 = sbr.rel (0) target = $region101
    $region100: #{tpu_custom_call.1} parent=1 // pred_region
      _
    $region101: #{tpu_custom_call.1} parent=1 // pred_fallthru
      _
    // Predicated region
    $region102: #{tpu_custom_call.1} parent=1 // pred_check
      _
    $region103: #{tpu_custom_call.1} parent=1 // pred_check_branch
      %205 = sbr.rel (0) target = $region105
    $region104: #{tpu_custom_call.1} parent=1 // pred_region
      _
    $region105: #{tpu_custom_call.1} parent=1 // pred_fallthru
      _
    // Predicated region
    $region106: #{tpu_custom_call.1} parent=1 // pred_check
      _
    $region107: #{tpu_custom_call.1} parent=1 // pred_check_branch
      %207 = sbr.rel (0) target = $region109
    $region108: #{tpu_custom_call.1} parent=1 // pred_region
      %208 = dma.done [#allocation3], 16384
    $region109: #{tpu_custom_call.1} parent=1 // pred_fallthru
      _
    // Predicated region
    $region110: #{tpu_custom_call.1} parent=1 // pred_check
      _
    $region111: #{tpu_custom_call.1} parent=1 // pred_check_branch
      %210 = sbr.rel (0) target = $region113
    $region112: #{tpu_custom_call.1} parent=1 // pred_region
      %211 = dma.done [#allocation5], 8192
    $region113: #{tpu_custom_call.1} parent=1 // pred_fallthru
      _
    // Predicated region
    $region114: #{tpu_custom_call.1} parent=1 // pred_check
      _
    $region115: #{tpu_custom_call.1} parent=1 // pred_check_branch
      %213 = sbr.rel (0) target = $region117
    $region116: #{tpu_custom_call.1} parent=1 // pred_region
      %214 = dma.done [#allocation5], 128
    $region117: #{tpu_custom_call.1} parent=1 // pred_fallthru
      _
    // Predicated region
    $region118: #{tpu_custom_call.1} parent=1 // pred_check
      _
    $region119: #{tpu_custom_call.1} parent=1 // pred_check_branch
      %216 = sbr.rel (0) target = $region121
    $region120: #{tpu_custom_call.1} parent=1 // pred_region
      %217 = dma.done [#allocation8], 16384
    $region121: #{tpu_custom_call.1} parent=1 // pred_fallthru
      _
    // Predicated region
    $region122: #{tpu_custom_call.1} parent=1 // pred_check
      _
    $region123: #{tpu_custom_call.1} parent=1 // pred_check_branch
      %219 = sbr.rel (0) target = $region125
    $region124: #{tpu_custom_call.1} parent=1 // pred_region
      %220 = dma.done [#allocation8], 8192
    $region125: #{tpu_custom_call.1} parent=1 // pred_fallthru
      _
    // Predicated region
    $region126: #{tpu_custom_call.1} parent=1 // pred_check
      _
    $region127: #{tpu_custom_call.1} parent=1 // pred_check_branch
      %222 = sbr.rel (0) target = $region129
    $region128: #{tpu_custom_call.1} parent=1 // pred_region
      %223 = dma.done [#allocation11], 128
    $region129: #{tpu_custom_call.1} parent=1 // pred_fallthru
      _
    // Predicated region
    $region130: #{tpu_custom_call.1} parent=1 // pred_check
      _
    $region131: #{tpu_custom_call.1} parent=1 // pred_check_branch
      %225 = sbr.rel (0) target = $region133
    $region132: #{tpu_custom_call.1} parent=1 // pred_region
      %226 = dma.done [#allocation11], 128
    $region133: #{tpu_custom_call.1} parent=1 // pred_fallthru
      _
    // Predicated region
    $region134: #{tpu_custom_call.1} parent=1 // pred_check
      _
    $region135: #{tpu_custom_call.1} parent=1 // pred_check_branch
      %228 = sbr.rel (0) target = $region137
    $region136: #{tpu_custom_call.1} parent=1 // pred_region
      %229 = dma.done [#allocation14], 1024
    $region137: #{tpu_custom_call.1} parent=1 // pred_fallthru
      _
    // Predicated region
    $region138: #{tpu_custom_call.1} parent=1 // pred_check
      _
    $region139: #{tpu_custom_call.1} parent=1 // pred_check_branch
      %231 = sbr.rel (0) target = $region141
    $region140: #{tpu_custom_call.1} parent=1 // pred_region
      %232 = dma.done [#allocation14], 16
    $region141: #{tpu_custom_call.1} parent=1 // pred_fallthru
      _
    // Predicated region
    $region142: #{tpu_custom_call.1} parent=1 // pred_check
      _
    $region143: #{tpu_custom_call.1} parent=1 // pred_check_branch
      %234 = sbr.rel (0) target = $region145
    $region144: #{tpu_custom_call.1} parent=1 // pred_region
      %235 = dma.done [#allocation17], 128
    $region145: #{tpu_custom_call.1} parent=1 // pred_fallthru
      _
    // Predicated region
    $region146: #{tpu_custom_call.1} parent=1 // pred_check
      _
    $region147: #{tpu_custom_call.1} parent=1 // pred_check_branch
      %237 = sbr.rel (0) target = $region149
    $region148: #{tpu_custom_call.1} parent=1 // pred_region
      %238 = dma.done [#allocation17], 128
    $region149: #{tpu_custom_call.1} parent=1 // pred_fallthru
      _
    // Predicated region
    $region150: #{tpu_custom_call.1} parent=1 // pred_check
      _
    $region151: #{tpu_custom_call.1} parent=1 // pred_check_branch
      %240 = sbr.rel (0) target = $region153
    $region152: #{tpu_custom_call.1} parent=1 // pred_region
      %241 = dma.done [#allocation20], 16
    $region153: #{tpu_custom_call.1} parent=1 // pred_fallthru
      _
    // Predicated region
    $region154: #{tpu_custom_call.1} parent=1 // pred_check
      _
    $region155: #{tpu_custom_call.1} parent=1 // pred_check_branch
      %243 = sbr.rel (0) target = $region157
    $region156: #{tpu_custom_call.1} parent=1 // pred_region
      %244 = dma.done [#allocation20], 256
    $region157: #{tpu_custom_call.1} parent=1 // pred_fallthru
      _
    %v246 = vld [vmem:[%s0] sm:$0xff]
    %v247 = vld [vmem:[%s0 + $0x8] sm:$0xff]
    %v248 = vld [vmem:[%s0 + $0x10] sm:$0xff]
    %v249 = vld [vmem:[%s0 + $0x18] sm:$0xff]
    %v250 = vld [vmem:[%s0 + $0x20] sm:$0xff]
    %v251 = vld [vmem:[%s0 + $0x28] sm:$0xff]
    %v252 = vld [vmem:[%s0 + $0x30] sm:$0xff]
    %v253 = vld [vmem:[%s0 + $0x38] sm:$0xff]
    %v254 = vld [vmem:[%s0 + $0x40] sm:$0xff]
    %v255 = vld [vmem:[%s0 + $0x48] sm:$0xff]
    %v256 = vld [vmem:[%s0 + $0x50] sm:$0xff]
    %v257 = vld [vmem:[%s0 + $0x58] sm:$0xff]
    %v258 = vld [vmem:[%s0 + $0x60] sm:$0xff]
    %v259 = vld [vmem:[%s0 + $0x68] sm:$0xff]
    %v260 = vld [vmem:[%s0 + $0x70] sm:$0xff]
    %v261 = vld [vmem:[%s0 + $0x78] sm:$0xff]
    %v262 = vpack.c.bf16 %v248, %v246
    %v263 = vpack.c.bf16 %v249, %v247
    %v264 = vpack.c.bf16 %v252, %v250
    %v265 = vpack.c.bf16 %v253, %v251
    %v266 = vpack.c.bf16 %v256, %v254
    %v267 = vpack.c.bf16 %v257, %v255
    %v268 = vpack.c.bf16 %v260, %v258
    %v269 = vpack.c.bf16 %v261, %v259
    %v270 = vld [vmem:[#allocation2] sm:$0xff]
    %v271 = vld [vmem:[#allocation2 + $0x8] sm:$0xff]
    %v272 = vld [vmem:[#allocation2 + $0x10] sm:$0xff]
    %v273 = vld [vmem:[#allocation2 + $0x18] sm:$0xff]
    %v274 = vld [vmem:[#allocation2 + $0x20] sm:$0xff]
    %v275 = vld [vmem:[#allocation2 + $0x28] sm:$0xff]
    %v276 = vld [vmem:[#allocation2 + $0x30] sm:$0xff]
    %v277 = vld [vmem:[#allocation2 + $0x38] sm:$0xff]
    %v278 = vld [vmem:[#allocation2 + $0x40] sm:$0xff]
    %v279 = vld [vmem:[#allocation2 + $0x48] sm:$0xff]
    %v280 = vld [vmem:[#allocation2 + $0x50] sm:$0xff]
    %v281 = vld [vmem:[#allocation2 + $0x58] sm:$0xff]
    %v282 = vld [vmem:[#allocation2 + $0x60] sm:$0xff]
    %v283 = vld [vmem:[#allocation2 + $0x68] sm:$0xff]
    %v284 = vld [vmem:[#allocation2 + $0x70] sm:$0xff]
    %v285 = vld [vmem:[#allocation2 + $0x78] sm:$0xff]
    %v286 = vld [vmem:[#allocation2 + $0x80] sm:$0xff]
    %v287 = vld [vmem:[#allocation2 + $0x88] sm:$0xff]
    %v288 = vld [vmem:[#allocation2 + $0x90] sm:$0xff]
    %v289 = vld [vmem:[#allocation2 + $0x98] sm:$0xff]
    %v290 = vld [vmem:[#allocation2 + $0xa0] sm:$0xff]
    %v291 = vld [vmem:[#allocation2 + $0xa8] sm:$0xff]
    %v292 = vld [vmem:[#allocation2 + $0xb0] sm:$0xff]
    %v293 = vld [vmem:[#allocation2 + $0xb8] sm:$0xff]
    %v294 = vld [vmem:[#allocation2 + $0xc0] sm:$0xff]
    %v295 = vld [vmem:[#allocation2 + $0xc8] sm:$0xff]
    %v296 = vld [vmem:[#allocation2 + $0xd0] sm:$0xff]
    %v297 = vld [vmem:[#allocation2 + $0xd8] sm:$0xff]
    %v298 = vld [vmem:[#allocation2 + $0xe0] sm:$0xff]
    %v299 = vld [vmem:[#allocation2 + $0xe8] sm:$0xff]
    %v300 = vld [vmem:[#allocation2 + $0xf0] sm:$0xff]
    %v301 = vld [vmem:[#allocation2 + $0xf8] sm:$0xff]
    %v302 = vld [vmem:[#allocation2 + $0x100] sm:$0xff]
    %v303 = vld [vmem:[#allocation2 + $0x108] sm:$0xff]
    %v304 = vld [vmem:[#allocation2 + $0x110] sm:$0xff]
    %v305 = vld [vmem:[#allocation2 + $0x118] sm:$0xff]
    %v306 = vld [vmem:[#allocation2 + $0x120] sm:$0xff]
    %v307 = vld [vmem:[#allocation2 + $0x128] sm:$0xff]
    %v308 = vld [vmem:[#allocation2 + $0x130] sm:$0xff]
    %v309 = vld [vmem:[#allocation2 + $0x138] sm:$0xff]
    %v310 = vld [vmem:[#allocation2 + $0x140] sm:$0xff]
    %v311 = vld [vmem:[#allocation2 + $0x148] sm:$0xff]
    %v312 = vld [vmem:[#allocation2 + $0x150] sm:$0xff]
    %v313 = vld [vmem:[#allocation2 + $0x158] sm:$0xff]
    %v314 = vld [vmem:[#allocation2 + $0x160] sm:$0xff]
    %v315 = vld [vmem:[#allocation2 + $0x168] sm:$0xff]
    %v316 = vld [vmem:[#allocation2 + $0x170] sm:$0xff]
    %v317 = vld [vmem:[#allocation2 + $0x178] sm:$0xff]
    %v318 = vld [vmem:[#allocation2 + $0x180] sm:$0xff]
    %v319 = vld [vmem:[#allocation2 + $0x188] sm:$0xff]
    %v320 = vld [vmem:[#allocation2 + $0x190] sm:$0xff]
    %v321 = vld [vmem:[#allocation2 + $0x198] sm:$0xff]
    %v322 = vld [vmem:[#allocation2 + $0x1a0] sm:$0xff]
    %v323 = vld [vmem:[#allocation2 + $0x1a8] sm:$0xff]
    %v324 = vld [vmem:[#allocation2 + $0x1b0] sm:$0xff]
    %v325 = vld [vmem:[#allocation2 + $0x1b8] sm:$0xff]
    %v326 = vld [vmem:[#allocation2 + $0x1c0] sm:$0xff]
    %v327 = vld [vmem:[#allocation2 + $0x1c8] sm:$0xff]
    %v328 = vld [vmem:[#allocation2 + $0x1d0] sm:$0xff]
    %v329 = vld [vmem:[#allocation2 + $0x1d8] sm:$0xff]
    %v330 = vld [vmem:[#allocation2 + $0x1e0] sm:$0xff]
    %v331 = vld [vmem:[#allocation2 + $0x1e8] sm:$0xff]
    %v332 = vld [vmem:[#allocation2 + $0x1f0] sm:$0xff]
    %v333 = vld [vmem:[#allocation2 + $0x1f8] sm:$0xff]
    %v334 = vld [vmem:[#allocation2 + $0x200] sm:$0xff]
    %v335 = vld [vmem:[#allocation2 + $0x208] sm:$0xff]
    %v336 = vld [vmem:[#allocation2 + $0x210] sm:$0xff]
    %v337 = vld [vmem:[#allocation2 + $0x218] sm:$0xff]
    %v338 = vld [vmem:[#allocation2 + $0x220] sm:$0xff]
    %v339 = vld [vmem:[#allocation2 + $0x228] sm:$0xff]
    %v340 = vld [vmem:[#allocation2 + $0x230] sm:$0xff]
    %v341 = vld [vmem:[#allocation2 + $0x238] sm:$0xff]
    %v342 = vld [vmem:[#allocation2 + $0x240] sm:$0xff]
    %v343 = vld [vmem:[#allocation2 + $0x248] sm:$0xff]
    %v344 = vld [vmem:[#allocation2 + $0x250] sm:$0xff]
    %v345 = vld [vmem:[#allocation2 + $0x258] sm:$0xff]
    %v346 = vld [vmem:[#allocation2 + $0x260] sm:$0xff]
    %v347 = vld [vmem:[#allocation2 + $0x268] sm:$0xff]
    %v348 = vld [vmem:[#allocation2 + $0x270] sm:$0xff]
    %v349 = vld [vmem:[#allocation2 + $0x278] sm:$0xff]
    %v350 = vld [vmem:[#allocation2 + $0x280] sm:$0xff]
    %v351 = vld [vmem:[#allocation2 + $0x288] sm:$0xff]
    %v352 = vld [vmem:[#allocation2 + $0x290] sm:$0xff]
    %v353 = vld [vmem:[#allocation2 + $0x298] sm:$0xff]
    %v354 = vld [vmem:[#allocation2 + $0x2a0] sm:$0xff]
    %v355 = vld [vmem:[#allocation2 + $0x2a8] sm:$0xff]
    %v356 = vld [vmem:[#allocation2 + $0x2b0] sm:$0xff]
    %v357 = vld [vmem:[#allocation2 + $0x2b8] sm:$0xff]
    %v358 = vld [vmem:[#allocation2 + $0x2c0] sm:$0xff]
    %v359 = vld [vmem:[#allocation2 + $0x2c8] sm:$0xff]
    %v360 = vld [vmem:[#allocation2 + $0x2d0] sm:$0xff]
    %v361 = vld [vmem:[#allocation2 + $0x2d8] sm:$0xff]
    %v362 = vld [vmem:[#allocation2 + $0x2e0] sm:$0xff]
    %v363 = vld [vmem:[#allocation2 + $0x2e8] sm:$0xff]
    %v364 = vld [vmem:[#allocation2 + $0x2f0] sm:$0xff]
    %v365 = vld [vmem:[#allocation2 + $0x2f8] sm:$0xff]
    %v366 = vld [vmem:[#allocation2 + $0x300] sm:$0xff]
    %v367 = vld [vmem:[#allocation2 + $0x308] sm:$0xff]
    %v368 = vld [vmem:[#allocation2 + $0x310] sm:$0xff]
    %v369 = vld [vmem:[#allocation2 + $0x318] sm:$0xff]
    %v370 = vld [vmem:[#allocation2 + $0x320] sm:$0xff]
    %v371 = vld [vmem:[#allocation2 + $0x328] sm:$0xff]
    %v372 = vld [vmem:[#allocation2 + $0x330] sm:$0xff]
    %v373 = vld [vmem:[#allocation2 + $0x338] sm:$0xff]
    %v374 = vld [vmem:[#allocation2 + $0x340] sm:$0xff]
    %v375 = vld [vmem:[#allocation2 + $0x348] sm:$0xff]
    %v376 = vld [vmem:[#allocation2 + $0x350] sm:$0xff]
    %v377 = vld [vmem:[#allocation2 + $0x358] sm:$0xff]
    %v378 = vld [vmem:[#allocation2 + $0x360] sm:$0xff]
    %v379 = vld [vmem:[#allocation2 + $0x368] sm:$0xff]
    %v380 = vld [vmem:[#allocation2 + $0x370] sm:$0xff]
    %v381 = vld [vmem:[#allocation2 + $0x378] sm:$0xff]
    %v382 = vld [vmem:[#allocation2 + $0x380] sm:$0xff]
    %v383 = vld [vmem:[#allocation2 + $0x388] sm:$0xff]
    %v384 = vld [vmem:[#allocation2 + $0x390] sm:$0xff]
    %v385 = vld [vmem:[#allocation2 + $0x398] sm:$0xff]
    %v386 = vld [vmem:[#allocation2 + $0x3a0] sm:$0xff]
    %v387 = vld [vmem:[#allocation2 + $0x3a8] sm:$0xff]
    %v388 = vld [vmem:[#allocation2 + $0x3b0] sm:$0xff]
    %v389 = vld [vmem:[#allocation2 + $0x3b8] sm:$0xff]
    %v390 = vld [vmem:[#allocation2 + $0x3c0] sm:$0xff]
    %v391 = vld [vmem:[#allocation2 + $0x3c8] sm:$0xff]
    %v392 = vld [vmem:[#allocation2 + $0x3d0] sm:$0xff]
    %v393 = vld [vmem:[#allocation2 + $0x3d8] sm:$0xff]
    %v394 = vld [vmem:[#allocation2 + $0x3e0] sm:$0xff]
    %v395 = vld [vmem:[#allocation2 + $0x3e8] sm:$0xff]
    %v396 = vld [vmem:[#allocation2 + $0x3f0] sm:$0xff]
    %v397 = vld [vmem:[#allocation2 + $0x3f8] sm:$0xff]
    %v398 = vld [vmem:[#allocation6] sm:$0xff]
    %v400 = vlaneseq
    %v401 = vshrl.u32 %v400, 7
    %v402 = vsub.s32 0, %v401
    %v403 = vrot.slane %v398, %v402
    %v404 = vlaneseq
    %v405 = vshrl.u32 %v404, 7
    %v406 = vsub.s32 1, %v405
    %v407 = vrot.slane %v398, %v406
    %v408 = vlaneseq
    %v409 = vshrl.u32 %v408, 7
    %v410 = vsub.s32 2, %v409
    %v411 = vrot.slane %v398, %v410
    %v412 = vlaneseq
    %v413 = vshrl.u32 %v412, 7
    %v414 = vsub.s32 3, %v413
    %v415 = vrot.slane %v398, %v414
    %v416 = vlaneseq
    %v417 = vshrl.u32 %v416, 7
    %v418 = vsub.s32 4, %v417
    %v419 = vrot.slane %v398, %v418
    %v420 = vlaneseq
    %v421 = vshrl.u32 %v420, 7
    %v422 = vsub.s32 5, %v421
    %v423 = vrot.slane %v398, %v422
    %v424 = vlaneseq
    %v425 = vshrl.u32 %v424, 7
    %v426 = vsub.s32 6, %v425
    %v427 = vrot.slane %v398, %v426
    %v428 = vlaneseq
    %v429 = vshrl.u32 %v428, 7
    %v430 = vsub.s32 7, %v429
    %v431 = vrot.slane %v398, %v430
    %v568 = vunpack.c.l.b16 %v270
    %v569 = vunpack.c.h.b16 %v270
    %v570 = vunpack.c.l.b16 %v271
    %v571 = vunpack.c.h.b16 %v271
    %v572 = vunpack.c.l.b16 %v272
    %v573 = vunpack.c.h.b16 %v272
    %v574 = vunpack.c.l.b16 %v273
    %v575 = vunpack.c.h.b16 %v273
    %v576 = vunpack.c.l.b16 %v274
    %v577 = vunpack.c.h.b16 %v274
    %v578 = vunpack.c.l.b16 %v275
    %v579 = vunpack.c.h.b16 %v275
    %v580 = vunpack.c.l.b16 %v276
    %v581 = vunpack.c.h.b16 %v276
    %v582 = vunpack.c.l.b16 %v277
    %v583 = vunpack.c.h.b16 %v277
    %v584 = vunpack.c.l.b16 %v278
    %v585 = vunpack.c.h.b16 %v278
    %v586 = vunpack.c.l.b16 %v279
    %v587 = vunpack.c.h.b16 %v279
    %v588 = vunpack.c.l.b16 %v280
    %v589 = vunpack.c.h.b16 %v280
    %v590 = vunpack.c.l.b16 %v281
    %v591 = vunpack.c.h.b16 %v281
    %v592 = vunpack.c.l.b16 %v282
    %v593 = vunpack.c.h.b16 %v282
    %v594 = vunpack.c.l.b16 %v283
    %v595 = vunpack.c.h.b16 %v283
    %v596 = vunpack.c.l.b16 %v284
    %v597 = vunpack.c.h.b16 %v284
    %v598 = vunpack.c.l.b16 %v285
    %v599 = vunpack.c.h.b16 %v285
    %v600 = vunpack.c.l.b16 %v286
    %v601 = vunpack.c.h.b16 %v286
    %v602 = vunpack.c.l.b16 %v287
    %v603 = vunpack.c.h.b16 %v287
    %v604 = vunpack.c.l.b16 %v288
    %v605 = vunpack.c.h.b16 %v288
    %v606 = vunpack.c.l.b16 %v289
    %v607 = vunpack.c.h.b16 %v289
    %v608 = vunpack.c.l.b16 %v290
    %v609 = vunpack.c.h.b16 %v290
    %v610 = vunpack.c.l.b16 %v291
    %v611 = vunpack.c.h.b16 %v291
    %v612 = vunpack.c.l.b16 %v292
    %v613 = vunpack.c.h.b16 %v292
    %v614 = vunpack.c.l.b16 %v293
    %v615 = vunpack.c.h.b16 %v293
    %v616 = vunpack.c.l.b16 %v294
    %v617 = vunpack.c.h.b16 %v294
    %v618 = vunpack.c.l.b16 %v295
    %v619 = vunpack.c.h.b16 %v295
    %v620 = vunpack.c.l.b16 %v296
    %v621 = vunpack.c.h.b16 %v296
    %v622 = vunpack.c.l.b16 %v297
    %v623 = vunpack.c.h.b16 %v297
    %v624 = vunpack.c.l.b16 %v298
    %v625 = vunpack.c.h.b16 %v298
    %v626 = vunpack.c.l.b16 %v299
    %v627 = vunpack.c.h.b16 %v299
    %v628 = vunpack.c.l.b16 %v300
    %v629 = vunpack.c.h.b16 %v300
    %v630 = vunpack.c.l.b16 %v301
    %v631 = vunpack.c.h.b16 %v301
    %v632 = vunpack.c.l.b16 %v302
    %v633 = vunpack.c.h.b16 %v302
    %v634 = vunpack.c.l.b16 %v303
    %v635 = vunpack.c.h.b16 %v303
    %v636 = vunpack.c.l.b16 %v304
    %v637 = vunpack.c.h.b16 %v304
    %v638 = vunpack.c.l.b16 %v305
    %v639 = vunpack.c.h.b16 %v305
    %v640 = vunpack.c.l.b16 %v306
    %v641 = vunpack.c.h.b16 %v306
    %v642 = vunpack.c.l.b16 %v307
    %v643 = vunpack.c.h.b16 %v307
    %v644 = vunpack.c.l.b16 %v308
    %v645 = vunpack.c.h.b16 %v308
    %v646 = vunpack.c.l.b16 %v309
    %v647 = vunpack.c.h.b16 %v309
    %v648 = vunpack.c.l.b16 %v310
    %v649 = vunpack.c.h.b16 %v310
    %v650 = vunpack.c.l.b16 %v311
    %v651 = vunpack.c.h.b16 %v311
    %v652 = vunpack.c.l.b16 %v312
    %v653 = vunpack.c.h.b16 %v312
    %v654 = vunpack.c.l.b16 %v313
    %v655 = vunpack.c.h.b16 %v313
    %v656 = vunpack.c.l.b16 %v314
    %v657 = vunpack.c.h.b16 %v314
    %v658 = vunpack.c.l.b16 %v315
    %v659 = vunpack.c.h.b16 %v315
    %v660 = vunpack.c.l.b16 %v316
    %v661 = vunpack.c.h.b16 %v316
    %v662 = vunpack.c.l.b16 %v317
    %v663 = vunpack.c.h.b16 %v317
    %v664 = vunpack.c.l.b16 %v318
    %v665 = vunpack.c.h.b16 %v318
    %v666 = vunpack.c.l.b16 %v319
    %v667 = vunpack.c.h.b16 %v319
    %v668 = vunpack.c.l.b16 %v320
    %v669 = vunpack.c.h.b16 %v320
    %v670 = vunpack.c.l.b16 %v321
    %v671 = vunpack.c.h.b16 %v321
    %v672 = vunpack.c.l.b16 %v322
    %v673 = vunpack.c.h.b16 %v322
    %v674 = vunpack.c.l.b16 %v323
    %v675 = vunpack.c.h.b16 %v323
    %v676 = vunpack.c.l.b16 %v324
    %v677 = vunpack.c.h.b16 %v324
    %v678 = vunpack.c.l.b16 %v325
    %v679 = vunpack.c.h.b16 %v325
    %v680 = vunpack.c.l.b16 %v326
    %v681 = vunpack.c.h.b16 %v326
    %v682 = vunpack.c.l.b16 %v327
    %v683 = vunpack.c.h.b16 %v327
    %v684 = vunpack.c.l.b16 %v328
    %v685 = vunpack.c.h.b16 %v328
    %v686 = vunpack.c.l.b16 %v329
    %v687 = vunpack.c.h.b16 %v329
    %v688 = vunpack.c.l.b16 %v330
    %v689 = vunpack.c.h.b16 %v330
    %v690 = vunpack.c.l.b16 %v331
    %v691 = vunpack.c.h.b16 %v331
    %v692 = vunpack.c.l.b16 %v332
    %v693 = vunpack.c.h.b16 %v332
    %v694 = vunpack.c.l.b16 %v333
    %v695 = vunpack.c.h.b16 %v333
    %v696 = vunpack.c.l.b16 %v334
    %v697 = vunpack.c.h.b16 %v334
    %v698 = vunpack.c.l.b16 %v335
    %v699 = vunpack.c.h.b16 %v335
    %v700 = vunpack.c.l.b16 %v336
    %v701 = vunpack.c.h.b16 %v336
    %v702 = vunpack.c.l.b16 %v337
    %v703 = vunpack.c.h.b16 %v337
    %v704 = vunpack.c.l.b16 %v338
    %v705 = vunpack.c.h.b16 %v338
    %v706 = vunpack.c.l.b16 %v339
    %v707 = vunpack.c.h.b16 %v339
    %v708 = vunpack.c.l.b16 %v340
    %v709 = vunpack.c.h.b16 %v340
    %v710 = vunpack.c.l.b16 %v341
    %v711 = vunpack.c.h.b16 %v341
    %v712 = vunpack.c.l.b16 %v342
    %v713 = vunpack.c.h.b16 %v342
    %v714 = vunpack.c.l.b16 %v343
    %v715 = vunpack.c.h.b16 %v343
    %v716 = vunpack.c.l.b16 %v344
    %v717 = vunpack.c.h.b16 %v344
    %v718 = vunpack.c.l.b16 %v345
    %v719 = vunpack.c.h.b16 %v345
    %v720 = vunpack.c.l.b16 %v346
    %v721 = vunpack.c.h.b16 %v346
    %v722 = vunpack.c.l.b16 %v347
    %v723 = vunpack.c.h.b16 %v347
    %v724 = vunpack.c.l.b16 %v348
    %v725 = vunpack.c.h.b16 %v348
    %v726 = vunpack.c.l.b16 %v349
    %v727 = vunpack.c.h.b16 %v349
    %v728 = vunpack.c.l.b16 %v350
    %v729 = vunpack.c.h.b16 %v350
    %v730 = vunpack.c.l.b16 %v351
    %v731 = vunpack.c.h.b16 %v351
    %v732 = vunpack.c.l.b16 %v352
    %v733 = vunpack.c.h.b16 %v352
    %v734 = vunpack.c.l.b16 %v353
    %v735 = vunpack.c.h.b16 %v353
    %v736 = vunpack.c.l.b16 %v354
    %v737 = vunpack.c.h.b16 %v354
    %v738 = vunpack.c.l.b16 %v355
    %v739 = vunpack.c.h.b16 %v355
    %v740 = vunpack.c.l.b16 %v356
    %v741 = vunpack.c.h.b16 %v356
    %v742 = vunpack.c.l.b16 %v357
    %v743 = vunpack.c.h.b16 %v357
    %v744 = vunpack.c.l.b16 %v358
    %v745 = vunpack.c.h.b16 %v358
    %v746 = vunpack.c.l.b16 %v359
    %v747 = vunpack.c.h.b16 %v359
    %v748 = vunpack.c.l.b16 %v360
    %v749 = vunpack.c.h.b16 %v360
    %v750 = vunpack.c.l.b16 %v361
    %v751 = vunpack.c.h.b16 %v361
    %v752 = vunpack.c.l.b16 %v362
    %v753 = vunpack.c.h.b16 %v362
    %v754 = vunpack.c.l.b16 %v363
    %v755 = vunpack.c.h.b16 %v363
    %v756 = vunpack.c.l.b16 %v364
    %v757 = vunpack.c.h.b16 %v364
    %v758 = vunpack.c.l.b16 %v365
    %v759 = vunpack.c.h.b16 %v365
    %v760 = vunpack.c.l.b16 %v366
    %v761 = vunpack.c.h.b16 %v366
    %v762 = vunpack.c.l.b16 %v367
    %v763 = vunpack.c.h.b16 %v367
    %v764 = vunpack.c.l.b16 %v368
    %v765 = vunpack.c.h.b16 %v368
    %v766 = vunpack.c.l.b16 %v369
    %v767 = vunpack.c.h.b16 %v369
    %v768 = vunpack.c.l.b16 %v370
    %v769 = vunpack.c.h.b16 %v370
    %v770 = vunpack.c.l.b16 %v371
    %v771 = vunpack.c.h.b16 %v371
    %v772 = vunpack.c.l.b16 %v372
    %v773 = vunpack.c.h.b16 %v372
    %v774 = vunpack.c.l.b16 %v373
    %v775 = vunpack.c.h.b16 %v373
    %v776 = vunpack.c.l.b16 %v374
    %v777 = vunpack.c.h.b16 %v374
    %v778 = vunpack.c.l.b16 %v375
    %v779 = vunpack.c.h.b16 %v375
    %v780 = vunpack.c.l.b16 %v376
    %v781 = vunpack.c.h.b16 %v376
    %v782 = vunpack.c.l.b16 %v377
    %v783 = vunpack.c.h.b16 %v377
    %v784 = vunpack.c.l.b16 %v378
    %v785 = vunpack.c.h.b16 %v378
    %v786 = vunpack.c.l.b16 %v379
    %v787 = vunpack.c.h.b16 %v379
    %v788 = vunpack.c.l.b16 %v380
    %v789 = vunpack.c.h.b16 %v380
    %v790 = vunpack.c.l.b16 %v381
    %v791 = vunpack.c.h.b16 %v381
    %v792 = vunpack.c.l.b16 %v382
    %v793 = vunpack.c.h.b16 %v382
    %v794 = vunpack.c.l.b16 %v383
    %v795 = vunpack.c.h.b16 %v383
    %v796 = vunpack.c.l.b16 %v384
    %v797 = vunpack.c.h.b16 %v384
    %v798 = vunpack.c.l.b16 %v385
    %v799 = vunpack.c.h.b16 %v385
    %v800 = vunpack.c.l.b16 %v386
    %v801 = vunpack.c.h.b16 %v386
    %v802 = vunpack.c.l.b16 %v387
    %v803 = vunpack.c.h.b16 %v387
    %v804 = vunpack.c.l.b16 %v388
    %v805 = vunpack.c.h.b16 %v388
    %v806 = vunpack.c.l.b16 %v389
    %v807 = vunpack.c.h.b16 %v389
    %v808 = vunpack.c.l.b16 %v390
    %v809 = vunpack.c.h.b16 %v390
    %v810 = vunpack.c.l.b16 %v391
    %v811 = vunpack.c.h.b16 %v391
    %v812 = vunpack.c.l.b16 %v392
    %v813 = vunpack.c.h.b16 %v392
    %v814 = vunpack.c.l.b16 %v393
    %v815 = vunpack.c.h.b16 %v393
    %v816 = vunpack.c.l.b16 %v394
    %v817 = vunpack.c.h.b16 %v394
    %v818 = vunpack.c.l.b16 %v395
    %v819 = vunpack.c.h.b16 %v395
    %v820 = vunpack.c.l.b16 %v396
    %v821 = vunpack.c.h.b16 %v396
    %v822 = vunpack.c.l.b16 %v397
    %v823 = vunpack.c.h.b16 %v397
    %v824 = vpack.c.b16 %v576, %v568
    %v825 = vpack.c.b16 %v577, %v569
    %v826 = vpack.c.b16 %v578, %v570
    %v827 = vpack.c.b16 %v579, %v571
    %v828 = vpack.c.b16 %v580, %v572
    %v829 = vpack.c.b16 %v581, %v573
    %v830 = vpack.c.b16 %v582, %v574
    %v831 = vpack.c.b16 %v583, %v575
    %v832 = vpack.c.b16 %v592, %v584
    %v833 = vpack.c.b16 %v593, %v585
    %v834 = vpack.c.b16 %v594, %v586
    %v835 = vpack.c.b16 %v595, %v587
    %v836 = vpack.c.b16 %v596, %v588
    %v837 = vpack.c.b16 %v597, %v589
    %v838 = vpack.c.b16 %v598, %v590
    %v839 = vpack.c.b16 %v599, %v591
    %v840 = vpack.c.b16 %v608, %v600
    %v841 = vpack.c.b16 %v609, %v601
    %v842 = vpack.c.b16 %v610, %v602
    %v843 = vpack.c.b16 %v611, %v603
    %v844 = vpack.c.b16 %v612, %v604
    %v845 = vpack.c.b16 %v613, %v605
    %v846 = vpack.c.b16 %v614, %v606
    %v847 = vpack.c.b16 %v615, %v607
    %v848 = vpack.c.b16 %v624, %v616
    %v849 = vpack.c.b16 %v625, %v617
    %v850 = vpack.c.b16 %v626, %v618
    %v851 = vpack.c.b16 %v627, %v619
    %v852 = vpack.c.b16 %v628, %v620
    %v853 = vpack.c.b16 %v629, %v621
    %v854 = vpack.c.b16 %v630, %v622
    %v855 = vpack.c.b16 %v631, %v623
    %v856 = vpack.c.b16 %v640, %v632
    %v857 = vpack.c.b16 %v641, %v633
    %v858 = vpack.c.b16 %v642, %v634
    %v859 = vpack.c.b16 %v643, %v635
    %v860 = vpack.c.b16 %v644, %v636
    %v861 = vpack.c.b16 %v645, %v637
    %v862 = vpack.c.b16 %v646, %v638
    %v863 = vpack.c.b16 %v647, %v639
    %v864 = vpack.c.b16 %v656, %v648
    %v865 = vpack.c.b16 %v657, %v649
    %v866 = vpack.c.b16 %v658, %v650
    %v867 = vpack.c.b16 %v659, %v651
    %v868 = vpack.c.b16 %v660, %v652
    %v869 = vpack.c.b16 %v661, %v653
    %v870 = vpack.c.b16 %v662, %v654
    %v871 = vpack.c.b16 %v663, %v655
    %v872 = vpack.c.b16 %v672, %v664
    %v873 = vpack.c.b16 %v673, %v665
    %v874 = vpack.c.b16 %v674, %v666
    %v875 = vpack.c.b16 %v675, %v667
    %v876 = vpack.c.b16 %v676, %v668
    %v877 = vpack.c.b16 %v677, %v669
    %v878 = vpack.c.b16 %v678, %v670
    %v879 = vpack.c.b16 %v679, %v671
    %v880 = vpack.c.b16 %v688, %v680
    %v881 = vpack.c.b16 %v689, %v681
    %v882 = vpack.c.b16 %v690, %v682
    %v883 = vpack.c.b16 %v691, %v683
    %v884 = vpack.c.b16 %v692, %v684
    %v885 = vpack.c.b16 %v693, %v685
    %v886 = vpack.c.b16 %v694, %v686
    %v887 = vpack.c.b16 %v695, %v687
    %v888 = vpack.c.b16 %v704, %v696
    %v889 = vpack.c.b16 %v705, %v697
    %v890 = vpack.c.b16 %v706, %v698
    %v891 = vpack.c.b16 %v707, %v699
    %v892 = vpack.c.b16 %v708, %v700
    %v893 = vpack.c.b16 %v709, %v701
    %v894 = vpack.c.b16 %v710, %v702
    %v895 = vpack.c.b16 %v711, %v703
    %v896 = vpack.c.b16 %v720, %v712
    %v897 = vpack.c.b16 %v721, %v713
    %v898 = vpack.c.b16 %v722, %v714
    %v899 = vpack.c.b16 %v723, %v715
    %v900 = vpack.c.b16 %v724, %v716
    %v901 = vpack.c.b16 %v725, %v717
    %v902 = vpack.c.b16 %v726, %v718
    %v903 = vpack.c.b16 %v727, %v719
    %v904 = vpack.c.b16 %v736, %v728
    %v905 = vpack.c.b16 %v737, %v729
    %v906 = vpack.c.b16 %v738, %v730
    %v907 = vpack.c.b16 %v739, %v731
    %v908 = vpack.c.b16 %v740, %v732
    %v909 = vpack.c.b16 %v741, %v733
    %v910 = vpack.c.b16 %v742, %v734
    %v911 = vpack.c.b16 %v743, %v735
    %v912 = vpack.c.b16 %v752, %v744
    %v913 = vpack.c.b16 %v753, %v745
    %v914 = vpack.c.b16 %v754, %v746
    %v915 = vpack.c.b16 %v755, %v747
    %v916 = vpack.c.b16 %v756, %v748
    %v917 = vpack.c.b16 %v757, %v749
    %v918 = vpack.c.b16 %v758, %v750
    %v919 = vpack.c.b16 %v759, %v751
    %v920 = vpack.c.b16 %v768, %v760
    %v921 = vpack.c.b16 %v769, %v761
    %v922 = vpack.c.b16 %v770, %v762
    %v923 = vpack.c.b16 %v771, %v763
    %v924 = vpack.c.b16 %v772, %v764
    %v925 = vpack.c.b16 %v773, %v765
    %v926 = vpack.c.b16 %v774, %v766
    %v927 = vpack.c.b16 %v775, %v767
    %v928 = vpack.c.b16 %v784, %v776
    %v929 = vpack.c.b16 %v785, %v777
    %v930 = vpack.c.b16 %v786, %v778
    %v931 = vpack.c.b16 %v787, %v779
    %v932 = vpack.c.b16 %v788, %v780
    %v933 = vpack.c.b16 %v789, %v781
    %v934 = vpack.c.b16 %v790, %v782
    %v935 = vpack.c.b16 %v791, %v783
    %v936 = vpack.c.b16 %v800, %v792
    %v937 = vpack.c.b16 %v801, %v793
    %v938 = vpack.c.b16 %v802, %v794
    %v939 = vpack.c.b16 %v803, %v795
    %v940 = vpack.c.b16 %v804, %v796
    %v941 = vpack.c.b16 %v805, %v797
    %v942 = vpack.c.b16 %v806, %v798
    %v943 = vpack.c.b16 %v807, %v799
    %v944 = vpack.c.b16 %v816, %v808
    %v945 = vpack.c.b16 %v817, %v809
    %v946 = vpack.c.b16 %v818, %v810
    %v947 = vpack.c.b16 %v819, %v811
    %v948 = vpack.c.b16 %v820, %v812
    %v949 = vpack.c.b16 %v821, %v813
    %v950 = vpack.c.b16 %v822, %v814
    %v951 = vpack.c.b16 %v823, %v815
    %1080 = vmatprep.subr.bf16.mxu0 %v881
    %1081 = vmatpush1.bf16.msra.mxu0 %v880
    %1082 = vmatprep.subr.bf16.mxu0 %v873
    %1083 = vmatpush1.bf16.msra.mxu0 %v872
    %1084 = vmatprep.subr.bf16.mxu0 %v865
    %1085 = vmatpush1.bf16.msra.mxu0 %v864
    %1086 = vmatprep.subr.bf16.mxu0 %v857
    %1087 = vmatpush1.bf16.msra.mxu0 %v856
    %1088 = vmatprep.subr.bf16.mxu0 %v849
    %1089 = vmatpush1.bf16.msra.mxu0 %v848
    %1090 = vmatprep.subr.bf16.mxu0 %v841
    %1091 = vmatpush1.bf16.msra.mxu0 %v840
    %1092 = vmatprep.subr.bf16.mxu0 %v833
    %1093 = vmatpush1.bf16.msra.mxu0 %v832
    %1094 = vmatprep.subr.bf16.mxu0 %v825
    %1095 = vmatpush1.bf16.msra.mxu0 %v824
    %1096 = vmatprep.subr.bf16.mxu0 %v945
    %1097 = vmatpush2.bf16.msra.mxu0 %v944
    %1098 = vmatprep.subr.bf16.mxu0 %v937
    %1099 = vmatpush2.bf16.msra.mxu0 %v936
    %1100 = vmatprep.subr.bf16.mxu0 %v929
    %1101 = vmatpush2.bf16.msra.mxu0 %v928
    %1102 = vmatprep.subr.bf16.mxu0 %v921
    %1103 = vmatpush2.bf16.msra.mxu0 %v920
    %1104 = vmatprep.subr.bf16.mxu0 %v913
    %1105 = vmatpush2.bf16.msra.mxu0 %v912
    %1106 = vmatprep.subr.bf16.mxu0 %v905
    %1107 = vmatpush2.bf16.msra.mxu0 %v904
    %1108 = vmatprep.subr.bf16.mxu0 %v897
    %1109 = vmatpush2.bf16.msra.mxu0 %v896
    %1110 = vmatprep.subr.bf16.mxu0 %v889
    %1111 = vmatpush2.bf16.msra.mxu0 %v888
    %1112 = vmatprep.mubr.bf16.mxu0 %v263
    %1113 = vmatmul.mubr.bf16.gmra.mxu0 %v262
    %v1114 = vpop.f32.mrf.mxu0
    %v1115 = vadd.f32 %v403, %v1114
    %v1116 = vpop.f32.mrf.mxu0
    %v1117 = vadd.f32 %v407, %v1116
    %v1118 = vpop.f32.mrf.mxu0
    %v1119 = vadd.f32 %v403, %v1118
    %v1120 = vpop.f32.mrf.mxu0
    %v1121 = vadd.f32 %v407, %v1120
    %1122 = vmatprep.mubr.bf16.mxu0 %v265
    %1123 = vmatmul.mubr.bf16.gmra.mxu0 %v264
    %v1124 = vpop.f32.mrf.mxu0
    %v1125 = vadd.f32 %v403, %v1124
    %v1126 = vpop.f32.mrf.mxu0
    %v1127 = vadd.f32 %v407, %v1126
    %v1128 = vpop.f32.mrf.mxu0
    %v1129 = vadd.f32 %v403, %v1128
    %v1130 = vpop.f32.mrf.mxu0
    %v1131 = vadd.f32 %v407, %v1130
    %1132 = vmatprep.mubr.bf16.mxu0 %v267
    %1133 = vmatmul.mubr.bf16.gmra.mxu0 %v266
    %v1134 = vpop.f32.mrf.mxu0
    %v1135 = vadd.f32 %v403, %v1134
    %v1136 = vpop.f32.mrf.mxu0
    %v1137 = vadd.f32 %v407, %v1136
    %v1138 = vpop.f32.mrf.mxu0
    %v1139 = vadd.f32 %v403, %v1138
    %v1140 = vpop.f32.mrf.mxu0
    %v1141 = vadd.f32 %v407, %v1140
    %1142 = vmatprep.mubr.bf16.mxu0 %v269
    %1143 = vmatmul.mubr.bf16.gmra.mxu0 %v268
    %v1144 = vpop.f32.mrf.mxu0
    %v1145 = vadd.f32 %v403, %v1144
    %v1146 = vpop.f32.mrf.mxu0
    %v1147 = vadd.f32 %v407, %v1146
    %v1148 = vpop.f32.mrf.mxu0
    %v1149 = vadd.f32 %v403, %v1148
    %v1150 = vpop.f32.mrf.mxu0
    %v1151 = vadd.f32 %v407, %v1150
    %1152 = vdwg.mxu0
    %1153 = vmatprep.subr.bf16.mxu0 %v883
    %1154 = vmatpush1.bf16.msra.mxu0 %v882
    %1155 = vmatprep.subr.bf16.mxu0 %v875
    %1156 = vmatpush1.bf16.msra.mxu0 %v874
    %1157 = vmatprep.subr.bf16.mxu0 %v867
    %1158 = vmatpush1.bf16.msra.mxu0 %v866
    %1159 = vmatprep.subr.bf16.mxu0 %v859
    %1160 = vmatpush1.bf16.msra.mxu0 %v858
    %1161 = vmatprep.subr.bf16.mxu0 %v851
    %1162 = vmatpush1.bf16.msra.mxu0 %v850
    %1163 = vmatprep.subr.bf16.mxu0 %v843
    %1164 = vmatpush1.bf16.msra.mxu0 %v842
    %1165 = vmatprep.subr.bf16.mxu0 %v835
    %1166 = vmatpush1.bf16.msra.mxu0 %v834
    %1167 = vmatprep.subr.bf16.mxu0 %v827
    %1168 = vmatpush1.bf16.msra.mxu0 %v826
    %1169 = vmatprep.subr.bf16.mxu0 %v947
    %1170 = vmatpush2.bf16.msra.mxu0 %v946
    %1171 = vmatprep.subr.bf16.mxu0 %v939
    %1172 = vmatpush2.bf16.msra.mxu0 %v938
    %1173 = vmatprep.subr.bf16.mxu0 %v931
    %1174 = vmatpush2.bf16.msra.mxu0 %v930
    %1175 = vmatprep.subr.bf16.mxu0 %v923
    %1176 = vmatpush2.bf16.msra.mxu0 %v922
    %1177 = vmatprep.subr.bf16.mxu0 %v915
    %1178 = vmatpush2.bf16.msra.mxu0 %v914
    %1179 = vmatprep.subr.bf16.mxu0 %v907
    %1180 = vmatpush2.bf16.msra.mxu0 %v906
    %1181 = vmatprep.subr.bf16.mxu0 %v899
    %1182 = vmatpush2.bf16.msra.mxu0 %v898
    %1183 = vmatprep.subr.bf16.mxu0 %v891
    %1184 = vmatpush2.bf16.msra.mxu0 %v890
    %1185 = vmatprep.mubr.bf16.mxu0 %v263
    %1186 = vmatmul.mubr.bf16.gmra.mxu0 %v262
    %v1187 = vpop.f32.mrf.mxu0
    %v1188 = vadd.f32 %v411, %v1187
    %v1189 = vpop.f32.mrf.mxu0
    %v1190 = vadd.f32 %v415, %v1189
    %v1191 = vpop.f32.mrf.mxu0
    %v1192 = vadd.f32 %v411, %v1191
    %v1193 = vpop.f32.mrf.mxu0
    %v1194 = vadd.f32 %v415, %v1193
    %1195 = vmatprep.mubr.bf16.mxu0 %v265
    %1196 = vmatmul.mubr.bf16.gmra.mxu0 %v264
    %v1197 = vpop.f32.mrf.mxu0
    %v1198 = vadd.f32 %v411, %v1197
    %v1199 = vpop.f32.mrf.mxu0
    %v1200 = vadd.f32 %v415, %v1199
    %v1201 = vpop.f32.mrf.mxu0
    %v1202 = vadd.f32 %v411, %v1201
    %v1203 = vpop.f32.mrf.mxu0
    %v1204 = vadd.f32 %v415, %v1203
    %1205 = vmatprep.mubr.bf16.mxu0 %v267
    %1206 = vmatmul.mubr.bf16.gmra.mxu0 %v266
    %v1207 = vpop.f32.mrf.mxu0
    %v1208 = vadd.f32 %v411, %v1207
    %v1209 = vpop.f32.mrf.mxu0
    %v1210 = vadd.f32 %v415, %v1209
    %v1211 = vpop.f32.mrf.mxu0
    %v1212 = vadd.f32 %v411, %v1211
    %v1213 = vpop.f32.mrf.mxu0
    %v1214 = vadd.f32 %v415, %v1213
    %1215 = vmatprep.mubr.bf16.mxu0 %v269
    %1216 = vmatmul.mubr.bf16.gmra.mxu0 %v268
    %v1217 = vpop.f32.mrf.mxu0
    %v1218 = vadd.f32 %v411, %v1217
    %v1219 = vpop.f32.mrf.mxu0
    %v1220 = vadd.f32 %v415, %v1219
    %v1221 = vpop.f32.mrf.mxu0
    %v1222 = vadd.f32 %v411, %v1221
    %v1223 = vpop.f32.mrf.mxu0
    %v1224 = vadd.f32 %v415, %v1223
    %1225 = vdwg.mxu0
    %1226 = vmatprep.subr.bf16.mxu0 %v885
    %1227 = vmatpush1.bf16.msra.mxu0 %v884
    %1228 = vmatprep.subr.bf16.mxu0 %v877
    %1229 = vmatpush1.bf16.msra.mxu0 %v876
    %1230 = vmatprep.subr.bf16.mxu0 %v869
    %1231 = vmatpush1.bf16.msra.mxu0 %v868
    %1232 = vmatprep.subr.bf16.mxu0 %v861
    %1233 = vmatpush1.bf16.msra.mxu0 %v860
    %1234 = vmatprep.subr.bf16.mxu0 %v853
    %1235 = vmatpush1.bf16.msra.mxu0 %v852
    %1236 = vmatprep.subr.bf16.mxu0 %v845
    %1237 = vmatpush1.bf16.msra.mxu0 %v844
    %1238 = vmatprep.subr.bf16.mxu0 %v837
    %1239 = vmatpush1.bf16.msra.mxu0 %v836
    %1240 = vmatprep.subr.bf16.mxu0 %v829
    %1241 = vmatpush1.bf16.msra.mxu0 %v828
    %1242 = vmatprep.subr.bf16.mxu0 %v949
    %1243 = vmatpush2.bf16.msra.mxu0 %v948
    %1244 = vmatprep.subr.bf16.mxu0 %v941
    %1245 = vmatpush2.bf16.msra.mxu0 %v940
    %1246 = vmatprep.subr.bf16.mxu0 %v933
    %1247 = vmatpush2.bf16.msra.mxu0 %v932
    %1248 = vmatprep.subr.bf16.mxu0 %v925
    %1249 = vmatpush2.bf16.msra.mxu0 %v924
    %1250 = vmatprep.subr.bf16.mxu0 %v917
    %1251 = vmatpush2.bf16.msra.mxu0 %v916
    %1252 = vmatprep.subr.bf16.mxu0 %v909
    %1253 = vmatpush2.bf16.msra.mxu0 %v908
    %1254 = vmatprep.subr.bf16.mxu0 %v901
    %1255 = vmatpush2.bf16.msra.mxu0 %v900
    %1256 = vmatprep.subr.bf16.mxu0 %v893
    %1257 = vmatpush2.bf16.msra.mxu0 %v892
    %1258 = vmatprep.mubr.bf16.mxu0 %v263
    %1259 = vmatmul.mubr.bf16.gmra.mxu0 %v262
    %v1260 = vpop.f32.mrf.mxu0
    %v1261 = vadd.f32 %v419, %v1260
    %v1262 = vpop.f32.mrf.mxu0
    %v1263 = vadd.f32 %v423, %v1262
    %v1264 = vpop.f32.mrf.mxu0
    %v1265 = vadd.f32 %v419, %v1264
    %v1266 = vpop.f32.mrf.mxu0
    %v1267 = vadd.f32 %v423, %v1266
    %1268 = vmatprep.mubr.bf16.mxu0 %v265
    %1269 = vmatmul.mubr.bf16.gmra.mxu0 %v264
    %v1270 = vpop.f32.mrf.mxu0
    %v1271 = vadd.f32 %v419, %v1270
    %v1272 = vpop.f32.mrf.mxu0
    %v1273 = vadd.f32 %v423, %v1272
    %v1274 = vpop.f32.mrf.mxu0
    %v1275 = vadd.f32 %v419, %v1274
    %v1276 = vpop.f32.mrf.mxu0
    %v1277 = vadd.f32 %v423, %v1276
    %1278 = vmatprep.mubr.bf16.mxu0 %v267
    %1279 = vmatmul.mubr.bf16.gmra.mxu0 %v266
    %v1280 = vpop.f32.mrf.mxu0
    %v1281 = vadd.f32 %v419, %v1280
    %v1282 = vpop.f32.mrf.mxu0
    %v1283 = vadd.f32 %v423, %v1282
    %v1284 = vpop.f32.mrf.mxu0
    %v1285 = vadd.f32 %v419, %v1284
    %v1286 = vpop.f32.mrf.mxu0
    %v1287 = vadd.f32 %v423, %v1286
    %1288 = vmatprep.mubr.bf16.mxu0 %v269
    %1289 = vmatmul.mubr.bf16.gmra.mxu0 %v268
    %v1290 = vpop.f32.mrf.mxu0
    %v1291 = vadd.f32 %v419, %v1290
    %v1292 = vpop.f32.mrf.mxu0
    %v1293 = vadd.f32 %v423, %v1292
    %v1294 = vpop.f32.mrf.mxu0
    %v1295 = vadd.f32 %v419, %v1294
    %v1296 = vpop.f32.mrf.mxu0
    %v1297 = vadd.f32 %v423, %v1296
    %1298 = vdwg.mxu0
    %1299 = vmatprep.subr.bf16.mxu0 %v887
    %1300 = vmatpush1.bf16.msra.mxu0 %v886
    %1301 = vmatprep.subr.bf16.mxu0 %v879
    %1302 = vmatpush1.bf16.msra.mxu0 %v878
    %1303 = vmatprep.subr.bf16.mxu0 %v871
    %1304 = vmatpush1.bf16.msra.mxu0 %v870
    %1305 = vmatprep.subr.bf16.mxu0 %v863
    %1306 = vmatpush1.bf16.msra.mxu0 %v862
    %1307 = vmatprep.subr.bf16.mxu0 %v855
    %1308 = vmatpush1.bf16.msra.mxu0 %v854
    %1309 = vmatprep.subr.bf16.mxu0 %v847
    %1310 = vmatpush1.bf16.msra.mxu0 %v846
    %1311 = vmatprep.subr.bf16.mxu0 %v839
    %1312 = vmatpush1.bf16.msra.mxu0 %v838
    %1313 = vmatprep.subr.bf16.mxu0 %v831
    %1314 = vmatpush1.bf16.msra.mxu0 %v830
    %1315 = vmatprep.subr.bf16.mxu0 %v951
    %1316 = vmatpush2.bf16.msra.mxu0 %v950
    %1317 = vmatprep.subr.bf16.mxu0 %v943
    %1318 = vmatpush2.bf16.msra.mxu0 %v942
    %1319 = vmatprep.subr.bf16.mxu0 %v935
    %1320 = vmatpush2.bf16.msra.mxu0 %v934
    %1321 = vmatprep.subr.bf16.mxu0 %v927
    %1322 = vmatpush2.bf16.msra.mxu0 %v926
    %1323 = vmatprep.subr.bf16.mxu0 %v919
    %1324 = vmatpush2.bf16.msra.mxu0 %v918
    %1325 = vmatprep.subr.bf16.mxu0 %v911
    %1326 = vmatpush2.bf16.msra.mxu0 %v910
    %1327 = vmatprep.subr.bf16.mxu0 %v903
    %1328 = vmatpush2.bf16.msra.mxu0 %v902
    %1329 = vmatprep.subr.bf16.mxu0 %v895
    %1330 = vmatpush2.bf16.msra.mxu0 %v894
    %1331 = vmatprep.mubr.bf16.mxu0 %v263
    %1332 = vmatmul.mubr.bf16.gmra.mxu0 %v262
    %v1333 = vpop.f32.mrf.mxu0
    %v1334 = vadd.f32 %v427, %v1333
    %v1335 = vpop.f32.mrf.mxu0
    %v1336 = vadd.f32 %v431, %v1335
    %v1337 = vpop.f32.mrf.mxu0
    %v1338 = vadd.f32 %v427, %v1337
    %v1339 = vpop.f32.mrf.mxu0
    %v1340 = vadd.f32 %v431, %v1339
    %1341 = vmatprep.mubr.bf16.mxu0 %v265
    %1342 = vmatmul.mubr.bf16.gmra.mxu0 %v264
    %v1343 = vpop.f32.mrf.mxu0
    %v1344 = vadd.f32 %v427, %v1343
    %v1345 = vpop.f32.mrf.mxu0
    %v1346 = vadd.f32 %v431, %v1345
    %v1347 = vpop.f32.mrf.mxu0
    %v1348 = vadd.f32 %v427, %v1347
    %v1349 = vpop.f32.mrf.mxu0
    %v1350 = vadd.f32 %v431, %v1349
    %1351 = vmatprep.mubr.bf16.mxu0 %v267
    %1352 = vmatmul.mubr.bf16.gmra.mxu0 %v266
    %v1353 = vpop.f32.mrf.mxu0
    %v1354 = vadd.f32 %v427, %v1353
    %v1355 = vpop.f32.mrf.mxu0
    %v1356 = vadd.f32 %v431, %v1355
    %v1357 = vpop.f32.mrf.mxu0
    %v1358 = vadd.f32 %v427, %v1357
    %v1359 = vpop.f32.mrf.mxu0
    %v1360 = vadd.f32 %v431, %v1359
    %1361 = vmatprep.mubr.bf16.mxu0 %v269
    %1362 = vmatmul.mubr.bf16.gmra.mxu0 %v268
    %v1363 = vpop.f32.mrf.mxu0
    %v1364 = vadd.f32 %v427, %v1363
    %v1365 = vpop.f32.mrf.mxu0
    %v1366 = vadd.f32 %v431, %v1365
    %v1367 = vpop.f32.mrf.mxu0
    %v1368 = vadd.f32 %v427, %v1367
    %v1369 = vpop.f32.mrf.mxu0
    %v1370 = vadd.f32 %v431, %v1369
    %1371 = vdwg.mxu0
    %v1372 = vld [vmem:[#allocation4] sm:$0xff]
    %v1373 = vld [vmem:[#allocation4 + $0x8] sm:$0xff]
    %v1374 = vld [vmem:[#allocation4 + $0x10] sm:$0xff]
    %v1375 = vld [vmem:[#allocation4 + $0x18] sm:$0xff]
    %v1376 = vld [vmem:[#allocation4 + $0x20] sm:$0xff]
    %v1377 = vld [vmem:[#allocation4 + $0x28] sm:$0xff]
    %v1378 = vld [vmem:[#allocation4 + $0x30] sm:$0xff]
    %v1379 = vld [vmem:[#allocation4 + $0x38] sm:$0xff]
    %v1380 = vld [vmem:[#allocation4 + $0x40] sm:$0xff]
    %v1381 = vld [vmem:[#allocation4 + $0x48] sm:$0xff]
    %v1382 = vld [vmem:[#allocation4 + $0x50] sm:$0xff]
    %v1383 = vld [vmem:[#allocation4 + $0x58] sm:$0xff]
    %v1384 = vld [vmem:[#allocation4 + $0x60] sm:$0xff]
    %v1385 = vld [vmem:[#allocation4 + $0x68] sm:$0xff]
    %v1386 = vld [vmem:[#allocation4 + $0x70] sm:$0xff]
    %v1387 = vld [vmem:[#allocation4 + $0x78] sm:$0xff]
    %v1388 = vld [vmem:[#allocation4 + $0x80] sm:$0xff]
    %v1389 = vld [vmem:[#allocation4 + $0x88] sm:$0xff]
    %v1390 = vld [vmem:[#allocation4 + $0x90] sm:$0xff]
    %v1391 = vld [vmem:[#allocation4 + $0x98] sm:$0xff]
    %v1392 = vld [vmem:[#allocation4 + $0xa0] sm:$0xff]
    %v1393 = vld [vmem:[#allocation4 + $0xa8] sm:$0xff]
    %v1394 = vld [vmem:[#allocation4 + $0xb0] sm:$0xff]
    %v1395 = vld [vmem:[#allocation4 + $0xb8] sm:$0xff]
    %v1396 = vld [vmem:[#allocation4 + $0xc0] sm:$0xff]
    %v1397 = vld [vmem:[#allocation4 + $0xc8] sm:$0xff]
    %v1398 = vld [vmem:[#allocation4 + $0xd0] sm:$0xff]
    %v1399 = vld [vmem:[#allocation4 + $0xd8] sm:$0xff]
    %v1400 = vld [vmem:[#allocation4 + $0xe0] sm:$0xff]
    %v1401 = vld [vmem:[#allocation4 + $0xe8] sm:$0xff]
    %v1402 = vld [vmem:[#allocation4 + $0xf0] sm:$0xff]
    %v1403 = vld [vmem:[#allocation4 + $0xf8] sm:$0xff]
    %s1404 = scalar_lea.vmem [#allocation4], 256
    %v1405 = vld [vmem:[%s1404] sm:$0xff]
    %v1406 = vld [vmem:[%s1404 + $0x8] sm:$0xff]
    %v1407 = vld [vmem:[%s1404 + $0x10] sm:$0xff]
    %v1408 = vld [vmem:[%s1404 + $0x18] sm:$0xff]
    %v1409 = vld [vmem:[%s1404 + $0x20] sm:$0xff]
    %v1410 = vld [vmem:[%s1404 + $0x28] sm:$0xff]
    %v1411 = vld [vmem:[%s1404 + $0x30] sm:$0xff]
    %v1412 = vld [vmem:[%s1404 + $0x38] sm:$0xff]
    %v1413 = vld [vmem:[%s1404 + $0x40] sm:$0xff]
    %v1414 = vld [vmem:[%s1404 + $0x48] sm:$0xff]
    %v1415 = vld [vmem:[%s1404 + $0x50] sm:$0xff]
    %v1416 = vld [vmem:[%s1404 + $0x58] sm:$0xff]
    %v1417 = vld [vmem:[%s1404 + $0x60] sm:$0xff]
    %v1418 = vld [vmem:[%s1404 + $0x68] sm:$0xff]
    %v1419 = vld [vmem:[%s1404 + $0x70] sm:$0xff]
    %v1420 = vld [vmem:[%s1404 + $0x78] sm:$0xff]
    %v1421 = vld [vmem:[%s1404 + $0x80] sm:$0xff]
    %v1422 = vld [vmem:[%s1404 + $0x88] sm:$0xff]
    %v1423 = vld [vmem:[%s1404 + $0x90] sm:$0xff]
    %v1424 = vld [vmem:[%s1404 + $0x98] sm:$0xff]
    %v1425 = vld [vmem:[%s1404 + $0xa0] sm:$0xff]
    %v1426 = vld [vmem:[%s1404 + $0xa8] sm:$0xff]
    %v1427 = vld [vmem:[%s1404 + $0xb0] sm:$0xff]
    %v1428 = vld [vmem:[%s1404 + $0xb8] sm:$0xff]
    %v1429 = vld [vmem:[%s1404 + $0xc0] sm:$0xff]
    %v1430 = vld [vmem:[%s1404 + $0xc8] sm:$0xff]
    %v1431 = vld [vmem:[%s1404 + $0xd0] sm:$0xff]
    %v1432 = vld [vmem:[%s1404 + $0xd8] sm:$0xff]
    %v1433 = vld [vmem:[%s1404 + $0xe0] sm:$0xff]
    %v1434 = vld [vmem:[%s1404 + $0xe8] sm:$0xff]
    %v1435 = vld [vmem:[%s1404 + $0xf0] sm:$0xff]
    %v1436 = vld [vmem:[%s1404 + $0xf8] sm:$0xff]
    %v1469 = vunpack.c.l.b16 %v1372
    %v1470 = vunpack.c.h.b16 %v1372
    %v1471 = vunpack.c.l.b16 %v1373
    %v1472 = vunpack.c.h.b16 %v1373
    %v1473 = vunpack.c.l.b16 %v1374
    %v1474 = vunpack.c.h.b16 %v1374
    %v1475 = vunpack.c.l.b16 %v1375
    %v1476 = vunpack.c.h.b16 %v1375
    %v1477 = vunpack.c.l.b16 %v1376
    %v1478 = vunpack.c.h.b16 %v1376
    %v1479 = vunpack.c.l.b16 %v1377
    %v1480 = vunpack.c.h.b16 %v1377
    %v1481 = vunpack.c.l.b16 %v1378
    %v1482 = vunpack.c.h.b16 %v1378
    %v1483 = vunpack.c.l.b16 %v1379
    %v1484 = vunpack.c.h.b16 %v1379
    %v1485 = vunpack.c.l.b16 %v1380
    %v1486 = vunpack.c.h.b16 %v1380
    %v1487 = vunpack.c.l.b16 %v1381
    %v1488 = vunpack.c.h.b16 %v1381
    %v1489 = vunpack.c.l.b16 %v1382
    %v1490 = vunpack.c.h.b16 %v1382
    %v1491 = vunpack.c.l.b16 %v1383
    %v1492 = vunpack.c.h.b16 %v1383
    %v1493 = vunpack.c.l.b16 %v1384
    %v1494 = vunpack.c.h.b16 %v1384
    %v1495 = vunpack.c.l.b16 %v1385
    %v1496 = vunpack.c.h.b16 %v1385
    %v1497 = vunpack.c.l.b16 %v1386
    %v1498 = vunpack.c.h.b16 %v1386
    %v1499 = vunpack.c.l.b16 %v1387
    %v1500 = vunpack.c.h.b16 %v1387
    %v1501 = vunpack.c.l.b16 %v1388
    %v1502 = vunpack.c.h.b16 %v1388
    %v1503 = vunpack.c.l.b16 %v1389
    %v1504 = vunpack.c.h.b16 %v1389
    %v1505 = vunpack.c.l.b16 %v1390
    %v1506 = vunpack.c.h.b16 %v1390
    %v1507 = vunpack.c.l.b16 %v1391
    %v1508 = vunpack.c.h.b16 %v1391
    %v1509 = vunpack.c.l.b16 %v1392
    %v1510 = vunpack.c.h.b16 %v1392
    %v1511 = vunpack.c.l.b16 %v1393
    %v1512 = vunpack.c.h.b16 %v1393
    %v1513 = vunpack.c.l.b16 %v1394
    %v1514 = vunpack.c.h.b16 %v1394
    %v1515 = vunpack.c.l.b16 %v1395
    %v1516 = vunpack.c.h.b16 %v1395
    %v1517 = vunpack.c.l.b16 %v1396
    %v1518 = vunpack.c.h.b16 %v1396
    %v1519 = vunpack.c.l.b16 %v1397
    %v1520 = vunpack.c.h.b16 %v1397
    %v1521 = vunpack.c.l.b16 %v1398
    %v1522 = vunpack.c.h.b16 %v1398
    %v1523 = vunpack.c.l.b16 %v1399
    %v1524 = vunpack.c.h.b16 %v1399
    %v1525 = vunpack.c.l.b16 %v1400
    %v1526 = vunpack.c.h.b16 %v1400
    %v1527 = vunpack.c.l.b16 %v1401
    %v1528 = vunpack.c.h.b16 %v1401
    %v1529 = vunpack.c.l.b16 %v1402
    %v1530 = vunpack.c.h.b16 %v1402
    %v1531 = vunpack.c.l.b16 %v1403
    %v1532 = vunpack.c.h.b16 %v1403
    %v1533 = vpack.c.b16 %v1473, %v1469
    %v1534 = vpack.c.b16 %v1474, %v1470
    %v1535 = vpack.c.b16 %v1475, %v1471
    %v1536 = vpack.c.b16 %v1476, %v1472
    %v1537 = vpack.c.b16 %v1481, %v1477
    %v1538 = vpack.c.b16 %v1482, %v1478
    %v1539 = vpack.c.b16 %v1483, %v1479
    %v1540 = vpack.c.b16 %v1484, %v1480
    %v1541 = vpack.c.b16 %v1489, %v1485
    %v1542 = vpack.c.b16 %v1490, %v1486
    %v1543 = vpack.c.b16 %v1491, %v1487
    %v1544 = vpack.c.b16 %v1492, %v1488
    %v1545 = vpack.c.b16 %v1497, %v1493
    %v1546 = vpack.c.b16 %v1498, %v1494
    %v1547 = vpack.c.b16 %v1499, %v1495
    %v1548 = vpack.c.b16 %v1500, %v1496
    %v1549 = vpack.c.b16 %v1505, %v1501
    %v1550 = vpack.c.b16 %v1506, %v1502
    %v1551 = vpack.c.b16 %v1507, %v1503
    %v1552 = vpack.c.b16 %v1508, %v1504
    %v1553 = vpack.c.b16 %v1513, %v1509
    %v1554 = vpack.c.b16 %v1514, %v1510
    %v1555 = vpack.c.b16 %v1515, %v1511
    %v1556 = vpack.c.b16 %v1516, %v1512
    %v1557 = vpack.c.b16 %v1521, %v1517
    %v1558 = vpack.c.b16 %v1522, %v1518
    %v1559 = vpack.c.b16 %v1523, %v1519
    %v1560 = vpack.c.b16 %v1524, %v1520
    %v1561 = vpack.c.b16 %v1529, %v1525
    %v1562 = vpack.c.b16 %v1530, %v1526
    %v1563 = vpack.c.b16 %v1531, %v1527
    %v1564 = vpack.c.b16 %v1532, %v1528
    %1597 = vmatprep.subr.bf16.mxu0 %v1562
    %1598 = vmatpush1.bf16.msra.mxu0 %v1561
    %1599 = vmatprep.subr.bf16.mxu0 %v1558
    %1600 = vmatpush1.bf16.msra.mxu0 %v1557
    %1601 = vmatprep.subr.bf16.mxu0 %v1554
    %1602 = vmatpush1.bf16.msra.mxu0 %v1553
    %1603 = vmatprep.subr.bf16.mxu0 %v1550
    %1604 = vmatpush1.bf16.msra.mxu0 %v1549
    %1605 = vmatprep.subr.bf16.mxu0 %v1546
    %1606 = vmatpush1.bf16.msra.mxu0 %v1545
    %1607 = vmatprep.subr.bf16.mxu0 %v1542
    %1608 = vmatpush1.bf16.msra.mxu0 %v1541
    %1609 = vmatprep.subr.bf16.mxu0 %v1538
    %1610 = vmatpush1.bf16.msra.mxu0 %v1537
    %1611 = vmatprep.subr.bf16.mxu0 %v1534
    %1612 = vmatpush1.bf16.msra.mxu0 %v1533
    %1613 = vmatprep.subr.bf16.mxu0 0
    %1614 = vmatpush2.bf16.msra.mxu0 0
    %1615 = vmatprep.subr.bf16.mxu0 0
    %1616 = vmatpush2.bf16.msra.mxu0 0
    %1617 = vmatprep.subr.bf16.mxu0 0
    %1618 = vmatpush2.bf16.msra.mxu0 0
    %1619 = vmatprep.subr.bf16.mxu0 0
    %1620 = vmatpush2.bf16.msra.mxu0 0
    %1621 = vmatprep.subr.bf16.mxu0 0
    %1622 = vmatpush2.bf16.msra.mxu0 0
    %1623 = vmatprep.subr.bf16.mxu0 0
    %1624 = vmatpush2.bf16.msra.mxu0 0
    %1625 = vmatprep.subr.bf16.mxu0 0
    %1626 = vmatpush2.bf16.msra.mxu0 0
    %1627 = vmatprep.subr.bf16.mxu0 0
    %1628 = vmatpush2.bf16.msra.mxu0 0
    %1629 = vmatprep.mubr.bf16.mxu0 0
    %1630 = vmatmul.mubr.bf16.gmra.mxu0 0
    %v1631 = vpop.f32.mrf.mxu0
    %v1632 = vadd.f32 0.0, %v1631
    %v1633 = vpop.f32.mrf.mxu0
    %v1634 = vadd.f32 0.0, %v1633
    %v1635 = vpop.f32.mrf.mxu0
    %v1636 = vpop.f32.mrf.mxu0
    %1637 = vdwg.mxu0
    %1638 = vmatprep.subr.bf16.mxu0 %v1564
    %1639 = vmatpush1.bf16.msra.mxu0 %v1563
    %1640 = vmatprep.subr.bf16.mxu0 %v1560
    %1641 = vmatpush1.bf16.msra.mxu0 %v1559
    %1642 = vmatprep.subr.bf16.mxu0 %v1556
    %1643 = vmatpush1.bf16.msra.mxu0 %v1555
    %1644 = vmatprep.subr.bf16.mxu0 %v1552
    %1645 = vmatpush1.bf16.msra.mxu0 %v1551
    %1646 = vmatprep.subr.bf16.mxu0 %v1548
    %1647 = vmatpush1.bf16.msra.mxu0 %v1547
    %1648 = vmatprep.subr.bf16.mxu0 %v1544
    %1649 = vmatpush1.bf16.msra.mxu0 %v1543
    %1650 = vmatprep.subr.bf16.mxu0 %v1540
    %1651 = vmatpush1.bf16.msra.mxu0 %v1539
    %1652 = vmatprep.subr.bf16.mxu0 %v1536
    %1653 = vmatpush1.bf16.msra.mxu0 %v1535
    %1654 = vmatprep.subr.bf16.mxu0 0
    %1655 = vmatpush2.bf16.msra.mxu0 0
    %1656 = vmatprep.subr.bf16.mxu0 0
    %1657 = vmatpush2.bf16.msra.mxu0 0
    %1658 = vmatprep.subr.bf16.mxu0 0
    %1659 = vmatpush2.bf16.msra.mxu0 0
    %1660 = vmatprep.subr.bf16.mxu0 0
    %1661 = vmatpush2.bf16.msra.mxu0 0
    %1662 = vmatprep.subr.bf16.mxu0 0
    %1663 = vmatpush2.bf16.msra.mxu0 0
    %1664 = vmatprep.subr.bf16.mxu0 0
    %1665 = vmatpush2.bf16.msra.mxu0 0
    %1666 = vmatprep.subr.bf16.mxu0 0
    %1667 = vmatpush2.bf16.msra.mxu0 0
    %1668 = vmatprep.subr.bf16.mxu0 0
    %1669 = vmatpush2.bf16.msra.mxu0 0
    %1670 = vmatprep.mubr.bf16.mxu0 0
    %1671 = vmatmul.mubr.bf16.gmra.mxu0 0
    %v1672 = vpop.f32.mrf.mxu0
    %v1673 = vadd.f32 0.0, %v1672
    %v1674 = vpop.f32.mrf.mxu0
    %v1675 = vadd.f32 0.0, %v1674
    %v1676 = vpop.f32.mrf.mxu0
    %v1677 = vpop.f32.mrf.mxu0
    %1678 = vdwg.mxu0
    %v1679 = vadd.f32 %v1115, %v1632
    %v1680 = vadd.f32 %v1117, %v1634
    %v1681 = vadd.f32 %v1188, %v1673
    %v1682 = vadd.f32 %v1190, %v1675
    %v1715 = vunpack.c.l.b16 %v1405
    %v1716 = vunpack.c.h.b16 %v1405
    %v1717 = vunpack.c.l.b16 %v1406
    %v1718 = vunpack.c.h.b16 %v1406
    %v1719 = vunpack.c.l.b16 %v1407
    %v1720 = vunpack.c.h.b16 %v1407
    %v1721 = vunpack.c.l.b16 %v1408
    %v1722 = vunpack.c.h.b16 %v1408
    %v1723 = vunpack.c.l.b16 %v1409
    %v1724 = vunpack.c.h.b16 %v1409
    %v1725 = vunpack.c.l.b16 %v1410
    %v1726 = vunpack.c.h.b16 %v1410
    %v1727 = vunpack.c.l.b16 %v1411
    %v1728 = vunpack.c.h.b16 %v1411
    %v1729 = vunpack.c.l.b16 %v1412
    %v1730 = vunpack.c.h.b16 %v1412
    %v1731 = vunpack.c.l.b16 %v1413
    %v1732 = vunpack.c.h.b16 %v1413
    %v1733 = vunpack.c.l.b16 %v1414
    %v1734 = vunpack.c.h.b16 %v1414
    %v1735 = vunpack.c.l.b16 %v1415
    %v1736 = vunpack.c.h.b16 %v1415
    %v1737 = vunpack.c.l.b16 %v1416
    %v1738 = vunpack.c.h.b16 %v1416
    %v1739 = vunpack.c.l.b16 %v1417
    %v1740 = vunpack.c.h.b16 %v1417
    %v1741 = vunpack.c.l.b16 %v1418
    %v1742 = vunpack.c.h.b16 %v1418
    %v1743 = vunpack.c.l.b16 %v1419
    %v1744 = vunpack.c.h.b16 %v1419
    %v1745 = vunpack.c.l.b16 %v1420
    %v1746 = vunpack.c.h.b16 %v1420
    %v1747 = vunpack.c.l.b16 %v1421
    %v1748 = vunpack.c.h.b16 %v1421
    %v1749 = vunpack.c.l.b16 %v1422
    %v1750 = vunpack.c.h.b16 %v1422
    %v1751 = vunpack.c.l.b16 %v1423
    %v1752 = vunpack.c.h.b16 %v1423
    %v1753 = vunpack.c.l.b16 %v1424
    %v1754 = vunpack.c.h.b16 %v1424
    %v1755 = vunpack.c.l.b16 %v1425
    %v1756 = vunpack.c.h.b16 %v1425
    %v1757 = vunpack.c.l.b16 %v1426
    %v1758 = vunpack.c.h.b16 %v1426
    %v1759 = vunpack.c.l.b16 %v1427
    %v1760 = vunpack.c.h.b16 %v1427
    %v1761 = vunpack.c.l.b16 %v1428
    %v1762 = vunpack.c.h.b16 %v1428
    %v1763 = vunpack.c.l.b16 %v1429
    %v1764 = vunpack.c.h.b16 %v1429
    %v1765 = vunpack.c.l.b16 %v1430
    %v1766 = vunpack.c.h.b16 %v1430
    %v1767 = vunpack.c.l.b16 %v1431
    %v1768 = vunpack.c.h.b16 %v1431
    %v1769 = vunpack.c.l.b16 %v1432
    %v1770 = vunpack.c.h.b16 %v1432
    %v1771 = vunpack.c.l.b16 %v1433
    %v1772 = vunpack.c.h.b16 %v1433
    %v1773 = vunpack.c.l.b16 %v1434
    %v1774 = vunpack.c.h.b16 %v1434
    %v1775 = vunpack.c.l.b16 %v1435
    %v1776 = vunpack.c.h.b16 %v1435
    %v1777 = vunpack.c.l.b16 %v1436
    %v1778 = vunpack.c.h.b16 %v1436
    %v1779 = vpack.c.b16 %v1719, %v1715
    %v1780 = vpack.c.b16 %v1720, %v1716
    %v1781 = vpack.c.b16 %v1721, %v1717
    %v1782 = vpack.c.b16 %v1722, %v1718
    %v1783 = vpack.c.b16 %v1727, %v1723
    %v1784 = vpack.c.b16 %v1728, %v1724
    %v1785 = vpack.c.b16 %v1729, %v1725
    %v1786 = vpack.c.b16 %v1730, %v1726
    %v1787 = vpack.c.b16 %v1735, %v1731
    %v1788 = vpack.c.b16 %v1736, %v1732
    %v1789 = vpack.c.b16 %v1737, %v1733
    %v1790 = vpack.c.b16 %v1738, %v1734
    %v1791 = vpack.c.b16 %v1743, %v1739
    %v1792 = vpack.c.b16 %v1744, %v1740
    %v1793 = vpack.c.b16 %v1745, %v1741
    %v1794 = vpack.c.b16 %v1746, %v1742
    %v1795 = vpack.c.b16 %v1751, %v1747
    %v1796 = vpack.c.b16 %v1752, %v1748
    %v1797 = vpack.c.b16 %v1753, %v1749
    %v1798 = vpack.c.b16 %v1754, %v1750
    %v1799 = vpack.c.b16 %v1759, %v1755
    %v1800 = vpack.c.b16 %v1760, %v1756
    %v1801 = vpack.c.b16 %v1761, %v1757
    %v1802 = vpack.c.b16 %v1762, %v1758
    %v1803 = vpack.c.b16 %v1767, %v1763
    %v1804 = vpack.c.b16 %v1768, %v1764
    %v1805 = vpack.c.b16 %v1769, %v1765
    %v1806 = vpack.c.b16 %v1770, %v1766
    %v1807 = vpack.c.b16 %v1775, %v1771
    %v1808 = vpack.c.b16 %v1776, %v1772
    %v1809 = vpack.c.b16 %v1777, %v1773
    %v1810 = vpack.c.b16 %v1778, %v1774
    %1843 = vmatprep.subr.bf16.mxu0 %v1808
    %1844 = vmatpush1.bf16.msra.mxu0 %v1807
    %1845 = vmatprep.subr.bf16.mxu0 %v1804
    %1846 = vmatpush1.bf16.msra.mxu0 %v1803
    %1847 = vmatprep.subr.bf16.mxu0 %v1800
    %1848 = vmatpush1.bf16.msra.mxu0 %v1799
    %1849 = vmatprep.subr.bf16.mxu0 %v1796
    %1850 = vmatpush1.bf16.msra.mxu0 %v1795
    %1851 = vmatprep.subr.bf16.mxu0 %v1792
    %1852 = vmatpush1.bf16.msra.mxu0 %v1791
    %1853 = vmatprep.subr.bf16.mxu0 %v1788
    %1854 = vmatpush1.bf16.msra.mxu0 %v1787
    %1855 = vmatprep.subr.bf16.mxu0 %v1784
    %1856 = vmatpush1.bf16.msra.mxu0 %v1783
    %1857 = vmatprep.subr.bf16.mxu0 %v1780
    %1858 = vmatpush1.bf16.msra.mxu0 %v1779
    %1859 = vmatprep.subr.bf16.mxu0 0
    %1860 = vmatpush2.bf16.msra.mxu0 0
    %1861 = vmatprep.subr.bf16.mxu0 0
    %1862 = vmatpush2.bf16.msra.mxu0 0
    %1863 = vmatprep.subr.bf16.mxu0 0
    %1864 = vmatpush2.bf16.msra.mxu0 0
    %1865 = vmatprep.subr.bf16.mxu0 0
    %1866 = vmatpush2.bf16.msra.mxu0 0
    %1867 = vmatprep.subr.bf16.mxu0 0
    %1868 = vmatpush2.bf16.msra.mxu0 0
    %1869 = vmatprep.subr.bf16.mxu0 0
    %1870 = vmatpush2.bf16.msra.mxu0 0
    %1871 = vmatprep.subr.bf16.mxu0 0
    %1872 = vmatpush2.bf16.msra.mxu0 0
    %1873 = vmatprep.subr.bf16.mxu0 0
    %1874 = vmatpush2.bf16.msra.mxu0 0
    %1875 = vmatprep.mubr.bf16.mxu0 0
    %1876 = vmatmul.mubr.bf16.gmra.mxu0 0
    %v1877 = vpop.f32.mrf.mxu0
    %v1878 = vadd.f32 0.0, %v1877
    %v1879 = vpop.f32.mrf.mxu0
    %v1880 = vadd.f32 0.0, %v1879
    %v1881 = vpop.f32.mrf.mxu0
    %v1882 = vpop.f32.mrf.mxu0
    %1883 = vdwg.mxu0
    %1884 = vmatprep.subr.bf16.mxu0 %v1810
    %1885 = vmatpush1.bf16.msra.mxu0 %v1809
    %1886 = vmatprep.subr.bf16.mxu0 %v1806
    %1887 = vmatpush1.bf16.msra.mxu0 %v1805
    %1888 = vmatprep.subr.bf16.mxu0 %v1802
    %1889 = vmatpush1.bf16.msra.mxu0 %v1801
    %1890 = vmatprep.subr.bf16.mxu0 %v1798
    %1891 = vmatpush1.bf16.msra.mxu0 %v1797
    %1892 = vmatprep.subr.bf16.mxu0 %v1794
    %1893 = vmatpush1.bf16.msra.mxu0 %v1793
    %1894 = vmatprep.subr.bf16.mxu0 %v1790
    %1895 = vmatpush1.bf16.msra.mxu0 %v1789
    %1896 = vmatprep.subr.bf16.mxu0 %v1786
    %1897 = vmatpush1.bf16.msra.mxu0 %v1785
    %1898 = vmatprep.subr.bf16.mxu0 %v1782
    %1899 = vmatpush1.bf16.msra.mxu0 %v1781
    %1900 = vmatprep.subr.bf16.mxu0 0
    %1901 = vmatpush2.bf16.msra.mxu0 0
    %1902 = vmatprep.subr.bf16.mxu0 0
    %1903 = vmatpush2.bf16.msra.mxu0 0
    %1904 = vmatprep.subr.bf16.mxu0 0
    %1905 = vmatpush2.bf16.msra.mxu0 0
    %1906 = vmatprep.subr.bf16.mxu0 0
    %1907 = vmatpush2.bf16.msra.mxu0 0
    %1908 = vmatprep.subr.bf16.mxu0 0
    %1909 = vmatpush2.bf16.msra.mxu0 0
    %1910 = vmatprep.subr.bf16.mxu0 0
    %1911 = vmatpush2.bf16.msra.mxu0 0
    %1912 = vmatprep.subr.bf16.mxu0 0
    %1913 = vmatpush2.bf16.msra.mxu0 0
    %1914 = vmatprep.subr.bf16.mxu0 0
    %1915 = vmatpush2.bf16.msra.mxu0 0
    %1916 = vmatprep.mubr.bf16.mxu0 0
    %1917 = vmatmul.mubr.bf16.gmra.mxu0 0
    %v1918 = vpop.f32.mrf.mxu0
    %v1919 = vadd.f32 0.0, %v1918
    %v1920 = vpop.f32.mrf.mxu0
    %v1921 = vadd.f32 0.0, %v1920
    %v1922 = vpop.f32.mrf.mxu0
    %v1923 = vpop.f32.mrf.mxu0
    %1924 = vdwg.mxu0
    %v1925 = vadd.f32 %v1295, %v1878
    %v1926 = vadd.f32 %v1297, %v1880
    %v1927 = vadd.f32 %v1368, %v1919
    %v1928 = vadd.f32 %v1370, %v1921
    %v1929 = vxor.u32 %v1679, 2147483648
    %v1930 = vmul.f32 %v1929, 1.442695
    %v1931 = vpow.pop %v1930
    %v1932 = vadd.f32 %v1931, 1.0
    %v1933 = vrcp.pop %v1932
    %v1934 = vmul.f32 1.0, %v1933
    %v1935 = vxor.u32 %v1680, 2147483648
    %v1936 = vmul.f32 %v1935, 1.442695
    %v1937 = vpow.pop %v1936
    %v1938 = vadd.f32 %v1937, 1.0
    %v1939 = vrcp.pop %v1938
    %v1940 = vmul.f32 1.0, %v1939
    %v1941 = vtanh.pop %v1681
    %v1942 = vxor.u32 %v1682, 2147483648
    %v1943 = vmul.f32 %v1942, 1.442695
    %v1944 = vpow.pop %v1943
    %v1945 = vadd.f32 %v1944, 1.0
    %v1946 = vrcp.pop %v1945
    %v1947 = vmul.f32 1.0, %v1946
    %v1948 = vmul.f32 %v1940, 0.0
    %v1949 = vmul.f32 %v1934, %v1941
    %v1950 = vadd.f32 %v1948, %v1949
    %v1951 = vtanh.pop %v1950
    %v1952 = vmul.f32 %v1947, %v1951
    %v1953 = vxor.u32 %v1925, 2147483648
    %v1954 = vmul.f32 %v1953, 1.442695
    %v1955 = vpow.pop %v1954
    %v1956 = vadd.f32 %v1955, 1.0
    %v1957 = vrcp.pop %v1956
    %v1958 = vmul.f32 1.0, %v1957
    %v1959 = vxor.u32 %v1926, 2147483648
    %v1960 = vmul.f32 %v1959, 1.442695
    %v1961 = vpow.pop %v1960
    %v1962 = vadd.f32 %v1961, 1.0
    %v1963 = vrcp.pop %v1962
    %v1964 = vmul.f32 1.0, %v1963
    %v1965 = vtanh.pop %v1927
    %v1966 = vxor.u32 %v1928, 2147483648
    %v1967 = vmul.f32 %v1966, 1.442695
    %v1968 = vpow.pop %v1967
    %v1969 = vadd.f32 %v1968, 1.0
    %v1970 = vrcp.pop %v1969
    %v1971 = vmul.f32 1.0, %v1970
    %v1972 = vmul.f32 %v1964, 0.0
    %v1973 = vmul.f32 %v1958, %v1965
    %v1974 = vadd.f32 %v1972, %v1973
    %v1975 = vtanh.pop %v1974
    %v1976 = vmul.f32 %v1971, %v1975
    %v1977 = vpack.c.bf16 %v1952, %v1952
    %1978 = vmatprep.subr.bf16.mxu0 %v1562
    %1979 = vmatpush1.bf16.msra.mxu0 %v1561
    %1980 = vmatprep.subr.bf16.mxu0 %v1558
    %1981 = vmatpush1.bf16.msra.mxu0 %v1557
    %1982 = vmatprep.subr.bf16.mxu0 %v1554
    %1983 = vmatpush1.bf16.msra.mxu0 %v1553
    %1984 = vmatprep.subr.bf16.mxu0 %v1550
    %1985 = vmatpush1.bf16.msra.mxu0 %v1549
    %1986 = vmatprep.subr.bf16.mxu0 %v1546
    %1987 = vmatpush1.bf16.msra.mxu0 %v1545
    %1988 = vmatprep.subr.bf16.mxu0 %v1542
    %1989 = vmatpush1.bf16.msra.mxu0 %v1541
    %1990 = vmatprep.subr.bf16.mxu0 %v1538
    %1991 = vmatpush1.bf16.msra.mxu0 %v1537
    %1992 = vmatprep.subr.bf16.mxu0 %v1534
    %1993 = vmatpush1.bf16.msra.mxu0 %v1533
    %1994 = vmatprep.subr.bf16.mxu0 0
    %1995 = vmatpush2.bf16.msra.mxu0 0
    %1996 = vmatprep.subr.bf16.mxu0 0
    %1997 = vmatpush2.bf16.msra.mxu0 0
    %1998 = vmatprep.subr.bf16.mxu0 0
    %1999 = vmatpush2.bf16.msra.mxu0 0
    %2000 = vmatprep.subr.bf16.mxu0 0
    %2001 = vmatpush2.bf16.msra.mxu0 0
    %2002 = vmatprep.subr.bf16.mxu0 0
    %2003 = vmatpush2.bf16.msra.mxu0 0
    %2004 = vmatprep.subr.bf16.mxu0 0
    %2005 = vmatpush2.bf16.msra.mxu0 0
    %2006 = vmatprep.subr.bf16.mxu0 0
    %2007 = vmatpush2.bf16.msra.mxu0 0
    %2008 = vmatprep.subr.bf16.mxu0 0
    %2009 = vmatpush2.bf16.msra.mxu0 0
    %2010 = vmatprep.mubr.bf16.mxu0 0
    %2011 = vmatmul.mubr.bf16.gmra.mxu0 %v1977
    %v2012 = vpop.f32.mrf.mxu0
    %v2013 = vadd.f32 0.0, %v2012
    %v2014 = vpop.f32.mrf.mxu0
    %v2015 = vadd.f32 0.0, %v2014
    %v2016 = vpop.f32.mrf.mxu0
    %v2017 = vpop.f32.mrf.mxu0
    %2018 = vdwg.mxu0
    %2019 = vmatprep.subr.bf16.mxu0 %v1564
    %2020 = vmatpush1.bf16.msra.mxu0 %v1563
    %2021 = vmatprep.subr.bf16.mxu0 %v1560
    %2022 = vmatpush1.bf16.msra.mxu0 %v1559
    %2023 = vmatprep.subr.bf16.mxu0 %v1556
    %2024 = vmatpush1.bf16.msra.mxu0 %v1555
    %2025 = vmatprep.subr.bf16.mxu0 %v1552
    %2026 = vmatpush1.bf16.msra.mxu0 %v1551
    %2027 = vmatprep.subr.bf16.mxu0 %v1548
    %2028 = vmatpush1.bf16.msra.mxu0 %v1547
    %2029 = vmatprep.subr.bf16.mxu0 %v1544
    %2030 = vmatpush1.bf16.msra.mxu0 %v1543
    %2031 = vmatprep.subr.bf16.mxu0 %v1540
    %2032 = vmatpush1.bf16.msra.mxu0 %v1539
    %2033 = vmatprep.subr.bf16.mxu0 %v1536
    %2034 = vmatpush1.bf16.msra.mxu0 %v1535
    %2035 = vmatprep.subr.bf16.mxu0 0
    %2036 = vmatpush2.bf16.msra.mxu0 0
    %2037 = vmatprep.subr.bf16.mxu0 0
    %2038 = vmatpush2.bf16.msra.mxu0 0
    %2039 = vmatprep.subr.bf16.mxu0 0
    %2040 = vmatpush2.bf16.msra.mxu0 0
    %2041 = vmatprep.subr.bf16.mxu0 0
    %2042 = vmatpush2.bf16.msra.mxu0 0
    %2043 = vmatprep.subr.bf16.mxu0 0
    %2044 = vmatpush2.bf16.msra.mxu0 0
    %2045 = vmatprep.subr.bf16.mxu0 0
    %2046 = vmatpush2.bf16.msra.mxu0 0
    %2047 = vmatprep.subr.bf16.mxu0 0
    %2048 = vmatpush2.bf16.msra.mxu0 0
    %2049 = vmatprep.subr.bf16.mxu0 0
    %2050 = vmatpush2.bf16.msra.mxu0 0
    %2051 = vmatprep.mubr.bf16.mxu0 0
    %2052 = vmatmul.mubr.bf16.gmra.mxu0 %v1977
    %v2053 = vpop.f32.mrf.mxu0
    %v2054 = vadd.f32 0.0, %v2053
    %v2055 = vpop.f32.mrf.mxu0
    %v2056 = vadd.f32 0.0, %v2055
    %v2057 = vpop.f32.mrf.mxu0
    %v2058 = vpop.f32.mrf.mxu0
    %2059 = vdwg.mxu0
    %v2060 = vadd.f32 %v1119, %v2013
    %v2061 = vadd.f32 %v1121, %v2015
    %v2062 = vadd.f32 %v1192, %v2054
    %v2063 = vadd.f32 %v1194, %v2056
    %v2064 = vpack.c.bf16 %v1976, %v1976
    %2065 = vmatprep.subr.bf16.mxu0 %v1808
    %2066 = vmatpush1.bf16.msra.mxu0 %v1807
    %2067 = vmatprep.subr.bf16.mxu0 %v1804
    %2068 = vmatpush1.bf16.msra.mxu0 %v1803
    %2069 = vmatprep.subr.bf16.mxu0 %v1800
    %2070 = vmatpush1.bf16.msra.mxu0 %v1799
    %2071 = vmatprep.subr.bf16.mxu0 %v1796
    %2072 = vmatpush1.bf16.msra.mxu0 %v1795
    %2073 = vmatprep.subr.bf16.mxu0 %v1792
    %2074 = vmatpush1.bf16.msra.mxu0 %v1791
    %2075 = vmatprep.subr.bf16.mxu0 %v1788
    %2076 = vmatpush1.bf16.msra.mxu0 %v1787
    %2077 = vmatprep.subr.bf16.mxu0 %v1784
    %2078 = vmatpush1.bf16.msra.mxu0 %v1783
    %2079 = vmatprep.subr.bf16.mxu0 %v1780
    %2080 = vmatpush1.bf16.msra.mxu0 %v1779
    %2081 = vmatprep.subr.bf16.mxu0 0
    %2082 = vmatpush2.bf16.msra.mxu0 0
    %2083 = vmatprep.subr.bf16.mxu0 0
    %2084 = vmatpush2.bf16.msra.mxu0 0
    %2085 = vmatprep.subr.bf16.mxu0 0
    %2086 = vmatpush2.bf16.msra.mxu0 0
    %2087 = vmatprep.subr.bf16.mxu0 0
    %2088 = vmatpush2.bf16.msra.mxu0 0
    %2089 = vmatprep.subr.bf16.mxu0 0
    %2090 = vmatpush2.bf16.msra.mxu0 0
    %2091 = vmatprep.subr.bf16.mxu0 0
    %2092 = vmatpush2.bf16.msra.mxu0 0
    %2093 = vmatprep.subr.bf16.mxu0 0
    %2094 = vmatpush2.bf16.msra.mxu0 0
    %2095 = vmatprep.subr.bf16.mxu0 0
    %2096 = vmatpush2.bf16.msra.mxu0 0
    %2097 = vmatprep.mubr.bf16.mxu0 0
    %2098 = vmatmul.mubr.bf16.gmra.mxu0 %v2064
    %v2099 = vpop.f32.mrf.mxu0
    %v2100 = vadd.f32 0.0, %v2099
    %v2101 = vpop.f32.mrf.mxu0
    %v2102 = vadd.f32 0.0, %v2101
    %v2103 = vpop.f32.mrf.mxu0
    %v2104 = vpop.f32.mrf.mxu0
    %2105 = vdwg.mxu0
    %2106 = vmatprep.subr.bf16.mxu0 %v1810
    %2107 = vmatpush1.bf16.msra.mxu0 %v1809
    %2108 = vmatprep.subr.bf16.mxu0 %v1806
    %2109 = vmatpush1.bf16.msra.mxu0 %v1805
    %2110 = vmatprep.subr.bf16.mxu0 %v1802
    %2111 = vmatpush1.bf16.msra.mxu0 %v1801
    %2112 = vmatprep.subr.bf16.mxu0 %v1798
    %2113 = vmatpush1.bf16.msra.mxu0 %v1797
    %2114 = vmatprep.subr.bf16.mxu0 %v1794
    %2115 = vmatpush1.bf16.msra.mxu0 %v1793
    %2116 = vmatprep.subr.bf16.mxu0 %v1790
    %2117 = vmatpush1.bf16.msra.mxu0 %v1789
    %2118 = vmatprep.subr.bf16.mxu0 %v1786
    %2119 = vmatpush1.bf16.msra.mxu0 %v1785
    %2120 = vmatprep.subr.bf16.mxu0 %v1782
    %2121 = vmatpush1.bf16.msra.mxu0 %v1781
    %2122 = vmatprep.subr.bf16.mxu0 0
    %2123 = vmatpush2.bf16.msra.mxu0 0
    %2124 = vmatprep.subr.bf16.mxu0 0
    %2125 = vmatpush2.bf16.msra.mxu0 0
    %2126 = vmatprep.subr.bf16.mxu0 0
    %2127 = vmatpush2.bf16.msra.mxu0 0
    %2128 = vmatprep.subr.bf16.mxu0 0
    %2129 = vmatpush2.bf16.msra.mxu0 0
    %2130 = vmatprep.subr.bf16.mxu0 0
    %2131 = vmatpush2.bf16.msra.mxu0 0
    %2132 = vmatprep.subr.bf16.mxu0 0
    %2133 = vmatpush2.bf16.msra.mxu0 0
    %2134 = vmatprep.subr.bf16.mxu0 0
    %2135 = vmatpush2.bf16.msra.mxu0 0
    %2136 = vmatprep.subr.bf16.mxu0 0
    %2137 = vmatpush2.bf16.msra.mxu0 0
    %2138 = vmatprep.mubr.bf16.mxu0 0
    %2139 = vmatmul.mubr.bf16.gmra.mxu0 %v2064
    %v2140 = vpop.f32.mrf.mxu0
    %v2141 = vadd.f32 0.0, %v2140
    %v2142 = vpop.f32.mrf.mxu0
    %v2143 = vadd.f32 0.0, %v2142
    %v2144 = vpop.f32.mrf.mxu0
    %v2145 = vpop.f32.mrf.mxu0
    %2146 = vdwg.mxu0
    %v2147 = vadd.f32 %v1291, %v2100
    %v2148 = vadd.f32 %v1293, %v2102
    %v2149 = vadd.f32 %v1364, %v2141
    %v2150 = vadd.f32 %v1366, %v2143
    %v2151 = vxor.u32 %v2060, 2147483648
    %v2152 = vmul.f32 %v2151, 1.442695
    %v2153 = vpow.pop %v2152
    %v2154 = vadd.f32 %v2153, 1.0
    %v2155 = vrcp.pop %v2154
    %v2156 = vmul.f32 1.0, %v2155
    %v2157 = vxor.u32 %v2061, 2147483648
    %v2158 = vmul.f32 %v2157, 1.442695
    %v2159 = vpow.pop %v2158
    %v2160 = vadd.f32 %v2159, 1.0
    %v2161 = vrcp.pop %v2160
    %v2162 = vmul.f32 1.0, %v2161
    %v2163 = vtanh.pop %v2062
    %v2164 = vxor.u32 %v2063, 2147483648
    %v2165 = vmul.f32 %v2164, 1.442695
    %v2166 = vpow.pop %v2165
    %v2167 = vadd.f32 %v2166, 1.0
    %v2168 = vrcp.pop %v2167
    %v2169 = vmul.f32 1.0, %v2168
    %v2170 = vmul.f32 %v2162, %v1950
    %v2171 = vmul.f32 %v2156, %v2163
    %v2172 = vadd.f32 %v2170, %v2171
    %v2173 = vtanh.pop %v2172
    %v2174 = vmul.f32 %v2169, %v2173
    %v2175 = vxor.u32 %v2147, 2147483648
    %v2176 = vmul.f32 %v2175, 1.442695
    %v2177 = vpow.pop %v2176
    %v2178 = vadd.f32 %v2177, 1.0
    %v2179 = vrcp.pop %v2178
    %v2180 = vmul.f32 1.0, %v2179
    %v2181 = vxor.u32 %v2148, 2147483648
    %v2182 = vmul.f32 %v2181, 1.442695
    %v2183 = vpow.pop %v2182
    %v2184 = vadd.f32 %v2183, 1.0
    %v2185 = vrcp.pop %v2184
    %v2186 = vmul.f32 1.0, %v2185
    %v2187 = vtanh.pop %v2149
    %v2188 = vxor.u32 %v2150, 2147483648
    %v2189 = vmul.f32 %v2188, 1.442695
    %v2190 = vpow.pop %v2189
    %v2191 = vadd.f32 %v2190, 1.0
    %v2192 = vrcp.pop %v2191
    %v2193 = vmul.f32 1.0, %v2192
    %v2194 = vmul.f32 %v2186, %v1974
    %v2195 = vmul.f32 %v2180, %v2187
    %v2196 = vadd.f32 %v2194, %v2195
    %v2197 = vtanh.pop %v2196
    %v2198 = vmul.f32 %v2193, %v2197
    %v2199 = vpack.c.bf16 %v2174, %v2174
    %2200 = vmatprep.subr.bf16.mxu0 %v1562
    %2201 = vmatpush1.bf16.msra.mxu0 %v1561
    %2202 = vmatprep.subr.bf16.mxu0 %v1558
    %2203 = vmatpush1.bf16.msra.mxu0 %v1557
    %2204 = vmatprep.subr.bf16.mxu0 %v1554
    %2205 = vmatpush1.bf16.msra.mxu0 %v1553
    %2206 = vmatprep.subr.bf16.mxu0 %v1550
    %2207 = vmatpush1.bf16.msra.mxu0 %v1549
    %2208 = vmatprep.subr.bf16.mxu0 %v1546
    %2209 = vmatpush1.bf16.msra.mxu0 %v1545
    %2210 = vmatprep.subr.bf16.mxu0 %v1542
    %2211 = vmatpush1.bf16.msra.mxu0 %v1541
    %2212 = vmatprep.subr.bf16.mxu0 %v1538
    %2213 = vmatpush1.bf16.msra.mxu0 %v1537
    %2214 = vmatprep.subr.bf16.mxu0 %v1534
    %2215 = vmatpush1.bf16.msra.mxu0 %v1533
    %2216 = vmatprep.subr.bf16.mxu0 0
    %2217 = vmatpush2.bf16.msra.mxu0 0
    %2218 = vmatprep.subr.bf16.mxu0 0
    %2219 = vmatpush2.bf16.msra.mxu0 0
    %2220 = vmatprep.subr.bf16.mxu0 0
    %2221 = vmatpush2.bf16.msra.mxu0 0
    %2222 = vmatprep.subr.bf16.mxu0 0
    %2223 = vmatpush2.bf16.msra.mxu0 0
    %2224 = vmatprep.subr.bf16.mxu0 0
    %2225 = vmatpush2.bf16.msra.mxu0 0
    %2226 = vmatprep.subr.bf16.mxu0 0
    %2227 = vmatpush2.bf16.msra.mxu0 0
    %2228 = vmatprep.subr.bf16.mxu0 0
    %2229 = vmatpush2.bf16.msra.mxu0 0
    %2230 = vmatprep.subr.bf16.mxu0 0
    %2231 = vmatpush2.bf16.msra.mxu0 0
    %2232 = vmatprep.mubr.bf16.mxu0 0
    %2233 = vmatmul.mubr.bf16.gmra.mxu0 %v2199
    %v2234 = vpop.f32.mrf.mxu0
    %v2235 = vadd.f32 0.0, %v2234
    %v2236 = vpop.f32.mrf.mxu0
    %v2237 = vadd.f32 0.0, %v2236
    %v2238 = vpop.f32.mrf.mxu0
    %v2239 = vpop.f32.mrf.mxu0
    %2240 = vdwg.mxu0
    %2241 = vmatprep.subr.bf16.mxu0 %v1564
    %2242 = vmatpush1.bf16.msra.mxu0 %v1563
    %2243 = vmatprep.subr.bf16.mxu0 %v1560
    %2244 = vmatpush1.bf16.msra.mxu0 %v1559
    %2245 = vmatprep.subr.bf16.mxu0 %v1556
    %2246 = vmatpush1.bf16.msra.mxu0 %v1555
    %2247 = vmatprep.subr.bf16.mxu0 %v1552
    %2248 = vmatpush1.bf16.msra.mxu0 %v1551
    %2249 = vmatprep.subr.bf16.mxu0 %v1548
    %2250 = vmatpush1.bf16.msra.mxu0 %v1547
    %2251 = vmatprep.subr.bf16.mxu0 %v1544
    %2252 = vmatpush1.bf16.msra.mxu0 %v1543
    %2253 = vmatprep.subr.bf16.mxu0 %v1540
    %2254 = vmatpush1.bf16.msra.mxu0 %v1539
    %2255 = vmatprep.subr.bf16.mxu0 %v1536
    %2256 = vmatpush1.bf16.msra.mxu0 %v1535
    %2257 = vmatprep.subr.bf16.mxu0 0
    %2258 = vmatpush2.bf16.msra.mxu0 0
    %2259 = vmatprep.subr.bf16.mxu0 0
    %2260 = vmatpush2.bf16.msra.mxu0 0
    %2261 = vmatprep.subr.bf16.mxu0 0
    %2262 = vmatpush2.bf16.msra.mxu0 0
    %2263 = vmatprep.subr.bf16.mxu0 0
    %2264 = vmatpush2.bf16.msra.mxu0 0
    %2265 = vmatprep.subr.bf16.mxu0 0
    %2266 = vmatpush2.bf16.msra.mxu0 0
    %2267 = vmatprep.subr.bf16.mxu0 0
    %2268 = vmatpush2.bf16.msra.mxu0 0
    %2269 = vmatprep.subr.bf16.mxu0 0
    %2270 = vmatpush2.bf16.msra.mxu0 0
    %2271 = vmatprep.subr.bf16.mxu0 0
    %2272 = vmatpush2.bf16.msra.mxu0 0
    %2273 = vmatprep.mubr.bf16.mxu0 0
    %2274 = vmatmul.mubr.bf16.gmra.mxu0 %v2199
    %v2275 = vpop.f32.mrf.mxu0
    %v2276 = vadd.f32 0.0, %v2275
    %v2277 = vpop.f32.mrf.mxu0
    %v2278 = vadd.f32 0.0, %v2277
    %v2279 = vpop.f32.mrf.mxu0
    %v2280 = vpop.f32.mrf.mxu0
    %2281 = vdwg.mxu0
    %v2282 = vadd.f32 %v1125, %v2235
    %v2283 = vadd.f32 %v1127, %v2237
    %v2284 = vadd.f32 %v1198, %v2276
    %v2285 = vadd.f32 %v1200, %v2278
    %v2286 = vpack.c.bf16 %v2198, %v2198
    %2287 = vmatprep.subr.bf16.mxu0 %v1808
    %2288 = vmatpush1.bf16.msra.mxu0 %v1807
    %2289 = vmatprep.subr.bf16.mxu0 %v1804
    %2290 = vmatpush1.bf16.msra.mxu0 %v1803
    %2291 = vmatprep.subr.bf16.mxu0 %v1800
    %2292 = vmatpush1.bf16.msra.mxu0 %v1799
    %2293 = vmatprep.subr.bf16.mxu0 %v1796
    %2294 = vmatpush1.bf16.msra.mxu0 %v1795
    %2295 = vmatprep.subr.bf16.mxu0 %v1792
    %2296 = vmatpush1.bf16.msra.mxu0 %v1791
    %2297 = vmatprep.subr.bf16.mxu0 %v1788
    %2298 = vmatpush1.bf16.msra.mxu0 %v1787
    %2299 = vmatprep.subr.bf16.mxu0 %v1784
    %2300 = vmatpush1.bf16.msra.mxu0 %v1783
    %2301 = vmatprep.subr.bf16.mxu0 %v1780
    %2302 = vmatpush1.bf16.msra.mxu0 %v1779
    %2303 = vmatprep.subr.bf16.mxu0 0
    %2304 = vmatpush2.bf16.msra.mxu0 0
    %2305 = vmatprep.subr.bf16.mxu0 0
    %2306 = vmatpush2.bf16.msra.mxu0 0
    %2307 = vmatprep.subr.bf16.mxu0 0
    %2308 = vmatpush2.bf16.msra.mxu0 0
    %2309 = vmatprep.subr.bf16.mxu0 0
    %2310 = vmatpush2.bf16.msra.mxu0 0
    %2311 = vmatprep.subr.bf16.mxu0 0
    %2312 = vmatpush2.bf16.msra.mxu0 0
    %2313 = vmatprep.subr.bf16.mxu0 0
    %2314 = vmatpush2.bf16.msra.mxu0 0
    %2315 = vmatprep.subr.bf16.mxu0 0
    %2316 = vmatpush2.bf16.msra.mxu0 0
    %2317 = vmatprep.subr.bf16.mxu0 0
    %2318 = vmatpush2.bf16.msra.mxu0 0
    %2319 = vmatprep.mubr.bf16.mxu0 0
    %2320 = vmatmul.mubr.bf16.gmra.mxu0 %v2286
    %v2321 = vpop.f32.mrf.mxu0
    %v2322 = vadd.f32 0.0, %v2321
    %v2323 = vpop.f32.mrf.mxu0
    %v2324 = vadd.f32 0.0, %v2323
    %v2325 = vpop.f32.mrf.mxu0
    %v2326 = vpop.f32.mrf.mxu0
    %2327 = vdwg.mxu0
    %2328 = vmatprep.subr.bf16.mxu0 %v1810
    %2329 = vmatpush1.bf16.msra.mxu0 %v1809
    %2330 = vmatprep.subr.bf16.mxu0 %v1806
    %2331 = vmatpush1.bf16.msra.mxu0 %v1805
    %2332 = vmatprep.subr.bf16.mxu0 %v1802
    %2333 = vmatpush1.bf16.msra.mxu0 %v1801
    %2334 = vmatprep.subr.bf16.mxu0 %v1798
    %2335 = vmatpush1.bf16.msra.mxu0 %v1797
    %2336 = vmatprep.subr.bf16.mxu0 %v1794
    %2337 = vmatpush1.bf16.msra.mxu0 %v1793
    %2338 = vmatprep.subr.bf16.mxu0 %v1790
    %2339 = vmatpush1.bf16.msra.mxu0 %v1789
    %2340 = vmatprep.subr.bf16.mxu0 %v1786
    %2341 = vmatpush1.bf16.msra.mxu0 %v1785
    %2342 = vmatprep.subr.bf16.mxu0 %v1782
    %2343 = vmatpush1.bf16.msra.mxu0 %v1781
    %2344 = vmatprep.subr.bf16.mxu0 0
    %2345 = vmatpush2.bf16.msra.mxu0 0
    %2346 = vmatprep.subr.bf16.mxu0 0
    %2347 = vmatpush2.bf16.msra.mxu0 0
    %2348 = vmatprep.subr.bf16.mxu0 0
    %2349 = vmatpush2.bf16.msra.mxu0 0
    %2350 = vmatprep.subr.bf16.mxu0 0
    %2351 = vmatpush2.bf16.msra.mxu0 0
    %2352 = vmatprep.subr.bf16.mxu0 0
    %2353 = vmatpush2.bf16.msra.mxu0 0
    %2354 = vmatprep.subr.bf16.mxu0 0
    %2355 = vmatpush2.bf16.msra.mxu0 0
    %2356 = vmatprep.subr.bf16.mxu0 0
    %2357 = vmatpush2.bf16.msra.mxu0 0
    %2358 = vmatprep.subr.bf16.mxu0 0
    %2359 = vmatpush2.bf16.msra.mxu0 0
    %2360 = vmatprep.mubr.bf16.mxu0 0
    %2361 = vmatmul.mubr.bf16.gmra.mxu0 %v2286
    %v2362 = vpop.f32.mrf.mxu0
    %v2363 = vadd.f32 0.0, %v2362
    %v2364 = vpop.f32.mrf.mxu0
    %v2365 = vadd.f32 0.0, %v2364
    %v2366 = vpop.f32.mrf.mxu0
    %v2367 = vpop.f32.mrf.mxu0
    %2368 = vdwg.mxu0
    %v2369 = vadd.f32 %v1285, %v2322
    %v2370 = vadd.f32 %v1287, %v2324
    %v2371 = vadd.f32 %v1358, %v2363
    %v2372 = vadd.f32 %v1360, %v2365
    %v2373 = vxor.u32 %v2282, 2147483648
    %v2374 = vmul.f32 %v2373, 1.442695
    %v2375 = vpow.pop %v2374
    %v2376 = vadd.f32 %v2375, 1.0
    %v2377 = vrcp.pop %v2376
    %v2378 = vmul.f32 1.0, %v2377
    %v2379 = vxor.u32 %v2283, 2147483648
    %v2380 = vmul.f32 %v2379, 1.442695
    %v2381 = vpow.pop %v2380
    %v2382 = vadd.f32 %v2381, 1.0
    %v2383 = vrcp.pop %v2382
    %v2384 = vmul.f32 1.0, %v2383
    %v2385 = vtanh.pop %v2284
    %v2386 = vxor.u32 %v2285, 2147483648
    %v2387 = vmul.f32 %v2386, 1.442695
    %v2388 = vpow.pop %v2387
    %v2389 = vadd.f32 %v2388, 1.0
    %v2390 = vrcp.pop %v2389
    %v2391 = vmul.f32 1.0, %v2390
    %v2392 = vmul.f32 %v2384, %v2172
    %v2393 = vmul.f32 %v2378, %v2385
    %v2394 = vadd.f32 %v2392, %v2393
    %v2395 = vtanh.pop %v2394
    %v2396 = vmul.f32 %v2391, %v2395
    %v2397 = vxor.u32 %v2369, 2147483648
    %v2398 = vmul.f32 %v2397, 1.442695
    %v2399 = vpow.pop %v2398
    %v2400 = vadd.f32 %v2399, 1.0
    %v2401 = vrcp.pop %v2400
    %v2402 = vmul.f32 1.0, %v2401
    %v2403 = vxor.u32 %v2370, 2147483648
    %v2404 = vmul.f32 %v2403, 1.442695
    %v2405 = vpow.pop %v2404
    %v2406 = vadd.f32 %v2405, 1.0
    %v2407 = vrcp.pop %v2406
    %v2408 = vmul.f32 1.0, %v2407
    %v2409 = vtanh.pop %v2371
    %v2410 = vxor.u32 %v2372, 2147483648
    %v2411 = vmul.f32 %v2410, 1.442695
    %v2412 = vpow.pop %v2411
    %v2413 = vadd.f32 %v2412, 1.0
    %v2414 = vrcp.pop %v2413
    %v2415 = vmul.f32 1.0, %v2414
    %v2416 = vmul.f32 %v2408, %v2196
    %v2417 = vmul.f32 %v2402, %v2409
    %v2418 = vadd.f32 %v2416, %v2417
    %v2419 = vtanh.pop %v2418
    %v2420 = vmul.f32 %v2415, %v2419
    %v2421 = vpack.c.bf16 %v2396, %v2396
    %2422 = vmatprep.subr.bf16.mxu0 %v1562
    %2423 = vmatpush1.bf16.msra.mxu0 %v1561
    %2424 = vmatprep.subr.bf16.mxu0 %v1558
    %2425 = vmatpush1.bf16.msra.mxu0 %v1557
    %2426 = vmatprep.subr.bf16.mxu0 %v1554
    %2427 = vmatpush1.bf16.msra.mxu0 %v1553
    %2428 = vmatprep.subr.bf16.mxu0 %v1550
    %2429 = vmatpush1.bf16.msra.mxu0 %v1549
    %2430 = vmatprep.subr.bf16.mxu0 %v1546
    %2431 = vmatpush1.bf16.msra.mxu0 %v1545
    %2432 = vmatprep.subr.bf16.mxu0 %v1542
    %2433 = vmatpush1.bf16.msra.mxu0 %v1541
    %2434 = vmatprep.subr.bf16.mxu0 %v1538
    %2435 = vmatpush1.bf16.msra.mxu0 %v1537
    %2436 = vmatprep.subr.bf16.mxu0 %v1534
    %2437 = vmatpush1.bf16.msra.mxu0 %v1533
    %2438 = vmatprep.subr.bf16.mxu0 0
    %2439 = vmatpush2.bf16.msra.mxu0 0
    %2440 = vmatprep.subr.bf16.mxu0 0
    %2441 = vmatpush2.bf16.msra.mxu0 0
    %2442 = vmatprep.subr.bf16.mxu0 0
    %2443 = vmatpush2.bf16.msra.mxu0 0
    %2444 = vmatprep.subr.bf16.mxu0 0
    %2445 = vmatpush2.bf16.msra.mxu0 0
    %2446 = vmatprep.subr.bf16.mxu0 0
    %2447 = vmatpush2.bf16.msra.mxu0 0
    %2448 = vmatprep.subr.bf16.mxu0 0
    %2449 = vmatpush2.bf16.msra.mxu0 0
    %2450 = vmatprep.subr.bf16.mxu0 0
    %2451 = vmatpush2.bf16.msra.mxu0 0
    %2452 = vmatprep.subr.bf16.mxu0 0
    %2453 = vmatpush2.bf16.msra.mxu0 0
    %2454 = vmatprep.mubr.bf16.mxu0 0
    %2455 = vmatmul.mubr.bf16.gmra.mxu0 %v2421
    %v2456 = vpop.f32.mrf.mxu0
    %v2457 = vadd.f32 0.0, %v2456
    %v2458 = vpop.f32.mrf.mxu0
    %v2459 = vadd.f32 0.0, %v2458
    %v2460 = vpop.f32.mrf.mxu0
    %v2461 = vpop.f32.mrf.mxu0
    %2462 = vdwg.mxu0
    %2463 = vmatprep.subr.bf16.mxu0 %v1564
    %2464 = vmatpush1.bf16.msra.mxu0 %v1563
    %2465 = vmatprep.subr.bf16.mxu0 %v1560
    %2466 = vmatpush1.bf16.msra.mxu0 %v1559
    %2467 = vmatprep.subr.bf16.mxu0 %v1556
    %2468 = vmatpush1.bf16.msra.mxu0 %v1555
    %2469 = vmatprep.subr.bf16.mxu0 %v1552
    %2470 = vmatpush1.bf16.msra.mxu0 %v1551
    %2471 = vmatprep.subr.bf16.mxu0 %v1548
    %2472 = vmatpush1.bf16.msra.mxu0 %v1547
    %2473 = vmatprep.subr.bf16.mxu0 %v1544
    %2474 = vmatpush1.bf16.msra.mxu0 %v1543
    %2475 = vmatprep.subr.bf16.mxu0 %v1540
    %2476 = vmatpush1.bf16.msra.mxu0 %v1539
    %2477 = vmatprep.subr.bf16.mxu0 %v1536
    %2478 = vmatpush1.bf16.msra.mxu0 %v1535
    %2479 = vmatprep.subr.bf16.mxu0 0
    %2480 = vmatpush2.bf16.msra.mxu0 0
    %2481 = vmatprep.subr.bf16.mxu0 0
    %2482 = vmatpush2.bf16.msra.mxu0 0
    %2483 = vmatprep.subr.bf16.mxu0 0
    %2484 = vmatpush2.bf16.msra.mxu0 0
    %2485 = vmatprep.subr.bf16.mxu0 0
    %2486 = vmatpush2.bf16.msra.mxu0 0
    %2487 = vmatprep.subr.bf16.mxu0 0
    %2488 = vmatpush2.bf16.msra.mxu0 0
    %2489 = vmatprep.subr.bf16.mxu0 0
    %2490 = vmatpush2.bf16.msra.mxu0 0
    %2491 = vmatprep.subr.bf16.mxu0 0
    %2492 = vmatpush2.bf16.msra.mxu0 0
    %2493 = vmatprep.subr.bf16.mxu0 0
    %2494 = vmatpush2.bf16.msra.mxu0 0
    %2495 = vmatprep.mubr.bf16.mxu0 0
    %2496 = vmatmul.mubr.bf16.gmra.mxu0 %v2421
    %v2497 = vpop.f32.mrf.mxu0
    %v2498 = vadd.f32 0.0, %v2497
    %v2499 = vpop.f32.mrf.mxu0
    %v2500 = vadd.f32 0.0, %v2499
    %v2501 = vpop.f32.mrf.mxu0
    %v2502 = vpop.f32.mrf.mxu0
    %2503 = vdwg.mxu0
    %v2504 = vadd.f32 %v1129, %v2457
    %v2505 = vadd.f32 %v1131, %v2459
    %v2506 = vadd.f32 %v1202, %v2498
    %v2507 = vadd.f32 %v1204, %v2500
    %v2508 = vpack.c.bf16 %v2420, %v2420
    %2509 = vmatprep.subr.bf16.mxu0 %v1808
    %2510 = vmatpush1.bf16.msra.mxu0 %v1807
    %2511 = vmatprep.subr.bf16.mxu0 %v1804
    %2512 = vmatpush1.bf16.msra.mxu0 %v1803
    %2513 = vmatprep.subr.bf16.mxu0 %v1800
    %2514 = vmatpush1.bf16.msra.mxu0 %v1799
    %2515 = vmatprep.subr.bf16.mxu0 %v1796
    %2516 = vmatpush1.bf16.msra.mxu0 %v1795
    %2517 = vmatprep.subr.bf16.mxu0 %v1792
    %2518 = vmatpush1.bf16.msra.mxu0 %v1791
    %2519 = vmatprep.subr.bf16.mxu0 %v1788
    %2520 = vmatpush1.bf16.msra.mxu0 %v1787
    %2521 = vmatprep.subr.bf16.mxu0 %v1784
    %2522 = vmatpush1.bf16.msra.mxu0 %v1783
    %2523 = vmatprep.subr.bf16.mxu0 %v1780
    %2524 = vmatpush1.bf16.msra.mxu0 %v1779
    %2525 = vmatprep.subr.bf16.mxu0 0
    %2526 = vmatpush2.bf16.msra.mxu0 0
    %2527 = vmatprep.subr.bf16.mxu0 0
    %2528 = vmatpush2.bf16.msra.mxu0 0
    %2529 = vmatprep.subr.bf16.mxu0 0
    %2530 = vmatpush2.bf16.msra.mxu0 0
    %2531 = vmatprep.subr.bf16.mxu0 0
    %2532 = vmatpush2.bf16.msra.mxu0 0
    %2533 = vmatprep.subr.bf16.mxu0 0
    %2534 = vmatpush2.bf16.msra.mxu0 0
    %2535 = vmatprep.subr.bf16.mxu0 0
    %2536 = vmatpush2.bf16.msra.mxu0 0
    %2537 = vmatprep.subr.bf16.mxu0 0
    %2538 = vmatpush2.bf16.msra.mxu0 0
    %2539 = vmatprep.subr.bf16.mxu0 0
    %2540 = vmatpush2.bf16.msra.mxu0 0
    %2541 = vmatprep.mubr.bf16.mxu0 0
    %2542 = vmatmul.mubr.bf16.gmra.mxu0 %v2508
    %v2543 = vpop.f32.mrf.mxu0
    %v2544 = vadd.f32 0.0, %v2543
    %v2545 = vpop.f32.mrf.mxu0
    %v2546 = vadd.f32 0.0, %v2545
    %v2547 = vpop.f32.mrf.mxu0
    %v2548 = vpop.f32.mrf.mxu0
    %2549 = vdwg.mxu0
    %2550 = vmatprep.subr.bf16.mxu0 %v1810
    %2551 = vmatpush1.bf16.msra.mxu0 %v1809
    %2552 = vmatprep.subr.bf16.mxu0 %v1806
    %2553 = vmatpush1.bf16.msra.mxu0 %v1805
    %2554 = vmatprep.subr.bf16.mxu0 %v1802
    %2555 = vmatpush1.bf16.msra.mxu0 %v1801
    %2556 = vmatprep.subr.bf16.mxu0 %v1798
    %2557 = vmatpush1.bf16.msra.mxu0 %v1797
    %2558 = vmatprep.subr.bf16.mxu0 %v1794
    %2559 = vmatpush1.bf16.msra.mxu0 %v1793
    %2560 = vmatprep.subr.bf16.mxu0 %v1790
    %2561 = vmatpush1.bf16.msra.mxu0 %v1789
    %2562 = vmatprep.subr.bf16.mxu0 %v1786
    %2563 = vmatpush1.bf16.msra.mxu0 %v1785
    %2564 = vmatprep.subr.bf16.mxu0 %v1782
    %2565 = vmatpush1.bf16.msra.mxu0 %v1781
    %2566 = vmatprep.subr.bf16.mxu0 0
    %2567 = vmatpush2.bf16.msra.mxu0 0
    %2568 = vmatprep.subr.bf16.mxu0 0
    %2569 = vmatpush2.bf16.msra.mxu0 0
    %2570 = vmatprep.subr.bf16.mxu0 0
    %2571 = vmatpush2.bf16.msra.mxu0 0
    %2572 = vmatprep.subr.bf16.mxu0 0
    %2573 = vmatpush2.bf16.msra.mxu0 0
    %2574 = vmatprep.subr.bf16.mxu0 0
    %2575 = vmatpush2.bf16.msra.mxu0 0
    %2576 = vmatprep.subr.bf16.mxu0 0
    %2577 = vmatpush2.bf16.msra.mxu0 0
    %2578 = vmatprep.subr.bf16.mxu0 0
    %2579 = vmatpush2.bf16.msra.mxu0 0
    %2580 = vmatprep.subr.bf16.mxu0 0
    %2581 = vmatpush2.bf16.msra.mxu0 0
    %2582 = vmatprep.mubr.bf16.mxu0 0
    %2583 = vmatmul.mubr.bf16.gmra.mxu0 %v2508
    %v2584 = vpop.f32.mrf.mxu0
    %v2585 = vadd.f32 0.0, %v2584
    %v2586 = vpop.f32.mrf.mxu0
    %v2587 = vadd.f32 0.0, %v2586
    %v2588 = vpop.f32.mrf.mxu0
    %v2589 = vpop.f32.mrf.mxu0
    %2590 = vdwg.mxu0
    %v2591 = vadd.f32 %v1281, %v2544
    %v2592 = vadd.f32 %v1283, %v2546
    %v2593 = vadd.f32 %v1354, %v2585
    %v2594 = vadd.f32 %v1356, %v2587
    %v2595 = vxor.u32 %v2504, 2147483648
    %v2596 = vmul.f32 %v2595, 1.442695
    %v2597 = vpow.pop %v2596
    %v2598 = vadd.f32 %v2597, 1.0
    %v2599 = vrcp.pop %v2598
    %v2600 = vmul.f32 1.0, %v2599
    %v2601 = vxor.u32 %v2505, 2147483648
    %v2602 = vmul.f32 %v2601, 1.442695
    %v2603 = vpow.pop %v2602
    %v2604 = vadd.f32 %v2603, 1.0
    %v2605 = vrcp.pop %v2604
    %v2606 = vmul.f32 1.0, %v2605
    %v2607 = vtanh.pop %v2506
    %v2608 = vxor.u32 %v2507, 2147483648
    %v2609 = vmul.f32 %v2608, 1.442695
    %v2610 = vpow.pop %v2609
    %v2611 = vadd.f32 %v2610, 1.0
    %v2612 = vrcp.pop %v2611
    %v2613 = vmul.f32 1.0, %v2612
    %v2614 = vmul.f32 %v2606, %v2394
    %v2615 = vmul.f32 %v2600, %v2607
    %v2616 = vadd.f32 %v2614, %v2615
    %v2617 = vtanh.pop %v2616
    %v2618 = vmul.f32 %v2613, %v2617
    %v2619 = vxor.u32 %v2591, 2147483648
    %v2620 = vmul.f32 %v2619, 1.442695
    %v2621 = vpow.pop %v2620
    %v2622 = vadd.f32 %v2621, 1.0
    %v2623 = vrcp.pop %v2622
    %v2624 = vmul.f32 1.0, %v2623
    %v2625 = vxor.u32 %v2592, 2147483648
    %v2626 = vmul.f32 %v2625, 1.442695
    %v2627 = vpow.pop %v2626
    %v2628 = vadd.f32 %v2627, 1.0
    %v2629 = vrcp.pop %v2628
    %v2630 = vmul.f32 1.0, %v2629
    %v2631 = vtanh.pop %v2593
    %v2632 = vxor.u32 %v2594, 2147483648
    %v2633 = vmul.f32 %v2632, 1.442695
    %v2634 = vpow.pop %v2633
    %v2635 = vadd.f32 %v2634, 1.0
    %v2636 = vrcp.pop %v2635
    %v2637 = vmul.f32 1.0, %v2636
    %v2638 = vmul.f32 %v2630, %v2418
    %v2639 = vmul.f32 %v2624, %v2631
    %v2640 = vadd.f32 %v2638, %v2639
    %v2641 = vtanh.pop %v2640
    %v2642 = vmul.f32 %v2637, %v2641
    %v2643 = vpack.c.bf16 %v2618, %v2618
    %2644 = vmatprep.subr.bf16.mxu0 %v1562
    %2645 = vmatpush1.bf16.msra.mxu0 %v1561
    %2646 = vmatprep.subr.bf16.mxu0 %v1558
    %2647 = vmatpush1.bf16.msra.mxu0 %v1557
    %2648 = vmatprep.subr.bf16.mxu0 %v1554
    %2649 = vmatpush1.bf16.msra.mxu0 %v1553
    %2650 = vmatprep.subr.bf16.mxu0 %v1550
    %2651 = vmatpush1.bf16.msra.mxu0 %v1549
    %2652 = vmatprep.subr.bf16.mxu0 %v1546
    %2653 = vmatpush1.bf16.msra.mxu0 %v1545
    %2654 = vmatprep.subr.bf16.mxu0 %v1542
    %2655 = vmatpush1.bf16.msra.mxu0 %v1541
    %2656 = vmatprep.subr.bf16.mxu0 %v1538
    %2657 = vmatpush1.bf16.msra.mxu0 %v1537
    %2658 = vmatprep.subr.bf16.mxu0 %v1534
    %2659 = vmatpush1.bf16.msra.mxu0 %v1533
    %2660 = vmatprep.subr.bf16.mxu0 0
    %2661 = vmatpush2.bf16.msra.mxu0 0
    %2662 = vmatprep.subr.bf16.mxu0 0
    %2663 = vmatpush2.bf16.msra.mxu0 0
    %2664 = vmatprep.subr.bf16.mxu0 0
    %2665 = vmatpush2.bf16.msra.mxu0 0
    %2666 = vmatprep.subr.bf16.mxu0 0
    %2667 = vmatpush2.bf16.msra.mxu0 0
    %2668 = vmatprep.subr.bf16.mxu0 0
    %2669 = vmatpush2.bf16.msra.mxu0 0
    %2670 = vmatprep.subr.bf16.mxu0 0
    %2671 = vmatpush2.bf16.msra.mxu0 0
    %2672 = vmatprep.subr.bf16.mxu0 0
    %2673 = vmatpush2.bf16.msra.mxu0 0
    %2674 = vmatprep.subr.bf16.mxu0 0
    %2675 = vmatpush2.bf16.msra.mxu0 0
    %2676 = vmatprep.mubr.bf16.mxu0 0
    %2677 = vmatmul.mubr.bf16.gmra.mxu0 %v2643
    %v2678 = vpop.f32.mrf.mxu0
    %v2679 = vadd.f32 0.0, %v2678
    %v2680 = vpop.f32.mrf.mxu0
    %v2681 = vadd.f32 0.0, %v2680
    %v2682 = vpop.f32.mrf.mxu0
    %v2683 = vpop.f32.mrf.mxu0
    %2684 = vdwg.mxu0
    %2685 = vmatprep.subr.bf16.mxu0 %v1564
    %2686 = vmatpush1.bf16.msra.mxu0 %v1563
    %2687 = vmatprep.subr.bf16.mxu0 %v1560
    %2688 = vmatpush1.bf16.msra.mxu0 %v1559
    %2689 = vmatprep.subr.bf16.mxu0 %v1556
    %2690 = vmatpush1.bf16.msra.mxu0 %v1555
    %2691 = vmatprep.subr.bf16.mxu0 %v1552
    %2692 = vmatpush1.bf16.msra.mxu0 %v1551
    %2693 = vmatprep.subr.bf16.mxu0 %v1548
    %2694 = vmatpush1.bf16.msra.mxu0 %v1547
    %2695 = vmatprep.subr.bf16.mxu0 %v1544
    %2696 = vmatpush1.bf16.msra.mxu0 %v1543
    %2697 = vmatprep.subr.bf16.mxu0 %v1540
    %2698 = vmatpush1.bf16.msra.mxu0 %v1539
    %2699 = vmatprep.subr.bf16.mxu0 %v1536
    %2700 = vmatpush1.bf16.msra.mxu0 %v1535
    %2701 = vmatprep.subr.bf16.mxu0 0
    %2702 = vmatpush2.bf16.msra.mxu0 0
    %2703 = vmatprep.subr.bf16.mxu0 0
    %2704 = vmatpush2.bf16.msra.mxu0 0
    %2705 = vmatprep.subr.bf16.mxu0 0
    %2706 = vmatpush2.bf16.msra.mxu0 0
    %2707 = vmatprep.subr.bf16.mxu0 0
    %2708 = vmatpush2.bf16.msra.mxu0 0
    %2709 = vmatprep.subr.bf16.mxu0 0
    %2710 = vmatpush2.bf16.msra.mxu0 0
    %2711 = vmatprep.subr.bf16.mxu0 0
    %2712 = vmatpush2.bf16.msra.mxu0 0
    %2713 = vmatprep.subr.bf16.mxu0 0
    %2714 = vmatpush2.bf16.msra.mxu0 0
    %2715 = vmatprep.subr.bf16.mxu0 0
    %2716 = vmatpush2.bf16.msra.mxu0 0
    %2717 = vmatprep.mubr.bf16.mxu0 0
    %2718 = vmatmul.mubr.bf16.gmra.mxu0 %v2643
    %v2719 = vpop.f32.mrf.mxu0
    %v2720 = vadd.f32 0.0, %v2719
    %v2721 = vpop.f32.mrf.mxu0
    %v2722 = vadd.f32 0.0, %v2721
    %v2723 = vpop.f32.mrf.mxu0
    %v2724 = vpop.f32.mrf.mxu0
    %2725 = vdwg.mxu0
    %v2726 = vadd.f32 %v1135, %v2679
    %v2727 = vadd.f32 %v1137, %v2681
    %v2728 = vadd.f32 %v1208, %v2720
    %v2729 = vadd.f32 %v1210, %v2722
    %v2730 = vpack.c.bf16 %v2642, %v2642
    %2731 = vmatprep.subr.bf16.mxu0 %v1808
    %2732 = vmatpush1.bf16.msra.mxu0 %v1807
    %2733 = vmatprep.subr.bf16.mxu0 %v1804
    %2734 = vmatpush1.bf16.msra.mxu0 %v1803
    %2735 = vmatprep.subr.bf16.mxu0 %v1800
    %2736 = vmatpush1.bf16.msra.mxu0 %v1799
    %2737 = vmatprep.subr.bf16.mxu0 %v1796
    %2738 = vmatpush1.bf16.msra.mxu0 %v1795
    %2739 = vmatprep.subr.bf16.mxu0 %v1792
    %2740 = vmatpush1.bf16.msra.mxu0 %v1791
    %2741 = vmatprep.subr.bf16.mxu0 %v1788
    %2742 = vmatpush1.bf16.msra.mxu0 %v1787
    %2743 = vmatprep.subr.bf16.mxu0 %v1784
    %2744 = vmatpush1.bf16.msra.mxu0 %v1783
    %2745 = vmatprep.subr.bf16.mxu0 %v1780
    %2746 = vmatpush1.bf16.msra.mxu0 %v1779
    %2747 = vmatprep.subr.bf16.mxu0 0
    %2748 = vmatpush2.bf16.msra.mxu0 0
    %2749 = vmatprep.subr.bf16.mxu0 0
    %2750 = vmatpush2.bf16.msra.mxu0 0
    %2751 = vmatprep.subr.bf16.mxu0 0
    %2752 = vmatpush2.bf16.msra.mxu0 0
    %2753 = vmatprep.subr.bf16.mxu0 0
    %2754 = vmatpush2.bf16.msra.mxu0 0
    %2755 = vmatprep.subr.bf16.mxu0 0
    %2756 = vmatpush2.bf16.msra.mxu0 0
    %2757 = vmatprep.subr.bf16.mxu0 0
    %2758 = vmatpush2.bf16.msra.mxu0 0
    %2759 = vmatprep.subr.bf16.mxu0 0
    %2760 = vmatpush2.bf16.msra.mxu0 0
    %2761 = vmatprep.subr.bf16.mxu0 0
    %2762 = vmatpush2.bf16.msra.mxu0 0
    %2763 = vmatprep.mubr.bf16.mxu0 0
    %2764 = vmatmul.mubr.bf16.gmra.mxu0 %v2730
    %v2765 = vpop.f32.mrf.mxu0
    %v2766 = vadd.f32 0.0, %v2765
    %v2767 = vpop.f32.mrf.mxu0
    %v2768 = vadd.f32 0.0, %v2767
    %v2769 = vpop.f32.mrf.mxu0
    %v2770 = vpop.f32.mrf.mxu0
    %2771 = vdwg.mxu0
    %2772 = vmatprep.subr.bf16.mxu0 %v1810
    %2773 = vmatpush1.bf16.msra.mxu0 %v1809
    %2774 = vmatprep.subr.bf16.mxu0 %v1806
    %2775 = vmatpush1.bf16.msra.mxu0 %v1805
    %2776 = vmatprep.subr.bf16.mxu0 %v1802
    %2777 = vmatpush1.bf16.msra.mxu0 %v1801
    %2778 = vmatprep.subr.bf16.mxu0 %v1798
    %2779 = vmatpush1.bf16.msra.mxu0 %v1797
    %2780 = vmatprep.subr.bf16.mxu0 %v1794
    %2781 = vmatpush1.bf16.msra.mxu0 %v1793
    %2782 = vmatprep.subr.bf16.mxu0 %v1790
    %2783 = vmatpush1.bf16.msra.mxu0 %v1789
    %2784 = vmatprep.subr.bf16.mxu0 %v1786
    %2785 = vmatpush1.bf16.msra.mxu0 %v1785
    %2786 = vmatprep.subr.bf16.mxu0 %v1782
    %2787 = vmatpush1.bf16.msra.mxu0 %v1781
    %2788 = vmatprep.subr.bf16.mxu0 0
    %2789 = vmatpush2.bf16.msra.mxu0 0
    %2790 = vmatprep.subr.bf16.mxu0 0
    %2791 = vmatpush2.bf16.msra.mxu0 0
    %2792 = vmatprep.subr.bf16.mxu0 0
    %2793 = vmatpush2.bf16.msra.mxu0 0
    %2794 = vmatprep.subr.bf16.mxu0 0
    %2795 = vmatpush2.bf16.msra.mxu0 0
    %2796 = vmatprep.subr.bf16.mxu0 0
    %2797 = vmatpush2.bf16.msra.mxu0 0
    %2798 = vmatprep.subr.bf16.mxu0 0
    %2799 = vmatpush2.bf16.msra.mxu0 0
    %2800 = vmatprep.subr.bf16.mxu0 0
    %2801 = vmatpush2.bf16.msra.mxu0 0
    %2802 = vmatprep.subr.bf16.mxu0 0
    %2803 = vmatpush2.bf16.msra.mxu0 0
    %2804 = vmatprep.mubr.bf16.mxu0 0
    %2805 = vmatmul.mubr.bf16.gmra.mxu0 %v2730
    %v2806 = vpop.f32.mrf.mxu0
    %v2807 = vadd.f32 0.0, %v2806
    %v2808 = vpop.f32.mrf.mxu0
    %v2809 = vadd.f32 0.0, %v2808
    %v2810 = vpop.f32.mrf.mxu0
    %v2811 = vpop.f32.mrf.mxu0
    %2812 = vdwg.mxu0
    %v2813 = vadd.f32 %v1275, %v2766
    %v2814 = vadd.f32 %v1277, %v2768
    %v2815 = vadd.f32 %v1348, %v2807
    %v2816 = vadd.f32 %v1350, %v2809
    %v2817 = vxor.u32 %v2726, 2147483648
    %v2818 = vmul.f32 %v2817, 1.442695
    %v2819 = vpow.pop %v2818
    %v2820 = vadd.f32 %v2819, 1.0
    %v2821 = vrcp.pop %v2820
    %v2822 = vmul.f32 1.0, %v2821
    %v2823 = vxor.u32 %v2727, 2147483648
    %v2824 = vmul.f32 %v2823, 1.442695
    %v2825 = vpow.pop %v2824
    %v2826 = vadd.f32 %v2825, 1.0
    %v2827 = vrcp.pop %v2826
    %v2828 = vmul.f32 1.0, %v2827
    %v2829 = vtanh.pop %v2728
    %v2830 = vxor.u32 %v2729, 2147483648
    %v2831 = vmul.f32 %v2830, 1.442695
    %v2832 = vpow.pop %v2831
    %v2833 = vadd.f32 %v2832, 1.0
    %v2834 = vrcp.pop %v2833
    %v2835 = vmul.f32 1.0, %v2834
    %v2836 = vmul.f32 %v2828, %v2616
    %v2837 = vmul.f32 %v2822, %v2829
    %v2838 = vadd.f32 %v2836, %v2837
    %v2839 = vtanh.pop %v2838
    %v2840 = vmul.f32 %v2835, %v2839
    %v2841 = vxor.u32 %v2813, 2147483648
    %v2842 = vmul.f32 %v2841, 1.442695
    %v2843 = vpow.pop %v2842
    %v2844 = vadd.f32 %v2843, 1.0
    %v2845 = vrcp.pop %v2844
    %v2846 = vmul.f32 1.0, %v2845
    %v2847 = vxor.u32 %v2814, 2147483648
    %v2848 = vmul.f32 %v2847, 1.442695
    %v2849 = vpow.pop %v2848
    %v2850 = vadd.f32 %v2849, 1.0
    %v2851 = vrcp.pop %v2850
    %v2852 = vmul.f32 1.0, %v2851
    %v2853 = vtanh.pop %v2815
    %v2854 = vxor.u32 %v2816, 2147483648
    %v2855 = vmul.f32 %v2854, 1.442695
    %v2856 = vpow.pop %v2855
    %v2857 = vadd.f32 %v2856, 1.0
    %v2858 = vrcp.pop %v2857
    %v2859 = vmul.f32 1.0, %v2858
    %v2860 = vmul.f32 %v2852, %v2640
    %v2861 = vmul.f32 %v2846, %v2853
    %v2862 = vadd.f32 %v2860, %v2861
    %v2863 = vtanh.pop %v2862
    %v2864 = vmul.f32 %v2859, %v2863
    %v2865 = vpack.c.bf16 %v2840, %v2840
    %2866 = vmatprep.subr.bf16.mxu0 %v1562
    %2867 = vmatpush1.bf16.msra.mxu0 %v1561
    %2868 = vmatprep.subr.bf16.mxu0 %v1558
    %2869 = vmatpush1.bf16.msra.mxu0 %v1557
    %2870 = vmatprep.subr.bf16.mxu0 %v1554
    %2871 = vmatpush1.bf16.msra.mxu0 %v1553
    %2872 = vmatprep.subr.bf16.mxu0 %v1550
    %2873 = vmatpush1.bf16.msra.mxu0 %v1549
    %2874 = vmatprep.subr.bf16.mxu0 %v1546
    %2875 = vmatpush1.bf16.msra.mxu0 %v1545
    %2876 = vmatprep.subr.bf16.mxu0 %v1542
    %2877 = vmatpush1.bf16.msra.mxu0 %v1541
    %2878 = vmatprep.subr.bf16.mxu0 %v1538
    %2879 = vmatpush1.bf16.msra.mxu0 %v1537
    %2880 = vmatprep.subr.bf16.mxu0 %v1534
    %2881 = vmatpush1.bf16.msra.mxu0 %v1533
    %2882 = vmatprep.subr.bf16.mxu0 0
    %2883 = vmatpush2.bf16.msra.mxu0 0
    %2884 = vmatprep.subr.bf16.mxu0 0
    %2885 = vmatpush2.bf16.msra.mxu0 0
    %2886 = vmatprep.subr.bf16.mxu0 0
    %2887 = vmatpush2.bf16.msra.mxu0 0
    %2888 = vmatprep.subr.bf16.mxu0 0
    %2889 = vmatpush2.bf16.msra.mxu0 0
    %2890 = vmatprep.subr.bf16.mxu0 0
    %2891 = vmatpush2.bf16.msra.mxu0 0
    %2892 = vmatprep.subr.bf16.mxu0 0
    %2893 = vmatpush2.bf16.msra.mxu0 0
    %2894 = vmatprep.subr.bf16.mxu0 0
    %2895 = vmatpush2.bf16.msra.mxu0 0
    %2896 = vmatprep.subr.bf16.mxu0 0
    %2897 = vmatpush2.bf16.msra.mxu0 0
    %2898 = vmatprep.mubr.bf16.mxu0 0
    %2899 = vmatmul.mubr.bf16.gmra.mxu0 %v2865
    %v2900 = vpop.f32.mrf.mxu0
    %v2901 = vadd.f32 0.0, %v2900
    %v2902 = vpop.f32.mrf.mxu0
    %v2903 = vadd.f32 0.0, %v2902
    %v2904 = vpop.f32.mrf.mxu0
    %v2905 = vpop.f32.mrf.mxu0
    %2906 = vdwg.mxu0
    %2907 = vmatprep.subr.bf16.mxu0 %v1564
    %2908 = vmatpush1.bf16.msra.mxu0 %v1563
    %2909 = vmatprep.subr.bf16.mxu0 %v1560
    %2910 = vmatpush1.bf16.msra.mxu0 %v1559
    %2911 = vmatprep.subr.bf16.mxu0 %v1556
    %2912 = vmatpush1.bf16.msra.mxu0 %v1555
    %2913 = vmatprep.subr.bf16.mxu0 %v1552
    %2914 = vmatpush1.bf16.msra.mxu0 %v1551
    %2915 = vmatprep.subr.bf16.mxu0 %v1548
    %2916 = vmatpush1.bf16.msra.mxu0 %v1547
    %2917 = vmatprep.subr.bf16.mxu0 %v1544
    %2918 = vmatpush1.bf16.msra.mxu0 %v1543
    %2919 = vmatprep.subr.bf16.mxu0 %v1540
    %2920 = vmatpush1.bf16.msra.mxu0 %v1539
    %2921 = vmatprep.subr.bf16.mxu0 %v1536
    %2922 = vmatpush1.bf16.msra.mxu0 %v1535
    %2923 = vmatprep.subr.bf16.mxu0 0
    %2924 = vmatpush2.bf16.msra.mxu0 0
    %2925 = vmatprep.subr.bf16.mxu0 0
    %2926 = vmatpush2.bf16.msra.mxu0 0
    %2927 = vmatprep.subr.bf16.mxu0 0
    %2928 = vmatpush2.bf16.msra.mxu0 0
    %2929 = vmatprep.subr.bf16.mxu0 0
    %2930 = vmatpush2.bf16.msra.mxu0 0
    %2931 = vmatprep.subr.bf16.mxu0 0
    %2932 = vmatpush2.bf16.msra.mxu0 0
    %2933 = vmatprep.subr.bf16.mxu0 0
    %2934 = vmatpush2.bf16.msra.mxu0 0
    %2935 = vmatprep.subr.bf16.mxu0 0
    %2936 = vmatpush2.bf16.msra.mxu0 0
    %2937 = vmatprep.subr.bf16.mxu0 0
    %2938 = vmatpush2.bf16.msra.mxu0 0
    %2939 = vmatprep.mubr.bf16.mxu0 0
    %2940 = vmatmul.mubr.bf16.gmra.mxu0 %v2865
    %v2941 = vpop.f32.mrf.mxu0
    %v2942 = vadd.f32 0.0, %v2941
    %v2943 = vpop.f32.mrf.mxu0
    %v2944 = vadd.f32 0.0, %v2943
    %v2945 = vpop.f32.mrf.mxu0
    %v2946 = vpop.f32.mrf.mxu0
    %2947 = vdwg.mxu0
    %v2948 = vadd.f32 %v1139, %v2901
    %v2949 = vadd.f32 %v1141, %v2903
    %v2950 = vadd.f32 %v1212, %v2942
    %v2951 = vadd.f32 %v1214, %v2944
    %v2952 = vpack.c.bf16 %v2864, %v2864
    %2953 = vmatprep.subr.bf16.mxu0 %v1808
    %2954 = vmatpush1.bf16.msra.mxu0 %v1807
    %2955 = vmatprep.subr.bf16.mxu0 %v1804
    %2956 = vmatpush1.bf16.msra.mxu0 %v1803
    %2957 = vmatprep.subr.bf16.mxu0 %v1800
    %2958 = vmatpush1.bf16.msra.mxu0 %v1799
    %2959 = vmatprep.subr.bf16.mxu0 %v1796
    %2960 = vmatpush1.bf16.msra.mxu0 %v1795
    %2961 = vmatprep.subr.bf16.mxu0 %v1792
    %2962 = vmatpush1.bf16.msra.mxu0 %v1791
    %2963 = vmatprep.subr.bf16.mxu0 %v1788
    %2964 = vmatpush1.bf16.msra.mxu0 %v1787
    %2965 = vmatprep.subr.bf16.mxu0 %v1784
    %2966 = vmatpush1.bf16.msra.mxu0 %v1783
    %2967 = vmatprep.subr.bf16.mxu0 %v1780
    %2968 = vmatpush1.bf16.msra.mxu0 %v1779
    %2969 = vmatprep.subr.bf16.mxu0 0
    %2970 = vmatpush2.bf16.msra.mxu0 0
    %2971 = vmatprep.subr.bf16.mxu0 0
    %2972 = vmatpush2.bf16.msra.mxu0 0
    %2973 = vmatprep.subr.bf16.mxu0 0
    %2974 = vmatpush2.bf16.msra.mxu0 0
    %2975 = vmatprep.subr.bf16.mxu0 0
    %2976 = vmatpush2.bf16.msra.mxu0 0
    %2977 = vmatprep.subr.bf16.mxu0 0
    %2978 = vmatpush2.bf16.msra.mxu0 0
    %2979 = vmatprep.subr.bf16.mxu0 0
    %2980 = vmatpush2.bf16.msra.mxu0 0
    %2981 = vmatprep.subr.bf16.mxu0 0
    %2982 = vmatpush2.bf16.msra.mxu0 0
    %2983 = vmatprep.subr.bf16.mxu0 0
    %2984 = vmatpush2.bf16.msra.mxu0 0
    %2985 = vmatprep.mubr.bf16.mxu0 0
    %2986 = vmatmul.mubr.bf16.gmra.mxu0 %v2952
    %v2987 = vpop.f32.mrf.mxu0
    %v2988 = vadd.f32 0.0, %v2987
    %v2989 = vpop.f32.mrf.mxu0
    %v2990 = vadd.f32 0.0, %v2989
    %v2991 = vpop.f32.mrf.mxu0
    %v2992 = vpop.f32.mrf.mxu0
    %2993 = vdwg.mxu0
    %2994 = vmatprep.subr.bf16.mxu0 %v1810
    %2995 = vmatpush1.bf16.msra.mxu0 %v1809
    %2996 = vmatprep.subr.bf16.mxu0 %v1806
    %2997 = vmatpush1.bf16.msra.mxu0 %v1805
    %2998 = vmatprep.subr.bf16.mxu0 %v1802
    %2999 = vmatpush1.bf16.msra.mxu0 %v1801
    %3000 = vmatprep.subr.bf16.mxu0 %v1798
    %3001 = vmatpush1.bf16.msra.mxu0 %v1797
    %3002 = vmatprep.subr.bf16.mxu0 %v1794
    %3003 = vmatpush1.bf16.msra.mxu0 %v1793
    %3004 = vmatprep.subr.bf16.mxu0 %v1790
    %3005 = vmatpush1.bf16.msra.mxu0 %v1789
    %3006 = vmatprep.subr.bf16.mxu0 %v1786
    %3007 = vmatpush1.bf16.msra.mxu0 %v1785
    %3008 = vmatprep.subr.bf16.mxu0 %v1782
    %3009 = vmatpush1.bf16.msra.mxu0 %v1781
    %3010 = vmatprep.subr.bf16.mxu0 0
    %3011 = vmatpush2.bf16.msra.mxu0 0
    %3012 = vmatprep.subr.bf16.mxu0 0
    %3013 = vmatpush2.bf16.msra.mxu0 0
    %3014 = vmatprep.subr.bf16.mxu0 0
    %3015 = vmatpush2.bf16.msra.mxu0 0
    %3016 = vmatprep.subr.bf16.mxu0 0
    %3017 = vmatpush2.bf16.msra.mxu0 0
    %3018 = vmatprep.subr.bf16.mxu0 0
    %3019 = vmatpush2.bf16.msra.mxu0 0
    %3020 = vmatprep.subr.bf16.mxu0 0
    %3021 = vmatpush2.bf16.msra.mxu0 0
    %3022 = vmatprep.subr.bf16.mxu0 0
    %3023 = vmatpush2.bf16.msra.mxu0 0
    %3024 = vmatprep.subr.bf16.mxu0 0
    %3025 = vmatpush2.bf16.msra.mxu0 0
    %3026 = vmatprep.mubr.bf16.mxu0 0
    %3027 = vmatmul.mubr.bf16.gmra.mxu0 %v2952
    %v3028 = vpop.f32.mrf.mxu0
    %v3029 = vadd.f32 0.0, %v3028
    %v3030 = vpop.f32.mrf.mxu0
    %v3031 = vadd.f32 0.0, %v3030
    %v3032 = vpop.f32.mrf.mxu0
    %v3033 = vpop.f32.mrf.mxu0
    %3034 = vdwg.mxu0
    %v3035 = vadd.f32 %v1271, %v2988
    %v3036 = vadd.f32 %v1273, %v2990
    %v3037 = vadd.f32 %v1344, %v3029
    %v3038 = vadd.f32 %v1346, %v3031
    %v3039 = vxor.u32 %v2948, 2147483648
    %v3040 = vmul.f32 %v3039, 1.442695
    %v3041 = vpow.pop %v3040
    %v3042 = vadd.f32 %v3041, 1.0
    %v3043 = vrcp.pop %v3042
    %v3044 = vmul.f32 1.0, %v3043
    %v3045 = vxor.u32 %v2949, 2147483648
    %v3046 = vmul.f32 %v3045, 1.442695
    %v3047 = vpow.pop %v3046
    %v3048 = vadd.f32 %v3047, 1.0
    %v3049 = vrcp.pop %v3048
    %v3050 = vmul.f32 1.0, %v3049
    %v3051 = vtanh.pop %v2950
    %v3052 = vxor.u32 %v2951, 2147483648
    %v3053 = vmul.f32 %v3052, 1.442695
    %v3054 = vpow.pop %v3053
    %v3055 = vadd.f32 %v3054, 1.0
    %v3056 = vrcp.pop %v3055
    %v3057 = vmul.f32 1.0, %v3056
    %v3058 = vmul.f32 %v3050, %v2838
    %v3059 = vmul.f32 %v3044, %v3051
    %v3060 = vadd.f32 %v3058, %v3059
    %v3061 = vtanh.pop %v3060
    %v3062 = vmul.f32 %v3057, %v3061
    %v3063 = vxor.u32 %v3035, 2147483648
    %v3064 = vmul.f32 %v3063, 1.442695
    %v3065 = vpow.pop %v3064
    %v3066 = vadd.f32 %v3065, 1.0
    %v3067 = vrcp.pop %v3066
    %v3068 = vmul.f32 1.0, %v3067
    %v3069 = vxor.u32 %v3036, 2147483648
    %v3070 = vmul.f32 %v3069, 1.442695
    %v3071 = vpow.pop %v3070
    %v3072 = vadd.f32 %v3071, 1.0
    %v3073 = vrcp.pop %v3072
    %v3074 = vmul.f32 1.0, %v3073
    %v3075 = vtanh.pop %v3037
    %v3076 = vxor.u32 %v3038, 2147483648
    %v3077 = vmul.f32 %v3076, 1.442695
    %v3078 = vpow.pop %v3077
    %v3079 = vadd.f32 %v3078, 1.0
    %v3080 = vrcp.pop %v3079
    %v3081 = vmul.f32 1.0, %v3080
    %v3082 = vmul.f32 %v3074, %v2862
    %v3083 = vmul.f32 %v3068, %v3075
    %v3084 = vadd.f32 %v3082, %v3083
    %v3085 = vtanh.pop %v3084
    %v3086 = vmul.f32 %v3081, %v3085
    %v3087 = vpack.c.bf16 %v3062, %v3062
    %3088 = vmatprep.subr.bf16.mxu0 %v1562
    %3089 = vmatpush1.bf16.msra.mxu0 %v1561
    %3090 = vmatprep.subr.bf16.mxu0 %v1558
    %3091 = vmatpush1.bf16.msra.mxu0 %v1557
    %3092 = vmatprep.subr.bf16.mxu0 %v1554
    %3093 = vmatpush1.bf16.msra.mxu0 %v1553
    %3094 = vmatprep.subr.bf16.mxu0 %v1550
    %3095 = vmatpush1.bf16.msra.mxu0 %v1549
    %3096 = vmatprep.subr.bf16.mxu0 %v1546
    %3097 = vmatpush1.bf16.msra.mxu0 %v1545
    %3098 = vmatprep.subr.bf16.mxu0 %v1542
    %3099 = vmatpush1.bf16.msra.mxu0 %v1541
    %3100 = vmatprep.subr.bf16.mxu0 %v1538
    %3101 = vmatpush1.bf16.msra.mxu0 %v1537
    %3102 = vmatprep.subr.bf16.mxu0 %v1534
    %3103 = vmatpush1.bf16.msra.mxu0 %v1533
    %3104 = vmatprep.subr.bf16.mxu0 0
    %3105 = vmatpush2.bf16.msra.mxu0 0
    %3106 = vmatprep.subr.bf16.mxu0 0
    %3107 = vmatpush2.bf16.msra.mxu0 0
    %3108 = vmatprep.subr.bf16.mxu0 0
    %3109 = vmatpush2.bf16.msra.mxu0 0
    %3110 = vmatprep.subr.bf16.mxu0 0
    %3111 = vmatpush2.bf16.msra.mxu0 0
    %3112 = vmatprep.subr.bf16.mxu0 0
    %3113 = vmatpush2.bf16.msra.mxu0 0
    %3114 = vmatprep.subr.bf16.mxu0 0
    %3115 = vmatpush2.bf16.msra.mxu0 0
    %3116 = vmatprep.subr.bf16.mxu0 0
    %3117 = vmatpush2.bf16.msra.mxu0 0
    %3118 = vmatprep.subr.bf16.mxu0 0
    %3119 = vmatpush2.bf16.msra.mxu0 0
    %3120 = vmatprep.mubr.bf16.mxu0 0
    %3121 = vmatmul.mubr.bf16.gmra.mxu0 %v3087
    %v3122 = vpop.f32.mrf.mxu0
    %v3123 = vadd.f32 0.0, %v3122
    %v3124 = vpop.f32.mrf.mxu0
    %v3125 = vadd.f32 0.0, %v3124
    %v3126 = vpop.f32.mrf.mxu0
    %v3127 = vpop.f32.mrf.mxu0
    %3128 = vdwg.mxu0
    %3129 = vmatprep.subr.bf16.mxu0 %v1564
    %3130 = vmatpush1.bf16.msra.mxu0 %v1563
    %3131 = vmatprep.subr.bf16.mxu0 %v1560
    %3132 = vmatpush1.bf16.msra.mxu0 %v1559
    %3133 = vmatprep.subr.bf16.mxu0 %v1556
    %3134 = vmatpush1.bf16.msra.mxu0 %v1555
    %3135 = vmatprep.subr.bf16.mxu0 %v1552
    %3136 = vmatpush1.bf16.msra.mxu0 %v1551
    %3137 = vmatprep.subr.bf16.mxu0 %v1548
    %3138 = vmatpush1.bf16.msra.mxu0 %v1547
    %3139 = vmatprep.subr.bf16.mxu0 %v1544
    %3140 = vmatpush1.bf16.msra.mxu0 %v1543
    %3141 = vmatprep.subr.bf16.mxu0 %v1540
    %3142 = vmatpush1.bf16.msra.mxu0 %v1539
    %3143 = vmatprep.subr.bf16.mxu0 %v1536
    %3144 = vmatpush1.bf16.msra.mxu0 %v1535
    %3145 = vmatprep.subr.bf16.mxu0 0
    %3146 = vmatpush2.bf16.msra.mxu0 0
    %3147 = vmatprep.subr.bf16.mxu0 0
    %3148 = vmatpush2.bf16.msra.mxu0 0
    %3149 = vmatprep.subr.bf16.mxu0 0
    %3150 = vmatpush2.bf16.msra.mxu0 0
    %3151 = vmatprep.subr.bf16.mxu0 0
    %3152 = vmatpush2.bf16.msra.mxu0 0
    %3153 = vmatprep.subr.bf16.mxu0 0
    %3154 = vmatpush2.bf16.msra.mxu0 0
    %3155 = vmatprep.subr.bf16.mxu0 0
    %3156 = vmatpush2.bf16.msra.mxu0 0
    %3157 = vmatprep.subr.bf16.mxu0 0
    %3158 = vmatpush2.bf16.msra.mxu0 0
    %3159 = vmatprep.subr.bf16.mxu0 0
    %3160 = vmatpush2.bf16.msra.mxu0 0
    %3161 = vmatprep.mubr.bf16.mxu0 0
    %3162 = vmatmul.mubr.bf16.gmra.mxu0 %v3087
    %v3163 = vpop.f32.mrf.mxu0
    %v3164 = vadd.f32 0.0, %v3163
    %v3165 = vpop.f32.mrf.mxu0
    %v3166 = vadd.f32 0.0, %v3165
    %v3167 = vpop.f32.mrf.mxu0
    %v3168 = vpop.f32.mrf.mxu0
    %3169 = vdwg.mxu0
    %v3170 = vadd.f32 %v1145, %v3123
    %v3171 = vadd.f32 %v1147, %v3125
    %v3172 = vadd.f32 %v1218, %v3164
    %v3173 = vadd.f32 %v1220, %v3166
    %v3174 = vpack.c.bf16 %v3086, %v3086
    %3175 = vmatprep.subr.bf16.mxu0 %v1808
    %3176 = vmatpush1.bf16.msra.mxu0 %v1807
    %3177 = vmatprep.subr.bf16.mxu0 %v1804
    %3178 = vmatpush1.bf16.msra.mxu0 %v1803
    %3179 = vmatprep.subr.bf16.mxu0 %v1800
    %3180 = vmatpush1.bf16.msra.mxu0 %v1799
    %3181 = vmatprep.subr.bf16.mxu0 %v1796
    %3182 = vmatpush1.bf16.msra.mxu0 %v1795
    %3183 = vmatprep.subr.bf16.mxu0 %v1792
    %3184 = vmatpush1.bf16.msra.mxu0 %v1791
    %3185 = vmatprep.subr.bf16.mxu0 %v1788
    %3186 = vmatpush1.bf16.msra.mxu0 %v1787
    %3187 = vmatprep.subr.bf16.mxu0 %v1784
    %3188 = vmatpush1.bf16.msra.mxu0 %v1783
    %3189 = vmatprep.subr.bf16.mxu0 %v1780
    %3190 = vmatpush1.bf16.msra.mxu0 %v1779
    %3191 = vmatprep.subr.bf16.mxu0 0
    %3192 = vmatpush2.bf16.msra.mxu0 0
    %3193 = vmatprep.subr.bf16.mxu0 0
    %3194 = vmatpush2.bf16.msra.mxu0 0
    %3195 = vmatprep.subr.bf16.mxu0 0
    %3196 = vmatpush2.bf16.msra.mxu0 0
    %3197 = vmatprep.subr.bf16.mxu0 0
    %3198 = vmatpush2.bf16.msra.mxu0 0
    %3199 = vmatprep.subr.bf16.mxu0 0
    %3200 = vmatpush2.bf16.msra.mxu0 0
    %3201 = vmatprep.subr.bf16.mxu0 0
    %3202 = vmatpush2.bf16.msra.mxu0 0
    %3203 = vmatprep.subr.bf16.mxu0 0
    %3204 = vmatpush2.bf16.msra.mxu0 0
    %3205 = vmatprep.subr.bf16.mxu0 0
    %3206 = vmatpush2.bf16.msra.mxu0 0
    %3207 = vmatprep.mubr.bf16.mxu0 0
    %3208 = vmatmul.mubr.bf16.gmra.mxu0 %v3174
    %v3209 = vpop.f32.mrf.mxu0
    %v3210 = vadd.f32 0.0, %v3209
    %v3211 = vpop.f32.mrf.mxu0
    %v3212 = vadd.f32 0.0, %v3211
    %v3213 = vpop.f32.mrf.mxu0
    %v3214 = vpop.f32.mrf.mxu0
    %3215 = vdwg.mxu0
    %3216 = vmatprep.subr.bf16.mxu0 %v1810
    %3217 = vmatpush1.bf16.msra.mxu0 %v1809
    %3218 = vmatprep.subr.bf16.mxu0 %v1806
    %3219 = vmatpush1.bf16.msra.mxu0 %v1805
    %3220 = vmatprep.subr.bf16.mxu0 %v1802
    %3221 = vmatpush1.bf16.msra.mxu0 %v1801
    %3222 = vmatprep.subr.bf16.mxu0 %v1798
    %3223 = vmatpush1.bf16.msra.mxu0 %v1797
    %3224 = vmatprep.subr.bf16.mxu0 %v1794
    %3225 = vmatpush1.bf16.msra.mxu0 %v1793
    %3226 = vmatprep.subr.bf16.mxu0 %v1790
    %3227 = vmatpush1.bf16.msra.mxu0 %v1789
    %3228 = vmatprep.subr.bf16.mxu0 %v1786
    %3229 = vmatpush1.bf16.msra.mxu0 %v1785
    %3230 = vmatprep.subr.bf16.mxu0 %v1782
    %3231 = vmatpush1.bf16.msra.mxu0 %v1781
    %3232 = vmatprep.subr.bf16.mxu0 0
    %3233 = vmatpush2.bf16.msra.mxu0 0
    %3234 = vmatprep.subr.bf16.mxu0 0
    %3235 = vmatpush2.bf16.msra.mxu0 0
    %3236 = vmatprep.subr.bf16.mxu0 0
    %3237 = vmatpush2.bf16.msra.mxu0 0
    %3238 = vmatprep.subr.bf16.mxu0 0
    %3239 = vmatpush2.bf16.msra.mxu0 0
    %3240 = vmatprep.subr.bf16.mxu0 0
    %3241 = vmatpush2.bf16.msra.mxu0 0
    %3242 = vmatprep.subr.bf16.mxu0 0
    %3243 = vmatpush2.bf16.msra.mxu0 0
    %3244 = vmatprep.subr.bf16.mxu0 0
    %3245 = vmatpush2.bf16.msra.mxu0 0
    %3246 = vmatprep.subr.bf16.mxu0 0
    %3247 = vmatpush2.bf16.msra.mxu0 0
    %3248 = vmatprep.mubr.bf16.mxu0 0
    %3249 = vmatmul.mubr.bf16.gmra.mxu0 %v3174
    %v3250 = vpop.f32.mrf.mxu0
    %v3251 = vadd.f32 0.0, %v3250
    %v3252 = vpop.f32.mrf.mxu0
    %v3253 = vadd.f32 0.0, %v3252
    %v3254 = vpop.f32.mrf.mxu0
    %v3255 = vpop.f32.mrf.mxu0
    %3256 = vdwg.mxu0
    %v3257 = vadd.f32 %v1265, %v3210
    %v3258 = vadd.f32 %v1267, %v3212
    %v3259 = vadd.f32 %v1338, %v3251
    %v3260 = vadd.f32 %v1340, %v3253
    %v3261 = vxor.u32 %v3170, 2147483648
    %v3262 = vmul.f32 %v3261, 1.442695
    %v3263 = vpow.pop %v3262
    %v3264 = vadd.f32 %v3263, 1.0
    %v3265 = vrcp.pop %v3264
    %v3266 = vmul.f32 1.0, %v3265
    %v3267 = vxor.u32 %v3171, 2147483648
    %v3268 = vmul.f32 %v3267, 1.442695
    %v3269 = vpow.pop %v3268
    %v3270 = vadd.f32 %v3269, 1.0
    %v3271 = vrcp.pop %v3270
    %v3272 = vmul.f32 1.0, %v3271
    %v3273 = vtanh.pop %v3172
    %v3274 = vxor.u32 %v3173, 2147483648
    %v3275 = vmul.f32 %v3274, 1.442695
    %v3276 = vpow.pop %v3275
    %v3277 = vadd.f32 %v3276, 1.0
    %v3278 = vrcp.pop %v3277
    %v3279 = vmul.f32 1.0, %v3278
    %v3280 = vmul.f32 %v3272, %v3060
    %v3281 = vmul.f32 %v3266, %v3273
    %v3282 = vadd.f32 %v3280, %v3281
    %v3283 = vtanh.pop %v3282
    %v3284 = vmul.f32 %v3279, %v3283
    %v3285 = vxor.u32 %v3257, 2147483648
    %v3286 = vmul.f32 %v3285, 1.442695
    %v3287 = vpow.pop %v3286
    %v3288 = vadd.f32 %v3287, 1.0
    %v3289 = vrcp.pop %v3288
    %v3290 = vmul.f32 1.0, %v3289
    %v3291 = vxor.u32 %v3258, 2147483648
    %v3292 = vmul.f32 %v3291, 1.442695
    %v3293 = vpow.pop %v3292
    %v3294 = vadd.f32 %v3293, 1.0
    %v3295 = vrcp.pop %v3294
    %v3296 = vmul.f32 1.0, %v3295
    %v3297 = vtanh.pop %v3259
    %v3298 = vxor.u32 %v3260, 2147483648
    %v3299 = vmul.f32 %v3298, 1.442695
    %v3300 = vpow.pop %v3299
    %v3301 = vadd.f32 %v3300, 1.0
    %v3302 = vrcp.pop %v3301
    %v3303 = vmul.f32 1.0, %v3302
    %v3304 = vmul.f32 %v3296, %v3084
    %v3305 = vmul.f32 %v3290, %v3297
    %v3306 = vadd.f32 %v3304, %v3305
    %v3307 = vtanh.pop %v3306
    %v3308 = vmul.f32 %v3303, %v3307
    %v3309 = vpack.c.bf16 %v3284, %v3284
    %3310 = vmatprep.subr.bf16.mxu0 %v1562
    %3311 = vmatpush1.bf16.msra.mxu0 %v1561
    %3312 = vmatprep.subr.bf16.mxu0 %v1558
    %3313 = vmatpush1.bf16.msra.mxu0 %v1557
    %3314 = vmatprep.subr.bf16.mxu0 %v1554
    %3315 = vmatpush1.bf16.msra.mxu0 %v1553
    %3316 = vmatprep.subr.bf16.mxu0 %v1550
    %3317 = vmatpush1.bf16.msra.mxu0 %v1549
    %3318 = vmatprep.subr.bf16.mxu0 %v1546
    %3319 = vmatpush1.bf16.msra.mxu0 %v1545
    %3320 = vmatprep.subr.bf16.mxu0 %v1542
    %3321 = vmatpush1.bf16.msra.mxu0 %v1541
    %3322 = vmatprep.subr.bf16.mxu0 %v1538
    %3323 = vmatpush1.bf16.msra.mxu0 %v1537
    %3324 = vmatprep.subr.bf16.mxu0 %v1534
    %3325 = vmatpush1.bf16.msra.mxu0 %v1533
    %3326 = vmatprep.subr.bf16.mxu0 0
    %3327 = vmatpush2.bf16.msra.mxu0 0
    %3328 = vmatprep.subr.bf16.mxu0 0
    %3329 = vmatpush2.bf16.msra.mxu0 0
    %3330 = vmatprep.subr.bf16.mxu0 0
    %3331 = vmatpush2.bf16.msra.mxu0 0
    %3332 = vmatprep.subr.bf16.mxu0 0
    %3333 = vmatpush2.bf16.msra.mxu0 0
    %3334 = vmatprep.subr.bf16.mxu0 0
    %3335 = vmatpush2.bf16.msra.mxu0 0
    %3336 = vmatprep.subr.bf16.mxu0 0
    %3337 = vmatpush2.bf16.msra.mxu0 0
    %3338 = vmatprep.subr.bf16.mxu0 0
    %3339 = vmatpush2.bf16.msra.mxu0 0
    %3340 = vmatprep.subr.bf16.mxu0 0
    %3341 = vmatpush2.bf16.msra.mxu0 0
    %3342 = vmatprep.mubr.bf16.mxu0 0
    %3343 = vmatmul.mubr.bf16.gmra.mxu0 %v3309
    %v3344 = vpop.f32.mrf.mxu0
    %v3345 = vadd.f32 0.0, %v3344
    %v3346 = vpop.f32.mrf.mxu0
    %v3347 = vadd.f32 0.0, %v3346
    %v3348 = vpop.f32.mrf.mxu0
    %v3349 = vpop.f32.mrf.mxu0
    %3350 = vdwg.mxu0
    %3351 = vmatprep.subr.bf16.mxu0 %v1564
    %3352 = vmatpush1.bf16.msra.mxu0 %v1563
    %3353 = vmatprep.subr.bf16.mxu0 %v1560
    %3354 = vmatpush1.bf16.msra.mxu0 %v1559
    %3355 = vmatprep.subr.bf16.mxu0 %v1556
    %3356 = vmatpush1.bf16.msra.mxu0 %v1555
    %3357 = vmatprep.subr.bf16.mxu0 %v1552
    %3358 = vmatpush1.bf16.msra.mxu0 %v1551
    %3359 = vmatprep.subr.bf16.mxu0 %v1548
    %3360 = vmatpush1.bf16.msra.mxu0 %v1547
    %3361 = vmatprep.subr.bf16.mxu0 %v1544
    %3362 = vmatpush1.bf16.msra.mxu0 %v1543
    %3363 = vmatprep.subr.bf16.mxu0 %v1540
    %3364 = vmatpush1.bf16.msra.mxu0 %v1539
    %3365 = vmatprep.subr.bf16.mxu0 %v1536
    %3366 = vmatpush1.bf16.msra.mxu0 %v1535
    %3367 = vmatprep.subr.bf16.mxu0 0
    %3368 = vmatpush2.bf16.msra.mxu0 0
    %3369 = vmatprep.subr.bf16.mxu0 0
    %3370 = vmatpush2.bf16.msra.mxu0 0
    %3371 = vmatprep.subr.bf16.mxu0 0
    %3372 = vmatpush2.bf16.msra.mxu0 0
    %3373 = vmatprep.subr.bf16.mxu0 0
    %3374 = vmatpush2.bf16.msra.mxu0 0
    %3375 = vmatprep.subr.bf16.mxu0 0
    %3376 = vmatpush2.bf16.msra.mxu0 0
    %3377 = vmatprep.subr.bf16.mxu0 0
    %3378 = vmatpush2.bf16.msra.mxu0 0
    %3379 = vmatprep.subr.bf16.mxu0 0
    %3380 = vmatpush2.bf16.msra.mxu0 0
    %3381 = vmatprep.subr.bf16.mxu0 0
    %3382 = vmatpush2.bf16.msra.mxu0 0
    %3383 = vmatprep.mubr.bf16.mxu0 0
    %3384 = vmatmul.mubr.bf16.gmra.mxu0 %v3309
    %v3385 = vpop.f32.mrf.mxu0
    %v3386 = vadd.f32 0.0, %v3385
    %v3387 = vpop.f32.mrf.mxu0
    %v3388 = vadd.f32 0.0, %v3387
    %v3389 = vpop.f32.mrf.mxu0
    %v3390 = vpop.f32.mrf.mxu0
    %3391 = vdwg.mxu0
    %v3392 = vadd.f32 %v1149, %v3345
    %v3393 = vadd.f32 %v1151, %v3347
    %v3394 = vadd.f32 %v1222, %v3386
    %v3395 = vadd.f32 %v1224, %v3388
    %v3396 = vpack.c.bf16 %v3308, %v3308
    %3397 = vmatprep.subr.bf16.mxu0 %v1808
    %3398 = vmatpush1.bf16.msra.mxu0 %v1807
    %3399 = vmatprep.subr.bf16.mxu0 %v1804
    %3400 = vmatpush1.bf16.msra.mxu0 %v1803
    %3401 = vmatprep.subr.bf16.mxu0 %v1800
    %3402 = vmatpush1.bf16.msra.mxu0 %v1799
    %3403 = vmatprep.subr.bf16.mxu0 %v1796
    %3404 = vmatpush1.bf16.msra.mxu0 %v1795
    %3405 = vmatprep.subr.bf16.mxu0 %v1792
    %3406 = vmatpush1.bf16.msra.mxu0 %v1791
    %3407 = vmatprep.subr.bf16.mxu0 %v1788
    %3408 = vmatpush1.bf16.msra.mxu0 %v1787
    %3409 = vmatprep.subr.bf16.mxu0 %v1784
    %3410 = vmatpush1.bf16.msra.mxu0 %v1783
    %3411 = vmatprep.subr.bf16.mxu0 %v1780
    %3412 = vmatpush1.bf16.msra.mxu0 %v1779
    %3413 = vmatprep.subr.bf16.mxu0 0
    %3414 = vmatpush2.bf16.msra.mxu0 0
    %3415 = vmatprep.subr.bf16.mxu0 0
    %3416 = vmatpush2.bf16.msra.mxu0 0
    %3417 = vmatprep.subr.bf16.mxu0 0
    %3418 = vmatpush2.bf16.msra.mxu0 0
    %3419 = vmatprep.subr.bf16.mxu0 0
    %3420 = vmatpush2.bf16.msra.mxu0 0
    %3421 = vmatprep.subr.bf16.mxu0 0
    %3422 = vmatpush2.bf16.msra.mxu0 0
    %3423 = vmatprep.subr.bf16.mxu0 0
    %3424 = vmatpush2.bf16.msra.mxu0 0
    %3425 = vmatprep.subr.bf16.mxu0 0
    %3426 = vmatpush2.bf16.msra.mxu0 0
    %3427 = vmatprep.subr.bf16.mxu0 0
    %3428 = vmatpush2.bf16.msra.mxu0 0
    %3429 = vmatprep.mubr.bf16.mxu0 0
    %3430 = vmatmul.mubr.bf16.gmra.mxu0 %v3396
    %v3431 = vpop.f32.mrf.mxu0
    %v3432 = vadd.f32 0.0, %v3431
    %v3433 = vpop.f32.mrf.mxu0
    %v3434 = vadd.f32 0.0, %v3433
    %v3435 = vpop.f32.mrf.mxu0
    %v3436 = vpop.f32.mrf.mxu0
    %3437 = vdwg.mxu0
    %3438 = vmatprep.subr.bf16.mxu0 %v1810
    %3439 = vmatpush1.bf16.msra.mxu0 %v1809
    %3440 = vmatprep.subr.bf16.mxu0 %v1806
    %3441 = vmatpush1.bf16.msra.mxu0 %v1805
    %3442 = vmatprep.subr.bf16.mxu0 %v1802
    %3443 = vmatpush1.bf16.msra.mxu0 %v1801
    %3444 = vmatprep.subr.bf16.mxu0 %v1798
    %3445 = vmatpush1.bf16.msra.mxu0 %v1797
    %3446 = vmatprep.subr.bf16.mxu0 %v1794
    %3447 = vmatpush1.bf16.msra.mxu0 %v1793
    %3448 = vmatprep.subr.bf16.mxu0 %v1790
    %3449 = vmatpush1.bf16.msra.mxu0 %v1789
    %3450 = vmatprep.subr.bf16.mxu0 %v1786
    %3451 = vmatpush1.bf16.msra.mxu0 %v1785
    %3452 = vmatprep.subr.bf16.mxu0 %v1782
    %3453 = vmatpush1.bf16.msra.mxu0 %v1781
    %3454 = vmatprep.subr.bf16.mxu0 0
    %3455 = vmatpush2.bf16.msra.mxu0 0
    %3456 = vmatprep.subr.bf16.mxu0 0
    %3457 = vmatpush2.bf16.msra.mxu0 0
    %3458 = vmatprep.subr.bf16.mxu0 0
    %3459 = vmatpush2.bf16.msra.mxu0 0
    %3460 = vmatprep.subr.bf16.mxu0 0
    %3461 = vmatpush2.bf16.msra.mxu0 0
    %3462 = vmatprep.subr.bf16.mxu0 0
    %3463 = vmatpush2.bf16.msra.mxu0 0
    %3464 = vmatprep.subr.bf16.mxu0 0
    %3465 = vmatpush2.bf16.msra.mxu0 0
    %3466 = vmatprep.subr.bf16.mxu0 0
    %3467 = vmatpush2.bf16.msra.mxu0 0
    %3468 = vmatprep.subr.bf16.mxu0 0
    %3469 = vmatpush2.bf16.msra.mxu0 0
    %3470 = vmatprep.mubr.bf16.mxu0 0
    %3471 = vmatmul.mubr.bf16.gmra.mxu0 %v3396
    %v3472 = vpop.f32.mrf.mxu0
    %v3473 = vadd.f32 0.0, %v3472
    %v3474 = vpop.f32.mrf.mxu0
    %v3475 = vadd.f32 0.0, %v3474
    %v3476 = vpop.f32.mrf.mxu0
    %v3477 = vpop.f32.mrf.mxu0
    %3478 = vdwg.mxu0
    %v3479 = vadd.f32 %v1261, %v3432
    %v3480 = vadd.f32 %v1263, %v3434
    %v3481 = vadd.f32 %v1334, %v3473
    %v3482 = vadd.f32 %v1336, %v3475
    %v3483 = vxor.u32 %v3392, 2147483648
    %v3484 = vmul.f32 %v3483, 1.442695
    %v3485 = vpow.pop %v3484
    %v3486 = vadd.f32 %v3485, 1.0
    %v3487 = vrcp.pop %v3486
    %v3488 = vmul.f32 1.0, %v3487
    %v3489 = vxor.u32 %v3393, 2147483648
    %v3490 = vmul.f32 %v3489, 1.442695
    %v3491 = vpow.pop %v3490
    %v3492 = vadd.f32 %v3491, 1.0
    %v3493 = vrcp.pop %v3492
    %v3494 = vmul.f32 1.0, %v3493
    %v3495 = vtanh.pop %v3394
    %v3496 = vxor.u32 %v3395, 2147483648
    %v3497 = vmul.f32 %v3496, 1.442695
    %v3498 = vpow.pop %v3497
    %v3499 = vadd.f32 %v3498, 1.0
    %v3500 = vrcp.pop %v3499
    %v3501 = vmul.f32 1.0, %v3500
    %v3502 = vmul.f32 %v3494, %v3282
    %v3503 = vmul.f32 %v3488, %v3495
    %v3504 = vadd.f32 %v3502, %v3503
    %v3505 = vtanh.pop %v3504
    %v3506 = vmul.f32 %v3501, %v3505
    %v3507 = vxor.u32 %v3479, 2147483648
    %v3508 = vmul.f32 %v3507, 1.442695
    %v3509 = vpow.pop %v3508
    %v3510 = vadd.f32 %v3509, 1.0
    %v3511 = vrcp.pop %v3510
    %v3512 = vmul.f32 1.0, %v3511
    %v3513 = vxor.u32 %v3480, 2147483648
    %v3514 = vmul.f32 %v3513, 1.442695
    %v3515 = vpow.pop %v3514
    %v3516 = vadd.f32 %v3515, 1.0
    %v3517 = vrcp.pop %v3516
    %v3518 = vmul.f32 1.0, %v3517
    %v3519 = vtanh.pop %v3481
    %v3520 = vxor.u32 %v3482, 2147483648
    %v3521 = vmul.f32 %v3520, 1.442695
    %v3522 = vpow.pop %v3521
    %v3523 = vadd.f32 %v3522, 1.0
    %v3524 = vrcp.pop %v3523
    %v3525 = vmul.f32 1.0, %v3524
    %v3526 = vmul.f32 %v3518, %v3306
    %v3527 = vmul.f32 %v3512, %v3519
    %v3528 = vadd.f32 %v3526, %v3527
    %v3529 = vtanh.pop %v3528
    %v3530 = vmul.f32 %v3525, %v3529
    %v3531 = vpack.c.bf16 %v2174, %v1952
    %v3532 = vpack.c.bf16 %v3308, %v3530
    %v3533 = vpack.c.bf16 %v2618, %v2396
    %v3534 = vpack.c.bf16 %v2864, %v3086
    %v3535 = vpack.c.bf16 %v3062, %v2840
    %v3536 = vpack.c.bf16 %v2420, %v2642
    %v3537 = vpack.c.bf16 %v3506, %v3284
    %v3538 = vpack.c.bf16 %v1976, %v2198
    %v3539 = vld [vmem:[#allocation7] sm:$0xff]
    %v3540 = vld [vmem:[#allocation7 + $0x8] sm:$0xff]
    %v3541 = vld [vmem:[#allocation7 + $0x10] sm:$0xff]
    %v3542 = vld [vmem:[#allocation7 + $0x18] sm:$0xff]
    %v3543 = vld [vmem:[#allocation7 + $0x20] sm:$0xff]
    %v3544 = vld [vmem:[#allocation7 + $0x28] sm:$0xff]
    %v3545 = vld [vmem:[#allocation7 + $0x30] sm:$0xff]
    %v3546 = vld [vmem:[#allocation7 + $0x38] sm:$0xff]
    %v3547 = vld [vmem:[#allocation7 + $0x40] sm:$0xff]
    %v3548 = vld [vmem:[#allocation7 + $0x48] sm:$0xff]
    %v3549 = vld [vmem:[#allocation7 + $0x50] sm:$0xff]
    %v3550 = vld [vmem:[#allocation7 + $0x58] sm:$0xff]
    %v3551 = vld [vmem:[#allocation7 + $0x60] sm:$0xff]
    %v3552 = vld [vmem:[#allocation7 + $0x68] sm:$0xff]
    %v3553 = vld [vmem:[#allocation7 + $0x70] sm:$0xff]
    %v3554 = vld [vmem:[#allocation7 + $0x78] sm:$0xff]
    %v3555 = vld [vmem:[#allocation7 + $0x80] sm:$0xff]
    %v3556 = vld [vmem:[#allocation7 + $0x88] sm:$0xff]
    %v3557 = vld [vmem:[#allocation7 + $0x90] sm:$0xff]
    %v3558 = vld [vmem:[#allocation7 + $0x98] sm:$0xff]
    %v3559 = vld [vmem:[#allocation7 + $0xa0] sm:$0xff]
    %v3560 = vld [vmem:[#allocation7 + $0xa8] sm:$0xff]
    %v3561 = vld [vmem:[#allocation7 + $0xb0] sm:$0xff]
    %v3562 = vld [vmem:[#allocation7 + $0xb8] sm:$0xff]
    %v3563 = vld [vmem:[#allocation7 + $0xc0] sm:$0xff]
    %v3564 = vld [vmem:[#allocation7 + $0xc8] sm:$0xff]
    %v3565 = vld [vmem:[#allocation7 + $0xd0] sm:$0xff]
    %v3566 = vld [vmem:[#allocation7 + $0xd8] sm:$0xff]
    %v3567 = vld [vmem:[#allocation7 + $0xe0] sm:$0xff]
    %v3568 = vld [vmem:[#allocation7 + $0xe8] sm:$0xff]
    %v3569 = vld [vmem:[#allocation7 + $0xf0] sm:$0xff]
    %v3570 = vld [vmem:[#allocation7 + $0xf8] sm:$0xff]
    %v3571 = vld [vmem:[#allocation7 + $0x100] sm:$0xff]
    %v3572 = vld [vmem:[#allocation7 + $0x108] sm:$0xff]
    %v3573 = vld [vmem:[#allocation7 + $0x110] sm:$0xff]
    %v3574 = vld [vmem:[#allocation7 + $0x118] sm:$0xff]
    %v3575 = vld [vmem:[#allocation7 + $0x120] sm:$0xff]
    %v3576 = vld [vmem:[#allocation7 + $0x128] sm:$0xff]
    %v3577 = vld [vmem:[#allocation7 + $0x130] sm:$0xff]
    %v3578 = vld [vmem:[#allocation7 + $0x138] sm:$0xff]
    %v3579 = vld [vmem:[#allocation7 + $0x140] sm:$0xff]
    %v3580 = vld [vmem:[#allocation7 + $0x148] sm:$0xff]
    %v3581 = vld [vmem:[#allocation7 + $0x150] sm:$0xff]
    %v3582 = vld [vmem:[#allocation7 + $0x158] sm:$0xff]
    %v3583 = vld [vmem:[#allocation7 + $0x160] sm:$0xff]
    %v3584 = vld [vmem:[#allocation7 + $0x168] sm:$0xff]
    %v3585 = vld [vmem:[#allocation7 + $0x170] sm:$0xff]
    %v3586 = vld [vmem:[#allocation7 + $0x178] sm:$0xff]
    %v3587 = vld [vmem:[#allocation7 + $0x180] sm:$0xff]
    %v3588 = vld [vmem:[#allocation7 + $0x188] sm:$0xff]
    %v3589 = vld [vmem:[#allocation7 + $0x190] sm:$0xff]
    %v3590 = vld [vmem:[#allocation7 + $0x198] sm:$0xff]
    %v3591 = vld [vmem:[#allocation7 + $0x1a0] sm:$0xff]
    %v3592 = vld [vmem:[#allocation7 + $0x1a8] sm:$0xff]
    %v3593 = vld [vmem:[#allocation7 + $0x1b0] sm:$0xff]
    %v3594 = vld [vmem:[#allocation7 + $0x1b8] sm:$0xff]
    %v3595 = vld [vmem:[#allocation7 + $0x1c0] sm:$0xff]
    %v3596 = vld [vmem:[#allocation7 + $0x1c8] sm:$0xff]
    %v3597 = vld [vmem:[#allocation7 + $0x1d0] sm:$0xff]
    %v3598 = vld [vmem:[#allocation7 + $0x1d8] sm:$0xff]
    %v3599 = vld [vmem:[#allocation7 + $0x1e0] sm:$0xff]
    %v3600 = vld [vmem:[#allocation7 + $0x1e8] sm:$0xff]
    %v3601 = vld [vmem:[#allocation7 + $0x1f0] sm:$0xff]
    %v3602 = vld [vmem:[#allocation7 + $0x1f8] sm:$0xff]
    %v3603 = vld [vmem:[#allocation7 + $0x200] sm:$0xff]
    %v3604 = vld [vmem:[#allocation7 + $0x208] sm:$0xff]
    %v3605 = vld [vmem:[#allocation7 + $0x210] sm:$0xff]
    %v3606 = vld [vmem:[#allocation7 + $0x218] sm:$0xff]
    %v3607 = vld [vmem:[#allocation7 + $0x220] sm:$0xff]
    %v3608 = vld [vmem:[#allocation7 + $0x228] sm:$0xff]
    %v3609 = vld [vmem:[#allocation7 + $0x230] sm:$0xff]
    %v3610 = vld [vmem:[#allocation7 + $0x238] sm:$0xff]
    %v3611 = vld [vmem:[#allocation7 + $0x240] sm:$0xff]
    %v3612 = vld [vmem:[#allocation7 + $0x248] sm:$0xff]
    %v3613 = vld [vmem:[#allocation7 + $0x250] sm:$0xff]
    %v3614 = vld [vmem:[#allocation7 + $0x258] sm:$0xff]
    %v3615 = vld [vmem:[#allocation7 + $0x260] sm:$0xff]
    %v3616 = vld [vmem:[#allocation7 + $0x268] sm:$0xff]
    %v3617 = vld [vmem:[#allocation7 + $0x270] sm:$0xff]
    %v3618 = vld [vmem:[#allocation7 + $0x278] sm:$0xff]
    %v3619 = vld [vmem:[#allocation7 + $0x280] sm:$0xff]
    %v3620 = vld [vmem:[#allocation7 + $0x288] sm:$0xff]
    %v3621 = vld [vmem:[#allocation7 + $0x290] sm:$0xff]
    %v3622 = vld [vmem:[#allocation7 + $0x298] sm:$0xff]
    %v3623 = vld [vmem:[#allocation7 + $0x2a0] sm:$0xff]
    %v3624 = vld [vmem:[#allocation7 + $0x2a8] sm:$0xff]
    %v3625 = vld [vmem:[#allocation7 + $0x2b0] sm:$0xff]
    %v3626 = vld [vmem:[#allocation7 + $0x2b8] sm:$0xff]
    %v3627 = vld [vmem:[#allocation7 + $0x2c0] sm:$0xff]
    %v3628 = vld [vmem:[#allocation7 + $0x2c8] sm:$0xff]
    %v3629 = vld [vmem:[#allocation7 + $0x2d0] sm:$0xff]
    %v3630 = vld [vmem:[#allocation7 + $0x2d8] sm:$0xff]
    %v3631 = vld [vmem:[#allocation7 + $0x2e0] sm:$0xff]
    %v3632 = vld [vmem:[#allocation7 + $0x2e8] sm:$0xff]
    %v3633 = vld [vmem:[#allocation7 + $0x2f0] sm:$0xff]
    %v3634 = vld [vmem:[#allocation7 + $0x2f8] sm:$0xff]
    %v3635 = vld [vmem:[#allocation7 + $0x300] sm:$0xff]
    %v3636 = vld [vmem:[#allocation7 + $0x308] sm:$0xff]
    %v3637 = vld [vmem:[#allocation7 + $0x310] sm:$0xff]
    %v3638 = vld [vmem:[#allocation7 + $0x318] sm:$0xff]
    %v3639 = vld [vmem:[#allocation7 + $0x320] sm:$0xff]
    %v3640 = vld [vmem:[#allocation7 + $0x328] sm:$0xff]
    %v3641 = vld [vmem:[#allocation7 + $0x330] sm:$0xff]
    %v3642 = vld [vmem:[#allocation7 + $0x338] sm:$0xff]
    %v3643 = vld [vmem:[#allocation7 + $0x340] sm:$0xff]
    %v3644 = vld [vmem:[#allocation7 + $0x348] sm:$0xff]
    %v3645 = vld [vmem:[#allocation7 + $0x350] sm:$0xff]
    %v3646 = vld [vmem:[#allocation7 + $0x358] sm:$0xff]
    %v3647 = vld [vmem:[#allocation7 + $0x360] sm:$0xff]
    %v3648 = vld [vmem:[#allocation7 + $0x368] sm:$0xff]
    %v3649 = vld [vmem:[#allocation7 + $0x370] sm:$0xff]
    %v3650 = vld [vmem:[#allocation7 + $0x378] sm:$0xff]
    %v3651 = vld [vmem:[#allocation7 + $0x380] sm:$0xff]
    %v3652 = vld [vmem:[#allocation7 + $0x388] sm:$0xff]
    %v3653 = vld [vmem:[#allocation7 + $0x390] sm:$0xff]
    %v3654 = vld [vmem:[#allocation7 + $0x398] sm:$0xff]
    %v3655 = vld [vmem:[#allocation7 + $0x3a0] sm:$0xff]
    %v3656 = vld [vmem:[#allocation7 + $0x3a8] sm:$0xff]
    %v3657 = vld [vmem:[#allocation7 + $0x3b0] sm:$0xff]
    %v3658 = vld [vmem:[#allocation7 + $0x3b8] sm:$0xff]
    %v3659 = vld [vmem:[#allocation7 + $0x3c0] sm:$0xff]
    %v3660 = vld [vmem:[#allocation7 + $0x3c8] sm:$0xff]
    %v3661 = vld [vmem:[#allocation7 + $0x3d0] sm:$0xff]
    %v3662 = vld [vmem:[#allocation7 + $0x3d8] sm:$0xff]
    %v3663 = vld [vmem:[#allocation7 + $0x3e0] sm:$0xff]
    %v3664 = vld [vmem:[#allocation7 + $0x3e8] sm:$0xff]
    %v3665 = vld [vmem:[#allocation7 + $0x3f0] sm:$0xff]
    %v3666 = vld [vmem:[#allocation7 + $0x3f8] sm:$0xff]
    %v3667 = vld [vmem:[#allocation10] sm:$0xff]
    %v3669 = vlaneseq
    %v3670 = vshrl.u32 %v3669, 7
    %v3671 = vsub.s32 0, %v3670
    %v3672 = vrot.slane %v3667, %v3671
    %v3673 = vlaneseq
    %v3674 = vshrl.u32 %v3673, 7
    %v3675 = vsub.s32 1, %v3674
    %v3676 = vrot.slane %v3667, %v3675
    %v3677 = vlaneseq
    %v3678 = vshrl.u32 %v3677, 7
    %v3679 = vsub.s32 2, %v3678
    %v3680 = vrot.slane %v3667, %v3679
    %v3681 = vlaneseq
    %v3682 = vshrl.u32 %v3681, 7
    %v3683 = vsub.s32 3, %v3682
    %v3684 = vrot.slane %v3667, %v3683
    %v3685 = vlaneseq
    %v3686 = vshrl.u32 %v3685, 7
    %v3687 = vsub.s32 4, %v3686
    %v3688 = vrot.slane %v3667, %v3687
    %v3689 = vlaneseq
    %v3690 = vshrl.u32 %v3689, 7
    %v3691 = vsub.s32 5, %v3690
    %v3692 = vrot.slane %v3667, %v3691
    %v3693 = vlaneseq
    %v3694 = vshrl.u32 %v3693, 7
    %v3695 = vsub.s32 6, %v3694
    %v3696 = vrot.slane %v3667, %v3695
    %v3697 = vlaneseq
    %v3698 = vshrl.u32 %v3697, 7
    %v3699 = vsub.s32 7, %v3698
    %v3700 = vrot.slane %v3667, %v3699
    %v3837 = vunpack.c.l.b16 %v3539
    %v3838 = vunpack.c.h.b16 %v3539
    %v3839 = vunpack.c.l.b16 %v3540
    %v3840 = vunpack.c.h.b16 %v3540
    %v3841 = vunpack.c.l.b16 %v3541
    %v3842 = vunpack.c.h.b16 %v3541
    %v3843 = vunpack.c.l.b16 %v3542
    %v3844 = vunpack.c.h.b16 %v3542
    %v3845 = vunpack.c.l.b16 %v3543
    %v3846 = vunpack.c.h.b16 %v3543
    %v3847 = vunpack.c.l.b16 %v3544
    %v3848 = vunpack.c.h.b16 %v3544
    %v3849 = vunpack.c.l.b16 %v3545
    %v3850 = vunpack.c.h.b16 %v3545
    %v3851 = vunpack.c.l.b16 %v3546
    %v3852 = vunpack.c.h.b16 %v3546
    %v3853 = vunpack.c.l.b16 %v3547
    %v3854 = vunpack.c.h.b16 %v3547
    %v3855 = vunpack.c.l.b16 %v3548
    %v3856 = vunpack.c.h.b16 %v3548
    %v3857 = vunpack.c.l.b16 %v3549
    %v3858 = vunpack.c.h.b16 %v3549
    %v3859 = vunpack.c.l.b16 %v3550
    %v3860 = vunpack.c.h.b16 %v3550
    %v3861 = vunpack.c.l.b16 %v3551
    %v3862 = vunpack.c.h.b16 %v3551
    %v3863 = vunpack.c.l.b16 %v3552
    %v3864 = vunpack.c.h.b16 %v3552
    %v3865 = vunpack.c.l.b16 %v3553
    %v3866 = vunpack.c.h.b16 %v3553
    %v3867 = vunpack.c.l.b16 %v3554
    %v3868 = vunpack.c.h.b16 %v3554
    %v3869 = vunpack.c.l.b16 %v3555
    %v3870 = vunpack.c.h.b16 %v3555
    %v3871 = vunpack.c.l.b16 %v3556
    %v3872 = vunpack.c.h.b16 %v3556
    %v3873 = vunpack.c.l.b16 %v3557
    %v3874 = vunpack.c.h.b16 %v3557
    %v3875 = vunpack.c.l.b16 %v3558
    %v3876 = vunpack.c.h.b16 %v3558
    %v3877 = vunpack.c.l.b16 %v3559
    %v3878 = vunpack.c.h.b16 %v3559
    %v3879 = vunpack.c.l.b16 %v3560
    %v3880 = vunpack.c.h.b16 %v3560
    %v3881 = vunpack.c.l.b16 %v3561
    %v3882 = vunpack.c.h.b16 %v3561
    %v3883 = vunpack.c.l.b16 %v3562
    %v3884 = vunpack.c.h.b16 %v3562
    %v3885 = vunpack.c.l.b16 %v3563
    %v3886 = vunpack.c.h.b16 %v3563
    %v3887 = vunpack.c.l.b16 %v3564
    %v3888 = vunpack.c.h.b16 %v3564
    %v3889 = vunpack.c.l.b16 %v3565
    %v3890 = vunpack.c.h.b16 %v3565
    %v3891 = vunpack.c.l.b16 %v3566
    %v3892 = vunpack.c.h.b16 %v3566
    %v3893 = vunpack.c.l.b16 %v3567
    %v3894 = vunpack.c.h.b16 %v3567
    %v3895 = vunpack.c.l.b16 %v3568
    %v3896 = vunpack.c.h.b16 %v3568
    %v3897 = vunpack.c.l.b16 %v3569
    %v3898 = vunpack.c.h.b16 %v3569
    %v3899 = vunpack.c.l.b16 %v3570
    %v3900 = vunpack.c.h.b16 %v3570
    %v3901 = vunpack.c.l.b16 %v3571
    %v3902 = vunpack.c.h.b16 %v3571
    %v3903 = vunpack.c.l.b16 %v3572
    %v3904 = vunpack.c.h.b16 %v3572
    %v3905 = vunpack.c.l.b16 %v3573
    %v3906 = vunpack.c.h.b16 %v3573
    %v3907 = vunpack.c.l.b16 %v3574
    %v3908 = vunpack.c.h.b16 %v3574
    %v3909 = vunpack.c.l.b16 %v3575
    %v3910 = vunpack.c.h.b16 %v3575
    %v3911 = vunpack.c.l.b16 %v3576
    %v3912 = vunpack.c.h.b16 %v3576
    %v3913 = vunpack.c.l.b16 %v3577
    %v3914 = vunpack.c.h.b16 %v3577
    %v3915 = vunpack.c.l.b16 %v3578
    %v3916 = vunpack.c.h.b16 %v3578
    %v3917 = vunpack.c.l.b16 %v3579
    %v3918 = vunpack.c.h.b16 %v3579
    %v3919 = vunpack.c.l.b16 %v3580
    %v3920 = vunpack.c.h.b16 %v3580
    %v3921 = vunpack.c.l.b16 %v3581
    %v3922 = vunpack.c.h.b16 %v3581
    %v3923 = vunpack.c.l.b16 %v3582
    %v3924 = vunpack.c.h.b16 %v3582
    %v3925 = vunpack.c.l.b16 %v3583
    %v3926 = vunpack.c.h.b16 %v3583
    %v3927 = vunpack.c.l.b16 %v3584
    %v3928 = vunpack.c.h.b16 %v3584
    %v3929 = vunpack.c.l.b16 %v3585
    %v3930 = vunpack.c.h.b16 %v3585
    %v3931 = vunpack.c.l.b16 %v3586
    %v3932 = vunpack.c.h.b16 %v3586
    %v3933 = vunpack.c.l.b16 %v3587
    %v3934 = vunpack.c.h.b16 %v3587
    %v3935 = vunpack.c.l.b16 %v3588
    %v3936 = vunpack.c.h.b16 %v3588
    %v3937 = vunpack.c.l.b16 %v3589
    %v3938 = vunpack.c.h.b16 %v3589
    %v3939 = vunpack.c.l.b16 %v3590
    %v3940 = vunpack.c.h.b16 %v3590
    %v3941 = vunpack.c.l.b16 %v3591
    %v3942 = vunpack.c.h.b16 %v3591
    %v3943 = vunpack.c.l.b16 %v3592
    %v3944 = vunpack.c.h.b16 %v3592
    %v3945 = vunpack.c.l.b16 %v3593
    %v3946 = vunpack.c.h.b16 %v3593
    %v3947 = vunpack.c.l.b16 %v3594
    %v3948 = vunpack.c.h.b16 %v3594
    %v3949 = vunpack.c.l.b16 %v3595
    %v3950 = vunpack.c.h.b16 %v3595
    %v3951 = vunpack.c.l.b16 %v3596
    %v3952 = vunpack.c.h.b16 %v3596
    %v3953 = vunpack.c.l.b16 %v3597
    %v3954 = vunpack.c.h.b16 %v3597
    %v3955 = vunpack.c.l.b16 %v3598
    %v3956 = vunpack.c.h.b16 %v3598
    %v3957 = vunpack.c.l.b16 %v3599
    %v3958 = vunpack.c.h.b16 %v3599
    %v3959 = vunpack.c.l.b16 %v3600
    %v3960 = vunpack.c.h.b16 %v3600
    %v3961 = vunpack.c.l.b16 %v3601
    %v3962 = vunpack.c.h.b16 %v3601
    %v3963 = vunpack.c.l.b16 %v3602
    %v3964 = vunpack.c.h.b16 %v3602
    %v3965 = vunpack.c.l.b16 %v3603
    %v3966 = vunpack.c.h.b16 %v3603
    %v3967 = vunpack.c.l.b16 %v3604
    %v3968 = vunpack.c.h.b16 %v3604
    %v3969 = vunpack.c.l.b16 %v3605
    %v3970 = vunpack.c.h.b16 %v3605
    %v3971 = vunpack.c.l.b16 %v3606
    %v3972 = vunpack.c.h.b16 %v3606
    %v3973 = vunpack.c.l.b16 %v3607
    %v3974 = vunpack.c.h.b16 %v3607
    %v3975 = vunpack.c.l.b16 %v3608
    %v3976 = vunpack.c.h.b16 %v3608
    %v3977 = vunpack.c.l.b16 %v3609
    %v3978 = vunpack.c.h.b16 %v3609
    %v3979 = vunpack.c.l.b16 %v3610
    %v3980 = vunpack.c.h.b16 %v3610
    %v3981 = vunpack.c.l.b16 %v3611
    %v3982 = vunpack.c.h.b16 %v3611
    %v3983 = vunpack.c.l.b16 %v3612
    %v3984 = vunpack.c.h.b16 %v3612
    %v3985 = vunpack.c.l.b16 %v3613
    %v3986 = vunpack.c.h.b16 %v3613
    %v3987 = vunpack.c.l.b16 %v3614
    %v3988 = vunpack.c.h.b16 %v3614
    %v3989 = vunpack.c.l.b16 %v3615
    %v3990 = vunpack.c.h.b16 %v3615
    %v3991 = vunpack.c.l.b16 %v3616
    %v3992 = vunpack.c.h.b16 %v3616
    %v3993 = vunpack.c.l.b16 %v3617
    %v3994 = vunpack.c.h.b16 %v3617
    %v3995 = vunpack.c.l.b16 %v3618
    %v3996 = vunpack.c.h.b16 %v3618
    %v3997 = vunpack.c.l.b16 %v3619
    %v3998 = vunpack.c.h.b16 %v3619
    %v3999 = vunpack.c.l.b16 %v3620
    %v4000 = vunpack.c.h.b16 %v3620
    %v4001 = vunpack.c.l.b16 %v3621
    %v4002 = vunpack.c.h.b16 %v3621
    %v4003 = vunpack.c.l.b16 %v3622
    %v4004 = vunpack.c.h.b16 %v3622
    %v4005 = vunpack.c.l.b16 %v3623
    %v4006 = vunpack.c.h.b16 %v3623
    %v4007 = vunpack.c.l.b16 %v3624
    %v4008 = vunpack.c.h.b16 %v3624
    %v4009 = vunpack.c.l.b16 %v3625
    %v4010 = vunpack.c.h.b16 %v3625
    %v4011 = vunpack.c.l.b16 %v3626
    %v4012 = vunpack.c.h.b16 %v3626
    %v4013 = vunpack.c.l.b16 %v3627
    %v4014 = vunpack.c.h.b16 %v3627
    %v4015 = vunpack.c.l.b16 %v3628
    %v4016 = vunpack.c.h.b16 %v3628
    %v4017 = vunpack.c.l.b16 %v3629
    %v4018 = vunpack.c.h.b16 %v3629
    %v4019 = vunpack.c.l.b16 %v3630
    %v4020 = vunpack.c.h.b16 %v3630
    %v4021 = vunpack.c.l.b16 %v3631
    %v4022 = vunpack.c.h.b16 %v3631
    %v4023 = vunpack.c.l.b16 %v3632
    %v4024 = vunpack.c.h.b16 %v3632
    %v4025 = vunpack.c.l.b16 %v3633
    %v4026 = vunpack.c.h.b16 %v3633
    %v4027 = vunpack.c.l.b16 %v3634
    %v4028 = vunpack.c.h.b16 %v3634
    %v4029 = vunpack.c.l.b16 %v3635
    %v4030 = vunpack.c.h.b16 %v3635
    %v4031 = vunpack.c.l.b16 %v3636
    %v4032 = vunpack.c.h.b16 %v3636
    %v4033 = vunpack.c.l.b16 %v3637
    %v4034 = vunpack.c.h.b16 %v3637
    %v4035 = vunpack.c.l.b16 %v3638
    %v4036 = vunpack.c.h.b16 %v3638
    %v4037 = vunpack.c.l.b16 %v3639
    %v4038 = vunpack.c.h.b16 %v3639
    %v4039 = vunpack.c.l.b16 %v3640
    %v4040 = vunpack.c.h.b16 %v3640
    %v4041 = vunpack.c.l.b16 %v3641
    %v4042 = vunpack.c.h.b16 %v3641
    %v4043 = vunpack.c.l.b16 %v3642
    %v4044 = vunpack.c.h.b16 %v3642
    %v4045 = vunpack.c.l.b16 %v3643
    %v4046 = vunpack.c.h.b16 %v3643
    %v4047 = vunpack.c.l.b16 %v3644
    %v4048 = vunpack.c.h.b16 %v3644
    %v4049 = vunpack.c.l.b16 %v3645
    %v4050 = vunpack.c.h.b16 %v3645
    %v4051 = vunpack.c.l.b16 %v3646
    %v4052 = vunpack.c.h.b16 %v3646
    %v4053 = vunpack.c.l.b16 %v3647
    %v4054 = vunpack.c.h.b16 %v3647
    %v4055 = vunpack.c.l.b16 %v3648
    %v4056 = vunpack.c.h.b16 %v3648
    %v4057 = vunpack.c.l.b16 %v3649
    %v4058 = vunpack.c.h.b16 %v3649
    %v4059 = vunpack.c.l.b16 %v3650
    %v4060 = vunpack.c.h.b16 %v3650
    %v4061 = vunpack.c.l.b16 %v3651
    %v4062 = vunpack.c.h.b16 %v3651
    %v4063 = vunpack.c.l.b16 %v3652
    %v4064 = vunpack.c.h.b16 %v3652
    %v4065 = vunpack.c.l.b16 %v3653
    %v4066 = vunpack.c.h.b16 %v3653
    %v4067 = vunpack.c.l.b16 %v3654
    %v4068 = vunpack.c.h.b16 %v3654
    %v4069 = vunpack.c.l.b16 %v3655
    %v4070 = vunpack.c.h.b16 %v3655
    %v4071 = vunpack.c.l.b16 %v3656
    %v4072 = vunpack.c.h.b16 %v3656
    %v4073 = vunpack.c.l.b16 %v3657
    %v4074 = vunpack.c.h.b16 %v3657
    %v4075 = vunpack.c.l.b16 %v3658
    %v4076 = vunpack.c.h.b16 %v3658
    %v4077 = vunpack.c.l.b16 %v3659
    %v4078 = vunpack.c.h.b16 %v3659
    %v4079 = vunpack.c.l.b16 %v3660
    %v4080 = vunpack.c.h.b16 %v3660
    %v4081 = vunpack.c.l.b16 %v3661
    %v4082 = vunpack.c.h.b16 %v3661
    %v4083 = vunpack.c.l.b16 %v3662
    %v4084 = vunpack.c.h.b16 %v3662
    %v4085 = vunpack.c.l.b16 %v3663
    %v4086 = vunpack.c.h.b16 %v3663
    %v4087 = vunpack.c.l.b16 %v3664
    %v4088 = vunpack.c.h.b16 %v3664
    %v4089 = vunpack.c.l.b16 %v3665
    %v4090 = vunpack.c.h.b16 %v3665
    %v4091 = vunpack.c.l.b16 %v3666
    %v4092 = vunpack.c.h.b16 %v3666
    %v4093 = vpack.c.b16 %v3845, %v3837
    %v4094 = vpack.c.b16 %v3846, %v3838
    %v4095 = vpack.c.b16 %v3847, %v3839
    %v4096 = vpack.c.b16 %v3848, %v3840
    %v4097 = vpack.c.b16 %v3849, %v3841
    %v4098 = vpack.c.b16 %v3850, %v3842
    %v4099 = vpack.c.b16 %v3851, %v3843
    %v4100 = vpack.c.b16 %v3852, %v3844
    %v4101 = vpack.c.b16 %v3861, %v3853
    %v4102 = vpack.c.b16 %v3862, %v3854
    %v4103 = vpack.c.b16 %v3863, %v3855
    %v4104 = vpack.c.b16 %v3864, %v3856
    %v4105 = vpack.c.b16 %v3865, %v3857
    %v4106 = vpack.c.b16 %v3866, %v3858
    %v4107 = vpack.c.b16 %v3867, %v3859
    %v4108 = vpack.c.b16 %v3868, %v3860
    %v4109 = vpack.c.b16 %v3877, %v3869
    %v4110 = vpack.c.b16 %v3878, %v3870
    %v4111 = vpack.c.b16 %v3879, %v3871
    %v4112 = vpack.c.b16 %v3880, %v3872
    %v4113 = vpack.c.b16 %v3881, %v3873
    %v4114 = vpack.c.b16 %v3882, %v3874
    %v4115 = vpack.c.b16 %v3883, %v3875
    %v4116 = vpack.c.b16 %v3884, %v3876
    %v4117 = vpack.c.b16 %v3893, %v3885
    %v4118 = vpack.c.b16 %v3894, %v3886
    %v4119 = vpack.c.b16 %v3895, %v3887
    %v4120 = vpack.c.b16 %v3896, %v3888
    %v4121 = vpack.c.b16 %v3897, %v3889
    %v4122 = vpack.c.b16 %v3898, %v3890
    %v4123 = vpack.c.b16 %v3899, %v3891
    %v4124 = vpack.c.b16 %v3900, %v3892
    %v4125 = vpack.c.b16 %v3909, %v3901
    %v4126 = vpack.c.b16 %v3910, %v3902
    %v4127 = vpack.c.b16 %v3911, %v3903
    %v4128 = vpack.c.b16 %v3912, %v3904
    %v4129 = vpack.c.b16 %v3913, %v3905
    %v4130 = vpack.c.b16 %v3914, %v3906
    %v4131 = vpack.c.b16 %v3915, %v3907
    %v4132 = vpack.c.b16 %v3916, %v3908
    %v4133 = vpack.c.b16 %v3925, %v3917
    %v4134 = vpack.c.b16 %v3926, %v3918
    %v4135 = vpack.c.b16 %v3927, %v3919
    %v4136 = vpack.c.b16 %v3928, %v3920
    %v4137 = vpack.c.b16 %v3929, %v3921
    %v4138 = vpack.c.b16 %v3930, %v3922
    %v4139 = vpack.c.b16 %v3931, %v3923
    %v4140 = vpack.c.b16 %v3932, %v3924
    %v4141 = vpack.c.b16 %v3941, %v3933
    %v4142 = vpack.c.b16 %v3942, %v3934
    %v4143 = vpack.c.b16 %v3943, %v3935
    %v4144 = vpack.c.b16 %v3944, %v3936
    %v4145 = vpack.c.b16 %v3945, %v3937
    %v4146 = vpack.c.b16 %v3946, %v3938
    %v4147 = vpack.c.b16 %v3947, %v3939
    %v4148 = vpack.c.b16 %v3948, %v3940
    %v4149 = vpack.c.b16 %v3957, %v3949
    %v4150 = vpack.c.b16 %v3958, %v3950
    %v4151 = vpack.c.b16 %v3959, %v3951
    %v4152 = vpack.c.b16 %v3960, %v3952
    %v4153 = vpack.c.b16 %v3961, %v3953
    %v4154 = vpack.c.b16 %v3962, %v3954
    %v4155 = vpack.c.b16 %v3963, %v3955
    %v4156 = vpack.c.b16 %v3964, %v3956
    %v4157 = vpack.c.b16 %v3973, %v3965
    %v4158 = vpack.c.b16 %v3974, %v3966
    %v4159 = vpack.c.b16 %v3975, %v3967
    %v4160 = vpack.c.b16 %v3976, %v3968
    %v4161 = vpack.c.b16 %v3977, %v3969
    %v4162 = vpack.c.b16 %v3978, %v3970
    %v4163 = vpack.c.b16 %v3979, %v3971
    %v4164 = vpack.c.b16 %v3980, %v3972
    %v4165 = vpack.c.b16 %v3989, %v3981
    %v4166 = vpack.c.b16 %v3990, %v3982
    %v4167 = vpack.c.b16 %v3991, %v3983
    %v4168 = vpack.c.b16 %v3992, %v3984
    %v4169 = vpack.c.b16 %v3993, %v3985
    %v4170 = vpack.c.b16 %v3994, %v3986
    %v4171 = vpack.c.b16 %v3995, %v3987
    %v4172 = vpack.c.b16 %v3996, %v3988
    %v4173 = vpack.c.b16 %v4005, %v3997
    %v4174 = vpack.c.b16 %v4006, %v3998
    %v4175 = vpack.c.b16 %v4007, %v3999
    %v4176 = vpack.c.b16 %v4008, %v4000
    %v4177 = vpack.c.b16 %v4009, %v4001
    %v4178 = vpack.c.b16 %v4010, %v4002
    %v4179 = vpack.c.b16 %v4011, %v4003
    %v4180 = vpack.c.b16 %v4012, %v4004
    %v4181 = vpack.c.b16 %v4021, %v4013
    %v4182 = vpack.c.b16 %v4022, %v4014
    %v4183 = vpack.c.b16 %v4023, %v4015
    %v4184 = vpack.c.b16 %v4024, %v4016
    %v4185 = vpack.c.b16 %v4025, %v4017
    %v4186 = vpack.c.b16 %v4026, %v4018
    %v4187 = vpack.c.b16 %v4027, %v4019
    %v4188 = vpack.c.b16 %v4028, %v4020
    %v4189 = vpack.c.b16 %v4037, %v4029
    %v4190 = vpack.c.b16 %v4038, %v4030
    %v4191 = vpack.c.b16 %v4039, %v4031
    %v4192 = vpack.c.b16 %v4040, %v4032
    %v4193 = vpack.c.b16 %v4041, %v4033
    %v4194 = vpack.c.b16 %v4042, %v4034
    %v4195 = vpack.c.b16 %v4043, %v4035
    %v4196 = vpack.c.b16 %v4044, %v4036
    %v4197 = vpack.c.b16 %v4053, %v4045
    %v4198 = vpack.c.b16 %v4054, %v4046
    %v4199 = vpack.c.b16 %v4055, %v4047
    %v4200 = vpack.c.b16 %v4056, %v4048
    %v4201 = vpack.c.b16 %v4057, %v4049
    %v4202 = vpack.c.b16 %v4058, %v4050
    %v4203 = vpack.c.b16 %v4059, %v4051
    %v4204 = vpack.c.b16 %v4060, %v4052
    %v4205 = vpack.c.b16 %v4069, %v4061
    %v4206 = vpack.c.b16 %v4070, %v4062
    %v4207 = vpack.c.b16 %v4071, %v4063
    %v4208 = vpack.c.b16 %v4072, %v4064
    %v4209 = vpack.c.b16 %v4073, %v4065
    %v4210 = vpack.c.b16 %v4074, %v4066
    %v4211 = vpack.c.b16 %v4075, %v4067
    %v4212 = vpack.c.b16 %v4076, %v4068
    %v4213 = vpack.c.b16 %v4085, %v4077
    %v4214 = vpack.c.b16 %v4086, %v4078
    %v4215 = vpack.c.b16 %v4087, %v4079
    %v4216 = vpack.c.b16 %v4088, %v4080
    %v4217 = vpack.c.b16 %v4089, %v4081
    %v4218 = vpack.c.b16 %v4090, %v4082
    %v4219 = vpack.c.b16 %v4091, %v4083
    %v4220 = vpack.c.b16 %v4092, %v4084
    %4349 = vmatprep.subr.bf16.mxu0 %v4150
    %4350 = vmatpush1.bf16.msra.mxu0 %v4149
    %4351 = vmatprep.subr.bf16.mxu0 %v4142
    %4352 = vmatpush1.bf16.msra.mxu0 %v4141
    %4353 = vmatprep.subr.bf16.mxu0 %v4134
    %4354 = vmatpush1.bf16.msra.mxu0 %v4133
    %4355 = vmatprep.subr.bf16.mxu0 %v4126
    %4356 = vmatpush1.bf16.msra.mxu0 %v4125
    %4357 = vmatprep.subr.bf16.mxu0 %v4118
    %4358 = vmatpush1.bf16.msra.mxu0 %v4117
    %4359 = vmatprep.subr.bf16.mxu0 %v4110
    %4360 = vmatpush1.bf16.msra.mxu0 %v4109
    %4361 = vmatprep.subr.bf16.mxu0 %v4102
    %4362 = vmatpush1.bf16.msra.mxu0 %v4101
    %4363 = vmatprep.subr.bf16.mxu0 %v4094
    %4364 = vmatpush1.bf16.msra.mxu0 %v4093
    %4365 = vmatprep.subr.bf16.mxu0 %v4214
    %4366 = vmatpush2.bf16.msra.mxu0 %v4213
    %4367 = vmatprep.subr.bf16.mxu0 %v4206
    %4368 = vmatpush2.bf16.msra.mxu0 %v4205
    %4369 = vmatprep.subr.bf16.mxu0 %v4198
    %4370 = vmatpush2.bf16.msra.mxu0 %v4197
    %4371 = vmatprep.subr.bf16.mxu0 %v4190
    %4372 = vmatpush2.bf16.msra.mxu0 %v4189
    %4373 = vmatprep.subr.bf16.mxu0 %v4182
    %4374 = vmatpush2.bf16.msra.mxu0 %v4181
    %4375 = vmatprep.subr.bf16.mxu0 %v4174
    %4376 = vmatpush2.bf16.msra.mxu0 %v4173
    %4377 = vmatprep.subr.bf16.mxu0 %v4166
    %4378 = vmatpush2.bf16.msra.mxu0 %v4165
    %4379 = vmatprep.subr.bf16.mxu0 %v4158
    %4380 = vmatpush2.bf16.msra.mxu0 %v4157
    %4381 = vmatprep.mubr.bf16.mxu0 %v3532
    %4382 = vmatmul.mubr.bf16.gmra.mxu0 %v3531
    %v4383 = vpop.f32.mrf.mxu0
    %v4384 = vadd.f32 %v3672, %v4383
    %v4385 = vpop.f32.mrf.mxu0
    %v4386 = vadd.f32 %v3676, %v4385
    %v4387 = vpop.f32.mrf.mxu0
    %v4388 = vadd.f32 %v3672, %v4387
    %v4389 = vpop.f32.mrf.mxu0
    %v4390 = vadd.f32 %v3676, %v4389
    %4391 = vmatprep.mubr.bf16.mxu0 %v3534
    %4392 = vmatmul.mubr.bf16.gmra.mxu0 %v3533
    %v4393 = vpop.f32.mrf.mxu0
    %v4394 = vadd.f32 %v3672, %v4393
    %v4395 = vpop.f32.mrf.mxu0
    %v4396 = vadd.f32 %v3676, %v4395
    %v4397 = vpop.f32.mrf.mxu0
    %v4398 = vadd.f32 %v3672, %v4397
    %v4399 = vpop.f32.mrf.mxu0
    %v4400 = vadd.f32 %v3676, %v4399
    %4401 = vmatprep.mubr.bf16.mxu0 %v3536
    %4402 = vmatmul.mubr.bf16.gmra.mxu0 %v3535
    %v4403 = vpop.f32.mrf.mxu0
    %v4404 = vadd.f32 %v3672, %v4403
    %v4405 = vpop.f32.mrf.mxu0
    %v4406 = vadd.f32 %v3676, %v4405
    %v4407 = vpop.f32.mrf.mxu0
    %v4408 = vadd.f32 %v3672, %v4407
    %v4409 = vpop.f32.mrf.mxu0
    %v4410 = vadd.f32 %v3676, %v4409
    %4411 = vmatprep.mubr.bf16.mxu0 %v3538
    %4412 = vmatmul.mubr.bf16.gmra.mxu0 %v3537
    %v4413 = vpop.f32.mrf.mxu0
    %v4414 = vadd.f32 %v3672, %v4413
    %v4415 = vpop.f32.mrf.mxu0
    %v4416 = vadd.f32 %v3676, %v4415
    %v4417 = vpop.f32.mrf.mxu0
    %v4418 = vadd.f32 %v3672, %v4417
    %v4419 = vpop.f32.mrf.mxu0
    %v4420 = vadd.f32 %v3676, %v4419
    %4421 = vdwg.mxu0
    %4422 = vmatprep.subr.bf16.mxu0 %v4152
    %4423 = vmatpush1.bf16.msra.mxu0 %v4151
    %4424 = vmatprep.subr.bf16.mxu0 %v4144
    %4425 = vmatpush1.bf16.msra.mxu0 %v4143
    %4426 = vmatprep.subr.bf16.mxu0 %v4136
    %4427 = vmatpush1.bf16.msra.mxu0 %v4135
    %4428 = vmatprep.subr.bf16.mxu0 %v4128
    %4429 = vmatpush1.bf16.msra.mxu0 %v4127
    %4430 = vmatprep.subr.bf16.mxu0 %v4120
    %4431 = vmatpush1.bf16.msra.mxu0 %v4119
    %4432 = vmatprep.subr.bf16.mxu0 %v4112
    %4433 = vmatpush1.bf16.msra.mxu0 %v4111
    %4434 = vmatprep.subr.bf16.mxu0 %v4104
    %4435 = vmatpush1.bf16.msra.mxu0 %v4103
    %4436 = vmatprep.subr.bf16.mxu0 %v4096
    %4437 = vmatpush1.bf16.msra.mxu0 %v4095
    %4438 = vmatprep.subr.bf16.mxu0 %v4216
    %4439 = vmatpush2.bf16.msra.mxu0 %v4215
    %4440 = vmatprep.subr.bf16.mxu0 %v4208
    %4441 = vmatpush2.bf16.msra.mxu0 %v4207
    %4442 = vmatprep.subr.bf16.mxu0 %v4200
    %4443 = vmatpush2.bf16.msra.mxu0 %v4199
    %4444 = vmatprep.subr.bf16.mxu0 %v4192
    %4445 = vmatpush2.bf16.msra.mxu0 %v4191
    %4446 = vmatprep.subr.bf16.mxu0 %v4184
    %4447 = vmatpush2.bf16.msra.mxu0 %v4183
    %4448 = vmatprep.subr.bf16.mxu0 %v4176
    %4449 = vmatpush2.bf16.msra.mxu0 %v4175
    %4450 = vmatprep.subr.bf16.mxu0 %v4168
    %4451 = vmatpush2.bf16.msra.mxu0 %v4167
    %4452 = vmatprep.subr.bf16.mxu0 %v4160
    %4453 = vmatpush2.bf16.msra.mxu0 %v4159
    %4454 = vmatprep.mubr.bf16.mxu0 %v3532
    %4455 = vmatmul.mubr.bf16.gmra.mxu0 %v3531
    %v4456 = vpop.f32.mrf.mxu0
    %v4457 = vadd.f32 %v3680, %v4456
    %v4458 = vpop.f32.mrf.mxu0
    %v4459 = vadd.f32 %v3684, %v4458
    %v4460 = vpop.f32.mrf.mxu0
    %v4461 = vadd.f32 %v3680, %v4460
    %v4462 = vpop.f32.mrf.mxu0
    %v4463 = vadd.f32 %v3684, %v4462
    %4464 = vmatprep.mubr.bf16.mxu0 %v3534
    %4465 = vmatmul.mubr.bf16.gmra.mxu0 %v3533
    %v4466 = vpop.f32.mrf.mxu0
    %v4467 = vadd.f32 %v3680, %v4466
    %v4468 = vpop.f32.mrf.mxu0
    %v4469 = vadd.f32 %v3684, %v4468
    %v4470 = vpop.f32.mrf.mxu0
    %v4471 = vadd.f32 %v3680, %v4470
    %v4472 = vpop.f32.mrf.mxu0
    %v4473 = vadd.f32 %v3684, %v4472
    %4474 = vmatprep.mubr.bf16.mxu0 %v3536
    %4475 = vmatmul.mubr.bf16.gmra.mxu0 %v3535
    %v4476 = vpop.f32.mrf.mxu0
    %v4477 = vadd.f32 %v3680, %v4476
    %v4478 = vpop.f32.mrf.mxu0
    %v4479 = vadd.f32 %v3684, %v4478
    %v4480 = vpop.f32.mrf.mxu0
    %v4481 = vadd.f32 %v3680, %v4480
    %v4482 = vpop.f32.mrf.mxu0
    %v4483 = vadd.f32 %v3684, %v4482
    %4484 = vmatprep.mubr.bf16.mxu0 %v3538
    %4485 = vmatmul.mubr.bf16.gmra.mxu0 %v3537
    %v4486 = vpop.f32.mrf.mxu0
    %v4487 = vadd.f32 %v3680, %v4486
    %v4488 = vpop.f32.mrf.mxu0
    %v4489 = vadd.f32 %v3684, %v4488
    %v4490 = vpop.f32.mrf.mxu0
    %v4491 = vadd.f32 %v3680, %v4490
    %v4492 = vpop.f32.mrf.mxu0
    %v4493 = vadd.f32 %v3684, %v4492
    %4494 = vdwg.mxu0
    %4495 = vmatprep.subr.bf16.mxu0 %v4154
    %4496 = vmatpush1.bf16.msra.mxu0 %v4153
    %4497 = vmatprep.subr.bf16.mxu0 %v4146
    %4498 = vmatpush1.bf16.msra.mxu0 %v4145
    %4499 = vmatprep.subr.bf16.mxu0 %v4138
    %4500 = vmatpush1.bf16.msra.mxu0 %v4137
    %4501 = vmatprep.subr.bf16.mxu0 %v4130
    %4502 = vmatpush1.bf16.msra.mxu0 %v4129
    %4503 = vmatprep.subr.bf16.mxu0 %v4122
    %4504 = vmatpush1.bf16.msra.mxu0 %v4121
    %4505 = vmatprep.subr.bf16.mxu0 %v4114
    %4506 = vmatpush1.bf16.msra.mxu0 %v4113
    %4507 = vmatprep.subr.bf16.mxu0 %v4106
    %4508 = vmatpush1.bf16.msra.mxu0 %v4105
    %4509 = vmatprep.subr.bf16.mxu0 %v4098
    %4510 = vmatpush1.bf16.msra.mxu0 %v4097
    %4511 = vmatprep.subr.bf16.mxu0 %v4218
    %4512 = vmatpush2.bf16.msra.mxu0 %v4217
    %4513 = vmatprep.subr.bf16.mxu0 %v4210
    %4514 = vmatpush2.bf16.msra.mxu0 %v4209
    %4515 = vmatprep.subr.bf16.mxu0 %v4202
    %4516 = vmatpush2.bf16.msra.mxu0 %v4201
    %4517 = vmatprep.subr.bf16.mxu0 %v4194
    %4518 = vmatpush2.bf16.msra.mxu0 %v4193
    %4519 = vmatprep.subr.bf16.mxu0 %v4186
    %4520 = vmatpush2.bf16.msra.mxu0 %v4185
    %4521 = vmatprep.subr.bf16.mxu0 %v4178
    %4522 = vmatpush2.bf16.msra.mxu0 %v4177
    %4523 = vmatprep.subr.bf16.mxu0 %v4170
    %4524 = vmatpush2.bf16.msra.mxu0 %v4169
    %4525 = vmatprep.subr.bf16.mxu0 %v4162
    %4526 = vmatpush2.bf16.msra.mxu0 %v4161
    %4527 = vmatprep.mubr.bf16.mxu0 %v3532
    %4528 = vmatmul.mubr.bf16.gmra.mxu0 %v3531
    %v4529 = vpop.f32.mrf.mxu0
    %v4530 = vadd.f32 %v3688, %v4529
    %v4531 = vpop.f32.mrf.mxu0
    %v4532 = vadd.f32 %v3692, %v4531
    %v4533 = vpop.f32.mrf.mxu0
    %v4534 = vadd.f32 %v3688, %v4533
    %v4535 = vpop.f32.mrf.mxu0
    %v4536 = vadd.f32 %v3692, %v4535
    %4537 = vmatprep.mubr.bf16.mxu0 %v3534
    %4538 = vmatmul.mubr.bf16.gmra.mxu0 %v3533
    %v4539 = vpop.f32.mrf.mxu0
    %v4540 = vadd.f32 %v3688, %v4539
    %v4541 = vpop.f32.mrf.mxu0
    %v4542 = vadd.f32 %v3692, %v4541
    %v4543 = vpop.f32.mrf.mxu0
    %v4544 = vadd.f32 %v3688, %v4543
    %v4545 = vpop.f32.mrf.mxu0
    %v4546 = vadd.f32 %v3692, %v4545
    %4547 = vmatprep.mubr.bf16.mxu0 %v3536
    %4548 = vmatmul.mubr.bf16.gmra.mxu0 %v3535
    %v4549 = vpop.f32.mrf.mxu0
    %v4550 = vadd.f32 %v3688, %v4549
    %v4551 = vpop.f32.mrf.mxu0
    %v4552 = vadd.f32 %v3692, %v4551
    %v4553 = vpop.f32.mrf.mxu0
    %v4554 = vadd.f32 %v3688, %v4553
    %v4555 = vpop.f32.mrf.mxu0
    %v4556 = vadd.f32 %v3692, %v4555
    %4557 = vmatprep.mubr.bf16.mxu0 %v3538
    %4558 = vmatmul.mubr.bf16.gmra.mxu0 %v3537
    %v4559 = vpop.f32.mrf.mxu0
    %v4560 = vadd.f32 %v3688, %v4559
    %v4561 = vpop.f32.mrf.mxu0
    %v4562 = vadd.f32 %v3692, %v4561
    %v4563 = vpop.f32.mrf.mxu0
    %v4564 = vadd.f32 %v3688, %v4563
    %v4565 = vpop.f32.mrf.mxu0
    %v4566 = vadd.f32 %v3692, %v4565
    %4567 = vdwg.mxu0
    %4568 = vmatprep.subr.bf16.mxu0 %v4156
    %4569 = vmatpush1.bf16.msra.mxu0 %v4155
    %4570 = vmatprep.subr.bf16.mxu0 %v4148
    %4571 = vmatpush1.bf16.msra.mxu0 %v4147
    %4572 = vmatprep.subr.bf16.mxu0 %v4140
    %4573 = vmatpush1.bf16.msra.mxu0 %v4139
    %4574 = vmatprep.subr.bf16.mxu0 %v4132
    %4575 = vmatpush1.bf16.msra.mxu0 %v4131
    %4576 = vmatprep.subr.bf16.mxu0 %v4124
    %4577 = vmatpush1.bf16.msra.mxu0 %v4123
    %4578 = vmatprep.subr.bf16.mxu0 %v4116
    %4579 = vmatpush1.bf16.msra.mxu0 %v4115
    %4580 = vmatprep.subr.bf16.mxu0 %v4108
    %4581 = vmatpush1.bf16.msra.mxu0 %v4107
    %4582 = vmatprep.subr.bf16.mxu0 %v4100
    %4583 = vmatpush1.bf16.msra.mxu0 %v4099
    %4584 = vmatprep.subr.bf16.mxu0 %v4220
    %4585 = vmatpush2.bf16.msra.mxu0 %v4219
    %4586 = vmatprep.subr.bf16.mxu0 %v4212
    %4587 = vmatpush2.bf16.msra.mxu0 %v4211
    %4588 = vmatprep.subr.bf16.mxu0 %v4204
    %4589 = vmatpush2.bf16.msra.mxu0 %v4203
    %4590 = vmatprep.subr.bf16.mxu0 %v4196
    %4591 = vmatpush2.bf16.msra.mxu0 %v4195
    %4592 = vmatprep.subr.bf16.mxu0 %v4188
    %4593 = vmatpush2.bf16.msra.mxu0 %v4187
    %4594 = vmatprep.subr.bf16.mxu0 %v4180
    %4595 = vmatpush2.bf16.msra.mxu0 %v4179
    %4596 = vmatprep.subr.bf16.mxu0 %v4172
    %4597 = vmatpush2.bf16.msra.mxu0 %v4171
    %4598 = vmatprep.subr.bf16.mxu0 %v4164
    %4599 = vmatpush2.bf16.msra.mxu0 %v4163
    %4600 = vmatprep.mubr.bf16.mxu0 %v3532
    %4601 = vmatmul.mubr.bf16.gmra.mxu0 %v3531
    %v4602 = vpop.f32.mrf.mxu0
    %v4603 = vadd.f32 %v3696, %v4602
    %v4604 = vpop.f32.mrf.mxu0
    %v4605 = vadd.f32 %v3700, %v4604
    %v4606 = vpop.f32.mrf.mxu0
    %v4607 = vadd.f32 %v3696, %v4606
    %v4608 = vpop.f32.mrf.mxu0
    %v4609 = vadd.f32 %v3700, %v4608
    %4610 = vmatprep.mubr.bf16.mxu0 %v3534
    %4611 = vmatmul.mubr.bf16.gmra.mxu0 %v3533
    %v4612 = vpop.f32.mrf.mxu0
    %v4613 = vadd.f32 %v3696, %v4612
    %v4614 = vpop.f32.mrf.mxu0
    %v4615 = vadd.f32 %v3700, %v4614
    %v4616 = vpop.f32.mrf.mxu0
    %v4617 = vadd.f32 %v3696, %v4616
    %v4618 = vpop.f32.mrf.mxu0
    %v4619 = vadd.f32 %v3700, %v4618
    %4620 = vmatprep.mubr.bf16.mxu0 %v3536
    %4621 = vmatmul.mubr.bf16.gmra.mxu0 %v3535
    %v4622 = vpop.f32.mrf.mxu0
    %v4623 = vadd.f32 %v3696, %v4622
    %v4624 = vpop.f32.mrf.mxu0
    %v4625 = vadd.f32 %v3700, %v4624
    %v4626 = vpop.f32.mrf.mxu0
    %v4627 = vadd.f32 %v3696, %v4626
    %v4628 = vpop.f32.mrf.mxu0
    %v4629 = vadd.f32 %v3700, %v4628
    %4630 = vmatprep.mubr.bf16.mxu0 %v3538
    %4631 = vmatmul.mubr.bf16.gmra.mxu0 %v3537
    %v4632 = vpop.f32.mrf.mxu0
    %v4633 = vadd.f32 %v3696, %v4632
    %v4634 = vpop.f32.mrf.mxu0
    %v4635 = vadd.f32 %v3700, %v4634
    %v4636 = vpop.f32.mrf.mxu0
    %v4637 = vadd.f32 %v3696, %v4636
    %v4638 = vpop.f32.mrf.mxu0
    %v4639 = vadd.f32 %v3700, %v4638
    %4640 = vdwg.mxu0
    %v4641 = vld [vmem:[#allocation9] sm:$0xff]
    %v4642 = vld [vmem:[#allocation9 + $0x8] sm:$0xff]
    %v4643 = vld [vmem:[#allocation9 + $0x10] sm:$0xff]
    %v4644 = vld [vmem:[#allocation9 + $0x18] sm:$0xff]
    %v4645 = vld [vmem:[#allocation9 + $0x20] sm:$0xff]
    %v4646 = vld [vmem:[#allocation9 + $0x28] sm:$0xff]
    %v4647 = vld [vmem:[#allocation9 + $0x30] sm:$0xff]
    %v4648 = vld [vmem:[#allocation9 + $0x38] sm:$0xff]
    %v4649 = vld [vmem:[#allocation9 + $0x40] sm:$0xff]
    %v4650 = vld [vmem:[#allocation9 + $0x48] sm:$0xff]
    %v4651 = vld [vmem:[#allocation9 + $0x50] sm:$0xff]
    %v4652 = vld [vmem:[#allocation9 + $0x58] sm:$0xff]
    %v4653 = vld [vmem:[#allocation9 + $0x60] sm:$0xff]
    %v4654 = vld [vmem:[#allocation9 + $0x68] sm:$0xff]
    %v4655 = vld [vmem:[#allocation9 + $0x70] sm:$0xff]
    %v4656 = vld [vmem:[#allocation9 + $0x78] sm:$0xff]
    %v4657 = vld [vmem:[#allocation9 + $0x80] sm:$0xff]
    %v4658 = vld [vmem:[#allocation9 + $0x88] sm:$0xff]
    %v4659 = vld [vmem:[#allocation9 + $0x90] sm:$0xff]
    %v4660 = vld [vmem:[#allocation9 + $0x98] sm:$0xff]
    %v4661 = vld [vmem:[#allocation9 + $0xa0] sm:$0xff]
    %v4662 = vld [vmem:[#allocation9 + $0xa8] sm:$0xff]
    %v4663 = vld [vmem:[#allocation9 + $0xb0] sm:$0xff]
    %v4664 = vld [vmem:[#allocation9 + $0xb8] sm:$0xff]
    %v4665 = vld [vmem:[#allocation9 + $0xc0] sm:$0xff]
    %v4666 = vld [vmem:[#allocation9 + $0xc8] sm:$0xff]
    %v4667 = vld [vmem:[#allocation9 + $0xd0] sm:$0xff]
    %v4668 = vld [vmem:[#allocation9 + $0xd8] sm:$0xff]
    %v4669 = vld [vmem:[#allocation9 + $0xe0] sm:$0xff]
    %v4670 = vld [vmem:[#allocation9 + $0xe8] sm:$0xff]
    %v4671 = vld [vmem:[#allocation9 + $0xf0] sm:$0xff]
    %v4672 = vld [vmem:[#allocation9 + $0xf8] sm:$0xff]
    %s4673 = scalar_lea.vmem [#allocation9], 256
    %v4674 = vld [vmem:[%s4673] sm:$0xff]
    %v4675 = vld [vmem:[%s4673 + $0x8] sm:$0xff]
    %v4676 = vld [vmem:[%s4673 + $0x10] sm:$0xff]
    %v4677 = vld [vmem:[%s4673 + $0x18] sm:$0xff]
    %v4678 = vld [vmem:[%s4673 + $0x20] sm:$0xff]
    %v4679 = vld [vmem:[%s4673 + $0x28] sm:$0xff]
    %v4680 = vld [vmem:[%s4673 + $0x30] sm:$0xff]
    %v4681 = vld [vmem:[%s4673 + $0x38] sm:$0xff]
    %v4682 = vld [vmem:[%s4673 + $0x40] sm:$0xff]
    %v4683 = vld [vmem:[%s4673 + $0x48] sm:$0xff]
    %v4684 = vld [vmem:[%s4673 + $0x50] sm:$0xff]
    %v4685 = vld [vmem:[%s4673 + $0x58] sm:$0xff]
    %v4686 = vld [vmem:[%s4673 + $0x60] sm:$0xff]
    %v4687 = vld [vmem:[%s4673 + $0x68] sm:$0xff]
    %v4688 = vld [vmem:[%s4673 + $0x70] sm:$0xff]
    %v4689 = vld [vmem:[%s4673 + $0x78] sm:$0xff]
    %v4690 = vld [vmem:[%s4673 + $0x80] sm:$0xff]
    %v4691 = vld [vmem:[%s4673 + $0x88] sm:$0xff]
    %v4692 = vld [vmem:[%s4673 + $0x90] sm:$0xff]
    %v4693 = vld [vmem:[%s4673 + $0x98] sm:$0xff]
    %v4694 = vld [vmem:[%s4673 + $0xa0] sm:$0xff]
    %v4695 = vld [vmem:[%s4673 + $0xa8] sm:$0xff]
    %v4696 = vld [vmem:[%s4673 + $0xb0] sm:$0xff]
    %v4697 = vld [vmem:[%s4673 + $0xb8] sm:$0xff]
    %v4698 = vld [vmem:[%s4673 + $0xc0] sm:$0xff]
    %v4699 = vld [vmem:[%s4673 + $0xc8] sm:$0xff]
    %v4700 = vld [vmem:[%s4673 + $0xd0] sm:$0xff]
    %v4701 = vld [vmem:[%s4673 + $0xd8] sm:$0xff]
    %v4702 = vld [vmem:[%s4673 + $0xe0] sm:$0xff]
    %v4703 = vld [vmem:[%s4673 + $0xe8] sm:$0xff]
    %v4704 = vld [vmem:[%s4673 + $0xf0] sm:$0xff]
    %v4705 = vld [vmem:[%s4673 + $0xf8] sm:$0xff]
    %v4738 = vunpack.c.l.b16 %v4641
    %v4739 = vunpack.c.h.b16 %v4641
    %v4740 = vunpack.c.l.b16 %v4642
    %v4741 = vunpack.c.h.b16 %v4642
    %v4742 = vunpack.c.l.b16 %v4643
    %v4743 = vunpack.c.h.b16 %v4643
    %v4744 = vunpack.c.l.b16 %v4644
    %v4745 = vunpack.c.h.b16 %v4644
    %v4746 = vunpack.c.l.b16 %v4645
    %v4747 = vunpack.c.h.b16 %v4645
    %v4748 = vunpack.c.l.b16 %v4646
    %v4749 = vunpack.c.h.b16 %v4646
    %v4750 = vunpack.c.l.b16 %v4647
    %v4751 = vunpack.c.h.b16 %v4647
    %v4752 = vunpack.c.l.b16 %v4648
    %v4753 = vunpack.c.h.b16 %v4648
    %v4754 = vunpack.c.l.b16 %v4649
    %v4755 = vunpack.c.h.b16 %v4649
    %v4756 = vunpack.c.l.b16 %v4650
    %v4757 = vunpack.c.h.b16 %v4650
    %v4758 = vunpack.c.l.b16 %v4651
    %v4759 = vunpack.c.h.b16 %v4651
    %v4760 = vunpack.c.l.b16 %v4652
    %v4761 = vunpack.c.h.b16 %v4652
    %v4762 = vunpack.c.l.b16 %v4653
    %v4763 = vunpack.c.h.b16 %v4653
    %v4764 = vunpack.c.l.b16 %v4654
    %v4765 = vunpack.c.h.b16 %v4654
    %v4766 = vunpack.c.l.b16 %v4655
    %v4767 = vunpack.c.h.b16 %v4655
    %v4768 = vunpack.c.l.b16 %v4656
    %v4769 = vunpack.c.h.b16 %v4656
    %v4770 = vunpack.c.l.b16 %v4657
    %v4771 = vunpack.c.h.b16 %v4657
    %v4772 = vunpack.c.l.b16 %v4658
    %v4773 = vunpack.c.h.b16 %v4658
    %v4774 = vunpack.c.l.b16 %v4659
    %v4775 = vunpack.c.h.b16 %v4659
    %v4776 = vunpack.c.l.b16 %v4660
    %v4777 = vunpack.c.h.b16 %v4660
    %v4778 = vunpack.c.l.b16 %v4661
    %v4779 = vunpack.c.h.b16 %v4661
    %v4780 = vunpack.c.l.b16 %v4662
    %v4781 = vunpack.c.h.b16 %v4662
    %v4782 = vunpack.c.l.b16 %v4663
    %v4783 = vunpack.c.h.b16 %v4663
    %v4784 = vunpack.c.l.b16 %v4664
    %v4785 = vunpack.c.h.b16 %v4664
    %v4786 = vunpack.c.l.b16 %v4665
    %v4787 = vunpack.c.h.b16 %v4665
    %v4788 = vunpack.c.l.b16 %v4666
    %v4789 = vunpack.c.h.b16 %v4666
    %v4790 = vunpack.c.l.b16 %v4667
    %v4791 = vunpack.c.h.b16 %v4667
    %v4792 = vunpack.c.l.b16 %v4668
    %v4793 = vunpack.c.h.b16 %v4668
    %v4794 = vunpack.c.l.b16 %v4669
    %v4795 = vunpack.c.h.b16 %v4669
    %v4796 = vunpack.c.l.b16 %v4670
    %v4797 = vunpack.c.h.b16 %v4670
    %v4798 = vunpack.c.l.b16 %v4671
    %v4799 = vunpack.c.h.b16 %v4671
    %v4800 = vunpack.c.l.b16 %v4672
    %v4801 = vunpack.c.h.b16 %v4672
    %v4802 = vpack.c.b16 %v4742, %v4738
    %v4803 = vpack.c.b16 %v4743, %v4739
    %v4804 = vpack.c.b16 %v4744, %v4740
    %v4805 = vpack.c.b16 %v4745, %v4741
    %v4806 = vpack.c.b16 %v4750, %v4746
    %v4807 = vpack.c.b16 %v4751, %v4747
    %v4808 = vpack.c.b16 %v4752, %v4748
    %v4809 = vpack.c.b16 %v4753, %v4749
    %v4810 = vpack.c.b16 %v4758, %v4754
    %v4811 = vpack.c.b16 %v4759, %v4755
    %v4812 = vpack.c.b16 %v4760, %v4756
    %v4813 = vpack.c.b16 %v4761, %v4757
    %v4814 = vpack.c.b16 %v4766, %v4762
    %v4815 = vpack.c.b16 %v4767, %v4763
    %v4816 = vpack.c.b16 %v4768, %v4764
    %v4817 = vpack.c.b16 %v4769, %v4765
    %v4818 = vpack.c.b16 %v4774, %v4770
    %v4819 = vpack.c.b16 %v4775, %v4771
    %v4820 = vpack.c.b16 %v4776, %v4772
    %v4821 = vpack.c.b16 %v4777, %v4773
    %v4822 = vpack.c.b16 %v4782, %v4778
    %v4823 = vpack.c.b16 %v4783, %v4779
    %v4824 = vpack.c.b16 %v4784, %v4780
    %v4825 = vpack.c.b16 %v4785, %v4781
    %v4826 = vpack.c.b16 %v4790, %v4786
    %v4827 = vpack.c.b16 %v4791, %v4787
    %v4828 = vpack.c.b16 %v4792, %v4788
    %v4829 = vpack.c.b16 %v4793, %v4789
    %v4830 = vpack.c.b16 %v4798, %v4794
    %v4831 = vpack.c.b16 %v4799, %v4795
    %v4832 = vpack.c.b16 %v4800, %v4796
    %v4833 = vpack.c.b16 %v4801, %v4797
    %4866 = vmatprep.subr.bf16.mxu0 %v4831
    %4867 = vmatpush1.bf16.msra.mxu0 %v4830
    %4868 = vmatprep.subr.bf16.mxu0 %v4827
    %4869 = vmatpush1.bf16.msra.mxu0 %v4826
    %4870 = vmatprep.subr.bf16.mxu0 %v4823
    %4871 = vmatpush1.bf16.msra.mxu0 %v4822
    %4872 = vmatprep.subr.bf16.mxu0 %v4819
    %4873 = vmatpush1.bf16.msra.mxu0 %v4818
    %4874 = vmatprep.subr.bf16.mxu0 %v4815
    %4875 = vmatpush1.bf16.msra.mxu0 %v4814
    %4876 = vmatprep.subr.bf16.mxu0 %v4811
    %4877 = vmatpush1.bf16.msra.mxu0 %v4810
    %4878 = vmatprep.subr.bf16.mxu0 %v4807
    %4879 = vmatpush1.bf16.msra.mxu0 %v4806
    %4880 = vmatprep.subr.bf16.mxu0 %v4803
    %4881 = vmatpush1.bf16.msra.mxu0 %v4802
    %4882 = vmatprep.subr.bf16.mxu0 0
    %4883 = vmatpush2.bf16.msra.mxu0 0
    %4884 = vmatprep.subr.bf16.mxu0 0
    %4885 = vmatpush2.bf16.msra.mxu0 0
    %4886 = vmatprep.subr.bf16.mxu0 0
    %4887 = vmatpush2.bf16.msra.mxu0 0
    %4888 = vmatprep.subr.bf16.mxu0 0
    %4889 = vmatpush2.bf16.msra.mxu0 0
    %4890 = vmatprep.subr.bf16.mxu0 0
    %4891 = vmatpush2.bf16.msra.mxu0 0
    %4892 = vmatprep.subr.bf16.mxu0 0
    %4893 = vmatpush2.bf16.msra.mxu0 0
    %4894 = vmatprep.subr.bf16.mxu0 0
    %4895 = vmatpush2.bf16.msra.mxu0 0
    %4896 = vmatprep.subr.bf16.mxu0 0
    %4897 = vmatpush2.bf16.msra.mxu0 0
    %4898 = vmatprep.mubr.bf16.mxu0 0
    %4899 = vmatmul.mubr.bf16.gmra.mxu0 0
    %v4900 = vpop.f32.mrf.mxu0
    %v4901 = vadd.f32 0.0, %v4900
    %v4902 = vpop.f32.mrf.mxu0
    %v4903 = vadd.f32 0.0, %v4902
    %v4904 = vpop.f32.mrf.mxu0
    %v4905 = vpop.f32.mrf.mxu0
    %4906 = vdwg.mxu0
    %4907 = vmatprep.subr.bf16.mxu0 %v4833
    %4908 = vmatpush1.bf16.msra.mxu0 %v4832
    %4909 = vmatprep.subr.bf16.mxu0 %v4829
    %4910 = vmatpush1.bf16.msra.mxu0 %v4828
    %4911 = vmatprep.subr.bf16.mxu0 %v4825
    %4912 = vmatpush1.bf16.msra.mxu0 %v4824
    %4913 = vmatprep.subr.bf16.mxu0 %v4821
    %4914 = vmatpush1.bf16.msra.mxu0 %v4820
    %4915 = vmatprep.subr.bf16.mxu0 %v4817
    %4916 = vmatpush1.bf16.msra.mxu0 %v4816
    %4917 = vmatprep.subr.bf16.mxu0 %v4813
    %4918 = vmatpush1.bf16.msra.mxu0 %v4812
    %4919 = vmatprep.subr.bf16.mxu0 %v4809
    %4920 = vmatpush1.bf16.msra.mxu0 %v4808
    %4921 = vmatprep.subr.bf16.mxu0 %v4805
    %4922 = vmatpush1.bf16.msra.mxu0 %v4804
    %4923 = vmatprep.subr.bf16.mxu0 0
    %4924 = vmatpush2.bf16.msra.mxu0 0
    %4925 = vmatprep.subr.bf16.mxu0 0
    %4926 = vmatpush2.bf16.msra.mxu0 0
    %4927 = vmatprep.subr.bf16.mxu0 0
    %4928 = vmatpush2.bf16.msra.mxu0 0
    %4929 = vmatprep.subr.bf16.mxu0 0
    %4930 = vmatpush2.bf16.msra.mxu0 0
    %4931 = vmatprep.subr.bf16.mxu0 0
    %4932 = vmatpush2.bf16.msra.mxu0 0
    %4933 = vmatprep.subr.bf16.mxu0 0
    %4934 = vmatpush2.bf16.msra.mxu0 0
    %4935 = vmatprep.subr.bf16.mxu0 0
    %4936 = vmatpush2.bf16.msra.mxu0 0
    %4937 = vmatprep.subr.bf16.mxu0 0
    %4938 = vmatpush2.bf16.msra.mxu0 0
    %4939 = vmatprep.mubr.bf16.mxu0 0
    %4940 = vmatmul.mubr.bf16.gmra.mxu0 0
    %v4941 = vpop.f32.mrf.mxu0
    %v4942 = vadd.f32 0.0, %v4941
    %v4943 = vpop.f32.mrf.mxu0
    %v4944 = vadd.f32 0.0, %v4943
    %v4945 = vpop.f32.mrf.mxu0
    %v4946 = vpop.f32.mrf.mxu0
    %4947 = vdwg.mxu0
    %v4948 = vadd.f32 %v4384, %v4901
    %v4949 = vadd.f32 %v4386, %v4903
    %v4950 = vadd.f32 %v4457, %v4942
    %v4951 = vadd.f32 %v4459, %v4944
    %v4984 = vunpack.c.l.b16 %v4674
    %v4985 = vunpack.c.h.b16 %v4674
    %v4986 = vunpack.c.l.b16 %v4675
    %v4987 = vunpack.c.h.b16 %v4675
    %v4988 = vunpack.c.l.b16 %v4676
    %v4989 = vunpack.c.h.b16 %v4676
    %v4990 = vunpack.c.l.b16 %v4677
    %v4991 = vunpack.c.h.b16 %v4677
    %v4992 = vunpack.c.l.b16 %v4678
    %v4993 = vunpack.c.h.b16 %v4678
    %v4994 = vunpack.c.l.b16 %v4679
    %v4995 = vunpack.c.h.b16 %v4679
    %v4996 = vunpack.c.l.b16 %v4680
    %v4997 = vunpack.c.h.b16 %v4680
    %v4998 = vunpack.c.l.b16 %v4681
    %v4999 = vunpack.c.h.b16 %v4681
    %v5000 = vunpack.c.l.b16 %v4682
    %v5001 = vunpack.c.h.b16 %v4682
    %v5002 = vunpack.c.l.b16 %v4683
    %v5003 = vunpack.c.h.b16 %v4683
    %v5004 = vunpack.c.l.b16 %v4684
    %v5005 = vunpack.c.h.b16 %v4684
    %v5006 = vunpack.c.l.b16 %v4685
    %v5007 = vunpack.c.h.b16 %v4685
    %v5008 = vunpack.c.l.b16 %v4686
    %v5009 = vunpack.c.h.b16 %v4686
    %v5010 = vunpack.c.l.b16 %v4687
    %v5011 = vunpack.c.h.b16 %v4687
    %v5012 = vunpack.c.l.b16 %v4688
    %v5013 = vunpack.c.h.b16 %v4688
    %v5014 = vunpack.c.l.b16 %v4689
    %v5015 = vunpack.c.h.b16 %v4689
    %v5016 = vunpack.c.l.b16 %v4690
    %v5017 = vunpack.c.h.b16 %v4690
    %v5018 = vunpack.c.l.b16 %v4691
    %v5019 = vunpack.c.h.b16 %v4691
    %v5020 = vunpack.c.l.b16 %v4692
    %v5021 = vunpack.c.h.b16 %v4692
    %v5022 = vunpack.c.l.b16 %v4693
    %v5023 = vunpack.c.h.b16 %v4693
    %v5024 = vunpack.c.l.b16 %v4694
    %v5025 = vunpack.c.h.b16 %v4694
    %v5026 = vunpack.c.l.b16 %v4695
    %v5027 = vunpack.c.h.b16 %v4695
    %v5028 = vunpack.c.l.b16 %v4696
    %v5029 = vunpack.c.h.b16 %v4696
    %v5030 = vunpack.c.l.b16 %v4697
    %v5031 = vunpack.c.h.b16 %v4697
    %v5032 = vunpack.c.l.b16 %v4698
    %v5033 = vunpack.c.h.b16 %v4698
    %v5034 = vunpack.c.l.b16 %v4699
    %v5035 = vunpack.c.h.b16 %v4699
    %v5036 = vunpack.c.l.b16 %v4700
    %v5037 = vunpack.c.h.b16 %v4700
    %v5038 = vunpack.c.l.b16 %v4701
    %v5039 = vunpack.c.h.b16 %v4701
    %v5040 = vunpack.c.l.b16 %v4702
    %v5041 = vunpack.c.h.b16 %v4702
    %v5042 = vunpack.c.l.b16 %v4703
    %v5043 = vunpack.c.h.b16 %v4703
    %v5044 = vunpack.c.l.b16 %v4704
    %v5045 = vunpack.c.h.b16 %v4704
    %v5046 = vunpack.c.l.b16 %v4705
    %v5047 = vunpack.c.h.b16 %v4705
    %v5048 = vpack.c.b16 %v4988, %v4984
    %v5049 = vpack.c.b16 %v4989, %v4985
    %v5050 = vpack.c.b16 %v4990, %v4986
    %v5051 = vpack.c.b16 %v4991, %v4987
    %v5052 = vpack.c.b16 %v4996, %v4992
    %v5053 = vpack.c.b16 %v4997, %v4993
    %v5054 = vpack.c.b16 %v4998, %v4994
    %v5055 = vpack.c.b16 %v4999, %v4995
    %v5056 = vpack.c.b16 %v5004, %v5000
    %v5057 = vpack.c.b16 %v5005, %v5001
    %v5058 = vpack.c.b16 %v5006, %v5002
    %v5059 = vpack.c.b16 %v5007, %v5003
    %v5060 = vpack.c.b16 %v5012, %v5008
    %v5061 = vpack.c.b16 %v5013, %v5009
    %v5062 = vpack.c.b16 %v5014, %v5010
    %v5063 = vpack.c.b16 %v5015, %v5011
    %v5064 = vpack.c.b16 %v5020, %v5016
    %v5065 = vpack.c.b16 %v5021, %v5017
    %v5066 = vpack.c.b16 %v5022, %v5018
    %v5067 = vpack.c.b16 %v5023, %v5019
    %v5068 = vpack.c.b16 %v5028, %v5024
    %v5069 = vpack.c.b16 %v5029, %v5025
    %v5070 = vpack.c.b16 %v5030, %v5026
    %v5071 = vpack.c.b16 %v5031, %v5027
    %v5072 = vpack.c.b16 %v5036, %v5032
    %v5073 = vpack.c.b16 %v5037, %v5033
    %v5074 = vpack.c.b16 %v5038, %v5034
    %v5075 = vpack.c.b16 %v5039, %v5035
    %v5076 = vpack.c.b16 %v5044, %v5040
    %v5077 = vpack.c.b16 %v5045, %v5041
    %v5078 = vpack.c.b16 %v5046, %v5042
    %v5079 = vpack.c.b16 %v5047, %v5043
    %5112 = vmatprep.subr.bf16.mxu0 %v5077
    %5113 = vmatpush1.bf16.msra.mxu0 %v5076
    %5114 = vmatprep.subr.bf16.mxu0 %v5073
    %5115 = vmatpush1.bf16.msra.mxu0 %v5072
    %5116 = vmatprep.subr.bf16.mxu0 %v5069
    %5117 = vmatpush1.bf16.msra.mxu0 %v5068
    %5118 = vmatprep.subr.bf16.mxu0 %v5065
    %5119 = vmatpush1.bf16.msra.mxu0 %v5064
    %5120 = vmatprep.subr.bf16.mxu0 %v5061
    %5121 = vmatpush1.bf16.msra.mxu0 %v5060
    %5122 = vmatprep.subr.bf16.mxu0 %v5057
    %5123 = vmatpush1.bf16.msra.mxu0 %v5056
    %5124 = vmatprep.subr.bf16.mxu0 %v5053
    %5125 = vmatpush1.bf16.msra.mxu0 %v5052
    %5126 = vmatprep.subr.bf16.mxu0 %v5049
    %5127 = vmatpush1.bf16.msra.mxu0 %v5048
    %5128 = vmatprep.subr.bf16.mxu0 0
    %5129 = vmatpush2.bf16.msra.mxu0 0
    %5130 = vmatprep.subr.bf16.mxu0 0
    %5131 = vmatpush2.bf16.msra.mxu0 0
    %5132 = vmatprep.subr.bf16.mxu0 0
    %5133 = vmatpush2.bf16.msra.mxu0 0
    %5134 = vmatprep.subr.bf16.mxu0 0
    %5135 = vmatpush2.bf16.msra.mxu0 0
    %5136 = vmatprep.subr.bf16.mxu0 0
    %5137 = vmatpush2.bf16.msra.mxu0 0
    %5138 = vmatprep.subr.bf16.mxu0 0
    %5139 = vmatpush2.bf16.msra.mxu0 0
    %5140 = vmatprep.subr.bf16.mxu0 0
    %5141 = vmatpush2.bf16.msra.mxu0 0
    %5142 = vmatprep.subr.bf16.mxu0 0
    %5143 = vmatpush2.bf16.msra.mxu0 0
    %5144 = vmatprep.mubr.bf16.mxu0 0
    %5145 = vmatmul.mubr.bf16.gmra.mxu0 0
    %v5146 = vpop.f32.mrf.mxu0
    %v5147 = vadd.f32 0.0, %v5146
    %v5148 = vpop.f32.mrf.mxu0
    %v5149 = vadd.f32 0.0, %v5148
    %v5150 = vpop.f32.mrf.mxu0
    %v5151 = vpop.f32.mrf.mxu0
    %5152 = vdwg.mxu0
    %5153 = vmatprep.subr.bf16.mxu0 %v5079
    %5154 = vmatpush1.bf16.msra.mxu0 %v5078
    %5155 = vmatprep.subr.bf16.mxu0 %v5075
    %5156 = vmatpush1.bf16.msra.mxu0 %v5074
    %5157 = vmatprep.subr.bf16.mxu0 %v5071
    %5158 = vmatpush1.bf16.msra.mxu0 %v5070
    %5159 = vmatprep.subr.bf16.mxu0 %v5067
    %5160 = vmatpush1.bf16.msra.mxu0 %v5066
    %5161 = vmatprep.subr.bf16.mxu0 %v5063
    %5162 = vmatpush1.bf16.msra.mxu0 %v5062
    %5163 = vmatprep.subr.bf16.mxu0 %v5059
    %5164 = vmatpush1.bf16.msra.mxu0 %v5058
    %5165 = vmatprep.subr.bf16.mxu0 %v5055
    %5166 = vmatpush1.bf16.msra.mxu0 %v5054
    %5167 = vmatprep.subr.bf16.mxu0 %v5051
    %5168 = vmatpush1.bf16.msra.mxu0 %v5050
    %5169 = vmatprep.subr.bf16.mxu0 0
    %5170 = vmatpush2.bf16.msra.mxu0 0
    %5171 = vmatprep.subr.bf16.mxu0 0
    %5172 = vmatpush2.bf16.msra.mxu0 0
    %5173 = vmatprep.subr.bf16.mxu0 0
    %5174 = vmatpush2.bf16.msra.mxu0 0
    %5175 = vmatprep.subr.bf16.mxu0 0
    %5176 = vmatpush2.bf16.msra.mxu0 0
    %5177 = vmatprep.subr.bf16.mxu0 0
    %5178 = vmatpush2.bf16.msra.mxu0 0
    %5179 = vmatprep.subr.bf16.mxu0 0
    %5180 = vmatpush2.bf16.msra.mxu0 0
    %5181 = vmatprep.subr.bf16.mxu0 0
    %5182 = vmatpush2.bf16.msra.mxu0 0
    %5183 = vmatprep.subr.bf16.mxu0 0
    %5184 = vmatpush2.bf16.msra.mxu0 0
    %5185 = vmatprep.mubr.bf16.mxu0 0
    %5186 = vmatmul.mubr.bf16.gmra.mxu0 0
    %v5187 = vpop.f32.mrf.mxu0
    %v5188 = vadd.f32 0.0, %v5187
    %v5189 = vpop.f32.mrf.mxu0
    %v5190 = vadd.f32 0.0, %v5189
    %v5191 = vpop.f32.mrf.mxu0
    %v5192 = vpop.f32.mrf.mxu0
    %5193 = vdwg.mxu0
    %v5194 = vadd.f32 %v4564, %v5147
    %v5195 = vadd.f32 %v4566, %v5149
    %v5196 = vadd.f32 %v4637, %v5188
    %v5197 = vadd.f32 %v4639, %v5190
    %v5198 = vxor.u32 %v4948, 2147483648
    %v5199 = vmul.f32 %v5198, 1.442695
    %v5200 = vpow.pop %v5199
    %v5201 = vadd.f32 %v5200, 1.0
    %v5202 = vrcp.pop %v5201
    %v5203 = vmul.f32 1.0, %v5202
    %v5204 = vxor.u32 %v4949, 2147483648
    %v5205 = vmul.f32 %v5204, 1.442695
    %v5206 = vpow.pop %v5205
    %v5207 = vadd.f32 %v5206, 1.0
    %v5208 = vrcp.pop %v5207
    %v5209 = vmul.f32 1.0, %v5208
    %v5210 = vtanh.pop %v4950
    %v5211 = vxor.u32 %v4951, 2147483648
    %v5212 = vmul.f32 %v5211, 1.442695
    %v5213 = vpow.pop %v5212
    %v5214 = vadd.f32 %v5213, 1.0
    %v5215 = vrcp.pop %v5214
    %v5216 = vmul.f32 1.0, %v5215
    %v5217 = vmul.f32 %v5209, 0.0
    %v5218 = vmul.f32 %v5203, %v5210
    %v5219 = vadd.f32 %v5217, %v5218
    %v5220 = vtanh.pop %v5219
    %v5221 = vmul.f32 %v5216, %v5220
    %v5222 = vxor.u32 %v5194, 2147483648
    %v5223 = vmul.f32 %v5222, 1.442695
    %v5224 = vpow.pop %v5223
    %v5225 = vadd.f32 %v5224, 1.0
    %v5226 = vrcp.pop %v5225
    %v5227 = vmul.f32 1.0, %v5226
    %v5228 = vxor.u32 %v5195, 2147483648
    %v5229 = vmul.f32 %v5228, 1.442695
    %v5230 = vpow.pop %v5229
    %v5231 = vadd.f32 %v5230, 1.0
    %v5232 = vrcp.pop %v5231
    %v5233 = vmul.f32 1.0, %v5232
    %v5234 = vtanh.pop %v5196
    %v5235 = vxor.u32 %v5197, 2147483648
    %v5236 = vmul.f32 %v5235, 1.442695
    %v5237 = vpow.pop %v5236
    %v5238 = vadd.f32 %v5237, 1.0
    %v5239 = vrcp.pop %v5238
    %v5240 = vmul.f32 1.0, %v5239
    %v5241 = vmul.f32 %v5233, 0.0
    %v5242 = vmul.f32 %v5227, %v5234
    %v5243 = vadd.f32 %v5241, %v5242
    %v5244 = vtanh.pop %v5243
    %v5245 = vmul.f32 %v5240, %v5244
    %v5246 = vpack.c.bf16 %v5221, %v5221
    %5247 = vmatprep.subr.bf16.mxu0 %v4831
    %5248 = vmatpush1.bf16.msra.mxu0 %v4830
    %5249 = vmatprep.subr.bf16.mxu0 %v4827
    %5250 = vmatpush1.bf16.msra.mxu0 %v4826
    %5251 = vmatprep.subr.bf16.mxu0 %v4823
    %5252 = vmatpush1.bf16.msra.mxu0 %v4822
    %5253 = vmatprep.subr.bf16.mxu0 %v4819
    %5254 = vmatpush1.bf16.msra.mxu0 %v4818
    %5255 = vmatprep.subr.bf16.mxu0 %v4815
    %5256 = vmatpush1.bf16.msra.mxu0 %v4814
    %5257 = vmatprep.subr.bf16.mxu0 %v4811
    %5258 = vmatpush1.bf16.msra.mxu0 %v4810
    %5259 = vmatprep.subr.bf16.mxu0 %v4807
    %5260 = vmatpush1.bf16.msra.mxu0 %v4806
    %5261 = vmatprep.subr.bf16.mxu0 %v4803
    %5262 = vmatpush1.bf16.msra.mxu0 %v4802
    %5263 = vmatprep.subr.bf16.mxu0 0
    %5264 = vmatpush2.bf16.msra.mxu0 0
    %5265 = vmatprep.subr.bf16.mxu0 0
    %5266 = vmatpush2.bf16.msra.mxu0 0
    %5267 = vmatprep.subr.bf16.mxu0 0
    %5268 = vmatpush2.bf16.msra.mxu0 0
    %5269 = vmatprep.subr.bf16.mxu0 0
    %5270 = vmatpush2.bf16.msra.mxu0 0
    %5271 = vmatprep.subr.bf16.mxu0 0
    %5272 = vmatpush2.bf16.msra.mxu0 0
    %5273 = vmatprep.subr.bf16.mxu0 0
    %5274 = vmatpush2.bf16.msra.mxu0 0
    %5275 = vmatprep.subr.bf16.mxu0 0
    %5276 = vmatpush2.bf16.msra.mxu0 0
    %5277 = vmatprep.subr.bf16.mxu0 0
    %5278 = vmatpush2.bf16.msra.mxu0 0
    %5279 = vmatprep.mubr.bf16.mxu0 0
    %5280 = vmatmul.mubr.bf16.gmra.mxu0 %v5246
    %v5281 = vpop.f32.mrf.mxu0
    %v5282 = vadd.f32 0.0, %v5281
    %v5283 = vpop.f32.mrf.mxu0
    %v5284 = vadd.f32 0.0, %v5283
    %v5285 = vpop.f32.mrf.mxu0
    %v5286 = vpop.f32.mrf.mxu0
    %5287 = vdwg.mxu0
    %5288 = vmatprep.subr.bf16.mxu0 %v4833
    %5289 = vmatpush1.bf16.msra.mxu0 %v4832
    %5290 = vmatprep.subr.bf16.mxu0 %v4829
    %5291 = vmatpush1.bf16.msra.mxu0 %v4828
    %5292 = vmatprep.subr.bf16.mxu0 %v4825
    %5293 = vmatpush1.bf16.msra.mxu0 %v4824
    %5294 = vmatprep.subr.bf16.mxu0 %v4821
    %5295 = vmatpush1.bf16.msra.mxu0 %v4820
    %5296 = vmatprep.subr.bf16.mxu0 %v4817
    %5297 = vmatpush1.bf16.msra.mxu0 %v4816
    %5298 = vmatprep.subr.bf16.mxu0 %v4813
    %5299 = vmatpush1.bf16.msra.mxu0 %v4812
    %5300 = vmatprep.subr.bf16.mxu0 %v4809
    %5301 = vmatpush1.bf16.msra.mxu0 %v4808
    %5302 = vmatprep.subr.bf16.mxu0 %v4805
    %5303 = vmatpush1.bf16.msra.mxu0 %v4804
    %5304 = vmatprep.subr.bf16.mxu0 0
    %5305 = vmatpush2.bf16.msra.mxu0 0
    %5306 = vmatprep.subr.bf16.mxu0 0
    %5307 = vmatpush2.bf16.msra.mxu0 0
    %5308 = vmatprep.subr.bf16.mxu0 0
    %5309 = vmatpush2.bf16.msra.mxu0 0
    %5310 = vmatprep.subr.bf16.mxu0 0
    %5311 = vmatpush2.bf16.msra.mxu0 0
    %5312 = vmatprep.subr.bf16.mxu0 0
    %5313 = vmatpush2.bf16.msra.mxu0 0
    %5314 = vmatprep.subr.bf16.mxu0 0
    %5315 = vmatpush2.bf16.msra.mxu0 0
    %5316 = vmatprep.subr.bf16.mxu0 0
    %5317 = vmatpush2.bf16.msra.mxu0 0
    %5318 = vmatprep.subr.bf16.mxu0 0
    %5319 = vmatpush2.bf16.msra.mxu0 0
    %5320 = vmatprep.mubr.bf16.mxu0 0
    %5321 = vmatmul.mubr.bf16.gmra.mxu0 %v5246
    %v5322 = vpop.f32.mrf.mxu0
    %v5323 = vadd.f32 0.0, %v5322
    %v5324 = vpop.f32.mrf.mxu0
    %v5325 = vadd.f32 0.0, %v5324
    %v5326 = vpop.f32.mrf.mxu0
    %v5327 = vpop.f32.mrf.mxu0
    %5328 = vdwg.mxu0
    %v5329 = vadd.f32 %v4388, %v5282
    %v5330 = vadd.f32 %v4390, %v5284
    %v5331 = vadd.f32 %v4461, %v5323
    %v5332 = vadd.f32 %v4463, %v5325
    %v5333 = vpack.c.bf16 %v5245, %v5245
    %5334 = vmatprep.subr.bf16.mxu0 %v5077
    %5335 = vmatpush1.bf16.msra.mxu0 %v5076
    %5336 = vmatprep.subr.bf16.mxu0 %v5073
    %5337 = vmatpush1.bf16.msra.mxu0 %v5072
    %5338 = vmatprep.subr.bf16.mxu0 %v5069
    %5339 = vmatpush1.bf16.msra.mxu0 %v5068
    %5340 = vmatprep.subr.bf16.mxu0 %v5065
    %5341 = vmatpush1.bf16.msra.mxu0 %v5064
    %5342 = vmatprep.subr.bf16.mxu0 %v5061
    %5343 = vmatpush1.bf16.msra.mxu0 %v5060
    %5344 = vmatprep.subr.bf16.mxu0 %v5057
    %5345 = vmatpush1.bf16.msra.mxu0 %v5056
    %5346 = vmatprep.subr.bf16.mxu0 %v5053
    %5347 = vmatpush1.bf16.msra.mxu0 %v5052
    %5348 = vmatprep.subr.bf16.mxu0 %v5049
    %5349 = vmatpush1.bf16.msra.mxu0 %v5048
    %5350 = vmatprep.subr.bf16.mxu0 0
    %5351 = vmatpush2.bf16.msra.mxu0 0
    %5352 = vmatprep.subr.bf16.mxu0 0
    %5353 = vmatpush2.bf16.msra.mxu0 0
    %5354 = vmatprep.subr.bf16.mxu0 0
    %5355 = vmatpush2.bf16.msra.mxu0 0
    %5356 = vmatprep.subr.bf16.mxu0 0
    %5357 = vmatpush2.bf16.msra.mxu0 0
    %5358 = vmatprep.subr.bf16.mxu0 0
    %5359 = vmatpush2.bf16.msra.mxu0 0
    %5360 = vmatprep.subr.bf16.mxu0 0
    %5361 = vmatpush2.bf16.msra.mxu0 0
    %5362 = vmatprep.subr.bf16.mxu0 0
    %5363 = vmatpush2.bf16.msra.mxu0 0
    %5364 = vmatprep.subr.bf16.mxu0 0
    %5365 = vmatpush2.bf16.msra.mxu0 0
    %5366 = vmatprep.mubr.bf16.mxu0 0
    %5367 = vmatmul.mubr.bf16.gmra.mxu0 %v5333
    %v5368 = vpop.f32.mrf.mxu0
    %v5369 = vadd.f32 0.0, %v5368
    %v5370 = vpop.f32.mrf.mxu0
    %v5371 = vadd.f32 0.0, %v5370
    %v5372 = vpop.f32.mrf.mxu0
    %v5373 = vpop.f32.mrf.mxu0
    %5374 = vdwg.mxu0
    %5375 = vmatprep.subr.bf16.mxu0 %v5079
    %5376 = vmatpush1.bf16.msra.mxu0 %v5078
    %5377 = vmatprep.subr.bf16.mxu0 %v5075
    %5378 = vmatpush1.bf16.msra.mxu0 %v5074
    %5379 = vmatprep.subr.bf16.mxu0 %v5071
    %5380 = vmatpush1.bf16.msra.mxu0 %v5070
    %5381 = vmatprep.subr.bf16.mxu0 %v5067
    %5382 = vmatpush1.bf16.msra.mxu0 %v5066
    %5383 = vmatprep.subr.bf16.mxu0 %v5063
    %5384 = vmatpush1.bf16.msra.mxu0 %v5062
    %5385 = vmatprep.subr.bf16.mxu0 %v5059
    %5386 = vmatpush1.bf16.msra.mxu0 %v5058
    %5387 = vmatprep.subr.bf16.mxu0 %v5055
    %5388 = vmatpush1.bf16.msra.mxu0 %v5054
    %5389 = vmatprep.subr.bf16.mxu0 %v5051
    %5390 = vmatpush1.bf16.msra.mxu0 %v5050
    %5391 = vmatprep.subr.bf16.mxu0 0
    %5392 = vmatpush2.bf16.msra.mxu0 0
    %5393 = vmatprep.subr.bf16.mxu0 0
    %5394 = vmatpush2.bf16.msra.mxu0 0
    %5395 = vmatprep.subr.bf16.mxu0 0
    %5396 = vmatpush2.bf16.msra.mxu0 0
    %5397 = vmatprep.subr.bf16.mxu0 0
    %5398 = vmatpush2.bf16.msra.mxu0 0
    %5399 = vmatprep.subr.bf16.mxu0 0
    %5400 = vmatpush2.bf16.msra.mxu0 0
    %5401 = vmatprep.subr.bf16.mxu0 0
    %5402 = vmatpush2.bf16.msra.mxu0 0
    %5403 = vmatprep.subr.bf16.mxu0 0
    %5404 = vmatpush2.bf16.msra.mxu0 0
    %5405 = vmatprep.subr.bf16.mxu0 0
    %5406 = vmatpush2.bf16.msra.mxu0 0
    %5407 = vmatprep.mubr.bf16.mxu0 0
    %5408 = vmatmul.mubr.bf16.gmra.mxu0 %v5333
    %v5409 = vpop.f32.mrf.mxu0
    %v5410 = vadd.f32 0.0, %v5409
    %v5411 = vpop.f32.mrf.mxu0
    %v5412 = vadd.f32 0.0, %v5411
    %v5413 = vpop.f32.mrf.mxu0
    %v5414 = vpop.f32.mrf.mxu0
    %5415 = vdwg.mxu0
    %v5416 = vadd.f32 %v4560, %v5369
    %v5417 = vadd.f32 %v4562, %v5371
    %v5418 = vadd.f32 %v4633, %v5410
    %v5419 = vadd.f32 %v4635, %v5412
    %v5420 = vxor.u32 %v5329, 2147483648
    %v5421 = vmul.f32 %v5420, 1.442695
    %v5422 = vpow.pop %v5421
    %v5423 = vadd.f32 %v5422, 1.0
    %v5424 = vrcp.pop %v5423
    %v5425 = vmul.f32 1.0, %v5424
    %v5426 = vxor.u32 %v5330, 2147483648
    %v5427 = vmul.f32 %v5426, 1.442695
    %v5428 = vpow.pop %v5427
    %v5429 = vadd.f32 %v5428, 1.0
    %v5430 = vrcp.pop %v5429
    %v5431 = vmul.f32 1.0, %v5430
    %v5432 = vtanh.pop %v5331
    %v5433 = vxor.u32 %v5332, 2147483648
    %v5434 = vmul.f32 %v5433, 1.442695
    %v5435 = vpow.pop %v5434
    %v5436 = vadd.f32 %v5435, 1.0
    %v5437 = vrcp.pop %v5436
    %v5438 = vmul.f32 1.0, %v5437
    %v5439 = vmul.f32 %v5431, %v5219
    %v5440 = vmul.f32 %v5425, %v5432
    %v5441 = vadd.f32 %v5439, %v5440
    %v5442 = vtanh.pop %v5441
    %v5443 = vmul.f32 %v5438, %v5442
    %v5444 = vxor.u32 %v5416, 2147483648
    %v5445 = vmul.f32 %v5444, 1.442695
    %v5446 = vpow.pop %v5445
    %v5447 = vadd.f32 %v5446, 1.0
    %v5448 = vrcp.pop %v5447
    %v5449 = vmul.f32 1.0, %v5448
    %v5450 = vxor.u32 %v5417, 2147483648
    %v5451 = vmul.f32 %v5450, 1.442695
    %v5452 = vpow.pop %v5451
    %v5453 = vadd.f32 %v5452, 1.0
    %v5454 = vrcp.pop %v5453
    %v5455 = vmul.f32 1.0, %v5454
    %v5456 = vtanh.pop %v5418
    %v5457 = vxor.u32 %v5419, 2147483648
    %v5458 = vmul.f32 %v5457, 1.442695
    %v5459 = vpow.pop %v5458
    %v5460 = vadd.f32 %v5459, 1.0
    %v5461 = vrcp.pop %v5460
    %v5462 = vmul.f32 1.0, %v5461
    %v5463 = vmul.f32 %v5455, %v5243
    %v5464 = vmul.f32 %v5449, %v5456
    %v5465 = vadd.f32 %v5463, %v5464
    %v5466 = vtanh.pop %v5465
    %v5467 = vmul.f32 %v5462, %v5466
    %v5468 = vpack.c.bf16 %v5443, %v5443
    %5469 = vmatprep.subr.bf16.mxu0 %v4831
    %5470 = vmatpush1.bf16.msra.mxu0 %v4830
    %5471 = vmatprep.subr.bf16.mxu0 %v4827
    %5472 = vmatpush1.bf16.msra.mxu0 %v4826
    %5473 = vmatprep.subr.bf16.mxu0 %v4823
    %5474 = vmatpush1.bf16.msra.mxu0 %v4822
    %5475 = vmatprep.subr.bf16.mxu0 %v4819
    %5476 = vmatpush1.bf16.msra.mxu0 %v4818
    %5477 = vmatprep.subr.bf16.mxu0 %v4815
    %5478 = vmatpush1.bf16.msra.mxu0 %v4814
    %5479 = vmatprep.subr.bf16.mxu0 %v4811
    %5480 = vmatpush1.bf16.msra.mxu0 %v4810
    %5481 = vmatprep.subr.bf16.mxu0 %v4807
    %5482 = vmatpush1.bf16.msra.mxu0 %v4806
    %5483 = vmatprep.subr.bf16.mxu0 %v4803
    %5484 = vmatpush1.bf16.msra.mxu0 %v4802
    %5485 = vmatprep.subr.bf16.mxu0 0
    %5486 = vmatpush2.bf16.msra.mxu0 0
    %5487 = vmatprep.subr.bf16.mxu0 0
    %5488 = vmatpush2.bf16.msra.mxu0 0
    %5489 = vmatprep.subr.bf16.mxu0 0
    %5490 = vmatpush2.bf16.msra.mxu0 0
    %5491 = vmatprep.subr.bf16.mxu0 0
    %5492 = vmatpush2.bf16.msra.mxu0 0
    %5493 = vmatprep.subr.bf16.mxu0 0
    %5494 = vmatpush2.bf16.msra.mxu0 0
    %5495 = vmatprep.subr.bf16.mxu0 0
    %5496 = vmatpush2.bf16.msra.mxu0 0
    %5497 = vmatprep.subr.bf16.mxu0 0
    %5498 = vmatpush2.bf16.msra.mxu0 0
    %5499 = vmatprep.subr.bf16.mxu0 0
    %5500 = vmatpush2.bf16.msra.mxu0 0
    %5501 = vmatprep.mubr.bf16.mxu0 0
    %5502 = vmatmul.mubr.bf16.gmra.mxu0 %v5468
    %v5503 = vpop.f32.mrf.mxu0
    %v5504 = vadd.f32 0.0, %v5503
    %v5505 = vpop.f32.mrf.mxu0
    %v5506 = vadd.f32 0.0, %v5505
    %v5507 = vpop.f32.mrf.mxu0
    %v5508 = vpop.f32.mrf.mxu0
    %5509 = vdwg.mxu0
    %5510 = vmatprep.subr.bf16.mxu0 %v4833
    %5511 = vmatpush1.bf16.msra.mxu0 %v4832
    %5512 = vmatprep.subr.bf16.mxu0 %v4829
    %5513 = vmatpush1.bf16.msra.mxu0 %v4828
    %5514 = vmatprep.subr.bf16.mxu0 %v4825
    %5515 = vmatpush1.bf16.msra.mxu0 %v4824
    %5516 = vmatprep.subr.bf16.mxu0 %v4821
    %5517 = vmatpush1.bf16.msra.mxu0 %v4820
    %5518 = vmatprep.subr.bf16.mxu0 %v4817
    %5519 = vmatpush1.bf16.msra.mxu0 %v4816
    %5520 = vmatprep.subr.bf16.mxu0 %v4813
    %5521 = vmatpush1.bf16.msra.mxu0 %v4812
    %5522 = vmatprep.subr.bf16.mxu0 %v4809
    %5523 = vmatpush1.bf16.msra.mxu0 %v4808
    %5524 = vmatprep.subr.bf16.mxu0 %v4805
    %5525 = vmatpush1.bf16.msra.mxu0 %v4804
    %5526 = vmatprep.subr.bf16.mxu0 0
    %5527 = vmatpush2.bf16.msra.mxu0 0
    %5528 = vmatprep.subr.bf16.mxu0 0
    %5529 = vmatpush2.bf16.msra.mxu0 0
    %5530 = vmatprep.subr.bf16.mxu0 0
    %5531 = vmatpush2.bf16.msra.mxu0 0
    %5532 = vmatprep.subr.bf16.mxu0 0
    %5533 = vmatpush2.bf16.msra.mxu0 0
    %5534 = vmatprep.subr.bf16.mxu0 0
    %5535 = vmatpush2.bf16.msra.mxu0 0
    %5536 = vmatprep.subr.bf16.mxu0 0
    %5537 = vmatpush2.bf16.msra.mxu0 0
    %5538 = vmatprep.subr.bf16.mxu0 0
    %5539 = vmatpush2.bf16.msra.mxu0 0
    %5540 = vmatprep.subr.bf16.mxu0 0
    %5541 = vmatpush2.bf16.msra.mxu0 0
    %5542 = vmatprep.mubr.bf16.mxu0 0
    %5543 = vmatmul.mubr.bf16.gmra.mxu0 %v5468
    %v5544 = vpop.f32.mrf.mxu0
    %v5545 = vadd.f32 0.0, %v5544
    %v5546 = vpop.f32.mrf.mxu0
    %v5547 = vadd.f32 0.0, %v5546
    %v5548 = vpop.f32.mrf.mxu0
    %v5549 = vpop.f32.mrf.mxu0
    %5550 = vdwg.mxu0
    %v5551 = vadd.f32 %v4394, %v5504
    %v5552 = vadd.f32 %v4396, %v5506
    %v5553 = vadd.f32 %v4467, %v5545
    %v5554 = vadd.f32 %v4469, %v5547
    %v5555 = vpack.c.bf16 %v5467, %v5467
    %5556 = vmatprep.subr.bf16.mxu0 %v5077
    %5557 = vmatpush1.bf16.msra.mxu0 %v5076
    %5558 = vmatprep.subr.bf16.mxu0 %v5073
    %5559 = vmatpush1.bf16.msra.mxu0 %v5072
    %5560 = vmatprep.subr.bf16.mxu0 %v5069
    %5561 = vmatpush1.bf16.msra.mxu0 %v5068
    %5562 = vmatprep.subr.bf16.mxu0 %v5065
    %5563 = vmatpush1.bf16.msra.mxu0 %v5064
    %5564 = vmatprep.subr.bf16.mxu0 %v5061
    %5565 = vmatpush1.bf16.msra.mxu0 %v5060
    %5566 = vmatprep.subr.bf16.mxu0 %v5057
    %5567 = vmatpush1.bf16.msra.mxu0 %v5056
    %5568 = vmatprep.subr.bf16.mxu0 %v5053
    %5569 = vmatpush1.bf16.msra.mxu0 %v5052
    %5570 = vmatprep.subr.bf16.mxu0 %v5049
    %5571 = vmatpush1.bf16.msra.mxu0 %v5048
    %5572 = vmatprep.subr.bf16.mxu0 0
    %5573 = vmatpush2.bf16.msra.mxu0 0
    %5574 = vmatprep.subr.bf16.mxu0 0
    %5575 = vmatpush2.bf16.msra.mxu0 0
    %5576 = vmatprep.subr.bf16.mxu0 0
    %5577 = vmatpush2.bf16.msra.mxu0 0
    %5578 = vmatprep.subr.bf16.mxu0 0
    %5579 = vmatpush2.bf16.msra.mxu0 0
    %5580 = vmatprep.subr.bf16.mxu0 0
    %5581 = vmatpush2.bf16.msra.mxu0 0
    %5582 = vmatprep.subr.bf16.mxu0 0
    %5583 = vmatpush2.bf16.msra.mxu0 0
    %5584 = vmatprep.subr.bf16.mxu0 0
    %5585 = vmatpush2.bf16.msra.mxu0 0
    %5586 = vmatprep.subr.bf16.mxu0 0
    %5587 = vmatpush2.bf16.msra.mxu0 0
    %5588 = vmatprep.mubr.bf16.mxu0 0
    %5589 = vmatmul.mubr.bf16.gmra.mxu0 %v5555
    %v5590 = vpop.f32.mrf.mxu0
    %v5591 = vadd.f32 0.0, %v5590
    %v5592 = vpop.f32.mrf.mxu0
    %v5593 = vadd.f32 0.0, %v5592
    %v5594 = vpop.f32.mrf.mxu0
    %v5595 = vpop.f32.mrf.mxu0
    %5596 = vdwg.mxu0
    %5597 = vmatprep.subr.bf16.mxu0 %v5079
    %5598 = vmatpush1.bf16.msra.mxu0 %v5078
    %5599 = vmatprep.subr.bf16.mxu0 %v5075
    %5600 = vmatpush1.bf16.msra.mxu0 %v5074
    %5601 = vmatprep.subr.bf16.mxu0 %v5071
    %5602 = vmatpush1.bf16.msra.mxu0 %v5070
    %5603 = vmatprep.subr.bf16.mxu0 %v5067
    %5604 = vmatpush1.bf16.msra.mxu0 %v5066
    %5605 = vmatprep.subr.bf16.mxu0 %v5063
    %5606 = vmatpush1.bf16.msra.mxu0 %v5062
    %5607 = vmatprep.subr.bf16.mxu0 %v5059
    %5608 = vmatpush1.bf16.msra.mxu0 %v5058
    %5609 = vmatprep.subr.bf16.mxu0 %v5055
    %5610 = vmatpush1.bf16.msra.mxu0 %v5054
    %5611 = vmatprep.subr.bf16.mxu0 %v5051
    %5612 = vmatpush1.bf16.msra.mxu0 %v5050
    %5613 = vmatprep.subr.bf16.mxu0 0
    %5614 = vmatpush2.bf16.msra.mxu0 0
    %5615 = vmatprep.subr.bf16.mxu0 0
    %5616 = vmatpush2.bf16.msra.mxu0 0
    %5617 = vmatprep.subr.bf16.mxu0 0
    %5618 = vmatpush2.bf16.msra.mxu0 0
    %5619 = vmatprep.subr.bf16.mxu0 0
    %5620 = vmatpush2.bf16.msra.mxu0 0
    %5621 = vmatprep.subr.bf16.mxu0 0
    %5622 = vmatpush2.bf16.msra.mxu0 0
    %5623 = vmatprep.subr.bf16.mxu0 0
    %5624 = vmatpush2.bf16.msra.mxu0 0
    %5625 = vmatprep.subr.bf16.mxu0 0
    %5626 = vmatpush2.bf16.msra.mxu0 0
    %5627 = vmatprep.subr.bf16.mxu0 0
    %5628 = vmatpush2.bf16.msra.mxu0 0
    %5629 = vmatprep.mubr.bf16.mxu0 0
    %5630 = vmatmul.mubr.bf16.gmra.mxu0 %v5555
    %v5631 = vpop.f32.mrf.mxu0
    %v5632 = vadd.f32 0.0, %v5631
    %v5633 = vpop.f32.mrf.mxu0
    %v5634 = vadd.f32 0.0, %v5633
    %v5635 = vpop.f32.mrf.mxu0
    %v5636 = vpop.f32.mrf.mxu0
    %5637 = vdwg.mxu0
    %v5638 = vadd.f32 %v4554, %v5591
    %v5639 = vadd.f32 %v4556, %v5593
    %v5640 = vadd.f32 %v4627, %v5632
    %v5641 = vadd.f32 %v4629, %v5634
    %v5642 = vxor.u32 %v5551, 2147483648
    %v5643 = vmul.f32 %v5642, 1.442695
    %v5644 = vpow.pop %v5643
    %v5645 = vadd.f32 %v5644, 1.0
    %v5646 = vrcp.pop %v5645
    %v5647 = vmul.f32 1.0, %v5646
    %v5648 = vxor.u32 %v5552, 2147483648
    %v5649 = vmul.f32 %v5648, 1.442695
    %v5650 = vpow.pop %v5649
    %v5651 = vadd.f32 %v5650, 1.0
    %v5652 = vrcp.pop %v5651
    %v5653 = vmul.f32 1.0, %v5652
    %v5654 = vtanh.pop %v5553
    %v5655 = vxor.u32 %v5554, 2147483648
    %v5656 = vmul.f32 %v5655, 1.442695
    %v5657 = vpow.pop %v5656
    %v5658 = vadd.f32 %v5657, 1.0
    %v5659 = vrcp.pop %v5658
    %v5660 = vmul.f32 1.0, %v5659
    %v5661 = vmul.f32 %v5653, %v5441
    %v5662 = vmul.f32 %v5647, %v5654
    %v5663 = vadd.f32 %v5661, %v5662
    %v5664 = vtanh.pop %v5663
    %v5665 = vmul.f32 %v5660, %v5664
    %v5666 = vxor.u32 %v5638, 2147483648
    %v5667 = vmul.f32 %v5666, 1.442695
    %v5668 = vpow.pop %v5667
    %v5669 = vadd.f32 %v5668, 1.0
    %v5670 = vrcp.pop %v5669
    %v5671 = vmul.f32 1.0, %v5670
    %v5672 = vxor.u32 %v5639, 2147483648
    %v5673 = vmul.f32 %v5672, 1.442695
    %v5674 = vpow.pop %v5673
    %v5675 = vadd.f32 %v5674, 1.0
    %v5676 = vrcp.pop %v5675
    %v5677 = vmul.f32 1.0, %v5676
    %v5678 = vtanh.pop %v5640
    %v5679 = vxor.u32 %v5641, 2147483648
    %v5680 = vmul.f32 %v5679, 1.442695
    %v5681 = vpow.pop %v5680
    %v5682 = vadd.f32 %v5681, 1.0
    %v5683 = vrcp.pop %v5682
    %v5684 = vmul.f32 1.0, %v5683
    %v5685 = vmul.f32 %v5677, %v5465
    %v5686 = vmul.f32 %v5671, %v5678
    %v5687 = vadd.f32 %v5685, %v5686
    %v5688 = vtanh.pop %v5687
    %v5689 = vmul.f32 %v5684, %v5688
    %v5690 = vpack.c.bf16 %v5665, %v5665
    %5691 = vmatprep.subr.bf16.mxu0 %v4831
    %5692 = vmatpush1.bf16.msra.mxu0 %v4830
    %5693 = vmatprep.subr.bf16.mxu0 %v4827
    %5694 = vmatpush1.bf16.msra.mxu0 %v4826
    %5695 = vmatprep.subr.bf16.mxu0 %v4823
    %5696 = vmatpush1.bf16.msra.mxu0 %v4822
    %5697 = vmatprep.subr.bf16.mxu0 %v4819
    %5698 = vmatpush1.bf16.msra.mxu0 %v4818
    %5699 = vmatprep.subr.bf16.mxu0 %v4815
    %5700 = vmatpush1.bf16.msra.mxu0 %v4814
    %5701 = vmatprep.subr.bf16.mxu0 %v4811
    %5702 = vmatpush1.bf16.msra.mxu0 %v4810
    %5703 = vmatprep.subr.bf16.mxu0 %v4807
    %5704 = vmatpush1.bf16.msra.mxu0 %v4806
    %5705 = vmatprep.subr.bf16.mxu0 %v4803
    %5706 = vmatpush1.bf16.msra.mxu0 %v4802
    %5707 = vmatprep.subr.bf16.mxu0 0
    %5708 = vmatpush2.bf16.msra.mxu0 0
    %5709 = vmatprep.subr.bf16.mxu0 0
    %5710 = vmatpush2.bf16.msra.mxu0 0
    %5711 = vmatprep.subr.bf16.mxu0 0
    %5712 = vmatpush2.bf16.msra.mxu0 0
    %5713 = vmatprep.subr.bf16.mxu0 0
    %5714 = vmatpush2.bf16.msra.mxu0 0
    %5715 = vmatprep.subr.bf16.mxu0 0
    %5716 = vmatpush2.bf16.msra.mxu0 0
    %5717 = vmatprep.subr.bf16.mxu0 0
    %5718 = vmatpush2.bf16.msra.mxu0 0
    %5719 = vmatprep.subr.bf16.mxu0 0
    %5720 = vmatpush2.bf16.msra.mxu0 0
    %5721 = vmatprep.subr.bf16.mxu0 0
    %5722 = vmatpush2.bf16.msra.mxu0 0
    %5723 = vmatprep.mubr.bf16.mxu0 0
    %5724 = vmatmul.mubr.bf16.gmra.mxu0 %v5690
    %v5725 = vpop.f32.mrf.mxu0
    %v5726 = vadd.f32 0.0, %v5725
    %v5727 = vpop.f32.mrf.mxu0
    %v5728 = vadd.f32 0.0, %v5727
    %v5729 = vpop.f32.mrf.mxu0
    %v5730 = vpop.f32.mrf.mxu0
    %5731 = vdwg.mxu0
    %5732 = vmatprep.subr.bf16.mxu0 %v4833
    %5733 = vmatpush1.bf16.msra.mxu0 %v4832
    %5734 = vmatprep.subr.bf16.mxu0 %v4829
    %5735 = vmatpush1.bf16.msra.mxu0 %v4828
    %5736 = vmatprep.subr.bf16.mxu0 %v4825
    %5737 = vmatpush1.bf16.msra.mxu0 %v4824
    %5738 = vmatprep.subr.bf16.mxu0 %v4821
    %5739 = vmatpush1.bf16.msra.mxu0 %v4820
    %5740 = vmatprep.subr.bf16.mxu0 %v4817
    %5741 = vmatpush1.bf16.msra.mxu0 %v4816
    %5742 = vmatprep.subr.bf16.mxu0 %v4813
    %5743 = vmatpush1.bf16.msra.mxu0 %v4812
    %5744 = vmatprep.subr.bf16.mxu0 %v4809
    %5745 = vmatpush1.bf16.msra.mxu0 %v4808
    %5746 = vmatprep.subr.bf16.mxu0 %v4805
    %5747 = vmatpush1.bf16.msra.mxu0 %v4804
    %5748 = vmatprep.subr.bf16.mxu0 0
    %5749 = vmatpush2.bf16.msra.mxu0 0
    %5750 = vmatprep.subr.bf16.mxu0 0
    %5751 = vmatpush2.bf16.msra.mxu0 0
    %5752 = vmatprep.subr.bf16.mxu0 0
    %5753 = vmatpush2.bf16.msra.mxu0 0
    %5754 = vmatprep.subr.bf16.mxu0 0
    %5755 = vmatpush2.bf16.msra.mxu0 0
    %5756 = vmatprep.subr.bf16.mxu0 0
    %5757 = vmatpush2.bf16.msra.mxu0 0
    %5758 = vmatprep.subr.bf16.mxu0 0
    %5759 = vmatpush2.bf16.msra.mxu0 0
    %5760 = vmatprep.subr.bf16.mxu0 0
    %5761 = vmatpush2.bf16.msra.mxu0 0
    %5762 = vmatprep.subr.bf16.mxu0 0
    %5763 = vmatpush2.bf16.msra.mxu0 0
    %5764 = vmatprep.mubr.bf16.mxu0 0
    %5765 = vmatmul.mubr.bf16.gmra.mxu0 %v5690
    %v5766 = vpop.f32.mrf.mxu0
    %v5767 = vadd.f32 0.0, %v5766
    %v5768 = vpop.f32.mrf.mxu0
    %v5769 = vadd.f32 0.0, %v5768
    %v5770 = vpop.f32.mrf.mxu0
    %v5771 = vpop.f32.mrf.mxu0
    %5772 = vdwg.mxu0
    %v5773 = vadd.f32 %v4398, %v5726
    %v5774 = vadd.f32 %v4400, %v5728
    %v5775 = vadd.f32 %v4471, %v5767
    %v5776 = vadd.f32 %v4473, %v5769
    %v5777 = vpack.c.bf16 %v5689, %v5689
    %5778 = vmatprep.subr.bf16.mxu0 %v5077
    %5779 = vmatpush1.bf16.msra.mxu0 %v5076
    %5780 = vmatprep.subr.bf16.mxu0 %v5073
    %5781 = vmatpush1.bf16.msra.mxu0 %v5072
    %5782 = vmatprep.subr.bf16.mxu0 %v5069
    %5783 = vmatpush1.bf16.msra.mxu0 %v5068
    %5784 = vmatprep.subr.bf16.mxu0 %v5065
    %5785 = vmatpush1.bf16.msra.mxu0 %v5064
    %5786 = vmatprep.subr.bf16.mxu0 %v5061
    %5787 = vmatpush1.bf16.msra.mxu0 %v5060
    %5788 = vmatprep.subr.bf16.mxu0 %v5057
    %5789 = vmatpush1.bf16.msra.mxu0 %v5056
    %5790 = vmatprep.subr.bf16.mxu0 %v5053
    %5791 = vmatpush1.bf16.msra.mxu0 %v5052
    %5792 = vmatprep.subr.bf16.mxu0 %v5049
    %5793 = vmatpush1.bf16.msra.mxu0 %v5048
    %5794 = vmatprep.subr.bf16.mxu0 0
    %5795 = vmatpush2.bf16.msra.mxu0 0
    %5796 = vmatprep.subr.bf16.mxu0 0
    %5797 = vmatpush2.bf16.msra.mxu0 0
    %5798 = vmatprep.subr.bf16.mxu0 0
    %5799 = vmatpush2.bf16.msra.mxu0 0
    %5800 = vmatprep.subr.bf16.mxu0 0
    %5801 = vmatpush2.bf16.msra.mxu0 0
    %5802 = vmatprep.subr.bf16.mxu0 0
    %5803 = vmatpush2.bf16.msra.mxu0 0
    %5804 = vmatprep.subr.bf16.mxu0 0
    %5805 = vmatpush2.bf16.msra.mxu0 0
    %5806 = vmatprep.subr.bf16.mxu0 0
    %5807 = vmatpush2.bf16.msra.mxu0 0
    %5808 = vmatprep.subr.bf16.mxu0 0
    %5809 = vmatpush2.bf16.msra.mxu0 0
    %5810 = vmatprep.mubr.bf16.mxu0 0
    %5811 = vmatmul.mubr.bf16.gmra.mxu0 %v5777
    %v5812 = vpop.f32.mrf.mxu0
    %v5813 = vadd.f32 0.0, %v5812
    %v5814 = vpop.f32.mrf.mxu0
    %v5815 = vadd.f32 0.0, %v5814
    %v5816 = vpop.f32.mrf.mxu0
    %v5817 = vpop.f32.mrf.mxu0
    %5818 = vdwg.mxu0
    %5819 = vmatprep.subr.bf16.mxu0 %v5079
    %5820 = vmatpush1.bf16.msra.mxu0 %v5078
    %5821 = vmatprep.subr.bf16.mxu0 %v5075
    %5822 = vmatpush1.bf16.msra.mxu0 %v5074
    %5823 = vmatprep.subr.bf16.mxu0 %v5071
    %5824 = vmatpush1.bf16.msra.mxu0 %v5070
    %5825 = vmatprep.subr.bf16.mxu0 %v5067
    %5826 = vmatpush1.bf16.msra.mxu0 %v5066
    %5827 = vmatprep.subr.bf16.mxu0 %v5063
    %5828 = vmatpush1.bf16.msra.mxu0 %v5062
    %5829 = vmatprep.subr.bf16.mxu0 %v5059
    %5830 = vmatpush1.bf16.msra.mxu0 %v5058
    %5831 = vmatprep.subr.bf16.mxu0 %v5055
    %5832 = vmatpush1.bf16.msra.mxu0 %v5054
    %5833 = vmatprep.subr.bf16.mxu0 %v5051
    %5834 = vmatpush1.bf16.msra.mxu0 %v5050
    %5835 = vmatprep.subr.bf16.mxu0 0
    %5836 = vmatpush2.bf16.msra.mxu0 0
    %5837 = vmatprep.subr.bf16.mxu0 0
    %5838 = vmatpush2.bf16.msra.mxu0 0
    %5839 = vmatprep.subr.bf16.mxu0 0
    %5840 = vmatpush2.bf16.msra.mxu0 0
    %5841 = vmatprep.subr.bf16.mxu0 0
    %5842 = vmatpush2.bf16.msra.mxu0 0
    %5843 = vmatprep.subr.bf16.mxu0 0
    %5844 = vmatpush2.bf16.msra.mxu0 0
    %5845 = vmatprep.subr.bf16.mxu0 0
    %5846 = vmatpush2.bf16.msra.mxu0 0
    %5847 = vmatprep.subr.bf16.mxu0 0
    %5848 = vmatpush2.bf16.msra.mxu0 0
    %5849 = vmatprep.subr.bf16.mxu0 0
    %5850 = vmatpush2.bf16.msra.mxu0 0
    %5851 = vmatprep.mubr.bf16.mxu0 0
    %5852 = vmatmul.mubr.bf16.gmra.mxu0 %v5777
    %v5853 = vpop.f32.mrf.mxu0
    %v5854 = vadd.f32 0.0, %v5853
    %v5855 = vpop.f32.mrf.mxu0
    %v5856 = vadd.f32 0.0, %v5855
    %v5857 = vpop.f32.mrf.mxu0
    %v5858 = vpop.f32.mrf.mxu0
    %5859 = vdwg.mxu0
    %v5860 = vadd.f32 %v4550, %v5813
    %v5861 = vadd.f32 %v4552, %v5815
    %v5862 = vadd.f32 %v4623, %v5854
    %v5863 = vadd.f32 %v4625, %v5856
    %v5864 = vxor.u32 %v5773, 2147483648
    %v5865 = vmul.f32 %v5864, 1.442695
    %v5866 = vpow.pop %v5865
    %v5867 = vadd.f32 %v5866, 1.0
    %v5868 = vrcp.pop %v5867
    %v5869 = vmul.f32 1.0, %v5868
    %v5870 = vxor.u32 %v5774, 2147483648
    %v5871 = vmul.f32 %v5870, 1.442695
    %v5872 = vpow.pop %v5871
    %v5873 = vadd.f32 %v5872, 1.0
    %v5874 = vrcp.pop %v5873
    %v5875 = vmul.f32 1.0, %v5874
    %v5876 = vtanh.pop %v5775
    %v5877 = vxor.u32 %v5776, 2147483648
    %v5878 = vmul.f32 %v5877, 1.442695
    %v5879 = vpow.pop %v5878
    %v5880 = vadd.f32 %v5879, 1.0
    %v5881 = vrcp.pop %v5880
    %v5882 = vmul.f32 1.0, %v5881
    %v5883 = vmul.f32 %v5875, %v5663
    %v5884 = vmul.f32 %v5869, %v5876
    %v5885 = vadd.f32 %v5883, %v5884
    %v5886 = vtanh.pop %v5885
    %v5887 = vmul.f32 %v5882, %v5886
    %v5888 = vxor.u32 %v5860, 2147483648
    %v5889 = vmul.f32 %v5888, 1.442695
    %v5890 = vpow.pop %v5889
    %v5891 = vadd.f32 %v5890, 1.0
    %v5892 = vrcp.pop %v5891
    %v5893 = vmul.f32 1.0, %v5892
    %v5894 = vxor.u32 %v5861, 2147483648
    %v5895 = vmul.f32 %v5894, 1.442695
    %v5896 = vpow.pop %v5895
    %v5897 = vadd.f32 %v5896, 1.0
    %v5898 = vrcp.pop %v5897
    %v5899 = vmul.f32 1.0, %v5898
    %v5900 = vtanh.pop %v5862
    %v5901 = vxor.u32 %v5863, 2147483648
    %v5902 = vmul.f32 %v5901, 1.442695
    %v5903 = vpow.pop %v5902
    %v5904 = vadd.f32 %v5903, 1.0
    %v5905 = vrcp.pop %v5904
    %v5906 = vmul.f32 1.0, %v5905
    %v5907 = vmul.f32 %v5899, %v5687
    %v5908 = vmul.f32 %v5893, %v5900
    %v5909 = vadd.f32 %v5907, %v5908
    %v5910 = vtanh.pop %v5909
    %v5911 = vmul.f32 %v5906, %v5910
    %v5912 = vpack.c.bf16 %v5887, %v5887
    %5913 = vmatprep.subr.bf16.mxu0 %v4831
    %5914 = vmatpush1.bf16.msra.mxu0 %v4830
    %5915 = vmatprep.subr.bf16.mxu0 %v4827
    %5916 = vmatpush1.bf16.msra.mxu0 %v4826
    %5917 = vmatprep.subr.bf16.mxu0 %v4823
    %5918 = vmatpush1.bf16.msra.mxu0 %v4822
    %5919 = vmatprep.subr.bf16.mxu0 %v4819
    %5920 = vmatpush1.bf16.msra.mxu0 %v4818
    %5921 = vmatprep.subr.bf16.mxu0 %v4815
    %5922 = vmatpush1.bf16.msra.mxu0 %v4814
    %5923 = vmatprep.subr.bf16.mxu0 %v4811
    %5924 = vmatpush1.bf16.msra.mxu0 %v4810
    %5925 = vmatprep.subr.bf16.mxu0 %v4807
    %5926 = vmatpush1.bf16.msra.mxu0 %v4806
    %5927 = vmatprep.subr.bf16.mxu0 %v4803
    %5928 = vmatpush1.bf16.msra.mxu0 %v4802
    %5929 = vmatprep.subr.bf16.mxu0 0
    %5930 = vmatpush2.bf16.msra.mxu0 0
    %5931 = vmatprep.subr.bf16.mxu0 0
    %5932 = vmatpush2.bf16.msra.mxu0 0
    %5933 = vmatprep.subr.bf16.mxu0 0
    %5934 = vmatpush2.bf16.msra.mxu0 0
    %5935 = vmatprep.subr.bf16.mxu0 0
    %5936 = vmatpush2.bf16.msra.mxu0 0
    %5937 = vmatprep.subr.bf16.mxu0 0
    %5938 = vmatpush2.bf16.msra.mxu0 0
    %5939 = vmatprep.subr.bf16.mxu0 0
    %5940 = vmatpush2.bf16.msra.mxu0 0
    %5941 = vmatprep.subr.bf16.mxu0 0
    %5942 = vmatpush2.bf16.msra.mxu0 0
    %5943 = vmatprep.subr.bf16.mxu0 0
    %5944 = vmatpush2.bf16.msra.mxu0 0
    %5945 = vmatprep.mubr.bf16.mxu0 0
    %5946 = vmatmul.mubr.bf16.gmra.mxu0 %v5912
    %v5947 = vpop.f32.mrf.mxu0
    %v5948 = vadd.f32 0.0, %v5947
    %v5949 = vpop.f32.mrf.mxu0
    %v5950 = vadd.f32 0.0, %v5949
    %v5951 = vpop.f32.mrf.mxu0
    %v5952 = vpop.f32.mrf.mxu0
    %5953 = vdwg.mxu0
    %5954 = vmatprep.subr.bf16.mxu0 %v4833
    %5955 = vmatpush1.bf16.msra.mxu0 %v4832
    %5956 = vmatprep.subr.bf16.mxu0 %v4829
    %5957 = vmatpush1.bf16.msra.mxu0 %v4828
    %5958 = vmatprep.subr.bf16.mxu0 %v4825
    %5959 = vmatpush1.bf16.msra.mxu0 %v4824
    %5960 = vmatprep.subr.bf16.mxu0 %v4821
    %5961 = vmatpush1.bf16.msra.mxu0 %v4820
    %5962 = vmatprep.subr.bf16.mxu0 %v4817
    %5963 = vmatpush1.bf16.msra.mxu0 %v4816
    %5964 = vmatprep.subr.bf16.mxu0 %v4813
    %5965 = vmatpush1.bf16.msra.mxu0 %v4812
    %5966 = vmatprep.subr.bf16.mxu0 %v4809
    %5967 = vmatpush1.bf16.msra.mxu0 %v4808
    %5968 = vmatprep.subr.bf16.mxu0 %v4805
    %5969 = vmatpush1.bf16.msra.mxu0 %v4804
    %5970 = vmatprep.subr.bf16.mxu0 0
    %5971 = vmatpush2.bf16.msra.mxu0 0
    %5972 = vmatprep.subr.bf16.mxu0 0
    %5973 = vmatpush2.bf16.msra.mxu0 0
    %5974 = vmatprep.subr.bf16.mxu0 0
    %5975 = vmatpush2.bf16.msra.mxu0 0
    %5976 = vmatprep.subr.bf16.mxu0 0
    %5977 = vmatpush2.bf16.msra.mxu0 0
    %5978 = vmatprep.subr.bf16.mxu0 0
    %5979 = vmatpush2.bf16.msra.mxu0 0
    %5980 = vmatprep.subr.bf16.mxu0 0
    %5981 = vmatpush2.bf16.msra.mxu0 0
    %5982 = vmatprep.subr.bf16.mxu0 0
    %5983 = vmatpush2.bf16.msra.mxu0 0
    %5984 = vmatprep.subr.bf16.mxu0 0
    %5985 = vmatpush2.bf16.msra.mxu0 0
    %5986 = vmatprep.mubr.bf16.mxu0 0
    %5987 = vmatmul.mubr.bf16.gmra.mxu0 %v5912
    %v5988 = vpop.f32.mrf.mxu0
    %v5989 = vadd.f32 0.0, %v5988
    %v5990 = vpop.f32.mrf.mxu0
    %v5991 = vadd.f32 0.0, %v5990
    %v5992 = vpop.f32.mrf.mxu0
    %v5993 = vpop.f32.mrf.mxu0
    %5994 = vdwg.mxu0
    %v5995 = vadd.f32 %v4404, %v5948
    %v5996 = vadd.f32 %v4406, %v5950
    %v5997 = vadd.f32 %v4477, %v5989
    %v5998 = vadd.f32 %v4479, %v5991
    %v5999 = vpack.c.bf16 %v5911, %v5911
    %6000 = vmatprep.subr.bf16.mxu0 %v5077
    %6001 = vmatpush1.bf16.msra.mxu0 %v5076
    %6002 = vmatprep.subr.bf16.mxu0 %v5073
    %6003 = vmatpush1.bf16.msra.mxu0 %v5072
    %6004 = vmatprep.subr.bf16.mxu0 %v5069
    %6005 = vmatpush1.bf16.msra.mxu0 %v5068
    %6006 = vmatprep.subr.bf16.mxu0 %v5065
    %6007 = vmatpush1.bf16.msra.mxu0 %v5064
    %6008 = vmatprep.subr.bf16.mxu0 %v5061
    %6009 = vmatpush1.bf16.msra.mxu0 %v5060
    %6010 = vmatprep.subr.bf16.mxu0 %v5057
    %6011 = vmatpush1.bf16.msra.mxu0 %v5056
    %6012 = vmatprep.subr.bf16.mxu0 %v5053
    %6013 = vmatpush1.bf16.msra.mxu0 %v5052
    %6014 = vmatprep.subr.bf16.mxu0 %v5049
    %6015 = vmatpush1.bf16.msra.mxu0 %v5048
    %6016 = vmatprep.subr.bf16.mxu0 0
    %6017 = vmatpush2.bf16.msra.mxu0 0
    %6018 = vmatprep.subr.bf16.mxu0 0
    %6019 = vmatpush2.bf16.msra.mxu0 0
    %6020 = vmatprep.subr.bf16.mxu0 0
    %6021 = vmatpush2.bf16.msra.mxu0 0
    %6022 = vmatprep.subr.bf16.mxu0 0
    %6023 = vmatpush2.bf16.msra.mxu0 0
    %6024 = vmatprep.subr.bf16.mxu0 0
    %6025 = vmatpush2.bf16.msra.mxu0 0
    %6026 = vmatprep.subr.bf16.mxu0 0
    %6027 = vmatpush2.bf16.msra.mxu0 0
    %6028 = vmatprep.subr.bf16.mxu0 0
    %6029 = vmatpush2.bf16.msra.mxu0 0
    %6030 = vmatprep.subr.bf16.mxu0 0
    %6031 = vmatpush2.bf16.msra.mxu0 0
    %6032 = vmatprep.mubr.bf16.mxu0 0
    %6033 = vmatmul.mubr.bf16.gmra.mxu0 %v5999
    %v6034 = vpop.f32.mrf.mxu0
    %v6035 = vadd.f32 0.0, %v6034
    %v6036 = vpop.f32.mrf.mxu0
    %v6037 = vadd.f32 0.0, %v6036
    %v6038 = vpop.f32.mrf.mxu0
    %v6039 = vpop.f32.mrf.mxu0
    %6040 = vdwg.mxu0
    %6041 = vmatprep.subr.bf16.mxu0 %v5079
    %6042 = vmatpush1.bf16.msra.mxu0 %v5078
    %6043 = vmatprep.subr.bf16.mxu0 %v5075
    %6044 = vmatpush1.bf16.msra.mxu0 %v5074
    %6045 = vmatprep.subr.bf16.mxu0 %v5071
    %6046 = vmatpush1.bf16.msra.mxu0 %v5070
    %6047 = vmatprep.subr.bf16.mxu0 %v5067
    %6048 = vmatpush1.bf16.msra.mxu0 %v5066
    %6049 = vmatprep.subr.bf16.mxu0 %v5063
    %6050 = vmatpush1.bf16.msra.mxu0 %v5062
    %6051 = vmatprep.subr.bf16.mxu0 %v5059
    %6052 = vmatpush1.bf16.msra.mxu0 %v5058
    %6053 = vmatprep.subr.bf16.mxu0 %v5055
    %6054 = vmatpush1.bf16.msra.mxu0 %v5054
    %6055 = vmatprep.subr.bf16.mxu0 %v5051
    %6056 = vmatpush1.bf16.msra.mxu0 %v5050
    %6057 = vmatprep.subr.bf16.mxu0 0
    %6058 = vmatpush2.bf16.msra.mxu0 0
    %6059 = vmatprep.subr.bf16.mxu0 0
    %6060 = vmatpush2.bf16.msra.mxu0 0
    %6061 = vmatprep.subr.bf16.mxu0 0
    %6062 = vmatpush2.bf16.msra.mxu0 0
    %6063 = vmatprep.subr.bf16.mxu0 0
    %6064 = vmatpush2.bf16.msra.mxu0 0
    %6065 = vmatprep.subr.bf16.mxu0 0
    %6066 = vmatpush2.bf16.msra.mxu0 0
    %6067 = vmatprep.subr.bf16.mxu0 0
    %6068 = vmatpush2.bf16.msra.mxu0 0
    %6069 = vmatprep.subr.bf16.mxu0 0
    %6070 = vmatpush2.bf16.msra.mxu0 0
    %6071 = vmatprep.subr.bf16.mxu0 0
    %6072 = vmatpush2.bf16.msra.mxu0 0
    %6073 = vmatprep.mubr.bf16.mxu0 0
    %6074 = vmatmul.mubr.bf16.gmra.mxu0 %v5999
    %v6075 = vpop.f32.mrf.mxu0
    %v6076 = vadd.f32 0.0, %v6075
    %v6077 = vpop.f32.mrf.mxu0
    %v6078 = vadd.f32 0.0, %v6077
    %v6079 = vpop.f32.mrf.mxu0
    %v6080 = vpop.f32.mrf.mxu0
    %6081 = vdwg.mxu0
    %v6082 = vadd.f32 %v4544, %v6035
    %v6083 = vadd.f32 %v4546, %v6037
    %v6084 = vadd.f32 %v4617, %v6076
    %v6085 = vadd.f32 %v4619, %v6078
    %v6086 = vxor.u32 %v5995, 2147483648
    %v6087 = vmul.f32 %v6086, 1.442695
    %v6088 = vpow.pop %v6087
    %v6089 = vadd.f32 %v6088, 1.0
    %v6090 = vrcp.pop %v6089
    %v6091 = vmul.f32 1.0, %v6090
    %v6092 = vxor.u32 %v5996, 2147483648
    %v6093 = vmul.f32 %v6092, 1.442695
    %v6094 = vpow.pop %v6093
    %v6095 = vadd.f32 %v6094, 1.0
    %v6096 = vrcp.pop %v6095
    %v6097 = vmul.f32 1.0, %v6096
    %v6098 = vtanh.pop %v5997
    %v6099 = vxor.u32 %v5998, 2147483648
    %v6100 = vmul.f32 %v6099, 1.442695
    %v6101 = vpow.pop %v6100
    %v6102 = vadd.f32 %v6101, 1.0
    %v6103 = vrcp.pop %v6102
    %v6104 = vmul.f32 1.0, %v6103
    %v6105 = vmul.f32 %v6097, %v5885
    %v6106 = vmul.f32 %v6091, %v6098
    %v6107 = vadd.f32 %v6105, %v6106
    %v6108 = vtanh.pop %v6107
    %v6109 = vmul.f32 %v6104, %v6108
    %v6110 = vxor.u32 %v6082, 2147483648
    %v6111 = vmul.f32 %v6110, 1.442695
    %v6112 = vpow.pop %v6111
    %v6113 = vadd.f32 %v6112, 1.0
    %v6114 = vrcp.pop %v6113
    %v6115 = vmul.f32 1.0, %v6114
    %v6116 = vxor.u32 %v6083, 2147483648
    %v6117 = vmul.f32 %v6116, 1.442695
    %v6118 = vpow.pop %v6117
    %v6119 = vadd.f32 %v6118, 1.0
    %v6120 = vrcp.pop %v6119
    %v6121 = vmul.f32 1.0, %v6120
    %v6122 = vtanh.pop %v6084
    %v6123 = vxor.u32 %v6085, 2147483648
    %v6124 = vmul.f32 %v6123, 1.442695
    %v6125 = vpow.pop %v6124
    %v6126 = vadd.f32 %v6125, 1.0
    %v6127 = vrcp.pop %v6126
    %v6128 = vmul.f32 1.0, %v6127
    %v6129 = vmul.f32 %v6121, %v5909
    %v6130 = vmul.f32 %v6115, %v6122
    %v6131 = vadd.f32 %v6129, %v6130
    %v6132 = vtanh.pop %v6131
    %v6133 = vmul.f32 %v6128, %v6132
    %v6134 = vpack.c.bf16 %v6109, %v6109
    %6135 = vmatprep.subr.bf16.mxu0 %v4831
    %6136 = vmatpush1.bf16.msra.mxu0 %v4830
    %6137 = vmatprep.subr.bf16.mxu0 %v4827
    %6138 = vmatpush1.bf16.msra.mxu0 %v4826
    %6139 = vmatprep.subr.bf16.mxu0 %v4823
    %6140 = vmatpush1.bf16.msra.mxu0 %v4822
    %6141 = vmatprep.subr.bf16.mxu0 %v4819
    %6142 = vmatpush1.bf16.msra.mxu0 %v4818
    %6143 = vmatprep.subr.bf16.mxu0 %v4815
    %6144 = vmatpush1.bf16.msra.mxu0 %v4814
    %6145 = vmatprep.subr.bf16.mxu0 %v4811
    %6146 = vmatpush1.bf16.msra.mxu0 %v4810
    %6147 = vmatprep.subr.bf16.mxu0 %v4807
    %6148 = vmatpush1.bf16.msra.mxu0 %v4806
    %6149 = vmatprep.subr.bf16.mxu0 %v4803
    %6150 = vmatpush1.bf16.msra.mxu0 %v4802
    %6151 = vmatprep.subr.bf16.mxu0 0
    %6152 = vmatpush2.bf16.msra.mxu0 0
    %6153 = vmatprep.subr.bf16.mxu0 0
    %6154 = vmatpush2.bf16.msra.mxu0 0
    %6155 = vmatprep.subr.bf16.mxu0 0
    %6156 = vmatpush2.bf16.msra.mxu0 0
    %6157 = vmatprep.subr.bf16.mxu0 0
    %6158 = vmatpush2.bf16.msra.mxu0 0
    %6159 = vmatprep.subr.bf16.mxu0 0
    %6160 = vmatpush2.bf16.msra.mxu0 0
    %6161 = vmatprep.subr.bf16.mxu0 0
    %6162 = vmatpush2.bf16.msra.mxu0 0
    %6163 = vmatprep.subr.bf16.mxu0 0
    %6164 = vmatpush2.bf16.msra.mxu0 0
    %6165 = vmatprep.subr.bf16.mxu0 0
    %6166 = vmatpush2.bf16.msra.mxu0 0
    %6167 = vmatprep.mubr.bf16.mxu0 0
    %6168 = vmatmul.mubr.bf16.gmra.mxu0 %v6134
    %v6169 = vpop.f32.mrf.mxu0
    %v6170 = vadd.f32 0.0, %v6169
    %v6171 = vpop.f32.mrf.mxu0
    %v6172 = vadd.f32 0.0, %v6171
    %v6173 = vpop.f32.mrf.mxu0
    %v6174 = vpop.f32.mrf.mxu0
    %6175 = vdwg.mxu0
    %6176 = vmatprep.subr.bf16.mxu0 %v4833
    %6177 = vmatpush1.bf16.msra.mxu0 %v4832
    %6178 = vmatprep.subr.bf16.mxu0 %v4829
    %6179 = vmatpush1.bf16.msra.mxu0 %v4828
    %6180 = vmatprep.subr.bf16.mxu0 %v4825
    %6181 = vmatpush1.bf16.msra.mxu0 %v4824
    %6182 = vmatprep.subr.bf16.mxu0 %v4821
    %6183 = vmatpush1.bf16.msra.mxu0 %v4820
    %6184 = vmatprep.subr.bf16.mxu0 %v4817
    %6185 = vmatpush1.bf16.msra.mxu0 %v4816
    %6186 = vmatprep.subr.bf16.mxu0 %v4813
    %6187 = vmatpush1.bf16.msra.mxu0 %v4812
    %6188 = vmatprep.subr.bf16.mxu0 %v4809
    %6189 = vmatpush1.bf16.msra.mxu0 %v4808
    %6190 = vmatprep.subr.bf16.mxu0 %v4805
    %6191 = vmatpush1.bf16.msra.mxu0 %v4804
    %6192 = vmatprep.subr.bf16.mxu0 0
    %6193 = vmatpush2.bf16.msra.mxu0 0
    %6194 = vmatprep.subr.bf16.mxu0 0
    %6195 = vmatpush2.bf16.msra.mxu0 0
    %6196 = vmatprep.subr.bf16.mxu0 0
    %6197 = vmatpush2.bf16.msra.mxu0 0
    %6198 = vmatprep.subr.bf16.mxu0 0
    %6199 = vmatpush2.bf16.msra.mxu0 0
    %6200 = vmatprep.subr.bf16.mxu0 0
    %6201 = vmatpush2.bf16.msra.mxu0 0
    %6202 = vmatprep.subr.bf16.mxu0 0
    %6203 = vmatpush2.bf16.msra.mxu0 0
    %6204 = vmatprep.subr.bf16.mxu0 0
    %6205 = vmatpush2.bf16.msra.mxu0 0
    %6206 = vmatprep.subr.bf16.mxu0 0
    %6207 = vmatpush2.bf16.msra.mxu0 0
    %6208 = vmatprep.mubr.bf16.mxu0 0
    %6209 = vmatmul.mubr.bf16.gmra.mxu0 %v6134
    %v6210 = vpop.f32.mrf.mxu0
    %v6211 = vadd.f32 0.0, %v6210
    %v6212 = vpop.f32.mrf.mxu0
    %v6213 = vadd.f32 0.0, %v6212
    %v6214 = vpop.f32.mrf.mxu0
    %v6215 = vpop.f32.mrf.mxu0
    %6216 = vdwg.mxu0
    %v6217 = vadd.f32 %v4408, %v6170
    %v6218 = vadd.f32 %v4410, %v6172
    %v6219 = vadd.f32 %v4481, %v6211
    %v6220 = vadd.f32 %v4483, %v6213
    %v6221 = vpack.c.bf16 %v6133, %v6133
    %6222 = vmatprep.subr.bf16.mxu0 %v5077
    %6223 = vmatpush1.bf16.msra.mxu0 %v5076
    %6224 = vmatprep.subr.bf16.mxu0 %v5073
    %6225 = vmatpush1.bf16.msra.mxu0 %v5072
    %6226 = vmatprep.subr.bf16.mxu0 %v5069
    %6227 = vmatpush1.bf16.msra.mxu0 %v5068
    %6228 = vmatprep.subr.bf16.mxu0 %v5065
    %6229 = vmatpush1.bf16.msra.mxu0 %v5064
    %6230 = vmatprep.subr.bf16.mxu0 %v5061
    %6231 = vmatpush1.bf16.msra.mxu0 %v5060
    %6232 = vmatprep.subr.bf16.mxu0 %v5057
    %6233 = vmatpush1.bf16.msra.mxu0 %v5056
    %6234 = vmatprep.subr.bf16.mxu0 %v5053
    %6235 = vmatpush1.bf16.msra.mxu0 %v5052
    %6236 = vmatprep.subr.bf16.mxu0 %v5049
    %6237 = vmatpush1.bf16.msra.mxu0 %v5048
    %6238 = vmatprep.subr.bf16.mxu0 0
    %6239 = vmatpush2.bf16.msra.mxu0 0
    %6240 = vmatprep.subr.bf16.mxu0 0
    %6241 = vmatpush2.bf16.msra.mxu0 0
    %6242 = vmatprep.subr.bf16.mxu0 0
    %6243 = vmatpush2.bf16.msra.mxu0 0
    %6244 = vmatprep.subr.bf16.mxu0 0
    %6245 = vmatpush2.bf16.msra.mxu0 0
    %6246 = vmatprep.subr.bf16.mxu0 0
    %6247 = vmatpush2.bf16.msra.mxu0 0
    %6248 = vmatprep.subr.bf16.mxu0 0
    %6249 = vmatpush2.bf16.msra.mxu0 0
    %6250 = vmatprep.subr.bf16.mxu0 0
    %6251 = vmatpush2.bf16.msra.mxu0 0
    %6252 = vmatprep.subr.bf16.mxu0 0
    %6253 = vmatpush2.bf16.msra.mxu0 0
    %6254 = vmatprep.mubr.bf16.mxu0 0
    %6255 = vmatmul.mubr.bf16.gmra.mxu0 %v6221
    %v6256 = vpop.f32.mrf.mxu0
    %v6257 = vadd.f32 0.0, %v6256
    %v6258 = vpop.f32.mrf.mxu0
    %v6259 = vadd.f32 0.0, %v6258
    %v6260 = vpop.f32.mrf.mxu0
    %v6261 = vpop.f32.mrf.mxu0
    %6262 = vdwg.mxu0
    %6263 = vmatprep.subr.bf16.mxu0 %v5079
    %6264 = vmatpush1.bf16.msra.mxu0 %v5078
    %6265 = vmatprep.subr.bf16.mxu0 %v5075
    %6266 = vmatpush1.bf16.msra.mxu0 %v5074
    %6267 = vmatprep.subr.bf16.mxu0 %v5071
    %6268 = vmatpush1.bf16.msra.mxu0 %v5070
    %6269 = vmatprep.subr.bf16.mxu0 %v5067
    %6270 = vmatpush1.bf16.msra.mxu0 %v5066
    %6271 = vmatprep.subr.bf16.mxu0 %v5063
    %6272 = vmatpush1.bf16.msra.mxu0 %v5062
    %6273 = vmatprep.subr.bf16.mxu0 %v5059
    %6274 = vmatpush1.bf16.msra.mxu0 %v5058
    %6275 = vmatprep.subr.bf16.mxu0 %v5055
    %6276 = vmatpush1.bf16.msra.mxu0 %v5054
    %6277 = vmatprep.subr.bf16.mxu0 %v5051
    %6278 = vmatpush1.bf16.msra.mxu0 %v5050
    %6279 = vmatprep.subr.bf16.mxu0 0
    %6280 = vmatpush2.bf16.msra.mxu0 0
    %6281 = vmatprep.subr.bf16.mxu0 0
    %6282 = vmatpush2.bf16.msra.mxu0 0
    %6283 = vmatprep.subr.bf16.mxu0 0
    %6284 = vmatpush2.bf16.msra.mxu0 0
    %6285 = vmatprep.subr.bf16.mxu0 0
    %6286 = vmatpush2.bf16.msra.mxu0 0
    %6287 = vmatprep.subr.bf16.mxu0 0
    %6288 = vmatpush2.bf16.msra.mxu0 0
    %6289 = vmatprep.subr.bf16.mxu0 0
    %6290 = vmatpush2.bf16.msra.mxu0 0
    %6291 = vmatprep.subr.bf16.mxu0 0
    %6292 = vmatpush2.bf16.msra.mxu0 0
    %6293 = vmatprep.subr.bf16.mxu0 0
    %6294 = vmatpush2.bf16.msra.mxu0 0
    %6295 = vmatprep.mubr.bf16.mxu0 0
    %6296 = vmatmul.mubr.bf16.gmra.mxu0 %v6221
    %v6297 = vpop.f32.mrf.mxu0
    %v6298 = vadd.f32 0.0, %v6297
    %v6299 = vpop.f32.mrf.mxu0
    %v6300 = vadd.f32 0.0, %v6299
    %v6301 = vpop.f32.mrf.mxu0
    %v6302 = vpop.f32.mrf.mxu0
    %6303 = vdwg.mxu0
    %v6304 = vadd.f32 %v4540, %v6257
    %v6305 = vadd.f32 %v4542, %v6259
    %v6306 = vadd.f32 %v4613, %v6298
    %v6307 = vadd.f32 %v4615, %v6300
    %v6308 = vxor.u32 %v6217, 2147483648
    %v6309 = vmul.f32 %v6308, 1.442695
    %v6310 = vpow.pop %v6309
    %v6311 = vadd.f32 %v6310, 1.0
    %v6312 = vrcp.pop %v6311
    %v6313 = vmul.f32 1.0, %v6312
    %v6314 = vxor.u32 %v6218, 2147483648
    %v6315 = vmul.f32 %v6314, 1.442695
    %v6316 = vpow.pop %v6315
    %v6317 = vadd.f32 %v6316, 1.0
    %v6318 = vrcp.pop %v6317
    %v6319 = vmul.f32 1.0, %v6318
    %v6320 = vtanh.pop %v6219
    %v6321 = vxor.u32 %v6220, 2147483648
    %v6322 = vmul.f32 %v6321, 1.442695
    %v6323 = vpow.pop %v6322
    %v6324 = vadd.f32 %v6323, 1.0
    %v6325 = vrcp.pop %v6324
    %v6326 = vmul.f32 1.0, %v6325
    %v6327 = vmul.f32 %v6319, %v6107
    %v6328 = vmul.f32 %v6313, %v6320
    %v6329 = vadd.f32 %v6327, %v6328
    %v6330 = vtanh.pop %v6329
    %v6331 = vmul.f32 %v6326, %v6330
    %v6332 = vxor.u32 %v6304, 2147483648
    %v6333 = vmul.f32 %v6332, 1.442695
    %v6334 = vpow.pop %v6333
    %v6335 = vadd.f32 %v6334, 1.0
    %v6336 = vrcp.pop %v6335
    %v6337 = vmul.f32 1.0, %v6336
    %v6338 = vxor.u32 %v6305, 2147483648
    %v6339 = vmul.f32 %v6338, 1.442695
    %v6340 = vpow.pop %v6339
    %v6341 = vadd.f32 %v6340, 1.0
    %v6342 = vrcp.pop %v6341
    %v6343 = vmul.f32 1.0, %v6342
    %v6344 = vtanh.pop %v6306
    %v6345 = vxor.u32 %v6307, 2147483648
    %v6346 = vmul.f32 %v6345, 1.442695
    %v6347 = vpow.pop %v6346
    %v6348 = vadd.f32 %v6347, 1.0
    %v6349 = vrcp.pop %v6348
    %v6350 = vmul.f32 1.0, %v6349
    %v6351 = vmul.f32 %v6343, %v6131
    %v6352 = vmul.f32 %v6337, %v6344
    %v6353 = vadd.f32 %v6351, %v6352
    %v6354 = vtanh.pop %v6353
    %v6355 = vmul.f32 %v6350, %v6354
    %v6356 = vpack.c.bf16 %v6331, %v6331
    %6357 = vmatprep.subr.bf16.mxu0 %v4831
    %6358 = vmatpush1.bf16.msra.mxu0 %v4830
    %6359 = vmatprep.subr.bf16.mxu0 %v4827
    %6360 = vmatpush1.bf16.msra.mxu0 %v4826
    %6361 = vmatprep.subr.bf16.mxu0 %v4823
    %6362 = vmatpush1.bf16.msra.mxu0 %v4822
    %6363 = vmatprep.subr.bf16.mxu0 %v4819
    %6364 = vmatpush1.bf16.msra.mxu0 %v4818
    %6365 = vmatprep.subr.bf16.mxu0 %v4815
    %6366 = vmatpush1.bf16.msra.mxu0 %v4814
    %6367 = vmatprep.subr.bf16.mxu0 %v4811
    %6368 = vmatpush1.bf16.msra.mxu0 %v4810
    %6369 = vmatprep.subr.bf16.mxu0 %v4807
    %6370 = vmatpush1.bf16.msra.mxu0 %v4806
    %6371 = vmatprep.subr.bf16.mxu0 %v4803
    %6372 = vmatpush1.bf16.msra.mxu0 %v4802
    %6373 = vmatprep.subr.bf16.mxu0 0
    %6374 = vmatpush2.bf16.msra.mxu0 0
    %6375 = vmatprep.subr.bf16.mxu0 0
    %6376 = vmatpush2.bf16.msra.mxu0 0
    %6377 = vmatprep.subr.bf16.mxu0 0
    %6378 = vmatpush2.bf16.msra.mxu0 0
    %6379 = vmatprep.subr.bf16.mxu0 0
    %6380 = vmatpush2.bf16.msra.mxu0 0
    %6381 = vmatprep.subr.bf16.mxu0 0
    %6382 = vmatpush2.bf16.msra.mxu0 0
    %6383 = vmatprep.subr.bf16.mxu0 0
    %6384 = vmatpush2.bf16.msra.mxu0 0
    %6385 = vmatprep.subr.bf16.mxu0 0
    %6386 = vmatpush2.bf16.msra.mxu0 0
    %6387 = vmatprep.subr.bf16.mxu0 0
    %6388 = vmatpush2.bf16.msra.mxu0 0
    %6389 = vmatprep.mubr.bf16.mxu0 0
    %6390 = vmatmul.mubr.bf16.gmra.mxu0 %v6356
    %v6391 = vpop.f32.mrf.mxu0
    %v6392 = vadd.f32 0.0, %v6391
    %v6393 = vpop.f32.mrf.mxu0
    %v6394 = vadd.f32 0.0, %v6393
    %v6395 = vpop.f32.mrf.mxu0
    %v6396 = vpop.f32.mrf.mxu0
    %6397 = vdwg.mxu0
    %6398 = vmatprep.subr.bf16.mxu0 %v4833
    %6399 = vmatpush1.bf16.msra.mxu0 %v4832
    %6400 = vmatprep.subr.bf16.mxu0 %v4829
    %6401 = vmatpush1.bf16.msra.mxu0 %v4828
    %6402 = vmatprep.subr.bf16.mxu0 %v4825
    %6403 = vmatpush1.bf16.msra.mxu0 %v4824
    %6404 = vmatprep.subr.bf16.mxu0 %v4821
    %6405 = vmatpush1.bf16.msra.mxu0 %v4820
    %6406 = vmatprep.subr.bf16.mxu0 %v4817
    %6407 = vmatpush1.bf16.msra.mxu0 %v4816
    %6408 = vmatprep.subr.bf16.mxu0 %v4813
    %6409 = vmatpush1.bf16.msra.mxu0 %v4812
    %6410 = vmatprep.subr.bf16.mxu0 %v4809
    %6411 = vmatpush1.bf16.msra.mxu0 %v4808
    %6412 = vmatprep.subr.bf16.mxu0 %v4805
    %6413 = vmatpush1.bf16.msra.mxu0 %v4804
    %6414 = vmatprep.subr.bf16.mxu0 0
    %6415 = vmatpush2.bf16.msra.mxu0 0
    %6416 = vmatprep.subr.bf16.mxu0 0
    %6417 = vmatpush2.bf16.msra.mxu0 0
    %6418 = vmatprep.subr.bf16.mxu0 0
    %6419 = vmatpush2.bf16.msra.mxu0 0
    %6420 = vmatprep.subr.bf16.mxu0 0
    %6421 = vmatpush2.bf16.msra.mxu0 0
    %6422 = vmatprep.subr.bf16.mxu0 0
    %6423 = vmatpush2.bf16.msra.mxu0 0
    %6424 = vmatprep.subr.bf16.mxu0 0
    %6425 = vmatpush2.bf16.msra.mxu0 0
    %6426 = vmatprep.subr.bf16.mxu0 0
    %6427 = vmatpush2.bf16.msra.mxu0 0
    %6428 = vmatprep.subr.bf16.mxu0 0
    %6429 = vmatpush2.bf16.msra.mxu0 0
    %6430 = vmatprep.mubr.bf16.mxu0 0
    %6431 = vmatmul.mubr.bf16.gmra.mxu0 %v6356
    %v6432 = vpop.f32.mrf.mxu0
    %v6433 = vadd.f32 0.0, %v6432
    %v6434 = vpop.f32.mrf.mxu0
    %v6435 = vadd.f32 0.0, %v6434
    %v6436 = vpop.f32.mrf.mxu0
    %v6437 = vpop.f32.mrf.mxu0
    %6438 = vdwg.mxu0
    %v6439 = vadd.f32 %v4414, %v6392
    %v6440 = vadd.f32 %v4416, %v6394
    %v6441 = vadd.f32 %v4487, %v6433
    %v6442 = vadd.f32 %v4489, %v6435
    %v6443 = vpack.c.bf16 %v6355, %v6355
    %6444 = vmatprep.subr.bf16.mxu0 %v5077
    %6445 = vmatpush1.bf16.msra.mxu0 %v5076
    %6446 = vmatprep.subr.bf16.mxu0 %v5073
    %6447 = vmatpush1.bf16.msra.mxu0 %v5072
    %6448 = vmatprep.subr.bf16.mxu0 %v5069
    %6449 = vmatpush1.bf16.msra.mxu0 %v5068
    %6450 = vmatprep.subr.bf16.mxu0 %v5065
    %6451 = vmatpush1.bf16.msra.mxu0 %v5064
    %6452 = vmatprep.subr.bf16.mxu0 %v5061
    %6453 = vmatpush1.bf16.msra.mxu0 %v5060
    %6454 = vmatprep.subr.bf16.mxu0 %v5057
    %6455 = vmatpush1.bf16.msra.mxu0 %v5056
    %6456 = vmatprep.subr.bf16.mxu0 %v5053
    %6457 = vmatpush1.bf16.msra.mxu0 %v5052
    %6458 = vmatprep.subr.bf16.mxu0 %v5049
    %6459 = vmatpush1.bf16.msra.mxu0 %v5048
    %6460 = vmatprep.subr.bf16.mxu0 0
    %6461 = vmatpush2.bf16.msra.mxu0 0
    %6462 = vmatprep.subr.bf16.mxu0 0
    %6463 = vmatpush2.bf16.msra.mxu0 0
    %6464 = vmatprep.subr.bf16.mxu0 0
    %6465 = vmatpush2.bf16.msra.mxu0 0
    %6466 = vmatprep.subr.bf16.mxu0 0
    %6467 = vmatpush2.bf16.msra.mxu0 0
    %6468 = vmatprep.subr.bf16.mxu0 0
    %6469 = vmatpush2.bf16.msra.mxu0 0
    %6470 = vmatprep.subr.bf16.mxu0 0
    %6471 = vmatpush2.bf16.msra.mxu0 0
    %6472 = vmatprep.subr.bf16.mxu0 0
    %6473 = vmatpush2.bf16.msra.mxu0 0
    %6474 = vmatprep.subr.bf16.mxu0 0
    %6475 = vmatpush2.bf16.msra.mxu0 0
    %6476 = vmatprep.mubr.bf16.mxu0 0
    %6477 = vmatmul.mubr.bf16.gmra.mxu0 %v6443
    %v6478 = vpop.f32.mrf.mxu0
    %v6479 = vadd.f32 0.0, %v6478
    %v6480 = vpop.f32.mrf.mxu0
    %v6481 = vadd.f32 0.0, %v6480
    %v6482 = vpop.f32.mrf.mxu0
    %v6483 = vpop.f32.mrf.mxu0
    %6484 = vdwg.mxu0
    %6485 = vmatprep.subr.bf16.mxu0 %v5079
    %6486 = vmatpush1.bf16.msra.mxu0 %v5078
    %6487 = vmatprep.subr.bf16.mxu0 %v5075
    %6488 = vmatpush1.bf16.msra.mxu0 %v5074
    %6489 = vmatprep.subr.bf16.mxu0 %v5071
    %6490 = vmatpush1.bf16.msra.mxu0 %v5070
    %6491 = vmatprep.subr.bf16.mxu0 %v5067
    %6492 = vmatpush1.bf16.msra.mxu0 %v5066
    %6493 = vmatprep.subr.bf16.mxu0 %v5063
    %6494 = vmatpush1.bf16.msra.mxu0 %v5062
    %6495 = vmatprep.subr.bf16.mxu0 %v5059
    %6496 = vmatpush1.bf16.msra.mxu0 %v5058
    %6497 = vmatprep.subr.bf16.mxu0 %v5055
    %6498 = vmatpush1.bf16.msra.mxu0 %v5054
    %6499 = vmatprep.subr.bf16.mxu0 %v5051
    %6500 = vmatpush1.bf16.msra.mxu0 %v5050
    %6501 = vmatprep.subr.bf16.mxu0 0
    %6502 = vmatpush2.bf16.msra.mxu0 0
    %6503 = vmatprep.subr.bf16.mxu0 0
    %6504 = vmatpush2.bf16.msra.mxu0 0
    %6505 = vmatprep.subr.bf16.mxu0 0
    %6506 = vmatpush2.bf16.msra.mxu0 0
    %6507 = vmatprep.subr.bf16.mxu0 0
    %6508 = vmatpush2.bf16.msra.mxu0 0
    %6509 = vmatprep.subr.bf16.mxu0 0
    %6510 = vmatpush2.bf16.msra.mxu0 0
    %6511 = vmatprep.subr.bf16.mxu0 0
    %6512 = vmatpush2.bf16.msra.mxu0 0
    %6513 = vmatprep.subr.bf16.mxu0 0
    %6514 = vmatpush2.bf16.msra.mxu0 0
    %6515 = vmatprep.subr.bf16.mxu0 0
    %6516 = vmatpush2.bf16.msra.mxu0 0
    %6517 = vmatprep.mubr.bf16.mxu0 0
    %6518 = vmatmul.mubr.bf16.gmra.mxu0 %v6443
    %v6519 = vpop.f32.mrf.mxu0
    %v6520 = vadd.f32 0.0, %v6519
    %v6521 = vpop.f32.mrf.mxu0
    %v6522 = vadd.f32 0.0, %v6521
    %v6523 = vpop.f32.mrf.mxu0
    %v6524 = vpop.f32.mrf.mxu0
    %6525 = vdwg.mxu0
    %v6526 = vadd.f32 %v4534, %v6479
    %v6527 = vadd.f32 %v4536, %v6481
    %v6528 = vadd.f32 %v4607, %v6520
    %v6529 = vadd.f32 %v4609, %v6522
    %v6530 = vxor.u32 %v6439, 2147483648
    %v6531 = vmul.f32 %v6530, 1.442695
    %v6532 = vpow.pop %v6531
    %v6533 = vadd.f32 %v6532, 1.0
    %v6534 = vrcp.pop %v6533
    %v6535 = vmul.f32 1.0, %v6534
    %v6536 = vxor.u32 %v6440, 2147483648
    %v6537 = vmul.f32 %v6536, 1.442695
    %v6538 = vpow.pop %v6537
    %v6539 = vadd.f32 %v6538, 1.0
    %v6540 = vrcp.pop %v6539
    %v6541 = vmul.f32 1.0, %v6540
    %v6542 = vtanh.pop %v6441
    %v6543 = vxor.u32 %v6442, 2147483648
    %v6544 = vmul.f32 %v6543, 1.442695
    %v6545 = vpow.pop %v6544
    %v6546 = vadd.f32 %v6545, 1.0
    %v6547 = vrcp.pop %v6546
    %v6548 = vmul.f32 1.0, %v6547
    %v6549 = vmul.f32 %v6541, %v6329
    %v6550 = vmul.f32 %v6535, %v6542
    %v6551 = vadd.f32 %v6549, %v6550
    %v6552 = vtanh.pop %v6551
    %v6553 = vmul.f32 %v6548, %v6552
    %v6554 = vxor.u32 %v6526, 2147483648
    %v6555 = vmul.f32 %v6554, 1.442695
    %v6556 = vpow.pop %v6555
    %v6557 = vadd.f32 %v6556, 1.0
    %v6558 = vrcp.pop %v6557
    %v6559 = vmul.f32 1.0, %v6558
    %v6560 = vxor.u32 %v6527, 2147483648
    %v6561 = vmul.f32 %v6560, 1.442695
    %v6562 = vpow.pop %v6561
    %v6563 = vadd.f32 %v6562, 1.0
    %v6564 = vrcp.pop %v6563
    %v6565 = vmul.f32 1.0, %v6564
    %v6566 = vtanh.pop %v6528
    %v6567 = vxor.u32 %v6529, 2147483648
    %v6568 = vmul.f32 %v6567, 1.442695
    %v6569 = vpow.pop %v6568
    %v6570 = vadd.f32 %v6569, 1.0
    %v6571 = vrcp.pop %v6570
    %v6572 = vmul.f32 1.0, %v6571
    %v6573 = vmul.f32 %v6565, %v6353
    %v6574 = vmul.f32 %v6559, %v6566
    %v6575 = vadd.f32 %v6573, %v6574
    %v6576 = vtanh.pop %v6575
    %v6577 = vmul.f32 %v6572, %v6576
    %v6578 = vpack.c.bf16 %v6553, %v6553
    %6579 = vmatprep.subr.bf16.mxu0 %v4831
    %6580 = vmatpush1.bf16.msra.mxu0 %v4830
    %6581 = vmatprep.subr.bf16.mxu0 %v4827
    %6582 = vmatpush1.bf16.msra.mxu0 %v4826
    %6583 = vmatprep.subr.bf16.mxu0 %v4823
    %6584 = vmatpush1.bf16.msra.mxu0 %v4822
    %6585 = vmatprep.subr.bf16.mxu0 %v4819
    %6586 = vmatpush1.bf16.msra.mxu0 %v4818
    %6587 = vmatprep.subr.bf16.mxu0 %v4815
    %6588 = vmatpush1.bf16.msra.mxu0 %v4814
    %6589 = vmatprep.subr.bf16.mxu0 %v4811
    %6590 = vmatpush1.bf16.msra.mxu0 %v4810
    %6591 = vmatprep.subr.bf16.mxu0 %v4807
    %6592 = vmatpush1.bf16.msra.mxu0 %v4806
    %6593 = vmatprep.subr.bf16.mxu0 %v4803
    %6594 = vmatpush1.bf16.msra.mxu0 %v4802
    %6595 = vmatprep.subr.bf16.mxu0 0
    %6596 = vmatpush2.bf16.msra.mxu0 0
    %6597 = vmatprep.subr.bf16.mxu0 0
    %6598 = vmatpush2.bf16.msra.mxu0 0
    %6599 = vmatprep.subr.bf16.mxu0 0
    %6600 = vmatpush2.bf16.msra.mxu0 0
    %6601 = vmatprep.subr.bf16.mxu0 0
    %6602 = vmatpush2.bf16.msra.mxu0 0
    %6603 = vmatprep.subr.bf16.mxu0 0
    %6604 = vmatpush2.bf16.msra.mxu0 0
    %6605 = vmatprep.subr.bf16.mxu0 0
    %6606 = vmatpush2.bf16.msra.mxu0 0
    %6607 = vmatprep.subr.bf16.mxu0 0
    %6608 = vmatpush2.bf16.msra.mxu0 0
    %6609 = vmatprep.subr.bf16.mxu0 0
    %6610 = vmatpush2.bf16.msra.mxu0 0
    %6611 = vmatprep.mubr.bf16.mxu0 0
    %6612 = vmatmul.mubr.bf16.gmra.mxu0 %v6578
    %v6613 = vpop.f32.mrf.mxu0
    %v6614 = vadd.f32 0.0, %v6613
    %v6615 = vpop.f32.mrf.mxu0
    %v6616 = vadd.f32 0.0, %v6615
    %v6617 = vpop.f32.mrf.mxu0
    %v6618 = vpop.f32.mrf.mxu0
    %6619 = vdwg.mxu0
    %6620 = vmatprep.subr.bf16.mxu0 %v4833
    %6621 = vmatpush1.bf16.msra.mxu0 %v4832
    %6622 = vmatprep.subr.bf16.mxu0 %v4829
    %6623 = vmatpush1.bf16.msra.mxu0 %v4828
    %6624 = vmatprep.subr.bf16.mxu0 %v4825
    %6625 = vmatpush1.bf16.msra.mxu0 %v4824
    %6626 = vmatprep.subr.bf16.mxu0 %v4821
    %6627 = vmatpush1.bf16.msra.mxu0 %v4820
    %6628 = vmatprep.subr.bf16.mxu0 %v4817
    %6629 = vmatpush1.bf16.msra.mxu0 %v4816
    %6630 = vmatprep.subr.bf16.mxu0 %v4813
    %6631 = vmatpush1.bf16.msra.mxu0 %v4812
    %6632 = vmatprep.subr.bf16.mxu0 %v4809
    %6633 = vmatpush1.bf16.msra.mxu0 %v4808
    %6634 = vmatprep.subr.bf16.mxu0 %v4805
    %6635 = vmatpush1.bf16.msra.mxu0 %v4804
    %6636 = vmatprep.subr.bf16.mxu0 0
    %6637 = vmatpush2.bf16.msra.mxu0 0
    %6638 = vmatprep.subr.bf16.mxu0 0
    %6639 = vmatpush2.bf16.msra.mxu0 0
    %6640 = vmatprep.subr.bf16.mxu0 0
    %6641 = vmatpush2.bf16.msra.mxu0 0
    %6642 = vmatprep.subr.bf16.mxu0 0
    %6643 = vmatpush2.bf16.msra.mxu0 0
    %6644 = vmatprep.subr.bf16.mxu0 0
    %6645 = vmatpush2.bf16.msra.mxu0 0
    %6646 = vmatprep.subr.bf16.mxu0 0
    %6647 = vmatpush2.bf16.msra.mxu0 0
    %6648 = vmatprep.subr.bf16.mxu0 0
    %6649 = vmatpush2.bf16.msra.mxu0 0
    %6650 = vmatprep.subr.bf16.mxu0 0
    %6651 = vmatpush2.bf16.msra.mxu0 0
    %6652 = vmatprep.mubr.bf16.mxu0 0
    %6653 = vmatmul.mubr.bf16.gmra.mxu0 %v6578
    %v6654 = vpop.f32.mrf.mxu0
    %v6655 = vadd.f32 0.0, %v6654
    %v6656 = vpop.f32.mrf.mxu0
    %v6657 = vadd.f32 0.0, %v6656
    %v6658 = vpop.f32.mrf.mxu0
    %v6659 = vpop.f32.mrf.mxu0
    %6660 = vdwg.mxu0
    %v6661 = vadd.f32 %v4418, %v6614
    %v6662 = vadd.f32 %v4420, %v6616
    %v6663 = vadd.f32 %v4491, %v6655
    %v6664 = vadd.f32 %v4493, %v6657
    %v6665 = vpack.c.bf16 %v6577, %v6577
    %6666 = vmatprep.subr.bf16.mxu0 %v5077
    %6667 = vmatpush1.bf16.msra.mxu0 %v5076
    %6668 = vmatprep.subr.bf16.mxu0 %v5073
    %6669 = vmatpush1.bf16.msra.mxu0 %v5072
    %6670 = vmatprep.subr.bf16.mxu0 %v5069
    %6671 = vmatpush1.bf16.msra.mxu0 %v5068
    %6672 = vmatprep.subr.bf16.mxu0 %v5065
    %6673 = vmatpush1.bf16.msra.mxu0 %v5064
    %6674 = vmatprep.subr.bf16.mxu0 %v5061
    %6675 = vmatpush1.bf16.msra.mxu0 %v5060
    %6676 = vmatprep.subr.bf16.mxu0 %v5057
    %6677 = vmatpush1.bf16.msra.mxu0 %v5056
    %6678 = vmatprep.subr.bf16.mxu0 %v5053
    %6679 = vmatpush1.bf16.msra.mxu0 %v5052
    %6680 = vmatprep.subr.bf16.mxu0 %v5049
    %6681 = vmatpush1.bf16.msra.mxu0 %v5048
    %6682 = vmatprep.subr.bf16.mxu0 0
    %6683 = vmatpush2.bf16.msra.mxu0 0
    %6684 = vmatprep.subr.bf16.mxu0 0
    %6685 = vmatpush2.bf16.msra.mxu0 0
    %6686 = vmatprep.subr.bf16.mxu0 0
    %6687 = vmatpush2.bf16.msra.mxu0 0
    %6688 = vmatprep.subr.bf16.mxu0 0
    %6689 = vmatpush2.bf16.msra.mxu0 0
    %6690 = vmatprep.subr.bf16.mxu0 0
    %6691 = vmatpush2.bf16.msra.mxu0 0
    %6692 = vmatprep.subr.bf16.mxu0 0
    %6693 = vmatpush2.bf16.msra.mxu0 0
    %6694 = vmatprep.subr.bf16.mxu0 0
    %6695 = vmatpush2.bf16.msra.mxu0 0
    %6696 = vmatprep.subr.bf16.mxu0 0
    %6697 = vmatpush2.bf16.msra.mxu0 0
    %6698 = vmatprep.mubr.bf16.mxu0 0
    %6699 = vmatmul.mubr.bf16.gmra.mxu0 %v6665
    %v6700 = vpop.f32.mrf.mxu0
    %v6701 = vadd.f32 0.0, %v6700
    %v6702 = vpop.f32.mrf.mxu0
    %v6703 = vadd.f32 0.0, %v6702
    %v6704 = vpop.f32.mrf.mxu0
    %v6705 = vpop.f32.mrf.mxu0
    %6706 = vdwg.mxu0
    %6707 = vmatprep.subr.bf16.mxu0 %v5079
    %6708 = vmatpush1.bf16.msra.mxu0 %v5078
    %6709 = vmatprep.subr.bf16.mxu0 %v5075
    %6710 = vmatpush1.bf16.msra.mxu0 %v5074
    %6711 = vmatprep.subr.bf16.mxu0 %v5071
    %6712 = vmatpush1.bf16.msra.mxu0 %v5070
    %6713 = vmatprep.subr.bf16.mxu0 %v5067
    %6714 = vmatpush1.bf16.msra.mxu0 %v5066
    %6715 = vmatprep.subr.bf16.mxu0 %v5063
    %6716 = vmatpush1.bf16.msra.mxu0 %v5062
    %6717 = vmatprep.subr.bf16.mxu0 %v5059
    %6718 = vmatpush1.bf16.msra.mxu0 %v5058
    %6719 = vmatprep.subr.bf16.mxu0 %v5055
    %6720 = vmatpush1.bf16.msra.mxu0 %v5054
    %6721 = vmatprep.subr.bf16.mxu0 %v5051
    %6722 = vmatpush1.bf16.msra.mxu0 %v5050
    %6723 = vmatprep.subr.bf16.mxu0 0
    %6724 = vmatpush2.bf16.msra.mxu0 0
    %6725 = vmatprep.subr.bf16.mxu0 0
    %6726 = vmatpush2.bf16.msra.mxu0 0
    %6727 = vmatprep.subr.bf16.mxu0 0
    %6728 = vmatpush2.bf16.msra.mxu0 0
    %6729 = vmatprep.subr.bf16.mxu0 0
    %6730 = vmatpush2.bf16.msra.mxu0 0
    %6731 = vmatprep.subr.bf16.mxu0 0
    %6732 = vmatpush2.bf16.msra.mxu0 0
    %6733 = vmatprep.subr.bf16.mxu0 0
    %6734 = vmatpush2.bf16.msra.mxu0 0
    %6735 = vmatprep.subr.bf16.mxu0 0
    %6736 = vmatpush2.bf16.msra.mxu0 0
    %6737 = vmatprep.subr.bf16.mxu0 0
    %6738 = vmatpush2.bf16.msra.mxu0 0
    %6739 = vmatprep.mubr.bf16.mxu0 0
    %6740 = vmatmul.mubr.bf16.gmra.mxu0 %v6665
    %v6741 = vpop.f32.mrf.mxu0
    %v6742 = vadd.f32 0.0, %v6741
    %v6743 = vpop.f32.mrf.mxu0
    %v6744 = vadd.f32 0.0, %v6743
    %v6745 = vpop.f32.mrf.mxu0
    %v6746 = vpop.f32.mrf.mxu0
    %6747 = vdwg.mxu0
    %v6748 = vadd.f32 %v4530, %v6701
    %v6749 = vadd.f32 %v4532, %v6703
    %v6750 = vadd.f32 %v4603, %v6742
    %v6751 = vadd.f32 %v4605, %v6744
    %v6752 = vxor.u32 %v6661, 2147483648
    %v6753 = vmul.f32 %v6752, 1.442695
    %v6754 = vpow.pop %v6753
    %v6755 = vadd.f32 %v6754, 1.0
    %v6756 = vrcp.pop %v6755
    %v6757 = vmul.f32 1.0, %v6756
    %v6758 = vxor.u32 %v6662, 2147483648
    %v6759 = vmul.f32 %v6758, 1.442695
    %v6760 = vpow.pop %v6759
    %v6761 = vadd.f32 %v6760, 1.0
    %v6762 = vrcp.pop %v6761
    %v6763 = vmul.f32 1.0, %v6762
    %v6764 = vtanh.pop %v6663
    %v6765 = vxor.u32 %v6664, 2147483648
    %v6766 = vmul.f32 %v6765, 1.442695
    %v6767 = vpow.pop %v6766
    %v6768 = vadd.f32 %v6767, 1.0
    %v6769 = vrcp.pop %v6768
    %v6770 = vmul.f32 1.0, %v6769
    %v6771 = vmul.f32 %v6763, %v6551
    %v6772 = vmul.f32 %v6757, %v6764
    %v6773 = vadd.f32 %v6771, %v6772
    %v6774 = vtanh.pop %v6773
    %v6775 = vmul.f32 %v6770, %v6774
    %v6776 = vxor.u32 %v6748, 2147483648
    %v6777 = vmul.f32 %v6776, 1.442695
    %v6778 = vpow.pop %v6777
    %v6779 = vadd.f32 %v6778, 1.0
    %v6780 = vrcp.pop %v6779
    %v6781 = vmul.f32 1.0, %v6780
    %v6782 = vxor.u32 %v6749, 2147483648
    %v6783 = vmul.f32 %v6782, 1.442695
    %v6784 = vpow.pop %v6783
    %v6785 = vadd.f32 %v6784, 1.0
    %v6786 = vrcp.pop %v6785
    %v6787 = vmul.f32 1.0, %v6786
    %v6788 = vtanh.pop %v6750
    %v6789 = vxor.u32 %v6751, 2147483648
    %v6790 = vmul.f32 %v6789, 1.442695
    %v6791 = vpow.pop %v6790
    %v6792 = vadd.f32 %v6791, 1.0
    %v6793 = vrcp.pop %v6792
    %v6794 = vmul.f32 1.0, %v6793
    %v6795 = vmul.f32 %v6787, %v6575
    %v6796 = vmul.f32 %v6781, %v6788
    %v6797 = vadd.f32 %v6795, %v6796
    %v6798 = vtanh.pop %v6797
    %v6799 = vmul.f32 %v6794, %v6798
    %v6800 = vadd.f32 %v5221, %v5443
    %v6801 = vadd.f32 %v6799, %v6577
    %v6802 = vadd.f32 %v6800, %v5665
    %v6803 = vadd.f32 %v6801, %v6355
    %v6804 = vadd.f32 %v6802, %v5887
    %v6805 = vadd.f32 %v6803, %v6133
    %v6806 = vadd.f32 %v6804, %v6109
    %v6807 = vadd.f32 %v6805, %v5911
    %v6808 = vadd.f32 %v6806, %v6331
    %v6809 = vadd.f32 %v6807, %v5689
    %v6810 = vadd.f32 %v6808, %v6553
    %v6811 = vadd.f32 %v6809, %v5467
    %v6812 = vadd.f32 %v6810, %v6775
    %v6813 = vadd.f32 %v6811, %v5245
    %v6814 = vmul.f32 %v6812, 0.125
    %v6815 = vmul.f32 %v6813, 0.125
    %v6816 = vpack.c.bf16 %v6814, %v6814
    %v6817 = vpack.c.bf16 %v6815, %v6815
    %v6818 = vld [vmem:[%s7] sm:$0xf]
    %v6819 = vld [vmem:[%s7 + $0x4] sm:$0xf]
    %v6820 = vld [vmem:[%s7 + $0x8] sm:$0xf]
    %v6821 = vld [vmem:[%s7 + $0xc] sm:$0xf]
    %v6822 = vld [vmem:[%s7 + $0x10] sm:$0xf]
    %v6823 = vld [vmem:[%s7 + $0x14] sm:$0xf]
    %v6824 = vld [vmem:[%s7 + $0x18] sm:$0xf]
    %v6825 = vld [vmem:[%s7 + $0x1c] sm:$0xf]
    %v6826 = vld [vmem:[%s7 + $0x20] sm:$0xf]
    %v6827 = vld [vmem:[%s7 + $0x24] sm:$0xf]
    %v6828 = vld [vmem:[%s7 + $0x28] sm:$0xf]
    %v6829 = vld [vmem:[%s7 + $0x2c] sm:$0xf]
    %v6830 = vld [vmem:[%s7 + $0x30] sm:$0xf]
    %v6831 = vld [vmem:[%s7 + $0x34] sm:$0xf]
    %v6832 = vld [vmem:[%s7 + $0x38] sm:$0xf]
    %v6833 = vld [vmem:[%s7 + $0x3c] sm:$0xf]
    %v6834 = vld [vmem:[%s7 + $0x40] sm:$0xf]
    %v6835 = vld [vmem:[%s7 + $0x44] sm:$0xf]
    %v6836 = vld [vmem:[%s7 + $0x48] sm:$0xf]
    %v6837 = vld [vmem:[%s7 + $0x4c] sm:$0xf]
    %v6838 = vld [vmem:[%s7 + $0x50] sm:$0xf]
    %v6839 = vld [vmem:[%s7 + $0x54] sm:$0xf]
    %v6840 = vld [vmem:[%s7 + $0x58] sm:$0xf]
    %v6841 = vld [vmem:[%s7 + $0x5c] sm:$0xf]
    %v6842 = vld [vmem:[%s7 + $0x60] sm:$0xf]
    %v6843 = vld [vmem:[%s7 + $0x64] sm:$0xf]
    %v6844 = vld [vmem:[%s7 + $0x68] sm:$0xf]
    %v6845 = vld [vmem:[%s7 + $0x6c] sm:$0xf]
    %v6846 = vld [vmem:[%s7 + $0x70] sm:$0xf]
    %v6847 = vld [vmem:[%s7 + $0x74] sm:$0xf]
    %v6848 = vld [vmem:[%s7 + $0x78] sm:$0xf]
    %v6849 = vld [vmem:[%s7 + $0x7c] sm:$0xf]
    %v6850 = vld [vmem:[%s8] sm:$0x1]
    %v6852 = vlaneseq
    %v6853 = vshrl.u32 %v6852, 7
    %v6854 = vsub.s32 0, %v6853
    %v6855 = vrot.slane %v6850, %v6854
    %v6889 = vunpack.c.l.b16 %v6818
    %v6890 = vunpack.c.l.b16 %v6819
    %v6891 = vunpack.c.l.b16 %v6820
    %v6892 = vunpack.c.l.b16 %v6821
    %v6893 = vunpack.c.l.b16 %v6822
    %v6894 = vunpack.c.l.b16 %v6823
    %v6895 = vunpack.c.l.b16 %v6824
    %v6896 = vunpack.c.l.b16 %v6825
    %v6897 = vunpack.c.l.b16 %v6826
    %v6898 = vunpack.c.l.b16 %v6827
    %v6899 = vunpack.c.l.b16 %v6828
    %v6900 = vunpack.c.l.b16 %v6829
    %v6901 = vunpack.c.l.b16 %v6830
    %v6902 = vunpack.c.l.b16 %v6831
    %v6903 = vunpack.c.l.b16 %v6832
    %v6904 = vunpack.c.l.b16 %v6833
    %v6905 = vunpack.c.l.b16 %v6834
    %v6906 = vunpack.c.l.b16 %v6835
    %v6907 = vunpack.c.l.b16 %v6836
    %v6908 = vunpack.c.l.b16 %v6837
    %v6909 = vunpack.c.l.b16 %v6838
    %v6910 = vunpack.c.l.b16 %v6839
    %v6911 = vunpack.c.l.b16 %v6840
    %v6912 = vunpack.c.l.b16 %v6841
    %v6913 = vunpack.c.l.b16 %v6842
    %v6914 = vunpack.c.l.b16 %v6843
    %v6915 = vunpack.c.l.b16 %v6844
    %v6916 = vunpack.c.l.b16 %v6845
    %v6917 = vunpack.c.l.b16 %v6846
    %v6918 = vunpack.c.l.b16 %v6847
    %v6919 = vunpack.c.l.b16 %v6848
    %v6920 = vunpack.c.l.b16 %v6849
    %v6921 = vpack.c.b16 %v6890, %v6889
    %v6922 = vpack.c.b16 %v6892, %v6891
    %v6923 = vpack.c.b16 %v6894, %v6893
    %v6924 = vpack.c.b16 %v6896, %v6895
    %v6925 = vpack.c.b16 %v6898, %v6897
    %v6926 = vpack.c.b16 %v6900, %v6899
    %v6927 = vpack.c.b16 %v6902, %v6901
    %v6928 = vpack.c.b16 %v6904, %v6903
    %v6929 = vpack.c.b16 %v6906, %v6905
    %v6930 = vpack.c.b16 %v6908, %v6907
    %v6931 = vpack.c.b16 %v6910, %v6909
    %v6932 = vpack.c.b16 %v6912, %v6911
    %v6933 = vpack.c.b16 %v6914, %v6913
    %v6934 = vpack.c.b16 %v6916, %v6915
    %v6935 = vpack.c.b16 %v6918, %v6917
    %v6936 = vpack.c.b16 %v6920, %v6919
    %6953 = vmatprep.subr.bf16.mxu0 0
    %6954 = vmatpush1.bf16.msra.mxu0 %v6928
    %6955 = vmatprep.subr.bf16.mxu0 0
    %6956 = vmatpush1.bf16.msra.mxu0 %v6927
    %6957 = vmatprep.subr.bf16.mxu0 0
    %6958 = vmatpush1.bf16.msra.mxu0 %v6926
    %6959 = vmatprep.subr.bf16.mxu0 0
    %6960 = vmatpush1.bf16.msra.mxu0 %v6925
    %6961 = vmatprep.subr.bf16.mxu0 0
    %6962 = vmatpush1.bf16.msra.mxu0 %v6924
    %6963 = vmatprep.subr.bf16.mxu0 0
    %6964 = vmatpush1.bf16.msra.mxu0 %v6923
    %6965 = vmatprep.subr.bf16.mxu0 0
    %6966 = vmatpush1.bf16.msra.mxu0 %v6922
    %6967 = vmatprep.subr.bf16.mxu0 0
    %6968 = vmatpush1.bf16.msra.mxu0 %v6921
    %6969 = vmatprep.subr.bf16.mxu0 0
    %6970 = vmatpush2.bf16.msra.mxu0 %v6936
    %6971 = vmatprep.subr.bf16.mxu0 0
    %6972 = vmatpush2.bf16.msra.mxu0 %v6935
    %6973 = vmatprep.subr.bf16.mxu0 0
    %6974 = vmatpush2.bf16.msra.mxu0 %v6934
    %6975 = vmatprep.subr.bf16.mxu0 0
    %6976 = vmatpush2.bf16.msra.mxu0 %v6933
    %6977 = vmatprep.subr.bf16.mxu0 0
    %6978 = vmatpush2.bf16.msra.mxu0 %v6932
    %6979 = vmatprep.subr.bf16.mxu0 0
    %6980 = vmatpush2.bf16.msra.mxu0 %v6931
    %6981 = vmatprep.subr.bf16.mxu0 0
    %6982 = vmatpush2.bf16.msra.mxu0 %v6930
    %6983 = vmatprep.subr.bf16.mxu0 0
    %6984 = vmatpush2.bf16.msra.mxu0 %v6929
    %6985 = vmatprep.mubr.bf16.mxu0 %v6817
    %6986 = vmatmul.mubr.bf16.gmra.mxu0 %v6816
    %v6987 = vpop.f32.mrf.mxu0
    %v6988 = vadd.f32 %v6855, %v6987
    %v6989 = vpop.f32.mrf.mxu0
    %v6990 = vpop.f32.mrf.mxu0
    %v6991 = vpop.f32.mrf.mxu0
    %6992 = vdwg.mxu0
    %v6993 = vld [vmem:[#allocation12] sm:$0xff]
    %v6994 = vmul.f32 %v6988, %v6993
    %v6995 = vpack.c.bf16 %v6994, %v6994
    %v6996 = vld [vmem:[#allocation13] sm:$0xf]
    %v6997 = vld [vmem:[#allocation13 + $0x4] sm:$0xf]
    %v6998 = vld [vmem:[#allocation13 + $0x8] sm:$0xf]
    %v6999 = vld [vmem:[#allocation13 + $0xc] sm:$0xf]
    %v7000 = vld [vmem:[#allocation13 + $0x10] sm:$0xf]
    %v7001 = vld [vmem:[#allocation13 + $0x14] sm:$0xf]
    %v7002 = vld [vmem:[#allocation13 + $0x18] sm:$0xf]
    %v7003 = vld [vmem:[#allocation13 + $0x1c] sm:$0xf]
    %v7004 = vld [vmem:[#allocation13 + $0x20] sm:$0xf]
    %v7005 = vld [vmem:[#allocation13 + $0x24] sm:$0xf]
    %v7006 = vld [vmem:[#allocation13 + $0x28] sm:$0xf]
    %v7007 = vld [vmem:[#allocation13 + $0x2c] sm:$0xf]
    %v7008 = vld [vmem:[#allocation13 + $0x30] sm:$0xf]
    %v7009 = vld [vmem:[#allocation13 + $0x34] sm:$0xf]
    %v7010 = vld [vmem:[#allocation13 + $0x38] sm:$0xf]
    %v7011 = vld [vmem:[#allocation13 + $0x3c] sm:$0xf]
    %v7028 = vunpack.c.l.b16 %v6996
    %v7029 = vunpack.c.l.b16 %v6997
    %v7030 = vunpack.c.l.b16 %v6998
    %v7031 = vunpack.c.l.b16 %v6999
    %v7032 = vunpack.c.l.b16 %v7000
    %v7033 = vunpack.c.l.b16 %v7001
    %v7034 = vunpack.c.l.b16 %v7002
    %v7035 = vunpack.c.l.b16 %v7003
    %v7036 = vunpack.c.l.b16 %v7004
    %v7037 = vunpack.c.l.b16 %v7005
    %v7038 = vunpack.c.l.b16 %v7006
    %v7039 = vunpack.c.l.b16 %v7007
    %v7040 = vunpack.c.l.b16 %v7008
    %v7041 = vunpack.c.l.b16 %v7009
    %v7042 = vunpack.c.l.b16 %v7010
    %v7043 = vunpack.c.l.b16 %v7011
    %v7044 = vpack.c.b16 %v7029, %v7028
    %v7045 = vpack.c.b16 %v7031, %v7030
    %v7046 = vpack.c.b16 %v7033, %v7032
    %v7047 = vpack.c.b16 %v7035, %v7034
    %v7048 = vpack.c.b16 %v7037, %v7036
    %v7049 = vpack.c.b16 %v7039, %v7038
    %v7050 = vpack.c.b16 %v7041, %v7040
    %v7051 = vpack.c.b16 %v7043, %v7042
    %7060 = vmatprep.subr.bf16.mxu0 0
    %7061 = vmatpush1.bf16.msra.mxu0 %v7051
    %7062 = vmatprep.subr.bf16.mxu0 0
    %7063 = vmatpush1.bf16.msra.mxu0 %v7050
    %7064 = vmatprep.subr.bf16.mxu0 0
    %7065 = vmatpush1.bf16.msra.mxu0 %v7049
    %7066 = vmatprep.subr.bf16.mxu0 0
    %7067 = vmatpush1.bf16.msra.mxu0 %v7048
    %7068 = vmatprep.subr.bf16.mxu0 0
    %7069 = vmatpush1.bf16.msra.mxu0 %v7047
    %7070 = vmatprep.subr.bf16.mxu0 0
    %7071 = vmatpush1.bf16.msra.mxu0 %v7046
    %7072 = vmatprep.subr.bf16.mxu0 0
    %7073 = vmatpush1.bf16.msra.mxu0 %v7045
    %7074 = vmatprep.subr.bf16.mxu0 0
    %7075 = vmatpush1.bf16.msra.mxu0 %v7044
    %7076 = vmatprep.subr.bf16.mxu0 0
    %7077 = vmatpush2.bf16.msra.mxu0 0
    %7078 = vmatprep.subr.bf16.mxu0 0
    %7079 = vmatpush2.bf16.msra.mxu0 0
    %7080 = vmatprep.subr.bf16.mxu0 0
    %7081 = vmatpush2.bf16.msra.mxu0 0
    %7082 = vmatprep.subr.bf16.mxu0 0
    %7083 = vmatpush2.bf16.msra.mxu0 0
    %7084 = vmatprep.subr.bf16.mxu0 0
    %7085 = vmatpush2.bf16.msra.mxu0 0
    %7086 = vmatprep.subr.bf16.mxu0 0
    %7087 = vmatpush2.bf16.msra.mxu0 0
    %7088 = vmatprep.subr.bf16.mxu0 0
    %7089 = vmatpush2.bf16.msra.mxu0 0
    %7090 = vmatprep.subr.bf16.mxu0 0
    %7091 = vmatpush2.bf16.msra.mxu0 0
    %7092 = vmatprep.mubr.bf16.mxu0 0
    %7093 = vmatmul.mubr.bf16.gmra.mxu0 %v6995
    %v7094 = vpop.f32.mrf.mxu0
    %v7095 = vadd.f32 0.0, %v7094
    %v7096 = vpop.f32.mrf.mxu0
    %v7097 = vpop.f32.mrf.mxu0
    %v7098 = vpop.f32.mrf.mxu0
    %7099 = vdwg.mxu0
    %v7100 = vld [vmem:[#allocation16] sm:$0xff]
    %vm7101 = vcmp.gt.f32.partialorder %v7100, 0.0
    %v7102 = vsel %vm7101, 1, 0
    %v7103 = vcvt.s32.f32 %v7102
    %v7104 = vld [vmem:[%s14] sm:$0xff]
    %v7105 = vld [vmem:[%s14 + $0x8] sm:$0xff]
    %v7106 = vld [vmem:[%s14 + $0x10] sm:$0xff]
    %v7107 = vld [vmem:[%s14 + $0x18] sm:$0xff]
    %v7108 = vld [vmem:[%s14 + $0x20] sm:$0xff]
    %v7109 = vld [vmem:[%s14 + $0x28] sm:$0xff]
    %v7110 = vld [vmem:[%s14 + $0x30] sm:$0xff]
    %v7111 = vld [vmem:[%s14 + $0x38] sm:$0xff]
    %v7112 = vld [vmem:[%s14 + $0x40] sm:$0xff]
    %v7113 = vld [vmem:[%s14 + $0x48] sm:$0xff]
    %v7114 = vld [vmem:[%s14 + $0x50] sm:$0xff]
    %v7115 = vld [vmem:[%s14 + $0x58] sm:$0xff]
    %v7116 = vld [vmem:[%s14 + $0x60] sm:$0xff]
    %v7117 = vld [vmem:[%s14 + $0x68] sm:$0xff]
    %v7118 = vld [vmem:[%s14 + $0x70] sm:$0xff]
    %v7119 = vld [vmem:[%s14 + $0x78] sm:$0xff]
    %v7120 = vld [vmem:[%s12] sm:$0x1]
    %v7122 = vlaneseq
    %v7123 = vshrl.u32 %v7122, 7
    %v7124 = vsub.s32 0, %v7123
    %v7125 = vrot.slane %v7120, %v7124
    %v7127 = vmul.f32 %v7095, %v7125
    %7128 = vmatprep.subr.mxu0 0.0
    %7129 = vmatpush1.msra.mxu0 %v7119
    %7130 = vmatprep.subr.mxu0 0.0
    %7131 = vmatpush1.msra.mxu0 %v7118
    %7132 = vmatprep.subr.mxu0 0.0
    %7133 = vmatpush1.msra.mxu0 %v7117
    %7134 = vmatprep.subr.mxu0 0.0
    %7135 = vmatpush1.msra.mxu0 %v7116
    %7136 = vmatprep.subr.mxu0 0.0
    %7137 = vmatpush1.msra.mxu0 %v7115
    %7138 = vmatprep.subr.mxu0 0.0
    %7139 = vmatpush1.msra.mxu0 %v7114
    %7140 = vmatprep.subr.mxu0 0.0
    %7141 = vmatpush1.msra.mxu0 %v7113
    %7142 = vmatprep.subr.mxu0 0.0
    %7143 = vmatpush1.msra.mxu0 %v7112
    %7144 = vmatprep.subr.mxu0 0.0
    %7145 = vmatpush1.msra.mxu0 %v7111
    %7146 = vmatprep.subr.mxu0 0.0
    %7147 = vmatpush1.msra.mxu0 %v7110
    %7148 = vmatprep.subr.mxu0 0.0
    %7149 = vmatpush1.msra.mxu0 %v7109
    %7150 = vmatprep.subr.mxu0 0.0
    %7151 = vmatpush1.msra.mxu0 %v7108
    %7152 = vmatprep.subr.mxu0 0.0
    %7153 = vmatpush1.msra.mxu0 %v7107
    %7154 = vmatprep.subr.mxu0 0.0
    %7155 = vmatpush1.msra.mxu0 %v7106
    %7156 = vmatprep.subr.mxu0 0.0
    %7157 = vmatpush1.msra.mxu0 %v7105
    %7158 = vmatprep.subr.mxu0 0.0
    %7159 = vmatpush1.msra.mxu0 %v7104
    %7160 = vmatprep.subr.mxu0 0.0
    %7161 = vmatpush2.msra.mxu0 0.0
    %7162 = vmatprep.subr.mxu0 0.0
    %7163 = vmatpush2.msra.mxu0 0.0
    %7164 = vmatprep.subr.mxu0 0.0
    %7165 = vmatpush2.msra.mxu0 0.0
    %7166 = vmatprep.subr.mxu0 0.0
    %7167 = vmatpush2.msra.mxu0 0.0
    %7168 = vmatprep.subr.mxu0 0.0
    %7169 = vmatpush2.msra.mxu0 0.0
    %7170 = vmatprep.subr.mxu0 0.0
    %7171 = vmatpush2.msra.mxu0 0.0
    %7172 = vmatprep.subr.mxu0 0.0
    %7173 = vmatpush2.msra.mxu0 0.0
    %7174 = vmatprep.subr.mxu0 0.0
    %7175 = vmatpush2.msra.mxu0 0.0
    %7176 = vmatprep.subr.mxu0 0.0
    %7177 = vmatpush2.msra.mxu0 0.0
    %7178 = vmatprep.subr.mxu0 0.0
    %7179 = vmatpush2.msra.mxu0 0.0
    %7180 = vmatprep.subr.mxu0 0.0
    %7181 = vmatpush2.msra.mxu0 0.0
    %7182 = vmatprep.subr.mxu0 0.0
    %7183 = vmatpush2.msra.mxu0 0.0
    %7184 = vmatprep.subr.mxu0 0.0
    %7185 = vmatpush2.msra.mxu0 0.0
    %7186 = vmatprep.subr.mxu0 0.0
    %7187 = vmatpush2.msra.mxu0 0.0
    %7188 = vmatprep.subr.mxu0 0.0
    %7189 = vmatpush2.msra.mxu0 0.0
    %7190 = vmatprep.subr.mxu0 0.0
    %7191 = vmatpush2.msra.mxu0 0.0
    %7192 = vmatprep.mubr.f32.mxu0 0.0
    %7193 = vmatmul.mubr.f32.gmra.mxu0 %v7127
    %v7194 = vpop.f32.mrf.mxu0
    %v7195 = vadd.f32 0.0, %v7194
    %v7196 = vpop.f32.mrf.mxu0
    %7197 = vdwg.mxu0
    %v7198 = vld [vmem:[%s11] sm:$0x1]
    %v7200 = vlaneseq
    %v7201 = vshrl.u32 %v7200, 7
    %v7202 = vsub.s32 0, %v7201
    %v7203 = vrot.slane %v7198, %v7202
    %v7205 = vmul.f32 %v7095, %v7203
    %7206 = vmatprep.subr.mxu0 0.0
    %7207 = vmatpush1.msra.mxu0 %v7119
    %7208 = vmatprep.subr.mxu0 0.0
    %7209 = vmatpush1.msra.mxu0 %v7118
    %7210 = vmatprep.subr.mxu0 0.0
    %7211 = vmatpush1.msra.mxu0 %v7117
    %7212 = vmatprep.subr.mxu0 0.0
    %7213 = vmatpush1.msra.mxu0 %v7116
    %7214 = vmatprep.subr.mxu0 0.0
    %7215 = vmatpush1.msra.mxu0 %v7115
    %7216 = vmatprep.subr.mxu0 0.0
    %7217 = vmatpush1.msra.mxu0 %v7114
    %7218 = vmatprep.subr.mxu0 0.0
    %7219 = vmatpush1.msra.mxu0 %v7113
    %7220 = vmatprep.subr.mxu0 0.0
    %7221 = vmatpush1.msra.mxu0 %v7112
    %7222 = vmatprep.subr.mxu0 0.0
    %7223 = vmatpush1.msra.mxu0 %v7111
    %7224 = vmatprep.subr.mxu0 0.0
    %7225 = vmatpush1.msra.mxu0 %v7110
    %7226 = vmatprep.subr.mxu0 0.0
    %7227 = vmatpush1.msra.mxu0 %v7109
    %7228 = vmatprep.subr.mxu0 0.0
    %7229 = vmatpush1.msra.mxu0 %v7108
    %7230 = vmatprep.subr.mxu0 0.0
    %7231 = vmatpush1.msra.mxu0 %v7107
    %7232 = vmatprep.subr.mxu0 0.0
    %7233 = vmatpush1.msra.mxu0 %v7106
    %7234 = vmatprep.subr.mxu0 0.0
    %7235 = vmatpush1.msra.mxu0 %v7105
    %7236 = vmatprep.subr.mxu0 0.0
    %7237 = vmatpush1.msra.mxu0 %v7104
    %7238 = vmatprep.subr.mxu0 0.0
    %7239 = vmatpush2.msra.mxu0 0.0
    %7240 = vmatprep.subr.mxu0 0.0
    %7241 = vmatpush2.msra.mxu0 0.0
    %7242 = vmatprep.subr.mxu0 0.0
    %7243 = vmatpush2.msra.mxu0 0.0
    %7244 = vmatprep.subr.mxu0 0.0
    %7245 = vmatpush2.msra.mxu0 0.0
    %7246 = vmatprep.subr.mxu0 0.0
    %7247 = vmatpush2.msra.mxu0 0.0
    %7248 = vmatprep.subr.mxu0 0.0
    %7249 = vmatpush2.msra.mxu0 0.0
    %7250 = vmatprep.subr.mxu0 0.0
    %7251 = vmatpush2.msra.mxu0 0.0
    %7252 = vmatprep.subr.mxu0 0.0
    %7253 = vmatpush2.msra.mxu0 0.0
    %7254 = vmatprep.subr.mxu0 0.0
    %7255 = vmatpush2.msra.mxu0 0.0
    %7256 = vmatprep.subr.mxu0 0.0
    %7257 = vmatpush2.msra.mxu0 0.0
    %7258 = vmatprep.subr.mxu0 0.0
    %7259 = vmatpush2.msra.mxu0 0.0
    %7260 = vmatprep.subr.mxu0 0.0
    %7261 = vmatpush2.msra.mxu0 0.0
    %7262 = vmatprep.subr.mxu0 0.0
    %7263 = vmatpush2.msra.mxu0 0.0
    %7264 = vmatprep.subr.mxu0 0.0
    %7265 = vmatpush2.msra.mxu0 0.0
    %7266 = vmatprep.subr.mxu0 0.0
    %7267 = vmatpush2.msra.mxu0 0.0
    %7268 = vmatprep.subr.mxu0 0.0
    %7269 = vmatpush2.msra.mxu0 0.0
    %7270 = vmatprep.mubr.f32.mxu0 0.0
    %7271 = vmatmul.mubr.f32.gmra.mxu0 %v7205
    %v7272 = vpop.f32.mrf.mxu0
    %v7273 = vadd.f32 0.0, %v7272
    %v7274 = vpop.f32.mrf.mxu0
    %7275 = vdwg.mxu0
    %7276 = vxpose.xlu0.b32.start [1/16] %v7273, 128
    %7277 = vxpose.xlu0.b32.cont [2/16] 0.0, 128
    %7278 = vxpose.xlu0.b32.cont [3/16] 0.0, 128
    %7279 = vxpose.xlu0.b32.cont [4/16] 0.0, 128
    %7280 = vxpose.xlu0.b32.cont [5/16] 0.0, 128
    %7281 = vxpose.xlu0.b32.cont [6/16] 0.0, 128
    %7282 = vxpose.xlu0.b32.cont [7/16] 0.0, 128
    %7283 = vxpose.xlu0.b32.cont [8/16] 0.0, 128
    %7284 = vxpose.xlu0.b32.cont [9/16] 0.0, 128
    %7285 = vxpose.xlu0.b32.cont [10/16] 0.0, 128
    %7286 = vxpose.xlu0.b32.cont [11/16] 0.0, 128
    %7287 = vxpose.xlu0.b32.cont [12/16] 0.0, 128
    %7288 = vxpose.xlu0.b32.cont [13/16] 0.0, 128
    %7289 = vxpose.xlu0.b32.cont [14/16] 0.0, 128
    %7290 = vxpose.xlu0.b32.cont [15/16] 0.0, 128
    %7291 = vxpose.xlu0.b32.end [16/16] 0.0, 128
    %v7292 = vpop.trf.xlu0
    %v7293 = vpop.trf.xlu0
    %v7294 = vpop.trf.xlu0
    %v7295 = vpop.trf.xlu0
    %v7296 = vpop.trf.xlu0
    %v7297 = vpop.trf.xlu0
    %v7298 = vpop.trf.xlu0
    %v7299 = vpop.trf.xlu0
    %v7300 = vpop.trf.xlu0
    %v7301 = vpop.trf.xlu0
    %v7302 = vpop.trf.xlu0
    %v7303 = vpop.trf.xlu0
    %v7304 = vpop.trf.xlu0
    %v7305 = vpop.trf.xlu0
    %v7306 = vpop.trf.xlu0
    %v7307 = vpop.trf.xlu0
    %7309 = vset.pattern.permute.xlu0 0
    %7310 = vperm.xlu0 %7309, %v7195
    %v7311 = vpop.permute.xlu0 %7310
    %v7313 = vlaneseq
    %v7314 = vshrl.u32 %v7313, 7
    %v7315 = vsub.s32 0, %v7314
    %v7316 = vrot.slane %v7292, %v7315
    %v7317 = vadd.f32 %v7311, %v7316
    %vm7318 = vcmp.gt.f32.partialorder %v7317, 0.0
    %v7319 = vmul.f32 %v7317, 0.2
    %v7320 = vsel %vm7318, %v7317, %v7319
    %v7321 = vsel %vm7101, %v7320, -1e+30
    %vm7322 = vcmask 64512
    %v7323 = vsel %vm7322, %v7321, -inf
    %7324 = vmax.xlane.f32.xlu0 %v7323
    %v7325 = vpop.xlane.xlu0 %7324
    %v7326 = vsub.f32 %v7321, %v7325
    %v7327 = vmul.f32 %v7326, 1.442695
    %v7328 = vpow.pop %v7327
    %v7329 = vmul.f32 %v7328, %v7103
    %v7330 = vsel %vm7322, %v7329, 0.0
    %7331 = vadd.xlane.f32.xlu0 %v7330
    %v7332 = vpop.xlane.xlu0 %7331
    %v7333 = vrcp.pop %v7332
    %v7334 = vmul.f32 %v7329, %v7333
    %v7336 = vsel %vm7322, %v7334, 0
    %7338 = vmatprep.subr.mxu0 0.0
    %7339 = vmatpush1.msra.mxu0 0.0
    %7340 = vmatprep.subr.mxu0 0.0
    %7341 = vmatpush1.msra.mxu0 0.0
    %7342 = vmatprep.subr.mxu0 0.0
    %7343 = vmatpush1.msra.mxu0 0.0
    %7344 = vmatprep.subr.mxu0 0.0
    %7345 = vmatpush1.msra.mxu0 0.0
    %7346 = vmatprep.subr.mxu0 0.0
    %7347 = vmatpush1.msra.mxu0 0.0
    %7348 = vmatprep.subr.mxu0 0.0
    %7349 = vmatpush1.msra.mxu0 0.0
    %7350 = vmatprep.subr.mxu0 0.0
    %7351 = vmatpush1.msra.mxu0 0.0
    %7352 = vmatprep.subr.mxu0 0.0
    %7353 = vmatpush1.msra.mxu0 0.0
    %7354 = vmatprep.subr.mxu0 0.0
    %7355 = vmatpush1.msra.mxu0 0.0
    %7356 = vmatprep.subr.mxu0 0.0
    %7357 = vmatpush1.msra.mxu0 0.0
    %7358 = vmatprep.subr.mxu0 0.0
    %7359 = vmatpush1.msra.mxu0 0.0
    %7360 = vmatprep.subr.mxu0 0.0
    %7361 = vmatpush1.msra.mxu0 0.0
    %7362 = vmatprep.subr.mxu0 0.0
    %7363 = vmatpush1.msra.mxu0 0.0
    %7364 = vmatprep.subr.mxu0 0.0
    %7365 = vmatpush1.msra.mxu0 0.0
    %7366 = vmatprep.subr.mxu0 0.0
    %7367 = vmatpush1.msra.mxu0 0.0
    %7368 = vmatprep.subr.mxu0 0.0
    %7369 = vmatpush1.msra.mxu0 %v7095
    %7370 = vmatprep.subr.mxu0 0.0
    %7371 = vmatpush2.msra.mxu0 0.0
    %7372 = vmatprep.subr.mxu0 0.0
    %7373 = vmatpush2.msra.mxu0 0.0
    %7374 = vmatprep.subr.mxu0 0.0
    %7375 = vmatpush2.msra.mxu0 0.0
    %7376 = vmatprep.subr.mxu0 0.0
    %7377 = vmatpush2.msra.mxu0 0.0
    %7378 = vmatprep.subr.mxu0 0.0
    %7379 = vmatpush2.msra.mxu0 0.0
    %7380 = vmatprep.subr.mxu0 0.0
    %7381 = vmatpush2.msra.mxu0 0.0
    %7382 = vmatprep.subr.mxu0 0.0
    %7383 = vmatpush2.msra.mxu0 0.0
    %7384 = vmatprep.subr.mxu0 0.0
    %7385 = vmatpush2.msra.mxu0 0.0
    %7386 = vmatprep.subr.mxu0 0.0
    %7387 = vmatpush2.msra.mxu0 0.0
    %7388 = vmatprep.subr.mxu0 0.0
    %7389 = vmatpush2.msra.mxu0 0.0
    %7390 = vmatprep.subr.mxu0 0.0
    %7391 = vmatpush2.msra.mxu0 0.0
    %7392 = vmatprep.subr.mxu0 0.0
    %7393 = vmatpush2.msra.mxu0 0.0
    %7394 = vmatprep.subr.mxu0 0.0
    %7395 = vmatpush2.msra.mxu0 0.0
    %7396 = vmatprep.subr.mxu0 0.0
    %7397 = vmatpush2.msra.mxu0 0.0
    %7398 = vmatprep.subr.mxu0 0.0
    %7399 = vmatpush2.msra.mxu0 0.0
    %7400 = vmatprep.subr.mxu0 0.0
    %7401 = vmatpush2.msra.mxu0 0.0
    %7402 = vmatprep.mubr.f32.mxu0 0.0
    %7403 = vmatmul.mubr.f32.gmra.mxu0 %v7336
    %v7404 = vpop.f32.mrf.mxu0
    %v7405 = vadd.f32 0.0, %v7404
    %v7406 = vpop.f32.mrf.mxu0
    %7407 = vdwg.mxu0
    %7408 = vset.pattern.permute.xlu0 1
    %7409 = vperm.xlu0 %7408, %v7195
    %v7410 = vpop.permute.xlu0 %7409
    %v7412 = vlaneseq
    %v7413 = vshrl.u32 %v7412, 7
    %v7414 = vsub.s32 1, %v7413
    %v7415 = vrot.slane %v7292, %v7414
    %v7416 = vadd.f32 %v7410, %v7415
    %vm7417 = vcmp.gt.f32.partialorder %v7416, 0.0
    %v7418 = vmul.f32 %v7416, 0.2
    %v7419 = vsel %vm7417, %v7416, %v7418
    %v7420 = vsel %vm7101, %v7419, -1e+30
    %v7421 = vsel %vm7322, %v7420, -inf
    %7422 = vmax.xlane.f32.xlu0 %v7421
    %v7423 = vpop.xlane.xlu0 %7422
    %v7424 = vsub.f32 %v7420, %v7423
    %v7425 = vmul.f32 %v7424, 1.442695
    %v7426 = vpow.pop %v7425
    %v7427 = vmul.f32 %v7426, %v7103
    %v7428 = vsel %vm7322, %v7427, 0.0
    %7429 = vadd.xlane.f32.xlu0 %v7428
    %v7430 = vpop.xlane.xlu0 %7429
    %v7431 = vrcp.pop %v7430
    %v7432 = vmul.f32 %v7427, %v7431
    %7434 = vrot.lane.b32.xlu0 %v7095, 96
    %v7435 = vpop.permute.xlu0 %7434
    %v7438 = vsel %vm7322, %v7432, 0
    %7440 = vmatprep.subr.mxu0 0.0
    %7441 = vmatpush1.msra.mxu0 0.0
    %7442 = vmatprep.subr.mxu0 0.0
    %7443 = vmatpush1.msra.mxu0 0.0
    %7444 = vmatprep.subr.mxu0 0.0
    %7445 = vmatpush1.msra.mxu0 0.0
    %7446 = vmatprep.subr.mxu0 0.0
    %7447 = vmatpush1.msra.mxu0 0.0
    %7448 = vmatprep.subr.mxu0 0.0
    %7449 = vmatpush1.msra.mxu0 0.0
    %7450 = vmatprep.subr.mxu0 0.0
    %7451 = vmatpush1.msra.mxu0 0.0
    %7452 = vmatprep.subr.mxu0 0.0
    %7453 = vmatpush1.msra.mxu0 0.0
    %7454 = vmatprep.subr.mxu0 0.0
    %7455 = vmatpush1.msra.mxu0 0.0
    %7456 = vmatprep.subr.mxu0 0.0
    %7457 = vmatpush1.msra.mxu0 0.0
    %7458 = vmatprep.subr.mxu0 0.0
    %7459 = vmatpush1.msra.mxu0 0.0
    %7460 = vmatprep.subr.mxu0 0.0
    %7461 = vmatpush1.msra.mxu0 0.0
    %7462 = vmatprep.subr.mxu0 0.0
    %7463 = vmatpush1.msra.mxu0 0.0
    %7464 = vmatprep.subr.mxu0 0.0
    %7465 = vmatpush1.msra.mxu0 0.0
    %7466 = vmatprep.subr.mxu0 0.0
    %7467 = vmatpush1.msra.mxu0 0.0
    %7468 = vmatprep.subr.mxu0 0.0
    %7469 = vmatpush1.msra.mxu0 0.0
    %7470 = vmatprep.subr.mxu0 0.0
    %7471 = vmatpush1.msra.mxu0 %v7435
    %7472 = vmatprep.subr.mxu0 0.0
    %7473 = vmatpush2.msra.mxu0 0.0
    %7474 = vmatprep.subr.mxu0 0.0
    %7475 = vmatpush2.msra.mxu0 0.0
    %7476 = vmatprep.subr.mxu0 0.0
    %7477 = vmatpush2.msra.mxu0 0.0
    %7478 = vmatprep.subr.mxu0 0.0
    %7479 = vmatpush2.msra.mxu0 0.0
    %7480 = vmatprep.subr.mxu0 0.0
    %7481 = vmatpush2.msra.mxu0 0.0
    %7482 = vmatprep.subr.mxu0 0.0
    %7483 = vmatpush2.msra.mxu0 0.0
    %7484 = vmatprep.subr.mxu0 0.0
    %7485 = vmatpush2.msra.mxu0 0.0
    %7486 = vmatprep.subr.mxu0 0.0
    %7487 = vmatpush2.msra.mxu0 0.0
    %7488 = vmatprep.subr.mxu0 0.0
    %7489 = vmatpush2.msra.mxu0 0.0
    %7490 = vmatprep.subr.mxu0 0.0
    %7491 = vmatpush2.msra.mxu0 0.0
    %7492 = vmatprep.subr.mxu0 0.0
    %7493 = vmatpush2.msra.mxu0 0.0
    %7494 = vmatprep.subr.mxu0 0.0
    %7495 = vmatpush2.msra.mxu0 0.0
    %7496 = vmatprep.subr.mxu0 0.0
    %7497 = vmatpush2.msra.mxu0 0.0
    %7498 = vmatprep.subr.mxu0 0.0
    %7499 = vmatpush2.msra.mxu0 0.0
    %7500 = vmatprep.subr.mxu0 0.0
    %7501 = vmatpush2.msra.mxu0 0.0
    %7502 = vmatprep.subr.mxu0 0.0
    %7503 = vmatpush2.msra.mxu0 0.0
    %7504 = vmatprep.mubr.f32.mxu0 0.0
    %7505 = vmatmul.mubr.f32.gmra.mxu0 %v7438
    %v7506 = vpop.f32.mrf.mxu0
    %v7507 = vadd.f32 0.0, %v7506
    %v7508 = vpop.f32.mrf.mxu0
    %7509 = vdwg.mxu0
    %7510 = vset.pattern.permute.xlu0 2
    %7511 = vperm.xlu0 %7510, %v7195
    %v7512 = vpop.permute.xlu0 %7511
    %v7514 = vlaneseq
    %v7515 = vshrl.u32 %v7514, 7
    %v7516 = vsub.s32 2, %v7515
    %v7517 = vrot.slane %v7292, %v7516
    %v7518 = vadd.f32 %v7512, %v7517
    %vm7519 = vcmp.gt.f32.partialorder %v7518, 0.0
    %v7520 = vmul.f32 %v7518, 0.2
    %v7521 = vsel %vm7519, %v7518, %v7520
    %v7522 = vsel %vm7101, %v7521, -1e+30
    %v7523 = vsel %vm7322, %v7522, -inf
    %7524 = vmax.xlane.f32.xlu0 %v7523
    %v7525 = vpop.xlane.xlu0 %7524
    %v7526 = vsub.f32 %v7522, %v7525
    %v7527 = vmul.f32 %v7526, 1.442695
    %v7528 = vpow.pop %v7527
    %v7529 = vmul.f32 %v7528, %v7103
    %v7530 = vsel %vm7322, %v7529, 0.0
    %7531 = vadd.xlane.f32.xlu0 %v7530
    %v7532 = vpop.xlane.xlu0 %7531
    %v7533 = vrcp.pop %v7532
    %v7534 = vmul.f32 %v7529, %v7533
    %7535 = vrot.lane.b32.xlu0 %v7095, 64
    %v7536 = vpop.permute.xlu0 %7535
    %v7539 = vsel %vm7322, %v7534, 0
    %7541 = vmatprep.subr.mxu0 0.0
    %7542 = vmatpush1.msra.mxu0 0.0
    %7543 = vmatprep.subr.mxu0 0.0
    %7544 = vmatpush1.msra.mxu0 0.0
    %7545 = vmatprep.subr.mxu0 0.0
    %7546 = vmatpush1.msra.mxu0 0.0
    %7547 = vmatprep.subr.mxu0 0.0
    %7548 = vmatpush1.msra.mxu0 0.0
    %7549 = vmatprep.subr.mxu0 0.0
    %7550 = vmatpush1.msra.mxu0 0.0
    %7551 = vmatprep.subr.mxu0 0.0
    %7552 = vmatpush1.msra.mxu0 0.0
    %7553 = vmatprep.subr.mxu0 0.0
    %7554 = vmatpush1.msra.mxu0 0.0
    %7555 = vmatprep.subr.mxu0 0.0
    %7556 = vmatpush1.msra.mxu0 0.0
    %7557 = vmatprep.subr.mxu0 0.0
    %7558 = vmatpush1.msra.mxu0 0.0
    %7559 = vmatprep.subr.mxu0 0.0
    %7560 = vmatpush1.msra.mxu0 0.0
    %7561 = vmatprep.subr.mxu0 0.0
    %7562 = vmatpush1.msra.mxu0 0.0
    %7563 = vmatprep.subr.mxu0 0.0
    %7564 = vmatpush1.msra.mxu0 0.0
    %7565 = vmatprep.subr.mxu0 0.0
    %7566 = vmatpush1.msra.mxu0 0.0
    %7567 = vmatprep.subr.mxu0 0.0
    %7568 = vmatpush1.msra.mxu0 0.0
    %7569 = vmatprep.subr.mxu0 0.0
    %7570 = vmatpush1.msra.mxu0 0.0
    %7571 = vmatprep.subr.mxu0 0.0
    %7572 = vmatpush1.msra.mxu0 %v7536
    %7573 = vmatprep.subr.mxu0 0.0
    %7574 = vmatpush2.msra.mxu0 0.0
    %7575 = vmatprep.subr.mxu0 0.0
    %7576 = vmatpush2.msra.mxu0 0.0
    %7577 = vmatprep.subr.mxu0 0.0
    %7578 = vmatpush2.msra.mxu0 0.0
    %7579 = vmatprep.subr.mxu0 0.0
    %7580 = vmatpush2.msra.mxu0 0.0
    %7581 = vmatprep.subr.mxu0 0.0
    %7582 = vmatpush2.msra.mxu0 0.0
    %7583 = vmatprep.subr.mxu0 0.0
    %7584 = vmatpush2.msra.mxu0 0.0
    %7585 = vmatprep.subr.mxu0 0.0
    %7586 = vmatpush2.msra.mxu0 0.0
    %7587 = vmatprep.subr.mxu0 0.0
    %7588 = vmatpush2.msra.mxu0 0.0
    %7589 = vmatprep.subr.mxu0 0.0
    %7590 = vmatpush2.msra.mxu0 0.0
    %7591 = vmatprep.subr.mxu0 0.0
    %7592 = vmatpush2.msra.mxu0 0.0
    %7593 = vmatprep.subr.mxu0 0.0
    %7594 = vmatpush2.msra.mxu0 0.0
    %7595 = vmatprep.subr.mxu0 0.0
    %7596 = vmatpush2.msra.mxu0 0.0
    %7597 = vmatprep.subr.mxu0 0.0
    %7598 = vmatpush2.msra.mxu0 0.0
    %7599 = vmatprep.subr.mxu0 0.0
    %7600 = vmatpush2.msra.mxu0 0.0
    %7601 = vmatprep.subr.mxu0 0.0
    %7602 = vmatpush2.msra.mxu0 0.0
    %7603 = vmatprep.subr.mxu0 0.0
    %7604 = vmatpush2.msra.mxu0 0.0
    %7605 = vmatprep.mubr.f32.mxu0 0.0
    %7606 = vmatmul.mubr.f32.gmra.mxu0 %v7539
    %v7607 = vpop.f32.mrf.mxu0
    %v7608 = vadd.f32 0.0, %v7607
    %v7609 = vpop.f32.mrf.mxu0
    %7610 = vdwg.mxu0
    %7611 = vset.pattern.permute.xlu0 3
    %7612 = vperm.xlu0 %7611, %v7195
    %v7613 = vpop.permute.xlu0 %7612
    %v7615 = vlaneseq
    %v7616 = vshrl.u32 %v7615, 7
    %v7617 = vsub.s32 3, %v7616
    %v7618 = vrot.slane %v7292, %v7617
    %v7619 = vadd.f32 %v7613, %v7618
    %vm7620 = vcmp.gt.f32.partialorder %v7619, 0.0
    %v7621 = vmul.f32 %v7619, 0.2
    %v7622 = vsel %vm7620, %v7619, %v7621
    %v7623 = vsel %vm7101, %v7622, -1e+30
    %v7624 = vsel %vm7322, %v7623, -inf
    %7625 = vmax.xlane.f32.xlu0 %v7624
    %v7626 = vpop.xlane.xlu0 %7625
    %v7627 = vsub.f32 %v7623, %v7626
    %v7628 = vmul.f32 %v7627, 1.442695
    %v7629 = vpow.pop %v7628
    %v7630 = vmul.f32 %v7629, %v7103
    %v7631 = vsel %vm7322, %v7630, 0.0
    %7632 = vadd.xlane.f32.xlu0 %v7631
    %v7633 = vpop.xlane.xlu0 %7632
    %v7634 = vrcp.pop %v7633
    %v7635 = vmul.f32 %v7630, %v7634
    %7636 = vrot.lane.b32.xlu0 %v7095, 32
    %v7637 = vpop.permute.xlu0 %7636
    %v7640 = vsel %vm7322, %v7635, 0
    %7642 = vmatprep.subr.mxu0 0.0
    %7643 = vmatpush1.msra.mxu0 0.0
    %7644 = vmatprep.subr.mxu0 0.0
    %7645 = vmatpush1.msra.mxu0 0.0
    %7646 = vmatprep.subr.mxu0 0.0
    %7647 = vmatpush1.msra.mxu0 0.0
    %7648 = vmatprep.subr.mxu0 0.0
    %7649 = vmatpush1.msra.mxu0 0.0
    %7650 = vmatprep.subr.mxu0 0.0
    %7651 = vmatpush1.msra.mxu0 0.0
    %7652 = vmatprep.subr.mxu0 0.0
    %7653 = vmatpush1.msra.mxu0 0.0
    %7654 = vmatprep.subr.mxu0 0.0
    %7655 = vmatpush1.msra.mxu0 0.0
    %7656 = vmatprep.subr.mxu0 0.0
    %7657 = vmatpush1.msra.mxu0 0.0
    %7658 = vmatprep.subr.mxu0 0.0
    %7659 = vmatpush1.msra.mxu0 0.0
    %7660 = vmatprep.subr.mxu0 0.0
    %7661 = vmatpush1.msra.mxu0 0.0
    %7662 = vmatprep.subr.mxu0 0.0
    %7663 = vmatpush1.msra.mxu0 0.0
    %7664 = vmatprep.subr.mxu0 0.0
    %7665 = vmatpush1.msra.mxu0 0.0
    %7666 = vmatprep.subr.mxu0 0.0
    %7667 = vmatpush1.msra.mxu0 0.0
    %7668 = vmatprep.subr.mxu0 0.0
    %7669 = vmatpush1.msra.mxu0 0.0
    %7670 = vmatprep.subr.mxu0 0.0
    %7671 = vmatpush1.msra.mxu0 0.0
    %7672 = vmatprep.subr.mxu0 0.0
    %7673 = vmatpush1.msra.mxu0 %v7637
    %7674 = vmatprep.subr.mxu0 0.0
    %7675 = vmatpush2.msra.mxu0 0.0
    %7676 = vmatprep.subr.mxu0 0.0
    %7677 = vmatpush2.msra.mxu0 0.0
    %7678 = vmatprep.subr.mxu0 0.0
    %7679 = vmatpush2.msra.mxu0 0.0
    %7680 = vmatprep.subr.mxu0 0.0
    %7681 = vmatpush2.msra.mxu0 0.0
    %7682 = vmatprep.subr.mxu0 0.0
    %7683 = vmatpush2.msra.mxu0 0.0
    %7684 = vmatprep.subr.mxu0 0.0
    %7685 = vmatpush2.msra.mxu0 0.0
    %7686 = vmatprep.subr.mxu0 0.0
    %7687 = vmatpush2.msra.mxu0 0.0
    %7688 = vmatprep.subr.mxu0 0.0
    %7689 = vmatpush2.msra.mxu0 0.0
    %7690 = vmatprep.subr.mxu0 0.0
    %7691 = vmatpush2.msra.mxu0 0.0
    %7692 = vmatprep.subr.mxu0 0.0
    %7693 = vmatpush2.msra.mxu0 0.0
    %7694 = vmatprep.subr.mxu0 0.0
    %7695 = vmatpush2.msra.mxu0 0.0
    %7696 = vmatprep.subr.mxu0 0.0
    %7697 = vmatpush2.msra.mxu0 0.0
    %7698 = vmatprep.subr.mxu0 0.0
    %7699 = vmatpush2.msra.mxu0 0.0
    %7700 = vmatprep.subr.mxu0 0.0
    %7701 = vmatpush2.msra.mxu0 0.0
    %7702 = vmatprep.subr.mxu0 0.0
    %7703 = vmatpush2.msra.mxu0 0.0
    %7704 = vmatprep.subr.mxu0 0.0
    %7705 = vmatpush2.msra.mxu0 0.0
    %7706 = vmatprep.mubr.f32.mxu0 0.0
    %7707 = vmatmul.mubr.f32.gmra.mxu0 %v7640
    %v7708 = vpop.f32.mrf.mxu0
    %v7709 = vadd.f32 0.0, %v7708
    %v7710 = vpop.f32.mrf.mxu0
    %7711 = vdwg.mxu0
    %7713 = vrot.lane.b32.xlu0 %v7507, 32
    %v7714 = vpop.permute.xlu0 %7713
    %7717 = vrot.lane.b32.xlu0 %v7608, 64
    %v7718 = vpop.permute.xlu0 %7717
    %7721 = vrot.lane.b32.xlu0 %v7709, 96
    %v7722 = vpop.permute.xlu0 %7721
    %vm7724 = vcmask 261120
    %v7725 = vsel %vm7724, %v7405, %v7714
    %vm7726 = vcmask 523264
    %v7727 = vsel %vm7726, %v7725, %v7718
    %vm7728 = vcmask 785408
    %v7729 = vsel %vm7728, %v7727, %v7722
    %v7730 = vld [vmem:[#allocation15] sm:$0x1]
    %v7732 = vlaneseq
    %v7733 = vshrl.u32 %v7732, 7
    %v7734 = vsub.s32 0, %v7733
    %v7735 = vrot.slane %v7730, %v7734
    %v7737 = vadd.f32 %v7729, %v7735
    %vm7738 = vcmp.gt.f32.partialorder %v7737, 0.0
    %v7739 = vmul.f32 %v7737, 1.442695
    %v7740 = vpow.pop %v7739
    %v7741 = vsub.f32 %v7740, 1.0
    %v7742 = vsel %vm7738, %v7737, %v7741
    %v7743 = vld [vmem:[#allocation18] sm:$0xff]
    %v7744 = vmul.f32 %v7742, %v7743
    %v7745 = vpack.c.bf16 %v7744, %v7744
    %v7746 = vld [vmem:[%s17] sm:$0xf]
    %v7747 = vld [vmem:[%s17 + $0x4] sm:$0xf]
    %v7748 = vld [vmem:[%s17 + $0x8] sm:$0xf]
    %v7749 = vld [vmem:[%s17 + $0xc] sm:$0xf]
    %v7750 = vld [vmem:[%s17 + $0x10] sm:$0xf]
    %v7751 = vld [vmem:[%s17 + $0x14] sm:$0xf]
    %v7752 = vld [vmem:[%s17 + $0x18] sm:$0xf]
    %v7753 = vld [vmem:[%s17 + $0x1c] sm:$0xf]
    %v7754 = vld [vmem:[%s17 + $0x20] sm:$0xf]
    %v7755 = vld [vmem:[%s17 + $0x24] sm:$0xf]
    %v7756 = vld [vmem:[%s17 + $0x28] sm:$0xf]
    %v7757 = vld [vmem:[%s17 + $0x2c] sm:$0xf]
    %v7758 = vld [vmem:[%s17 + $0x30] sm:$0xf]
    %v7759 = vld [vmem:[%s17 + $0x34] sm:$0xf]
    %v7760 = vld [vmem:[%s17 + $0x38] sm:$0xf]
    %v7761 = vld [vmem:[%s17 + $0x3c] sm:$0xf]
    %v7778 = vunpack.c.l.b16 %v7746
    %v7779 = vunpack.c.l.b16 %v7747
    %v7780 = vunpack.c.l.b16 %v7748
    %v7781 = vunpack.c.l.b16 %v7749
    %v7782 = vunpack.c.l.b16 %v7750
    %v7783 = vunpack.c.l.b16 %v7751
    %v7784 = vunpack.c.l.b16 %v7752
    %v7785 = vunpack.c.l.b16 %v7753
    %v7786 = vunpack.c.l.b16 %v7754
    %v7787 = vunpack.c.l.b16 %v7755
    %v7788 = vunpack.c.l.b16 %v7756
    %v7789 = vunpack.c.l.b16 %v7757
    %v7790 = vunpack.c.l.b16 %v7758
    %v7791 = vunpack.c.l.b16 %v7759
    %v7792 = vunpack.c.l.b16 %v7760
    %v7793 = vunpack.c.l.b16 %v7761
    %v7794 = vpack.c.b16 %v7779, %v7778
    %v7795 = vpack.c.b16 %v7781, %v7780
    %v7796 = vpack.c.b16 %v7783, %v7782
    %v7797 = vpack.c.b16 %v7785, %v7784
    %v7798 = vpack.c.b16 %v7787, %v7786
    %v7799 = vpack.c.b16 %v7789, %v7788
    %v7800 = vpack.c.b16 %v7791, %v7790
    %v7801 = vpack.c.b16 %v7793, %v7792
    %7810 = vmatprep.subr.bf16.mxu0 0
    %7811 = vmatpush1.bf16.msra.mxu0 %v7801
    %7812 = vmatprep.subr.bf16.mxu0 0
    %7813 = vmatpush1.bf16.msra.mxu0 %v7800
    %7814 = vmatprep.subr.bf16.mxu0 0
    %7815 = vmatpush1.bf16.msra.mxu0 %v7799
    %7816 = vmatprep.subr.bf16.mxu0 0
    %7817 = vmatpush1.bf16.msra.mxu0 %v7798
    %7818 = vmatprep.subr.bf16.mxu0 0
    %7819 = vmatpush1.bf16.msra.mxu0 %v7797
    %7820 = vmatprep.subr.bf16.mxu0 0
    %7821 = vmatpush1.bf16.msra.mxu0 %v7796
    %7822 = vmatprep.subr.bf16.mxu0 0
    %7823 = vmatpush1.bf16.msra.mxu0 %v7795
    %7824 = vmatprep.subr.bf16.mxu0 0
    %7825 = vmatpush1.bf16.msra.mxu0 %v7794
    %7826 = vmatprep.subr.bf16.mxu0 0
    %7827 = vmatpush2.bf16.msra.mxu0 0
    %7828 = vmatprep.subr.bf16.mxu0 0
    %7829 = vmatpush2.bf16.msra.mxu0 0
    %7830 = vmatprep.subr.bf16.mxu0 0
    %7831 = vmatpush2.bf16.msra.mxu0 0
    %7832 = vmatprep.subr.bf16.mxu0 0
    %7833 = vmatpush2.bf16.msra.mxu0 0
    %7834 = vmatprep.subr.bf16.mxu0 0
    %7835 = vmatpush2.bf16.msra.mxu0 0
    %7836 = vmatprep.subr.bf16.mxu0 0
    %7837 = vmatpush2.bf16.msra.mxu0 0
    %7838 = vmatprep.subr.bf16.mxu0 0
    %7839 = vmatpush2.bf16.msra.mxu0 0
    %7840 = vmatprep.subr.bf16.mxu0 0
    %7841 = vmatpush2.bf16.msra.mxu0 0
    %7842 = vmatprep.mubr.bf16.mxu0 0
    %7843 = vmatmul.mubr.bf16.gmra.mxu0 %v7745
    %v7844 = vpop.f32.mrf.mxu0
    %v7845 = vadd.f32 0.0, %v7844
    %v7846 = vpop.f32.mrf.mxu0
    %v7847 = vpop.f32.mrf.mxu0
    %v7848 = vpop.f32.mrf.mxu0
    %7849 = vdwg.mxu0
    %v7850 = vld [vmem:[#allocation19] sm:$0x1]
    %v7852 = vlaneseq
    %v7853 = vshrl.u32 %v7852, 7
    %v7854 = vsub.s32 0, %v7853
    %v7855 = vrot.slane %v7850, %v7854
    %v7857 = vmul.f32 %v7845, %v7855
    %v7858 = vsel %vm7726, %v7857, 0.0
    %7859 = vadd.xlane.f32.xlu0 %v7858
    %v7860 = vpop.xlane.xlu0 %7859
    %v7861 = vld [vmem:[%s18] sm:$0x1]
    %v7863 = vlaneseq
    %v7864 = vshrl.u32 %v7863, 7
    %v7865 = vsub.s32 0, %v7864
    %v7866 = vrot.slane %v7861, %v7865
    %v7868 = vmul.f32 %v7845, %v7866
    %v7869 = vsel %vm7726, %v7868, 0.0
    %7870 = vadd.xlane.f32.xlu0 %v7869
    %v7871 = vpop.xlane.xlu0 %7870
    %7872 = vxpose.xlu0.b32.start [1/16] %v7871, 128
    %7873 = vxpose.xlu0.b32.cont [2/16] 0.0, 128
    %7874 = vxpose.xlu0.b32.cont [3/16] 0.0, 128
    %7875 = vxpose.xlu0.b32.cont [4/16] 0.0, 128
    %7876 = vxpose.xlu0.b32.cont [5/16] 0.0, 128
    %7877 = vxpose.xlu0.b32.cont [6/16] 0.0, 128
    %7878 = vxpose.xlu0.b32.cont [7/16] 0.0, 128
    %7879 = vxpose.xlu0.b32.cont [8/16] 0.0, 128
    %7880 = vxpose.xlu0.b32.cont [9/16] 0.0, 128
    %7881 = vxpose.xlu0.b32.cont [10/16] 0.0, 128
    %7882 = vxpose.xlu0.b32.cont [11/16] 0.0, 128
    %7883 = vxpose.xlu0.b32.cont [12/16] 0.0, 128
    %7884 = vxpose.xlu0.b32.cont [13/16] 0.0, 128
    %7885 = vxpose.xlu0.b32.cont [14/16] 0.0, 128
    %7886 = vxpose.xlu0.b32.cont [15/16] 0.0, 128
    %7887 = vxpose.xlu0.b32.end [16/16] 0.0, 128
    %v7888 = vpop.trf.xlu0
    %v7889 = vpop.trf.xlu0
    %v7890 = vpop.trf.xlu0
    %v7891 = vpop.trf.xlu0
    %v7892 = vpop.trf.xlu0
    %v7893 = vpop.trf.xlu0
    %v7894 = vpop.trf.xlu0
    %v7895 = vpop.trf.xlu0
    %v7896 = vpop.trf.xlu0
    %v7897 = vpop.trf.xlu0
    %v7898 = vpop.trf.xlu0
    %v7899 = vpop.trf.xlu0
    %v7900 = vpop.trf.xlu0
    %v7901 = vpop.trf.xlu0
    %v7902 = vpop.trf.xlu0
    %v7903 = vpop.trf.xlu0
    %v7904 = vlaneseq
    %v7905 = vshrl.u32 %v7904, 7
    %v7906 = vsub.s32 0, %v7905
    %v7907 = vrot.slane %v7888, %v7906
    %v7908 = vadd.f32 %v7860, %v7907
    %vm7909 = vcmp.gt.f32.partialorder %v7908, 0.0
    %v7910 = vmul.f32 %v7908, 0.2
    %v7911 = vsel %vm7909, %v7908, %v7910
    %v7912 = vsel %vm7101, %v7911, -1e+30
    %v7913 = vsel %vm7322, %v7912, -inf
    %7914 = vmax.xlane.f32.xlu0 %v7913
    %v7915 = vpop.xlane.xlu0 %7914
    %v7916 = vsub.f32 %v7912, %v7915
    %v7917 = vmul.f32 %v7916, 1.442695
    %v7918 = vpow.pop %v7917
    %v7919 = vmul.f32 %v7918, %v7103
    %v7920 = vsel %vm7322, %v7919, 0.0
    %7921 = vadd.xlane.f32.xlu0 %v7920
    %v7922 = vpop.xlane.xlu0 %7921
    %v7923 = vrcp.pop %v7922
    %v7924 = vmul.f32 %v7919, %v7923
    %v7925 = vld [vmem:[%s20] sm:$0x1]
    %v7927 = vlaneseq
    %v7928 = vshrl.u32 %v7927, 7
    %v7929 = vsub.s32 0, %v7928
    %v7930 = vrot.slane %v7925, %v7929
    %v7933 = vsel %vm7322, %v7924, 0
    %7935 = vmatprep.subr.mxu0 0.0
    %7936 = vmatpush1.msra.mxu0 0.0
    %7937 = vmatprep.subr.mxu0 0.0
    %7938 = vmatpush1.msra.mxu0 0.0
    %7939 = vmatprep.subr.mxu0 0.0
    %7940 = vmatpush1.msra.mxu0 0.0
    %7941 = vmatprep.subr.mxu0 0.0
    %7942 = vmatpush1.msra.mxu0 0.0
    %7943 = vmatprep.subr.mxu0 0.0
    %7944 = vmatpush1.msra.mxu0 0.0
    %7945 = vmatprep.subr.mxu0 0.0
    %7946 = vmatpush1.msra.mxu0 0.0
    %7947 = vmatprep.subr.mxu0 0.0
    %7948 = vmatpush1.msra.mxu0 0.0
    %7949 = vmatprep.subr.mxu0 0.0
    %7950 = vmatpush1.msra.mxu0 0.0
    %7951 = vmatprep.subr.mxu0 0.0
    %7952 = vmatpush1.msra.mxu0 0.0
    %7953 = vmatprep.subr.mxu0 0.0
    %7954 = vmatpush1.msra.mxu0 0.0
    %7955 = vmatprep.subr.mxu0 0.0
    %7956 = vmatpush1.msra.mxu0 0.0
    %7957 = vmatprep.subr.mxu0 0.0
    %7958 = vmatpush1.msra.mxu0 0.0
    %7959 = vmatprep.subr.mxu0 0.0
    %7960 = vmatpush1.msra.mxu0 0.0
    %7961 = vmatprep.subr.mxu0 0.0
    %7962 = vmatpush1.msra.mxu0 0.0
    %7963 = vmatprep.subr.mxu0 0.0
    %7964 = vmatpush1.msra.mxu0 0.0
    %7965 = vmatprep.subr.mxu0 0.0
    %7966 = vmatpush1.msra.mxu0 %v7845
    %7967 = vmatprep.subr.mxu0 0.0
    %7968 = vmatpush2.msra.mxu0 0.0
    %7969 = vmatprep.subr.mxu0 0.0
    %7970 = vmatpush2.msra.mxu0 0.0
    %7971 = vmatprep.subr.mxu0 0.0
    %7972 = vmatpush2.msra.mxu0 0.0
    %7973 = vmatprep.subr.mxu0 0.0
    %7974 = vmatpush2.msra.mxu0 0.0
    %7975 = vmatprep.subr.mxu0 0.0
    %7976 = vmatpush2.msra.mxu0 0.0
    %7977 = vmatprep.subr.mxu0 0.0
    %7978 = vmatpush2.msra.mxu0 0.0
    %7979 = vmatprep.subr.mxu0 0.0
    %7980 = vmatpush2.msra.mxu0 0.0
    %7981 = vmatprep.subr.mxu0 0.0
    %7982 = vmatpush2.msra.mxu0 0.0
    %7983 = vmatprep.subr.mxu0 0.0
    %7984 = vmatpush2.msra.mxu0 0.0
    %7985 = vmatprep.subr.mxu0 0.0
    %7986 = vmatpush2.msra.mxu0 0.0
    %7987 = vmatprep.subr.mxu0 0.0
    %7988 = vmatpush2.msra.mxu0 0.0
    %7989 = vmatprep.subr.mxu0 0.0
    %7990 = vmatpush2.msra.mxu0 0.0
    %7991 = vmatprep.subr.mxu0 0.0
    %7992 = vmatpush2.msra.mxu0 0.0
    %7993 = vmatprep.subr.mxu0 0.0
    %7994 = vmatpush2.msra.mxu0 0.0
    %7995 = vmatprep.subr.mxu0 0.0
    %7996 = vmatpush2.msra.mxu0 0.0
    %7997 = vmatprep.subr.mxu0 0.0
    %7998 = vmatpush2.msra.mxu0 0.0
    %7999 = vmatprep.mubr.f32.mxu0 0.0
    %8000 = vmatmul.mubr.f32.gmra.mxu0 %v7933
    %v8001 = vpop.f32.mrf.mxu0
    %v8002 = vadd.f32 %v7930, %v8001
    %v8003 = vpop.f32.mrf.mxu0
    %8004 = vdwg.mxu0
    %v8005 = vpack.c.bf16 %v8002, %v8002
    %v8006 = vld [vmem:[%s21] sm:$0xf]
    %v8007 = vld [vmem:[%s21 + $0x4] sm:$0xf]
    %v8008 = vld [vmem:[%s21 + $0x8] sm:$0xf]
    %v8009 = vld [vmem:[%s21 + $0xc] sm:$0xf]
    %v8010 = vld [vmem:[%s21 + $0x10] sm:$0xf]
    %v8011 = vld [vmem:[%s21 + $0x14] sm:$0xf]
    %v8012 = vld [vmem:[%s21 + $0x18] sm:$0xf]
    %v8013 = vld [vmem:[%s21 + $0x1c] sm:$0xf]
    %v8014 = vld [vmem:[%s23] sm:$0x1]
    %v8016 = vlaneseq
    %v8017 = vshrl.u32 %v8016, 7
    %v8018 = vsub.s32 0, %v8017
    %v8019 = vrot.slane %v8014, %v8018
    %v8029 = vunpack.c.l.b16 %v8006
    %v8030 = vunpack.c.l.b16 %v8007
    %v8031 = vunpack.c.l.b16 %v8008
    %v8032 = vunpack.c.l.b16 %v8009
    %v8033 = vunpack.c.l.b16 %v8010
    %v8034 = vunpack.c.l.b16 %v8011
    %v8035 = vunpack.c.l.b16 %v8012
    %v8036 = vunpack.c.l.b16 %v8013
    %v8037 = vpack.c.b16 %v8030, %v8029
    %v8038 = vpack.c.b16 %v8032, %v8031
    %v8039 = vpack.c.b16 %v8034, %v8033
    %v8040 = vpack.c.b16 %v8036, %v8035
    %v8046 = vsel %vm7726, %v8005, 0
    %8048 = vmatprep.subr.bf16.mxu0 0
    %8049 = vmatpush1.bf16.msra.mxu0 0
    %8050 = vmatprep.subr.bf16.mxu0 0
    %8051 = vmatpush1.bf16.msra.mxu0 0
    %8052 = vmatprep.subr.bf16.mxu0 0
    %8053 = vmatpush1.bf16.msra.mxu0 0
    %8054 = vmatprep.subr.bf16.mxu0 0
    %8055 = vmatpush1.bf16.msra.mxu0 0
    %8056 = vmatprep.subr.bf16.mxu0 0
    %8057 = vmatpush1.bf16.msra.mxu0 %v8040
    %8058 = vmatprep.subr.bf16.mxu0 0
    %8059 = vmatpush1.bf16.msra.mxu0 %v8039
    %8060 = vmatprep.subr.bf16.mxu0 0
    %8061 = vmatpush1.bf16.msra.mxu0 %v8038
    %8062 = vmatprep.subr.bf16.mxu0 0
    %8063 = vmatpush1.bf16.msra.mxu0 %v8037
    %8064 = vmatprep.subr.bf16.mxu0 0
    %8065 = vmatpush2.bf16.msra.mxu0 0
    %8066 = vmatprep.subr.bf16.mxu0 0
    %8067 = vmatpush2.bf16.msra.mxu0 0
    %8068 = vmatprep.subr.bf16.mxu0 0
    %8069 = vmatpush2.bf16.msra.mxu0 0
    %8070 = vmatprep.subr.bf16.mxu0 0
    %8071 = vmatpush2.bf16.msra.mxu0 0
    %8072 = vmatprep.subr.bf16.mxu0 0
    %8073 = vmatpush2.bf16.msra.mxu0 0
    %8074 = vmatprep.subr.bf16.mxu0 0
    %8075 = vmatpush2.bf16.msra.mxu0 0
    %8076 = vmatprep.subr.bf16.mxu0 0
    %8077 = vmatpush2.bf16.msra.mxu0 0
    %8078 = vmatprep.subr.bf16.mxu0 0
    %8079 = vmatpush2.bf16.msra.mxu0 0
    %8080 = vmatprep.mubr.bf16.mxu0 0
    %8081 = vmatmul.mubr.bf16.gmra.mxu0 %v8046
    %v8082 = vpop.f32.mrf.mxu0
    %v8083 = vadd.f32 %v8019, %v8082
    %v8084 = vpop.f32.mrf.mxu0
    %v8085 = vpop.f32.mrf.mxu0
    %v8086 = vpop.f32.mrf.mxu0
    %8087 = vdwg.mxu0
    %v8088 = vld [vmem:[#allocation21] sm:$0xf]
    %v8089 = vld [vmem:[#allocation21 + $0x4] sm:$0xf]
    %v8090 = vld [vmem:[#allocation21 + $0x8] sm:$0xf]
    %v8091 = vld [vmem:[#allocation21 + $0xc] sm:$0xf]
    %v8096 = vunpack.c.l.b16 %v8088
    %v8097 = vunpack.c.l.b16 %v8089
    %v8098 = vunpack.c.l.b16 %v8090
    %v8099 = vunpack.c.l.b16 %v8091
    %v8100 = vpack.c.b16 %v8097, %v8096
    %v8101 = vpack.c.b16 %v8099, %v8098
    %v8105 = vsel %vm7724, 0, 0
    %8107 = vmatprep.subr.bf16.mxu0 0
    %8108 = vmatpush1.bf16.msra.mxu0 0
    %8109 = vmatprep.subr.bf16.mxu0 0
    %8110 = vmatpush1.bf16.msra.mxu0 0
    %8111 = vmatprep.subr.bf16.mxu0 0
    %8112 = vmatpush1.bf16.msra.mxu0 0
    %8113 = vmatprep.subr.bf16.mxu0 0
    %8114 = vmatpush1.bf16.msra.mxu0 0
    %8115 = vmatprep.subr.bf16.mxu0 0
    %8116 = vmatpush1.bf16.msra.mxu0 0
    %8117 = vmatprep.subr.bf16.mxu0 0
    %8118 = vmatpush1.bf16.msra.mxu0 0
    %8119 = vmatprep.subr.bf16.mxu0 0
    %8120 = vmatpush1.bf16.msra.mxu0 %v8101
    %8121 = vmatprep.subr.bf16.mxu0 0
    %8122 = vmatpush1.bf16.msra.mxu0 %v8100
    %8123 = vmatprep.subr.bf16.mxu0 0
    %8124 = vmatpush2.bf16.msra.mxu0 0
    %8125 = vmatprep.subr.bf16.mxu0 0
    %8126 = vmatpush2.bf16.msra.mxu0 0
    %8127 = vmatprep.subr.bf16.mxu0 0
    %8128 = vmatpush2.bf16.msra.mxu0 0
    %8129 = vmatprep.subr.bf16.mxu0 0
    %8130 = vmatpush2.bf16.msra.mxu0 0
    %8131 = vmatprep.subr.bf16.mxu0 0
    %8132 = vmatpush2.bf16.msra.mxu0 0
    %8133 = vmatprep.subr.bf16.mxu0 0
    %8134 = vmatpush2.bf16.msra.mxu0 0
    %8135 = vmatprep.subr.bf16.mxu0 0
    %8136 = vmatpush2.bf16.msra.mxu0 0
    %8137 = vmatprep.subr.bf16.mxu0 0
    %8138 = vmatpush2.bf16.msra.mxu0 0
    %8139 = vmatprep.mubr.bf16.mxu0 0
    %8140 = vmatmul.mubr.bf16.gmra.mxu0 %v8105
    %v8141 = vpop.f32.mrf.mxu0
    %v8142 = vadd.f32 0.0, %v8141
    %v8143 = vpop.f32.mrf.mxu0
    %v8144 = vpop.f32.mrf.mxu0
    %v8145 = vpop.f32.mrf.mxu0
    %8146 = vdwg.mxu0
    %v8147 = vadd.f32 %v8083, %v8142
    %v8148 = vxor.u32 %v8147, 2147483648
    %v8149 = vmul.f32 %v8148, 1.442695
    %v8150 = vpow.pop %v8149
    %v8151 = vadd.f32 %v8150, 1.0
    %v8152 = vrcp.pop %v8151
    %v8153 = vmul.f32 1.0, %v8152
    %v8154 = vtanh.pop %v8147
    %v8155 = vmul.f32 %v8153, 0.0
    %8157 = vrot.lane.b32.xlu0 %v8154, 64
    %v8158 = vpop.permute.xlu0 %8157
    %v8160 = vmul.f32 %v8153, %v8158
    %8162 = vrot.lane.b32.xlu0 %v8160, 32
    %v8163 = vpop.permute.xlu0 %8162
    %v8165 = vadd.f32 %v8155, %v8163
    %v8166 = vtanh.pop %v8165
    %8168 = vrot.lane.b32.xlu0 %v8166, 64
    %v8169 = vpop.permute.xlu0 %8168
    %v8171 = vmul.f32 %v8153, %v8169
    %v8172 = vpack.c.bf16 %v8171, %v8171
    %8174 = vrot.lane.b32.xlu0 %v8172, 32
    %v8175 = vpop.permute.xlu0 %8174
    %v8177 = vsel %vm7724, %v8175, 0
    %8179 = vmatprep.subr.bf16.mxu0 0
    %8180 = vmatpush1.bf16.msra.mxu0 0
    %8181 = vmatprep.subr.bf16.mxu0 0
    %8182 = vmatpush1.bf16.msra.mxu0 0
    %8183 = vmatprep.subr.bf16.mxu0 0
    %8184 = vmatpush1.bf16.msra.mxu0 0
    %8185 = vmatprep.subr.bf16.mxu0 0
    %8186 = vmatpush1.bf16.msra.mxu0 0
    %8187 = vmatprep.subr.bf16.mxu0 0
    %8188 = vmatpush1.bf16.msra.mxu0 0
    %8189 = vmatprep.subr.bf16.mxu0 0
    %8190 = vmatpush1.bf16.msra.mxu0 0
    %8191 = vmatprep.subr.bf16.mxu0 0
    %8192 = vmatpush1.bf16.msra.mxu0 %v8101
    %8193 = vmatprep.subr.bf16.mxu0 0
    %8194 = vmatpush1.bf16.msra.mxu0 %v8100
    %8195 = vmatprep.subr.bf16.mxu0 0
    %8196 = vmatpush2.bf16.msra.mxu0 0
    %8197 = vmatprep.subr.bf16.mxu0 0
    %8198 = vmatpush2.bf16.msra.mxu0 0
    %8199 = vmatprep.subr.bf16.mxu0 0
    %8200 = vmatpush2.bf16.msra.mxu0 0
    %8201 = vmatprep.subr.bf16.mxu0 0
    %8202 = vmatpush2.bf16.msra.mxu0 0
    %8203 = vmatprep.subr.bf16.mxu0 0
    %8204 = vmatpush2.bf16.msra.mxu0 0
    %8205 = vmatprep.subr.bf16.mxu0 0
    %8206 = vmatpush2.bf16.msra.mxu0 0
    %8207 = vmatprep.subr.bf16.mxu0 0
    %8208 = vmatpush2.bf16.msra.mxu0 0
    %8209 = vmatprep.subr.bf16.mxu0 0
    %8210 = vmatpush2.bf16.msra.mxu0 0
    %8211 = vmatprep.mubr.bf16.mxu0 0
    %8212 = vmatmul.mubr.bf16.gmra.mxu0 %v8177
    %v8213 = vpop.f32.mrf.mxu0
    %v8214 = vadd.f32 0.0, %v8213
    %v8215 = vpop.f32.mrf.mxu0
    %v8216 = vpop.f32.mrf.mxu0
    %v8217 = vpop.f32.mrf.mxu0
    %8218 = vdwg.mxu0
    %v8220 = vrot.slane %v8214, 7
    %v8222 = vadd.f32 %v8083, %v8220
    %v8223 = vxor.u32 %v8222, 2147483648
    %v8224 = vmul.f32 %v8223, 1.442695
    %v8225 = vpow.pop %v8224
    %v8226 = vadd.f32 %v8225, 1.0
    %v8227 = vrcp.pop %v8226
    %v8228 = vmul.f32 1.0, %v8227
    %v8229 = vtanh.pop %v8222
    %v8231 = vrot.slane %v8165, 7
    %v8233 = vmul.f32 %v8228, %v8231
    %8235 = vrot.lane.b32.xlu0 %v8229, 64
    %v8236 = vpop.permute.xlu0 %8235
    %v8238 = vmul.f32 %v8228, %v8236
    %8240 = vrot.lane.b32.xlu0 %v8238, 32
    %v8241 = vpop.permute.xlu0 %8240
    %v8243 = vadd.f32 %v8233, %v8241
    %v8244 = vtanh.pop %v8243
    %8246 = vrot.lane.b32.xlu0 %v8244, 64
    %v8247 = vpop.permute.xlu0 %8246
    %v8249 = vmul.f32 %v8228, %v8247
    %v8250 = vpack.c.bf16 %v8249, %v8249
    %v8252 = vshrl.u32 %v8250, 16
    %8254 = vrot.lane.b32.xlu0 %v8252, 32
    %v8255 = vpop.permute.xlu0 %8254
    %v8257 = vsel %vm7724, %v8255, 0
    %8259 = vmatprep.subr.bf16.mxu0 0
    %8260 = vmatpush1.bf16.msra.mxu0 0
    %8261 = vmatprep.subr.bf16.mxu0 0
    %8262 = vmatpush1.bf16.msra.mxu0 0
    %8263 = vmatprep.subr.bf16.mxu0 0
    %8264 = vmatpush1.bf16.msra.mxu0 0
    %8265 = vmatprep.subr.bf16.mxu0 0
    %8266 = vmatpush1.bf16.msra.mxu0 0
    %8267 = vmatprep.subr.bf16.mxu0 0
    %8268 = vmatpush1.bf16.msra.mxu0 0
    %8269 = vmatprep.subr.bf16.mxu0 0
    %8270 = vmatpush1.bf16.msra.mxu0 0
    %8271 = vmatprep.subr.bf16.mxu0 0
    %8272 = vmatpush1.bf16.msra.mxu0 %v8101
    %8273 = vmatprep.subr.bf16.mxu0 0
    %8274 = vmatpush1.bf16.msra.mxu0 %v8100
    %8275 = vmatprep.subr.bf16.mxu0 0
    %8276 = vmatpush2.bf16.msra.mxu0 0
    %8277 = vmatprep.subr.bf16.mxu0 0
    %8278 = vmatpush2.bf16.msra.mxu0 0
    %8279 = vmatprep.subr.bf16.mxu0 0
    %8280 = vmatpush2.bf16.msra.mxu0 0
    %8281 = vmatprep.subr.bf16.mxu0 0
    %8282 = vmatpush2.bf16.msra.mxu0 0
    %8283 = vmatprep.subr.bf16.mxu0 0
    %8284 = vmatpush2.bf16.msra.mxu0 0
    %8285 = vmatprep.subr.bf16.mxu0 0
    %8286 = vmatpush2.bf16.msra.mxu0 0
    %8287 = vmatprep.subr.bf16.mxu0 0
    %8288 = vmatpush2.bf16.msra.mxu0 0
    %8289 = vmatprep.subr.bf16.mxu0 0
    %8290 = vmatpush2.bf16.msra.mxu0 0
    %8291 = vmatprep.mubr.bf16.mxu0 0
    %8292 = vmatmul.mubr.bf16.gmra.mxu0 %v8257
    %v8293 = vpop.f32.mrf.mxu0
    %v8294 = vadd.f32 0.0, %v8293
    %v8295 = vpop.f32.mrf.mxu0
    %v8296 = vpop.f32.mrf.mxu0
    %v8297 = vpop.f32.mrf.mxu0
    %8298 = vdwg.mxu0
    %v8300 = vrot.slane %v8294, 6
    %v8302 = vadd.f32 %v8083, %v8300
    %v8303 = vxor.u32 %v8302, 2147483648
    %v8304 = vmul.f32 %v8303, 1.442695
    %v8305 = vpow.pop %v8304
    %v8306 = vadd.f32 %v8305, 1.0
    %v8307 = vrcp.pop %v8306
    %v8308 = vmul.f32 1.0, %v8307
    %v8309 = vtanh.pop %v8302
    %v8311 = vrot.slane %v8243, 7
    %v8313 = vmul.f32 %v8308, %v8311
    %8315 = vrot.lane.b32.xlu0 %v8309, 64
    %v8316 = vpop.permute.xlu0 %8315
    %v8318 = vmul.f32 %v8308, %v8316
    %8320 = vrot.lane.b32.xlu0 %v8318, 32
    %v8321 = vpop.permute.xlu0 %8320
    %v8323 = vadd.f32 %v8313, %v8321
    %v8324 = vtanh.pop %v8323
    %8326 = vrot.lane.b32.xlu0 %v8324, 64
    %v8327 = vpop.permute.xlu0 %8326
    %v8329 = vmul.f32 %v8308, %v8327
    %v8330 = vpack.c.bf16 %v8329, %v8329
    %v8332 = vrot.slane %v8330, 1
    %8333 = vrot.lane.b32.xlu0 %v8332, 32
    %v8334 = vpop.permute.xlu0 %8333
    %v8336 = vsel %vm7724, %v8334, 0
    %8338 = vmatprep.subr.bf16.mxu0 0
    %8339 = vmatpush1.bf16.msra.mxu0 0
    %8340 = vmatprep.subr.bf16.mxu0 0
    %8341 = vmatpush1.bf16.msra.mxu0 0
    %8342 = vmatprep.subr.bf16.mxu0 0
    %8343 = vmatpush1.bf16.msra.mxu0 0
    %8344 = vmatprep.subr.bf16.mxu0 0
    %8345 = vmatpush1.bf16.msra.mxu0 0
    %8346 = vmatprep.subr.bf16.mxu0 0
    %8347 = vmatpush1.bf16.msra.mxu0 0
    %8348 = vmatprep.subr.bf16.mxu0 0
    %8349 = vmatpush1.bf16.msra.mxu0 0
    %8350 = vmatprep.subr.bf16.mxu0 0
    %8351 = vmatpush1.bf16.msra.mxu0 %v8101
    %8352 = vmatprep.subr.bf16.mxu0 0
    %8353 = vmatpush1.bf16.msra.mxu0 %v8100
    %8354 = vmatprep.subr.bf16.mxu0 0
    %8355 = vmatpush2.bf16.msra.mxu0 0
    %8356 = vmatprep.subr.bf16.mxu0 0
    %8357 = vmatpush2.bf16.msra.mxu0 0
    %8358 = vmatprep.subr.bf16.mxu0 0
    %8359 = vmatpush2.bf16.msra.mxu0 0
    %8360 = vmatprep.subr.bf16.mxu0 0
    %8361 = vmatpush2.bf16.msra.mxu0 0
    %8362 = vmatprep.subr.bf16.mxu0 0
    %8363 = vmatpush2.bf16.msra.mxu0 0
    %8364 = vmatprep.subr.bf16.mxu0 0
    %8365 = vmatpush2.bf16.msra.mxu0 0
    %8366 = vmatprep.subr.bf16.mxu0 0
    %8367 = vmatpush2.bf16.msra.mxu0 0
    %8368 = vmatprep.subr.bf16.mxu0 0
    %8369 = vmatpush2.bf16.msra.mxu0 0
    %8370 = vmatprep.mubr.bf16.mxu0 0
    %8371 = vmatmul.mubr.bf16.gmra.mxu0 %v8336
    %v8372 = vpop.f32.mrf.mxu0
    %v8373 = vadd.f32 0.0, %v8372
    %v8374 = vpop.f32.mrf.mxu0
    %v8375 = vpop.f32.mrf.mxu0
    %v8376 = vpop.f32.mrf.mxu0
    %8377 = vdwg.mxu0
    %v8379 = vrot.slane %v8373, 5
    %v8381 = vadd.f32 %v8083, %v8379
    %v8382 = vxor.u32 %v8381, 2147483648
    %v8383 = vmul.f32 %v8382, 1.442695
    %v8384 = vpow.pop %v8383
    %v8385 = vadd.f32 %v8384, 1.0
    %v8386 = vrcp.pop %v8385
    %v8387 = vmul.f32 1.0, %v8386
    %v8388 = vtanh.pop %v8381
    %v8390 = vrot.slane %v8323, 7
    %v8392 = vmul.f32 %v8387, %v8390
    %8394 = vrot.lane.b32.xlu0 %v8388, 64
    %v8395 = vpop.permute.xlu0 %8394
    %v8397 = vmul.f32 %v8387, %v8395
    %8399 = vrot.lane.b32.xlu0 %v8397, 32
    %v8400 = vpop.permute.xlu0 %8399
    %v8402 = vadd.f32 %v8392, %v8400
    %v8403 = vtanh.pop %v8402
    %8405 = vrot.lane.b32.xlu0 %v8403, 64
    %v8406 = vpop.permute.xlu0 %8405
    %v8408 = vmul.f32 %v8387, %v8406
    %v8409 = vpack.c.bf16 %v8408, %v8408
    %v8411 = vshrl.u32 %v8409, 16
    %v8413 = vrot.slane %v8411, 1
    %8414 = vrot.lane.b32.xlu0 %v8413, 32
    %v8415 = vpop.permute.xlu0 %8414
    %v8417 = vsel %vm7724, %v8415, 0
    %8419 = vmatprep.subr.bf16.mxu0 0
    %8420 = vmatpush1.bf16.msra.mxu0 0
    %8421 = vmatprep.subr.bf16.mxu0 0
    %8422 = vmatpush1.bf16.msra.mxu0 0
    %8423 = vmatprep.subr.bf16.mxu0 0
    %8424 = vmatpush1.bf16.msra.mxu0 0
    %8425 = vmatprep.subr.bf16.mxu0 0
    %8426 = vmatpush1.bf16.msra.mxu0 0
    %8427 = vmatprep.subr.bf16.mxu0 0
    %8428 = vmatpush1.bf16.msra.mxu0 0
    %8429 = vmatprep.subr.bf16.mxu0 0
    %8430 = vmatpush1.bf16.msra.mxu0 0
    %8431 = vmatprep.subr.bf16.mxu0 0
    %8432 = vmatpush1.bf16.msra.mxu0 %v8101
    %8433 = vmatprep.subr.bf16.mxu0 0
    %8434 = vmatpush1.bf16.msra.mxu0 %v8100
    %8435 = vmatprep.subr.bf16.mxu0 0
    %8436 = vmatpush2.bf16.msra.mxu0 0
    %8437 = vmatprep.subr.bf16.mxu0 0
    %8438 = vmatpush2.bf16.msra.mxu0 0
    %8439 = vmatprep.subr.bf16.mxu0 0
    %8440 = vmatpush2.bf16.msra.mxu0 0
    %8441 = vmatprep.subr.bf16.mxu0 0
    %8442 = vmatpush2.bf16.msra.mxu0 0
    %8443 = vmatprep.subr.bf16.mxu0 0
    %8444 = vmatpush2.bf16.msra.mxu0 0
    %8445 = vmatprep.subr.bf16.mxu0 0
    %8446 = vmatpush2.bf16.msra.mxu0 0
    %8447 = vmatprep.subr.bf16.mxu0 0
    %8448 = vmatpush2.bf16.msra.mxu0 0
    %8449 = vmatprep.subr.bf16.mxu0 0
    %8450 = vmatpush2.bf16.msra.mxu0 0
    %8451 = vmatprep.mubr.bf16.mxu0 0
    %8452 = vmatmul.mubr.bf16.gmra.mxu0 %v8417
    %v8453 = vpop.f32.mrf.mxu0
    %v8454 = vadd.f32 0.0, %v8453
    %v8455 = vpop.f32.mrf.mxu0
    %v8456 = vpop.f32.mrf.mxu0
    %v8457 = vpop.f32.mrf.mxu0
    %8458 = vdwg.mxu0
    %v8460 = vrot.slane %v8454, 4
    %v8462 = vadd.f32 %v8083, %v8460
    %v8463 = vxor.u32 %v8462, 2147483648
    %v8464 = vmul.f32 %v8463, 1.442695
    %v8465 = vpow.pop %v8464
    %v8466 = vadd.f32 %v8465, 1.0
    %v8467 = vrcp.pop %v8466
    %v8468 = vmul.f32 1.0, %v8467
    %v8469 = vtanh.pop %v8462
    %v8471 = vrot.slane %v8402, 7
    %v8473 = vmul.f32 %v8468, %v8471
    %8475 = vrot.lane.b32.xlu0 %v8469, 64
    %v8476 = vpop.permute.xlu0 %8475
    %v8478 = vmul.f32 %v8468, %v8476
    %8480 = vrot.lane.b32.xlu0 %v8478, 32
    %v8481 = vpop.permute.xlu0 %8480
    %v8483 = vadd.f32 %v8473, %v8481
    %v8484 = vtanh.pop %v8483
    %8486 = vrot.lane.b32.xlu0 %v8484, 64
    %v8487 = vpop.permute.xlu0 %8486
    %v8489 = vmul.f32 %v8468, %v8487
    %v8490 = vpack.c.bf16 %v8489, %v8489
    %v8492 = vrot.slane %v8490, 2
    %8493 = vrot.lane.b32.xlu0 %v8492, 32
    %v8494 = vpop.permute.xlu0 %8493
    %v8496 = vsel %vm7724, %v8494, 0
    %8498 = vmatprep.subr.bf16.mxu0 0
    %8499 = vmatpush1.bf16.msra.mxu0 0
    %8500 = vmatprep.subr.bf16.mxu0 0
    %8501 = vmatpush1.bf16.msra.mxu0 0
    %8502 = vmatprep.subr.bf16.mxu0 0
    %8503 = vmatpush1.bf16.msra.mxu0 0
    %8504 = vmatprep.subr.bf16.mxu0 0
    %8505 = vmatpush1.bf16.msra.mxu0 0
    %8506 = vmatprep.subr.bf16.mxu0 0
    %8507 = vmatpush1.bf16.msra.mxu0 0
    %8508 = vmatprep.subr.bf16.mxu0 0
    %8509 = vmatpush1.bf16.msra.mxu0 0
    %8510 = vmatprep.subr.bf16.mxu0 0
    %8511 = vmatpush1.bf16.msra.mxu0 %v8101
    %8512 = vmatprep.subr.bf16.mxu0 0
    %8513 = vmatpush1.bf16.msra.mxu0 %v8100
    %8514 = vmatprep.subr.bf16.mxu0 0
    %8515 = vmatpush2.bf16.msra.mxu0 0
    %8516 = vmatprep.subr.bf16.mxu0 0
    %8517 = vmatpush2.bf16.msra.mxu0 0
    %8518 = vmatprep.subr.bf16.mxu0 0
    %8519 = vmatpush2.bf16.msra.mxu0 0
    %8520 = vmatprep.subr.bf16.mxu0 0
    %8521 = vmatpush2.bf16.msra.mxu0 0
    %8522 = vmatprep.subr.bf16.mxu0 0
    %8523 = vmatpush2.bf16.msra.mxu0 0
    %8524 = vmatprep.subr.bf16.mxu0 0
    %8525 = vmatpush2.bf16.msra.mxu0 0
    %8526 = vmatprep.subr.bf16.mxu0 0
    %8527 = vmatpush2.bf16.msra.mxu0 0
    %8528 = vmatprep.subr.bf16.mxu0 0
    %8529 = vmatpush2.bf16.msra.mxu0 0
    %8530 = vmatprep.mubr.bf16.mxu0 0
    %8531 = vmatmul.mubr.bf16.gmra.mxu0 %v8496
    %v8532 = vpop.f32.mrf.mxu0
    %v8533 = vadd.f32 0.0, %v8532
    %v8534 = vpop.f32.mrf.mxu0
    %v8535 = vpop.f32.mrf.mxu0
    %v8536 = vpop.f32.mrf.mxu0
    %8537 = vdwg.mxu0
    %v8539 = vrot.slane %v8533, 3
    %v8541 = vadd.f32 %v8083, %v8539
    %v8542 = vxor.u32 %v8541, 2147483648
    %v8543 = vmul.f32 %v8542, 1.442695
    %v8544 = vpow.pop %v8543
    %v8545 = vadd.f32 %v8544, 1.0
    %v8546 = vrcp.pop %v8545
    %v8547 = vmul.f32 1.0, %v8546
    %v8548 = vtanh.pop %v8541
    %v8550 = vrot.slane %v8483, 7
    %v8552 = vmul.f32 %v8547, %v8550
    %8554 = vrot.lane.b32.xlu0 %v8548, 64
    %v8555 = vpop.permute.xlu0 %8554
    %v8557 = vmul.f32 %v8547, %v8555
    %8559 = vrot.lane.b32.xlu0 %v8557, 32
    %v8560 = vpop.permute.xlu0 %8559
    %v8562 = vadd.f32 %v8552, %v8560
    %v8563 = vtanh.pop %v8562
    %8565 = vrot.lane.b32.xlu0 %v8563, 64
    %v8566 = vpop.permute.xlu0 %8565
    %v8568 = vmul.f32 %v8547, %v8566
    %v8569 = vpack.c.bf16 %v8568, %v8568
    %v8571 = vshrl.u32 %v8569, 16
    %v8573 = vrot.slane %v8571, 2
    %8574 = vrot.lane.b32.xlu0 %v8573, 32
    %v8575 = vpop.permute.xlu0 %8574
    %v8577 = vsel %vm7724, %v8575, 0
    %8579 = vmatprep.subr.bf16.mxu0 0
    %8580 = vmatpush1.bf16.msra.mxu0 0
    %8581 = vmatprep.subr.bf16.mxu0 0
    %8582 = vmatpush1.bf16.msra.mxu0 0
    %8583 = vmatprep.subr.bf16.mxu0 0
    %8584 = vmatpush1.bf16.msra.mxu0 0
    %8585 = vmatprep.subr.bf16.mxu0 0
    %8586 = vmatpush1.bf16.msra.mxu0 0
    %8587 = vmatprep.subr.bf16.mxu0 0
    %8588 = vmatpush1.bf16.msra.mxu0 0
    %8589 = vmatprep.subr.bf16.mxu0 0
    %8590 = vmatpush1.bf16.msra.mxu0 0
    %8591 = vmatprep.subr.bf16.mxu0 0
    %8592 = vmatpush1.bf16.msra.mxu0 %v8101
    %8593 = vmatprep.subr.bf16.mxu0 0
    %8594 = vmatpush1.bf16.msra.mxu0 %v8100
    %8595 = vmatprep.subr.bf16.mxu0 0
    %8596 = vmatpush2.bf16.msra.mxu0 0
    %8597 = vmatprep.subr.bf16.mxu0 0
    %8598 = vmatpush2.bf16.msra.mxu0 0
    %8599 = vmatprep.subr.bf16.mxu0 0
    %8600 = vmatpush2.bf16.msra.mxu0 0
    %8601 = vmatprep.subr.bf16.mxu0 0
    %8602 = vmatpush2.bf16.msra.mxu0 0
    %8603 = vmatprep.subr.bf16.mxu0 0
    %8604 = vmatpush2.bf16.msra.mxu0 0
    %8605 = vmatprep.subr.bf16.mxu0 0
    %8606 = vmatpush2.bf16.msra.mxu0 0
    %8607 = vmatprep.subr.bf16.mxu0 0
    %8608 = vmatpush2.bf16.msra.mxu0 0
    %8609 = vmatprep.subr.bf16.mxu0 0
    %8610 = vmatpush2.bf16.msra.mxu0 0
    %8611 = vmatprep.mubr.bf16.mxu0 0
    %8612 = vmatmul.mubr.bf16.gmra.mxu0 %v8577
    %v8613 = vpop.f32.mrf.mxu0
    %v8614 = vadd.f32 0.0, %v8613
    %v8615 = vpop.f32.mrf.mxu0
    %v8616 = vpop.f32.mrf.mxu0
    %v8617 = vpop.f32.mrf.mxu0
    %8618 = vdwg.mxu0
    %v8620 = vrot.slane %v8614, 2
    %v8622 = vadd.f32 %v8083, %v8620
    %v8623 = vxor.u32 %v8622, 2147483648
    %v8624 = vmul.f32 %v8623, 1.442695
    %v8625 = vpow.pop %v8624
    %v8626 = vadd.f32 %v8625, 1.0
    %v8627 = vrcp.pop %v8626
    %v8628 = vmul.f32 1.0, %v8627
    %v8629 = vtanh.pop %v8622
    %v8631 = vrot.slane %v8562, 7
    %v8633 = vmul.f32 %v8628, %v8631
    %8635 = vrot.lane.b32.xlu0 %v8629, 64
    %v8636 = vpop.permute.xlu0 %8635
    %v8638 = vmul.f32 %v8628, %v8636
    %8640 = vrot.lane.b32.xlu0 %v8638, 32
    %v8641 = vpop.permute.xlu0 %8640
    %v8643 = vadd.f32 %v8633, %v8641
    %v8644 = vtanh.pop %v8643
    %8646 = vrot.lane.b32.xlu0 %v8644, 64
    %v8647 = vpop.permute.xlu0 %8646
    %v8649 = vmul.f32 %v8628, %v8647
    %v8650 = vpack.c.bf16 %v8649, %v8649
    %v8652 = vrot.slane %v8650, 3
    %8653 = vrot.lane.b32.xlu0 %v8652, 32
    %v8654 = vpop.permute.xlu0 %8653
    %v8656 = vsel %vm7724, %v8654, 0
    %8658 = vmatprep.subr.bf16.mxu0 0
    %8659 = vmatpush1.bf16.msra.mxu0 0
    %8660 = vmatprep.subr.bf16.mxu0 0
    %8661 = vmatpush1.bf16.msra.mxu0 0
    %8662 = vmatprep.subr.bf16.mxu0 0
    %8663 = vmatpush1.bf16.msra.mxu0 0
    %8664 = vmatprep.subr.bf16.mxu0 0
    %8665 = vmatpush1.bf16.msra.mxu0 0
    %8666 = vmatprep.subr.bf16.mxu0 0
    %8667 = vmatpush1.bf16.msra.mxu0 0
    %8668 = vmatprep.subr.bf16.mxu0 0
    %8669 = vmatpush1.bf16.msra.mxu0 0
    %8670 = vmatprep.subr.bf16.mxu0 0
    %8671 = vmatpush1.bf16.msra.mxu0 %v8101
    %8672 = vmatprep.subr.bf16.mxu0 0
    %8673 = vmatpush1.bf16.msra.mxu0 %v8100
    %8674 = vmatprep.subr.bf16.mxu0 0
    %8675 = vmatpush2.bf16.msra.mxu0 0
    %8676 = vmatprep.subr.bf16.mxu0 0
    %8677 = vmatpush2.bf16.msra.mxu0 0
    %8678 = vmatprep.subr.bf16.mxu0 0
    %8679 = vmatpush2.bf16.msra.mxu0 0
    %8680 = vmatprep.subr.bf16.mxu0 0
    %8681 = vmatpush2.bf16.msra.mxu0 0
    %8682 = vmatprep.subr.bf16.mxu0 0
    %8683 = vmatpush2.bf16.msra.mxu0 0
    %8684 = vmatprep.subr.bf16.mxu0 0
    %8685 = vmatpush2.bf16.msra.mxu0 0
    %8686 = vmatprep.subr.bf16.mxu0 0
    %8687 = vmatpush2.bf16.msra.mxu0 0
    %8688 = vmatprep.subr.bf16.mxu0 0
    %8689 = vmatpush2.bf16.msra.mxu0 0
    %8690 = vmatprep.mubr.bf16.mxu0 0
    %8691 = vmatmul.mubr.bf16.gmra.mxu0 %v8656
    %v8692 = vpop.f32.mrf.mxu0
    %v8693 = vadd.f32 0.0, %v8692
    %v8694 = vpop.f32.mrf.mxu0
    %v8695 = vpop.f32.mrf.mxu0
    %v8696 = vpop.f32.mrf.mxu0
    %8697 = vdwg.mxu0
    %v8699 = vrot.slane %v8693, 1
    %v8701 = vadd.f32 %v8083, %v8699
    %v8702 = vxor.u32 %v8701, 2147483648
    %v8703 = vmul.f32 %v8702, 1.442695
    %v8704 = vpow.pop %v8703
    %v8705 = vadd.f32 %v8704, 1.0
    %v8706 = vrcp.pop %v8705
    %v8707 = vmul.f32 1.0, %v8706
    %v8708 = vtanh.pop %v8701
    %v8710 = vrot.slane %v8643, 7
    %v8712 = vmul.f32 %v8707, %v8710
    %8714 = vrot.lane.b32.xlu0 %v8708, 64
    %v8715 = vpop.permute.xlu0 %8714
    %v8717 = vmul.f32 %v8707, %v8715
    %8719 = vrot.lane.b32.xlu0 %v8717, 32
    %v8720 = vpop.permute.xlu0 %8719
    %v8722 = vadd.f32 %v8712, %v8720
    %v8723 = vtanh.pop %v8722
    %8725 = vrot.lane.b32.xlu0 %v8723, 64
    %v8726 = vpop.permute.xlu0 %8725
    %v8728 = vmul.f32 %v8707, %v8726
    %vm8729 = vcmask 1040384
    %v8730 = vsel %vm8729, %v8171, %v8249
    %vm8731 = vcmask 1041408
    %v8732 = vsel %vm8731, %v8730, %v8329
    %vm8733 = vcmask 1042432
    %v8734 = vsel %vm8733, %v8732, %v8408
    %vm8735 = vcmask 1043456
    %v8736 = vsel %vm8735, %v8734, %v8489
    %vm8737 = vcmask 1044480
    %v8738 = vsel %vm8737, %v8736, %v8568
    %vm8739 = vcmask 1045504
    %v8740 = vsel %vm8739, %v8738, %v8649
    %vm8741 = vcmask 1046528
    %v8742 = vsel %vm8741, %v8740, %v8728
    %v8743 = vld [vmem:[%s24] sm:$0xff]
    %v8744 = vld [vmem:[%s24 + $0x8] sm:$0xff]
    %v8745 = vld [vmem:[%s24 + $0x10] sm:$0xff]
    %v8746 = vld [vmem:[%s24 + $0x18] sm:$0xff]
    %v8747 = vld [vmem:[%s25] sm:$0x1]
    %v8749 = vlaneseq
    %v8750 = vshrl.u32 %v8749, 7
    %v8751 = vsub.s32 0, %v8750
    %v8752 = vrot.slane %v8747, %v8751
    %8755 = vrot.lane.b32.xlu0 %v8742, 32
    %v8756 = vpop.permute.xlu0 %8755
    %v8757 = vsel %vm7724, %v8756, 0
    %8759 = vmatprep.subr.mxu0 0.0
    %8760 = vmatpush1.msra.mxu0 0.0
    %8761 = vmatprep.subr.mxu0 0.0
    %8762 = vmatpush1.msra.mxu0 0.0
    %8763 = vmatprep.subr.mxu0 0.0
    %8764 = vmatpush1.msra.mxu0 0.0
    %8765 = vmatprep.subr.mxu0 0.0
    %8766 = vmatpush1.msra.mxu0 0.0
    %8767 = vmatprep.subr.mxu0 0.0
    %8768 = vmatpush1.msra.mxu0 0.0
    %8769 = vmatprep.subr.mxu0 0.0
    %8770 = vmatpush1.msra.mxu0 0.0
    %8771 = vmatprep.subr.mxu0 0.0
    %8772 = vmatpush1.msra.mxu0 0.0
    %8773 = vmatprep.subr.mxu0 0.0
    %8774 = vmatpush1.msra.mxu0 0.0
    %8775 = vmatprep.subr.mxu0 0.0
    %8776 = vmatpush1.msra.mxu0 0.0
    %8777 = vmatprep.subr.mxu0 0.0
    %8778 = vmatpush1.msra.mxu0 0.0
    %8779 = vmatprep.subr.mxu0 0.0
    %8780 = vmatpush1.msra.mxu0 0.0
    %8781 = vmatprep.subr.mxu0 0.0
    %8782 = vmatpush1.msra.mxu0 0.0
    %8783 = vmatprep.subr.mxu0 0.0
    %8784 = vmatpush1.msra.mxu0 %v8746
    %8785 = vmatprep.subr.mxu0 0.0
    %8786 = vmatpush1.msra.mxu0 %v8745
    %8787 = vmatprep.subr.mxu0 0.0
    %8788 = vmatpush1.msra.mxu0 %v8744
    %8789 = vmatprep.subr.mxu0 0.0
    %8790 = vmatpush1.msra.mxu0 %v8743
    %8791 = vmatprep.subr.mxu0 0.0
    %8792 = vmatpush2.msra.mxu0 0.0
    %8793 = vmatprep.subr.mxu0 0.0
    %8794 = vmatpush2.msra.mxu0 0.0
    %8795 = vmatprep.subr.mxu0 0.0
    %8796 = vmatpush2.msra.mxu0 0.0
    %8797 = vmatprep.subr.mxu0 0.0
    %8798 = vmatpush2.msra.mxu0 0.0
    %8799 = vmatprep.subr.mxu0 0.0
    %8800 = vmatpush2.msra.mxu0 0.0
    %8801 = vmatprep.subr.mxu0 0.0
    %8802 = vmatpush2.msra.mxu0 0.0
    %8803 = vmatprep.subr.mxu0 0.0
    %8804 = vmatpush2.msra.mxu0 0.0
    %8805 = vmatprep.subr.mxu0 0.0
    %8806 = vmatpush2.msra.mxu0 0.0
    %8807 = vmatprep.subr.mxu0 0.0
    %8808 = vmatpush2.msra.mxu0 0.0
    %8809 = vmatprep.subr.mxu0 0.0
    %8810 = vmatpush2.msra.mxu0 0.0
    %8811 = vmatprep.subr.mxu0 0.0
    %8812 = vmatpush2.msra.mxu0 0.0
    %8813 = vmatprep.subr.mxu0 0.0
    %8814 = vmatpush2.msra.mxu0 0.0
    %8815 = vmatprep.subr.mxu0 0.0
    %8816 = vmatpush2.msra.mxu0 0.0
    %8817 = vmatprep.subr.mxu0 0.0
    %8818 = vmatpush2.msra.mxu0 0.0
    %8819 = vmatprep.subr.mxu0 0.0
    %8820 = vmatpush2.msra.mxu0 0.0
    %8821 = vmatprep.subr.mxu0 0.0
    %8822 = vmatpush2.msra.mxu0 0.0
    %8823 = vmatprep.mubr.f32.mxu0 0.0
    %8824 = vmatmul.mubr.f32.gmra.mxu0 %v8757
    %v8825 = vpop.f32.mrf.mxu0
    %v8826 = vadd.f32 %v8752, %v8825
    %v8827 = vpop.f32.mrf.mxu0
    %8828 = vdwg.mxu0
    %vm8829 = vcmask 15360
    %8830 = vst.msk [vmem:[%s26] sm:$0xff] %vm8829, %v8826
    // Predicated region
    $region158: #{tpu_custom_call.1} parent=1 // pred_check
      _
    $region159: #{tpu_custom_call.1} parent=1 // pred_check_branch
      %8832 = sbr.rel (0) target = $region161
    $region160: #{tpu_custom_call.1} parent=1 // pred_region
      _
    $region161: #{tpu_custom_call.1} parent=1 // pred_fallthru
      _
    // Predicated region
    $region162: #{tpu_custom_call.1} parent=1 // pred_check
      _
    $region163: #{tpu_custom_call.1} parent=1 // pred_check_branch
      %8834 = sbr.rel (0) target = $region165
    $region164: #{tpu_custom_call.1} parent=1 // pred_region
      _
    $region165: #{tpu_custom_call.1} parent=1 // pred_fallthru
      _
    %8835 = vsyncpa [#allocation3], 1
    %8836 = vsyncpa [#allocation5], 1
    %8837 = vsyncpa [#allocation8], 1
    %8838 = vsyncpa [#allocation11], 1
    %8839 = vsyncpa [#allocation14], 1
    %8840 = vsyncpa [#allocation17], 1
    %8841 = vsyncpa [#allocation20], 1

</llo_original>
